<compile_context>
chip_gen: v7x
topology: tpu7x:2x2x1
jax: 0.10.0
libtpu: 0.0.40
codegen_flags: <defaults>
</compile_context>

<pallas_src>
import functools

import jax
import jax.numpy as jnp
import numpy as np
from jax import lax
from jax.experimental import pallas as pl
from jax.experimental.pallas import tpu as pltpu

NEG_SLOPE = 0.01   # nn.LeakyReLU default
BN_EPS = 1e-5      # nn.BatchNorm default


# ----------------------------- in-kernel helpers ------------------------------

def _bn_leaky_rows(y, gamma, beta):
    """Training-mode BatchNorm over rows (biased var, one pass) + LeakyReLU.

    y: (M, C) f32; gamma/beta: (1, C) f32.
    """
    inv_m = 1.0 / y.shape[0]
    s1 = jnp.sum(y, axis=0, keepdims=True)
    s2 = jnp.sum(y * y, axis=0, keepdims=True)
    mean = s1 * inv_m
    var = s2 * inv_m - mean * mean          # E[x^2] - E[x]^2, f32
    z = (y - mean) * lax.rsqrt(var + BN_EPS) * gamma + beta
    return jnp.where(z >= 0, z, NEG_SLOPE * z)


def _pad_hw(x):
    """Zero-pad H and W by 1 on each side, built with in-kernel concatenates."""
    n, h, w, c = x.shape
    zr = jnp.zeros((n, 1, w, c), x.dtype)
    x = jnp.concatenate([zr, x, zr], axis=1)
    zc = jnp.zeros((n, h + 2, 1, c), x.dtype)
    return jnp.concatenate([zc, x, zc], axis=2)


def _conv3x3_bn_leaky(x, w_flat_bf16, gamma, beta):
    """3x3 'same' conv as one K=9*Ci im2col matmul (bf16 operands, f32 acc),
    fused with BatchNorm2d(train) + LeakyReLU.

    x: (N, H, W, Ci) f32;  w_flat_bf16: (9*Ci, Co) bf16, taps flattened (ky,kx,ci).
    """
    n, h, w, ci = x.shape
    xp = _pad_hw(x)                                              # (N,H+2,W+2,Ci)
    cols = [xp[:, dy:dy + h, dx:dx + w, :]
            for dy in range(3) for dx in range(3)]
    patches = jnp.concatenate(cols, axis=-1)                     # (N,H,W,9*Ci)
    patches = patches.reshape(n * h * w, 9 * ci)                 # leading collapse
    y = jnp.dot(patches.astype(jnp.bfloat16), w_flat_bf16,
                preferred_element_type=jnp.float32)              # (N*H*W, Co)
    y = _bn_leaky_rows(y, gamma, beta)
    return y.reshape(n, h, w, -1)


def _maxpool2x2(x):
    """2x2 / stride-2 max pool using only layout-safe value ops."""
    n, h, w, c = x.shape
    ho, wo = h // 2, w // 2
    x5 = x.reshape(n, ho, 2, w, c)                   # split a major dim only
    yh = jnp.maximum(x5[:, :, 0], x5[:, :, 1])       # (N, Ho, W, C)
    cols = [jnp.maximum(yh[:, :, 2 * j:2 * j + 1, :],
                        yh[:, :, 2 * j + 1:2 * j + 2, :])
            for j in range(wo)]
    return jnp.concatenate(cols, axis=2)             # (N, Ho, Wo, C)


# ---------------------------------- kernel -------------------------------------

def _hpc_cnn_kernel(x_ref,
                    w1_ref, g1_ref, b1_ref,
                    w2_ref, g2_ref, b2_ref,
                    w3_ref, g3_ref, b3_ref,
                    w4_ref, g4_ref, b4_ref,
                    wf1_ref, gf1_ref, bf1_ref,
                    wf2_ref, bf2_ref,
                    o_ref):
    """Whole HPC_CNN forward pass in one VMEM-resident kernel."""
    x = x_ref[...]                                   # (N, H, W, 1) f32
    n, h, w, _ = x.shape

    # ---- conv1 (1->32): 9 scalar-weighted shifted adds on the VPU ----
    xp = _pad_hw(x)                                  # (N, H+2, W+2, 1)
    w1 = w1_ref[...]                                 # (9, 32) f32
    co1 = w1.shape[1]
    acc = jnp.zeros((n, h, w, co1), jnp.float32)
    for t in range(9):                               # statically unrolled
        dy, dx = divmod(t, 3)
        patch = xp[:, dy:dy + h, dx:dx + w, :]       # (N, H, W, 1)
        acc = acc + patch * w1[t:t + 1, :].reshape(1, 1, 1, co1)
    y = _bn_leaky_rows(acc.reshape(n * h * w, co1), g1_ref[...], b1_ref[...])
    y = y.reshape(n, h, w, co1)

    # ---- conv2 (32->32) + BN + LeakyReLU, fused 2x2 max pool ----
    y = _conv3x3_bn_leaky(y, w2_ref[...], g2_ref[...], b2_ref[...])
    y = _maxpool2x2(y)                               # (N, H/2, W/2, 32)

    # ---- conv3 (32->64), conv4 (64->64) + BN + LeakyReLU, fused pool ----
    y = _conv3x3_bn_leaky(y, w3_ref[...], g3_ref[...], b3_ref[...])
    y = _conv3x3_bn_leaky(y, w4_ref[...], g4_ref[...], b4_ref[...])
    y = _maxpool2x2(y)                               # (N, H/4, W/4, 64)

    # ---- flatten (h, w, c) order via lane-concat (no layout-hostile reshape) ----
    _, hq, wq, cq = y.shape
    feat = jnp.concatenate([y[:, i, j, :] for i in range(hq) for j in range(wq)],
                           axis=-1)                  # (N, hq*wq*cq)

    # ---- fc1 + BatchNorm1d(train) + LeakyReLU ----
    hft = jnp.dot(feat.astype(jnp.bfloat16), wf1_ref[...],
                  preferred_element_type=jnp.float32)
    hft = _bn_leaky_rows(hft, gf1_ref[...], bf1_ref[...])

    # ---- fc_final + bias + sigmoid ----
    logits = jnp.dot(hft.astype(jnp.bfloat16), wf2_ref[...],
                     preferred_element_type=jnp.float32) + bf2_ref[...]
    o_ref[...] = (1.0 / (1.0 + jnp.exp(-logits))).astype(o_ref.dtype)


# --------------------------------- wrapper --------------------------------------

def _full_spec(shape):
    zeros = (0,) * len(shape)
    return pl.BlockSpec(shape, lambda i: zeros)


def hpc_cnn_forward(params, x_nchw):
    n = x_nchw.shape[0]
    out_features = params["fc_final"]["w"].shape[1]
    x = jnp.transpose(x_nchw, (0, 2, 3, 1))          # NHWC (N, H, W, 1)

    def flat_bf16(w_hwio):                           # (3,3,Ci,Co) -> (9*Ci, Co) bf16
        kh, kw, ci, co = w_hwio.shape
        return w_hwio.reshape(kh * kw * ci, co).astype(jnp.bfloat16)

    p1, p2 = params["conv1"], params["conv2"]
    p3, p4 = params["conv3"], params["conv4"]
    pf1, pf2 = params["fc1"], params["fc_final"]

    operands = (
        x,
        p1["w"].reshape(9, p1["w"].shape[-1]), p1["gamma"], p1["beta"],
        flat_bf16(p2["w"]), p2["gamma"], p2["beta"],
        flat_bf16(p3["w"]), p3["gamma"], p3["beta"],
        flat_bf16(p4["w"]), p4["gamma"], p4["beta"],
        pf1["w"].astype(jnp.bfloat16), pf1["gamma"], pf1["beta"],
        pf2["w"].astype(jnp.bfloat16), pf2["b"],
    )

    return pl.pallas_call(
        _hpc_cnn_kernel,
        out_shape=jax.ShapeDtypeStruct((n, out_features), jnp.float32),
        grid=(1,),
        in_specs=[_full_spec(a.shape) for a in operands],
        out_specs=_full_spec((n, out_features)),
        compiler_params=pltpu.CompilerParams(dimension_semantics=("arbitrary",)),
    )(*operands)


# ---------------------------------- params --------------------------------------

def init_params(key, input_hw, out_features):
    """PyTorch-default-like init (U[-1/sqrt(fan_in), 1/sqrt(fan_in)]).
    Pre-BN biases are omitted: BatchNorm cancels them exactly."""
    h, w = input_hw
    lin_in = 64 * (h // 4) * (w // 4)
    keys = jax.random.split(key, 7)

    def uni(k, shape, fan_in):
        b = 1.0 / np.sqrt(fan_in)
        return jax.random.uniform(k, shape, jnp.float32, -b, b)

    def conv_p(k, ci, co):
        return {"w": uni(k, (3, 3, ci, co), 9 * ci),
                "gamma": jnp.ones((1, co), jnp.float32),
                "beta": jnp.zeros((1, co), jnp.float32)}

    return {
        "conv1": conv_p(keys[0], 1, 32),
        "conv2": conv_p(keys[1], 32, 32),
        "conv3": conv_p(keys[2], 32, 64),
        "conv4": conv_p(keys[3], 64, 64),
        "fc1": {"w": uni(keys[4], (lin_in, 256), lin_in),
                "gamma": jnp.ones((1, 256), jnp.float32),
                "beta": jnp.zeros((1, 256), jnp.float32)},
        "fc_final": {"w": uni(keys[5], (256, out_features), 256),
                     "b": uni(keys[6], (1, out_features), 256)},
    }


# ------------------------ pure-JAX reference (independent) ----------------------

def hpc_cnn_ref(params, x_nchw):
    x = jnp.transpose(x_nchw, (0, 2, 3, 1))

    def bn_leaky(y, gamma, beta, axes):
        g = gamma.reshape((1,) * (y.ndim - 1) + (-1,))
        b = beta.reshape((1,) * (y.ndim - 1) + (-1,))
        mean = jnp.mean(y, axis=axes, keepdims=True)
        var = jnp.mean(jnp.square(y - mean), axis=axes, keepdims=True)
        z = (y - mean) * lax.rsqrt(var + BN_EPS) * g + b
        return jnp.where(z >= 0, z, NEG_SLOPE * z)

    def conv(x, w, use_bf16):
        if use_bf16:
            x = x.astype(jnp.bfloat16)
            w = w.astype(jnp.bfloat16)
        return lax.conv_general_dilated(
            x, w, (1, 1), "SAME",
            dimension_numbers=("NHWC", "HWIO", "NHWC"),
            preferred_element_type=jnp.float32,
            precision=lax.Precision.HIGHEST)

    def pool(x):
        n, h, w, c = x.shape
        return jnp.max(x.reshape(n, h // 2, 2, w // 2, 2, c), axis=(2, 4))

    y = bn_leaky(conv(x, params["conv1"]["w"], False),
                 params["conv1"]["gamma"], params["conv1"]["beta"], (0, 1, 2))
    y = pool(bn_leaky(conv(y, params["conv2"]["w"], True),
                      params["conv2"]["gamma"], params["conv2"]["beta"], (0, 1, 2)))
    y = bn_leaky(conv(y, params["conv3"]["w"], True),
                 params["conv3"]["gamma"], params["conv3"]["beta"], (0, 1, 2))
    y = pool(bn_leaky(conv(y, params["conv4"]["w"], True),
                      params["conv4"]["gamma"], params["conv4"]["beta"], (0, 1, 2)))
    feat = y.reshape(y.shape[0], -1)                 # (h, w, c) order, same as kernel

    pf1, pf2 = params["fc1"], params["fc_final"]
    h = jnp.dot(feat.astype(jnp.bfloat16), pf1["w"].astype(jnp.bfloat16),
                preferred_element_type=jnp.float32)
    h = bn_leaky(h, pf1["gamma"], pf1["beta"], (0,))
    logits = (jnp.dot(h.astype(jnp.bfloat16), pf2["w"].astype(jnp.bfloat16),
                      preferred_element_type=jnp.float32) + pf2["b"])
    return 1.0 / (1.0 + jnp.exp(-logits))


# ----------------------------------- main ---------------------------------------

if __name__ == "__main__":
    key = jax.random.PRNGKey(0)
    batch, H, W, out_features = 2, 16, 16, 8

    kx, kp = jax.random.split(key)
    x = jax.random.normal(kx, (batch, 1, H, W), jnp.float32)
    params = init_params(kp, (H, W), out_features)

    fwd = jax.jit(functools.partial(hpc_cnn_forward, params))
    out = fwd(x)
    jax.block_until_ready(out)

    ref = hpc_cnn_ref(params, x)
    np.testing.assert_allclose(np.asarray(out), np.asarray(ref),
                               rtol=1e-2, atol=1e-2)
    assert out.shape == (batch, out_features)
    print("KERNEL_OK")
</pallas_src>

<mosaic_0001>
module attributes {stable_mosaic.version = 11 : i64} {
  func.func @_hpc_cnn_kernel(%arg0: i32, %arg1: memref<2x16x16x1xf32, #tpu.memory_space<vmem>>, %arg2: memref<9x32xf32, #tpu.memory_space<vmem>>, %arg3: memref<1x32xf32, #tpu.memory_space<vmem>>, %arg4: memref<1x32xf32, #tpu.memory_space<vmem>>, %arg5: memref<288x32xbf16, #tpu.memory_space<vmem>>, %arg6: memref<1x32xf32, #tpu.memory_space<vmem>>, %arg7: memref<1x32xf32, #tpu.memory_space<vmem>>, %arg8: memref<288x64xbf16, #tpu.memory_space<vmem>>, %arg9: memref<1x64xf32, #tpu.memory_space<vmem>>, %arg10: memref<1x64xf32, #tpu.memory_space<vmem>>, %arg11: memref<576x64xbf16, #tpu.memory_space<vmem>>, %arg12: memref<1x64xf32, #tpu.memory_space<vmem>>, %arg13: memref<1x64xf32, #tpu.memory_space<vmem>>, %arg14: memref<1024x256xbf16, #tpu.memory_space<vmem>>, %arg15: memref<1x256xf32, #tpu.memory_space<vmem>>, %arg16: memref<1x256xf32, #tpu.memory_space<vmem>>, %arg17: memref<256x8xbf16, #tpu.memory_space<vmem>>, %arg18: memref<1x8xf32, #tpu.memory_space<vmem>>, %arg19: memref<2x8xf32, #tpu.memory_space<vmem>>) attributes {dimension_semantics = [#tpu.dimension_semantics<arbitrary>], iteration_bounds = array<i64: 1>, scalar_prefetch = 0 : i64, scratch_operands = 0 : i64, tpu.core_type = #tpu.core_type<tc>, window_params = [{pipeline_mode = #tpu.pipeline_mode<synchronous>, transform_indices = @transform_0, window_bounds = array<i64: 2, 16, 16, 1>}, {pipeline_mode = #tpu.pipeline_mode<synchronous>, transform_indices = @transform_1, window_bounds = array<i64: 9, 32>}, {pipeline_mode = #tpu.pipeline_mode<synchronous>, transform_indices = @transform_2, window_bounds = array<i64: 1, 32>}, {pipeline_mode = #tpu.pipeline_mode<synchronous>, transform_indices = @transform_3, window_bounds = array<i64: 1, 32>}, {pipeline_mode = #tpu.pipeline_mode<synchronous>, transform_indices = @transform_4, window_bounds = array<i64: 288, 32>}, {pipeline_mode = #tpu.pipeline_mode<synchronous>, transform_indices = @transform_5, window_bounds = array<i64: 1, 32>}, {pipeline_mode = #tpu.pipeline_mode<synchronous>, transform_indices = @transform_6, window_bounds = array<i64: 1, 32>}, {pipeline_mode = #tpu.pipeline_mode<synchronous>, transform_indices = @transform_7, window_bounds = array<i64: 288, 64>}, {pipeline_mode = #tpu.pipeline_mode<synchronous>, transform_indices = @transform_8, window_bounds = array<i64: 1, 64>}, {pipeline_mode = #tpu.pipeline_mode<synchronous>, transform_indices = @transform_9, window_bounds = array<i64: 1, 64>}, {pipeline_mode = #tpu.pipeline_mode<synchronous>, transform_indices = @transform_10, window_bounds = array<i64: 576, 64>}, {pipeline_mode = #tpu.pipeline_mode<synchronous>, transform_indices = @transform_11, window_bounds = array<i64: 1, 64>}, {pipeline_mode = #tpu.pipeline_mode<synchronous>, transform_indices = @transform_12, window_bounds = array<i64: 1, 64>}, {pipeline_mode = #tpu.pipeline_mode<synchronous>, transform_indices = @transform_13, window_bounds = array<i64: 1024, 256>}, {pipeline_mode = #tpu.pipeline_mode<synchronous>, transform_indices = @transform_14, window_bounds = array<i64: 1, 256>}, {pipeline_mode = #tpu.pipeline_mode<synchronous>, transform_indices = @transform_15, window_bounds = array<i64: 1, 256>}, {pipeline_mode = #tpu.pipeline_mode<synchronous>, transform_indices = @transform_16, window_bounds = array<i64: 256, 8>}, {pipeline_mode = #tpu.pipeline_mode<synchronous>, transform_indices = @transform_17, window_bounds = array<i64: 1, 8>}, {pipeline_mode = #tpu.pipeline_mode<synchronous>, transform_indices = @transform_18, window_bounds = array<i64: 2, 8>}]} {
    %c0 = arith.constant 0 : index
    %c0_0 = arith.constant 0 : index
    %c0_1 = arith.constant 0 : index
    %c0_2 = arith.constant 0 : index
    %0 = vector.load %arg1[%c0, %c0_0, %c0_1, %c0_2] : memref<2x16x16x1xf32, #tpu.memory_space<vmem>>, vector<2x16x16x1xf32>
    %cst = arith.constant 0.000000e+00 : f32
    %1 = vector.broadcast %cst : f32 to vector<2x1x16x1xf32>
    %2 = tpu.concatenate %1, %0, %1 in 1 : vector<2x1x16x1xf32>, vector<2x16x16x1xf32>, vector<2x1x16x1xf32> -> vector<2x18x16x1xf32>
    %cst_3 = arith.constant 0.000000e+00 : f32
    %3 = vector.broadcast %cst_3 : f32 to vector<2x18x1x1xf32>
    %4 = tpu.concatenate %3, %2, %3 in 2 : vector<2x18x1x1xf32>, vector<2x18x16x1xf32>, vector<2x18x1x1xf32> -> vector<2x18x18x1xf32>
    %c0_4 = arith.constant 0 : index
    %c0_5 = arith.constant 0 : index
    %5 = vector.load %arg2[%c0_4, %c0_5] : memref<9x32xf32, #tpu.memory_space<vmem>>, vector<9x32xf32>
    %cst_6 = arith.constant 0.000000e+00 : f32
    %6 = vector.broadcast %cst_6 : f32 to vector<2x16x16x32xf32>
    %7 = vector.extract_strided_slice %4 {offsets = [0, 0, 0, 0], sizes = [2, 16, 16, 1], strides = [1, 1, 1, 1]} : vector<2x18x18x1xf32> to vector<2x16x16x1xf32>
    %8 = vector.extract_strided_slice %5 {offsets = [0, 0], sizes = [1, 32], strides = [1, 1]} : vector<9x32xf32> to vector<1x32xf32>
    %9 = vector.shape_cast %8 : vector<1x32xf32> to vector<1x1x1x32xf32>
    %10 = vector.broadcast %7 : vector<2x16x16x1xf32> to vector<2x16x16x32xf32>
    %11 = vector.broadcast %9 : vector<1x1x1x32xf32> to vector<2x16x16x32xf32>
    %12 = arith.mulf %10, %11 : vector<2x16x16x32xf32>
    %13 = arith.addf %6, %12 : vector<2x16x16x32xf32>
    %14 = vector.extract_strided_slice %4 {offsets = [0, 0, 1, 0], sizes = [2, 16, 16, 1], strides = [1, 1, 1, 1]} : vector<2x18x18x1xf32> to vector<2x16x16x1xf32>
    %15 = vector.extract_strided_slice %5 {offsets = [1, 0], sizes = [1, 32], strides = [1, 1]} : vector<9x32xf32> to vector<1x32xf32>
    %16 = vector.shape_cast %15 : vector<1x32xf32> to vector<1x1x1x32xf32>
    %17 = vector.broadcast %14 : vector<2x16x16x1xf32> to vector<2x16x16x32xf32>
    %18 = vector.broadcast %16 : vector<1x1x1x32xf32> to vector<2x16x16x32xf32>
    %19 = arith.mulf %17, %18 : vector<2x16x16x32xf32>
    %20 = arith.addf %13, %19 : vector<2x16x16x32xf32>
    %21 = vector.extract_strided_slice %4 {offsets = [0, 0, 2, 0], sizes = [2, 16, 16, 1], strides = [1, 1, 1, 1]} : vector<2x18x18x1xf32> to vector<2x16x16x1xf32>
    %22 = vector.extract_strided_slice %5 {offsets = [2, 0], sizes = [1, 32], strides = [1, 1]} : vector<9x32xf32> to vector<1x32xf32>
    %23 = vector.shape_cast %22 : vector<1x32xf32> to vector<1x1x1x32xf32>
    %24 = vector.broadcast %21 : vector<2x16x16x1xf32> to vector<2x16x16x32xf32>
    %25 = vector.broadcast %23 : vector<1x1x1x32xf32> to vector<2x16x16x32xf32>
    %26 = arith.mulf %24, %25 : vector<2x16x16x32xf32>
    %27 = arith.addf %20, %26 : vector<2x16x16x32xf32>
    %28 = vector.extract_strided_slice %4 {offsets = [0, 1, 0, 0], sizes = [2, 16, 16, 1], strides = [1, 1, 1, 1]} : vector<2x18x18x1xf32> to vector<2x16x16x1xf32>
    %29 = vector.extract_strided_slice %5 {offsets = [3, 0], sizes = [1, 32], strides = [1, 1]} : vector<9x32xf32> to vector<1x32xf32>
    %30 = vector.shape_cast %29 : vector<1x32xf32> to vector<1x1x1x32xf32>
    %31 = vector.broadcast %28 : vector<2x16x16x1xf32> to vector<2x16x16x32xf32>
    %32 = vector.broadcast %30 : vector<1x1x1x32xf32> to vector<2x16x16x32xf32>
    %33 = arith.mulf %31, %32 : vector<2x16x16x32xf32>
    %34 = arith.addf %27, %33 : vector<2x16x16x32xf32>
    %35 = vector.extract_strided_slice %4 {offsets = [0, 1, 1, 0], sizes = [2, 16, 16, 1], strides = [1, 1, 1, 1]} : vector<2x18x18x1xf32> to vector<2x16x16x1xf32>
    %36 = vector.extract_strided_slice %5 {offsets = [4, 0], sizes = [1, 32], strides = [1, 1]} : vector<9x32xf32> to vector<1x32xf32>
    %37 = vector.shape_cast %36 : vector<1x32xf32> to vector<1x1x1x32xf32>
    %38 = vector.broadcast %35 : vector<2x16x16x1xf32> to vector<2x16x16x32xf32>
    %39 = vector.broadcast %37 : vector<1x1x1x32xf32> to vector<2x16x16x32xf32>
    %40 = arith.mulf %38, %39 : vector<2x16x16x32xf32>
    %41 = arith.addf %34, %40 : vector<2x16x16x32xf32>
    %42 = vector.extract_strided_slice %4 {offsets = [0, 1, 2, 0], sizes = [2, 16, 16, 1], strides = [1, 1, 1, 1]} : vector<2x18x18x1xf32> to vector<2x16x16x1xf32>
    %43 = vector.extract_strided_slice %5 {offsets = [5, 0], sizes = [1, 32], strides = [1, 1]} : vector<9x32xf32> to vector<1x32xf32>
    %44 = vector.shape_cast %43 : vector<1x32xf32> to vector<1x1x1x32xf32>
    %45 = vector.broadcast %42 : vector<2x16x16x1xf32> to vector<2x16x16x32xf32>
    %46 = vector.broadcast %44 : vector<1x1x1x32xf32> to vector<2x16x16x32xf32>
    %47 = arith.mulf %45, %46 : vector<2x16x16x32xf32>
    %48 = arith.addf %41, %47 : vector<2x16x16x32xf32>
    %49 = vector.extract_strided_slice %4 {offsets = [0, 2, 0, 0], sizes = [2, 16, 16, 1], strides = [1, 1, 1, 1]} : vector<2x18x18x1xf32> to vector<2x16x16x1xf32>
    %50 = vector.extract_strided_slice %5 {offsets = [6, 0], sizes = [1, 32], strides = [1, 1]} : vector<9x32xf32> to vector<1x32xf32>
    %51 = vector.shape_cast %50 : vector<1x32xf32> to vector<1x1x1x32xf32>
    %52 = vector.broadcast %49 : vector<2x16x16x1xf32> to vector<2x16x16x32xf32>
    %53 = vector.broadcast %51 : vector<1x1x1x32xf32> to vector<2x16x16x32xf32>
    %54 = arith.mulf %52, %53 : vector<2x16x16x32xf32>
    %55 = arith.addf %48, %54 : vector<2x16x16x32xf32>
    %56 = vector.extract_strided_slice %4 {offsets = [0, 2, 1, 0], sizes = [2, 16, 16, 1], strides = [1, 1, 1, 1]} : vector<2x18x18x1xf32> to vector<2x16x16x1xf32>
    %57 = vector.extract_strided_slice %5 {offsets = [7, 0], sizes = [1, 32], strides = [1, 1]} : vector<9x32xf32> to vector<1x32xf32>
    %58 = vector.shape_cast %57 : vector<1x32xf32> to vector<1x1x1x32xf32>
    %59 = vector.broadcast %56 : vector<2x16x16x1xf32> to vector<2x16x16x32xf32>
    %60 = vector.broadcast %58 : vector<1x1x1x32xf32> to vector<2x16x16x32xf32>
    %61 = arith.mulf %59, %60 : vector<2x16x16x32xf32>
    %62 = arith.addf %55, %61 : vector<2x16x16x32xf32>
    %63 = vector.extract_strided_slice %4 {offsets = [0, 2, 2, 0], sizes = [2, 16, 16, 1], strides = [1, 1, 1, 1]} : vector<2x18x18x1xf32> to vector<2x16x16x1xf32>
    %64 = vector.extract_strided_slice %5 {offsets = [8, 0], sizes = [1, 32], strides = [1, 1]} : vector<9x32xf32> to vector<1x32xf32>
    %65 = vector.shape_cast %64 : vector<1x32xf32> to vector<1x1x1x32xf32>
    %66 = vector.broadcast %63 : vector<2x16x16x1xf32> to vector<2x16x16x32xf32>
    %67 = vector.broadcast %65 : vector<1x1x1x32xf32> to vector<2x16x16x32xf32>
    %68 = arith.mulf %66, %67 : vector<2x16x16x32xf32>
    %69 = arith.addf %62, %68 : vector<2x16x16x32xf32>
    %70 = vector.shape_cast %69 : vector<2x16x16x32xf32> to vector<512x32xf32>
    %c0_7 = arith.constant 0 : index
    %c0_8 = arith.constant 0 : index
    %71 = vector.load %arg3[%c0_7, %c0_8] : memref<1x32xf32, #tpu.memory_space<vmem>>, vector<1x32xf32>
    %c0_9 = arith.constant 0 : index
    %c0_10 = arith.constant 0 : index
    %72 = vector.load %arg4[%c0_9, %c0_10] : memref<1x32xf32, #tpu.memory_space<vmem>>, vector<1x32xf32>
    %cst_11 = arith.constant dense<0.000000e+00> : vector<32xf32>
    %73 = vector.multi_reduction <add>, %70, %cst_11 [0] : vector<512x32xf32> to vector<32xf32>
    %74 = vector.shape_cast %73 : vector<32xf32> to vector<1x32xf32>
    %75 = arith.mulf %70, %70 : vector<512x32xf32>
    %cst_12 = arith.constant dense<0.000000e+00> : vector<32xf32>
    %76 = vector.multi_reduction <add>, %75, %cst_12 [0] : vector<512x32xf32> to vector<32xf32>
    %77 = vector.shape_cast %76 : vector<32xf32> to vector<1x32xf32>
    %cst_13 = arith.constant 0.001953125 : f32
    %78 = vector.broadcast %cst_13 : f32 to vector<1x32xf32>
    %79 = arith.mulf %74, %78 : vector<1x32xf32>
    %cst_14 = arith.constant 0.001953125 : f32
    %80 = vector.broadcast %cst_14 : f32 to vector<1x32xf32>
    %81 = arith.mulf %77, %80 : vector<1x32xf32>
    %82 = arith.mulf %79, %79 : vector<1x32xf32>
    %83 = arith.subf %81, %82 : vector<1x32xf32>
    %84 = vector.broadcast %79 : vector<1x32xf32> to vector<512x32xf32>
    %85 = arith.subf %70, %84 : vector<512x32xf32>
    %cst_15 = arith.constant 9.99999974E-6 : f32
    %86 = vector.broadcast %cst_15 : f32 to vector<1x32xf32>
    %87 = arith.addf %83, %86 : vector<1x32xf32>
    %88 = math.rsqrt %87 : vector<1x32xf32>
    %89 = vector.broadcast %88 : vector<1x32xf32> to vector<512x32xf32>
    %90 = arith.mulf %85, %89 : vector<512x32xf32>
    %91 = vector.broadcast %71 : vector<1x32xf32> to vector<512x32xf32>
    %92 = arith.mulf %90, %91 : vector<512x32xf32>
    %93 = vector.broadcast %72 : vector<1x32xf32> to vector<512x32xf32>
    %94 = arith.addf %92, %93 : vector<512x32xf32>
    %cst_16 = arith.constant 0.000000e+00 : f32
    %95 = vector.broadcast %cst_16 : f32 to vector<512x32xf32>
    %96 = arith.cmpf oge, %94, %95 : vector<512x32xf32>
    %cst_17 = arith.constant 0.00999999977 : f32
    %97 = vector.broadcast %cst_17 : f32 to vector<512x32xf32>
    %98 = arith.mulf %97, %94 : vector<512x32xf32>
    %99 = arith.select %96, %94, %98 : vector<512x32xi1>, vector<512x32xf32>
    %100 = vector.shape_cast %99 : vector<512x32xf32> to vector<2x16x16x32xf32>
    %c0_18 = arith.constant 0 : index
    %c0_19 = arith.constant 0 : index
    %101 = vector.load %arg5[%c0_18, %c0_19] : memref<288x32xbf16, #tpu.memory_space<vmem>>, vector<288x32xbf16>
    %c0_20 = arith.constant 0 : index
    %c0_21 = arith.constant 0 : index
    %102 = vector.load %arg6[%c0_20, %c0_21] : memref<1x32xf32, #tpu.memory_space<vmem>>, vector<1x32xf32>
    %c0_22 = arith.constant 0 : index
    %c0_23 = arith.constant 0 : index
    %103 = vector.load %arg7[%c0_22, %c0_23] : memref<1x32xf32, #tpu.memory_space<vmem>>, vector<1x32xf32>
    %cst_24 = arith.constant 0.000000e+00 : f32
    %104 = vector.broadcast %cst_24 : f32 to vector<2x1x16x32xf32>
    %105 = tpu.concatenate %104, %100, %104 in 1 : vector<2x1x16x32xf32>, vector<2x16x16x32xf32>, vector<2x1x16x32xf32> -> vector<2x18x16x32xf32>
    %cst_25 = arith.constant 0.000000e+00 : f32
    %106 = vector.broadcast %cst_25 : f32 to vector<2x18x1x32xf32>
    %107 = tpu.concatenate %106, %105, %106 in 2 : vector<2x18x1x32xf32>, vector<2x18x16x32xf32>, vector<2x18x1x32xf32> -> vector<2x18x18x32xf32>
    %108 = vector.extract_strided_slice %107 {offsets = [0, 0, 0, 0], sizes = [2, 16, 16, 32], strides = [1, 1, 1, 1]} : vector<2x18x18x32xf32> to vector<2x16x16x32xf32>
    %109 = vector.extract_strided_slice %107 {offsets = [0, 0, 1, 0], sizes = [2, 16, 16, 32], strides = [1, 1, 1, 1]} : vector<2x18x18x32xf32> to vector<2x16x16x32xf32>
    %110 = vector.extract_strided_slice %107 {offsets = [0, 0, 2, 0], sizes = [2, 16, 16, 32], strides = [1, 1, 1, 1]} : vector<2x18x18x32xf32> to vector<2x16x16x32xf32>
    %111 = vector.extract_strided_slice %107 {offsets = [0, 1, 0, 0], sizes = [2, 16, 16, 32], strides = [1, 1, 1, 1]} : vector<2x18x18x32xf32> to vector<2x16x16x32xf32>
    %112 = vector.extract_strided_slice %107 {offsets = [0, 1, 1, 0], sizes = [2, 16, 16, 32], strides = [1, 1, 1, 1]} : vector<2x18x18x32xf32> to vector<2x16x16x32xf32>
    %113 = vector.extract_strided_slice %107 {offsets = [0, 1, 2, 0], sizes = [2, 16, 16, 32], strides = [1, 1, 1, 1]} : vector<2x18x18x32xf32> to vector<2x16x16x32xf32>
    %114 = vector.extract_strided_slice %107 {offsets = [0, 2, 0, 0], sizes = [2, 16, 16, 32], strides = [1, 1, 1, 1]} : vector<2x18x18x32xf32> to vector<2x16x16x32xf32>
    %115 = vector.extract_strided_slice %107 {offsets = [0, 2, 1, 0], sizes = [2, 16, 16, 32], strides = [1, 1, 1, 1]} : vector<2x18x18x32xf32> to vector<2x16x16x32xf32>
    %116 = vector.extract_strided_slice %107 {offsets = [0, 2, 2, 0], sizes = [2, 16, 16, 32], strides = [1, 1, 1, 1]} : vector<2x18x18x32xf32> to vector<2x16x16x32xf32>
    %117 = tpu.concatenate %108, %109, %110, %111, %112, %113, %114, %115, %116 in 3 : vector<2x16x16x32xf32>, vector<2x16x16x32xf32>, vector<2x16x16x32xf32>, vector<2x16x16x32xf32>, vector<2x16x16x32xf32>, vector<2x16x16x32xf32>, vector<2x16x16x32xf32>, vector<2x16x16x32xf32>, vector<2x16x16x32xf32> -> vector<2x16x16x288xf32>
    %118 = vector.shape_cast %117 : vector<2x16x16x288xf32> to vector<512x288xf32>
    %119 = arith.truncf %118 : vector<512x288xf32> to vector<512x288xbf16>
    %cst_26 = arith.constant dense<0.000000e+00> : vector<512x32xf32>
    %120 = tpu.matmul %119, %101, %cst_26 {dimension_numbers = #tpu.dot_dimension_numbers<[1], [0], [0], [1], [0, 0, 1, 1], [], []>} : vector<512x288xbf16>, vector<288x32xbf16>, vector<512x32xf32> -> vector<512x32xf32>
    %cst_27 = arith.constant dense<0.000000e+00> : vector<32xf32>
    %121 = vector.multi_reduction <add>, %120, %cst_27 [0] : vector<512x32xf32> to vector<32xf32>
    %122 = vector.shape_cast %121 : vector<32xf32> to vector<1x32xf32>
    %123 = arith.mulf %120, %120 : vector<512x32xf32>
    %cst_28 = arith.constant dense<0.000000e+00> : vector<32xf32>
    %124 = vector.multi_reduction <add>, %123, %cst_28 [0] : vector<512x32xf32> to vector<32xf32>
    %125 = vector.shape_cast %124 : vector<32xf32> to vector<1x32xf32>
    %cst_29 = arith.constant 0.001953125 : f32
    %126 = vector.broadcast %cst_29 : f32 to vector<1x32xf32>
    %127 = arith.mulf %122, %126 : vector<1x32xf32>
    %cst_30 = arith.constant 0.001953125 : f32
    %128 = vector.broadcast %cst_30 : f32 to vector<1x32xf32>
    %129 = arith.mulf %125, %128 : vector<1x32xf32>
    %130 = arith.mulf %127, %127 : vector<1x32xf32>
    %131 = arith.subf %129, %130 : vector<1x32xf32>
    %132 = vector.broadcast %127 : vector<1x32xf32> to vector<512x32xf32>
    %133 = arith.subf %120, %132 : vector<512x32xf32>
    %cst_31 = arith.constant 9.99999974E-6 : f32
    %134 = vector.broadcast %cst_31 : f32 to vector<1x32xf32>
    %135 = arith.addf %131, %134 : vector<1x32xf32>
    %136 = math.rsqrt %135 : vector<1x32xf32>
    %137 = vector.broadcast %136 : vector<1x32xf32> to vector<512x32xf32>
    %138 = arith.mulf %133, %137 : vector<512x32xf32>
    %139 = vector.broadcast %102 : vector<1x32xf32> to vector<512x32xf32>
    %140 = arith.mulf %138, %139 : vector<512x32xf32>
    %141 = vector.broadcast %103 : vector<1x32xf32> to vector<512x32xf32>
    %142 = arith.addf %140, %141 : vector<512x32xf32>
    %cst_32 = arith.constant 0.000000e+00 : f32
    %143 = vector.broadcast %cst_32 : f32 to vector<512x32xf32>
    %144 = arith.cmpf oge, %142, %143 : vector<512x32xf32>
    %cst_33 = arith.constant 0.00999999977 : f32
    %145 = vector.broadcast %cst_33 : f32 to vector<512x32xf32>
    %146 = arith.mulf %145, %142 : vector<512x32xf32>
    %147 = arith.select %144, %142, %146 : vector<512x32xi1>, vector<512x32xf32>
    %148 = vector.shape_cast %147 : vector<512x32xf32> to vector<2x16x16x32xf32>
    %149 = vector.shape_cast %148 : vector<2x16x16x32xf32> to vector<2x8x2x16x32xf32>
    %150 = vector.extract_strided_slice %149 {offsets = [0, 0, 0, 0, 0], sizes = [2, 8, 1, 16, 32], strides = [1, 1, 1, 1, 1]} : vector<2x8x2x16x32xf32> to vector<2x8x1x16x32xf32>
    %151 = vector.shape_cast %150 : vector<2x8x1x16x32xf32> to vector<2x8x16x32xf32>
    %152 = vector.extract_strided_slice %149 {offsets = [0, 0, 1, 0, 0], sizes = [2, 8, 1, 16, 32], strides = [1, 1, 1, 1, 1]} : vector<2x8x2x16x32xf32> to vector<2x8x1x16x32xf32>
    %153 = vector.shape_cast %152 : vector<2x8x1x16x32xf32> to vector<2x8x16x32xf32>
    %154 = arith.maximumf %151, %153 : vector<2x8x16x32xf32>
    %155 = vector.extract_strided_slice %154 {offsets = [0, 0, 0, 0], sizes = [2, 8, 1, 32], strides = [1, 1, 1, 1]} : vector<2x8x16x32xf32> to vector<2x8x1x32xf32>
    %156 = vector.extract_strided_slice %154 {offsets = [0, 0, 1, 0], sizes = [2, 8, 1, 32], strides = [1, 1, 1, 1]} : vector<2x8x16x32xf32> to vector<2x8x1x32xf32>
    %157 = arith.maximumf %155, %156 : vector<2x8x1x32xf32>
    %158 = vector.extract_strided_slice %154 {offsets = [0, 0, 2, 0], sizes = [2, 8, 1, 32], strides = [1, 1, 1, 1]} : vector<2x8x16x32xf32> to vector<2x8x1x32xf32>
    %159 = vector.extract_strided_slice %154 {offsets = [0, 0, 3, 0], sizes = [2, 8, 1, 32], strides = [1, 1, 1, 1]} : vector<2x8x16x32xf32> to vector<2x8x1x32xf32>
    %160 = arith.maximumf %158, %159 : vector<2x8x1x32xf32>
    %161 = vector.extract_strided_slice %154 {offsets = [0, 0, 4, 0], sizes = [2, 8, 1, 32], strides = [1, 1, 1, 1]} : vector<2x8x16x32xf32> to vector<2x8x1x32xf32>
    %162 = vector.extract_strided_slice %154 {offsets = [0, 0, 5, 0], sizes = [2, 8, 1, 32], strides = [1, 1, 1, 1]} : vector<2x8x16x32xf32> to vector<2x8x1x32xf32>
    %163 = arith.maximumf %161, %162 : vector<2x8x1x32xf32>
    %164 = vector.extract_strided_slice %154 {offsets = [0, 0, 6, 0], sizes = [2, 8, 1, 32], strides = [1, 1, 1, 1]} : vector<2x8x16x32xf32> to vector<2x8x1x32xf32>
    %165 = vector.extract_strided_slice %154 {offsets = [0, 0, 7, 0], sizes = [2, 8, 1, 32], strides = [1, 1, 1, 1]} : vector<2x8x16x32xf32> to vector<2x8x1x32xf32>
    %166 = arith.maximumf %164, %165 : vector<2x8x1x32xf32>
    %167 = vector.extract_strided_slice %154 {offsets = [0, 0, 8, 0], sizes = [2, 8, 1, 32], strides = [1, 1, 1, 1]} : vector<2x8x16x32xf32> to vector<2x8x1x32xf32>
    %168 = vector.extract_strided_slice %154 {offsets = [0, 0, 9, 0], sizes = [2, 8, 1, 32], strides = [1, 1, 1, 1]} : vector<2x8x16x32xf32> to vector<2x8x1x32xf32>
    %169 = arith.maximumf %167, %168 : vector<2x8x1x32xf32>
    %170 = vector.extract_strided_slice %154 {offsets = [0, 0, 10, 0], sizes = [2, 8, 1, 32], strides = [1, 1, 1, 1]} : vector<2x8x16x32xf32> to vector<2x8x1x32xf32>
    %171 = vector.extract_strided_slice %154 {offsets = [0, 0, 11, 0], sizes = [2, 8, 1, 32], strides = [1, 1, 1, 1]} : vector<2x8x16x32xf32> to vector<2x8x1x32xf32>
    %172 = arith.maximumf %170, %171 : vector<2x8x1x32xf32>
    %173 = vector.extract_strided_slice %154 {offsets = [0, 0, 12, 0], sizes = [2, 8, 1, 32], strides = [1, 1, 1, 1]} : vector<2x8x16x32xf32> to vector<2x8x1x32xf32>
    %174 = vector.extract_strided_slice %154 {offsets = [0, 0, 13, 0], sizes = [2, 8, 1, 32], strides = [1, 1, 1, 1]} : vector<2x8x16x32xf32> to vector<2x8x1x32xf32>
    %175 = arith.maximumf %173, %174 : vector<2x8x1x32xf32>
    %176 = vector.extract_strided_slice %154 {offsets = [0, 0, 14, 0], sizes = [2, 8, 1, 32], strides = [1, 1, 1, 1]} : vector<2x8x16x32xf32> to vector<2x8x1x32xf32>
    %177 = vector.extract_strided_slice %154 {offsets = [0, 0, 15, 0], sizes = [2, 8, 1, 32], strides = [1, 1, 1, 1]} : vector<2x8x16x32xf32> to vector<2x8x1x32xf32>
    %178 = arith.maximumf %176, %177 : vector<2x8x1x32xf32>
    %179 = tpu.concatenate %157, %160, %163, %166, %169, %172, %175, %178 in 2 : vector<2x8x1x32xf32>, vector<2x8x1x32xf32>, vector<2x8x1x32xf32>, vector<2x8x1x32xf32>, vector<2x8x1x32xf32>, vector<2x8x1x32xf32>, vector<2x8x1x32xf32>, vector<2x8x1x32xf32> -> vector<2x8x8x32xf32>
    %c0_34 = arith.constant 0 : index
    %c0_35 = arith.constant 0 : index
    %180 = vector.load %arg8[%c0_34, %c0_35] : memref<288x64xbf16, #tpu.memory_space<vmem>>, vector<288x64xbf16>
    %c0_36 = arith.constant 0 : index
    %c0_37 = arith.constant 0 : index
    %181 = vector.load %arg9[%c0_36, %c0_37] : memref<1x64xf32, #tpu.memory_space<vmem>>, vector<1x64xf32>
    %c0_38 = arith.constant 0 : index
    %c0_39 = arith.constant 0 : index
    %182 = vector.load %arg10[%c0_38, %c0_39] : memref<1x64xf32, #tpu.memory_space<vmem>>, vector<1x64xf32>
    %cst_40 = arith.constant 0.000000e+00 : f32
    %183 = vector.broadcast %cst_40 : f32 to vector<2x1x8x32xf32>
    %184 = tpu.concatenate %183, %179, %183 in 1 : vector<2x1x8x32xf32>, vector<2x8x8x32xf32>, vector<2x1x8x32xf32> -> vector<2x10x8x32xf32>
    %cst_41 = arith.constant 0.000000e+00 : f32
    %185 = vector.broadcast %cst_41 : f32 to vector<2x10x1x32xf32>
    %186 = tpu.concatenate %185, %184, %185 in 2 : vector<2x10x1x32xf32>, vector<2x10x8x32xf32>, vector<2x10x1x32xf32> -> vector<2x10x10x32xf32>
    %187 = vector.extract_strided_slice %186 {offsets = [0, 0, 0, 0], sizes = [2, 8, 8, 32], strides = [1, 1, 1, 1]} : vector<2x10x10x32xf32> to vector<2x8x8x32xf32>
    %188 = vector.extract_strided_slice %186 {offsets = [0, 0, 1, 0], sizes = [2, 8, 8, 32], strides = [1, 1, 1, 1]} : vector<2x10x10x32xf32> to vector<2x8x8x32xf32>
    %189 = vector.extract_strided_slice %186 {offsets = [0, 0, 2, 0], sizes = [2, 8, 8, 32], strides = [1, 1, 1, 1]} : vector<2x10x10x32xf32> to vector<2x8x8x32xf32>
    %190 = vector.extract_strided_slice %186 {offsets = [0, 1, 0, 0], sizes = [2, 8, 8, 32], strides = [1, 1, 1, 1]} : vector<2x10x10x32xf32> to vector<2x8x8x32xf32>
    %191 = vector.extract_strided_slice %186 {offsets = [0, 1, 1, 0], sizes = [2, 8, 8, 32], strides = [1, 1, 1, 1]} : vector<2x10x10x32xf32> to vector<2x8x8x32xf32>
    %192 = vector.extract_strided_slice %186 {offsets = [0, 1, 2, 0], sizes = [2, 8, 8, 32], strides = [1, 1, 1, 1]} : vector<2x10x10x32xf32> to vector<2x8x8x32xf32>
    %193 = vector.extract_strided_slice %186 {offsets = [0, 2, 0, 0], sizes = [2, 8, 8, 32], strides = [1, 1, 1, 1]} : vector<2x10x10x32xf32> to vector<2x8x8x32xf32>
    %194 = vector.extract_strided_slice %186 {offsets = [0, 2, 1, 0], sizes = [2, 8, 8, 32], strides = [1, 1, 1, 1]} : vector<2x10x10x32xf32> to vector<2x8x8x32xf32>
    %195 = vector.extract_strided_slice %186 {offsets = [0, 2, 2, 0], sizes = [2, 8, 8, 32], strides = [1, 1, 1, 1]} : vector<2x10x10x32xf32> to vector<2x8x8x32xf32>
    %196 = tpu.concatenate %187, %188, %189, %190, %191, %192, %193, %194, %195 in 3 : vector<2x8x8x32xf32>, vector<2x8x8x32xf32>, vector<2x8x8x32xf32>, vector<2x8x8x32xf32>, vector<2x8x8x32xf32>, vector<2x8x8x32xf32>, vector<2x8x8x32xf32>, vector<2x8x8x32xf32>, vector<2x8x8x32xf32> -> vector<2x8x8x288xf32>
    %197 = vector.shape_cast %196 : vector<2x8x8x288xf32> to vector<128x288xf32>
    %198 = arith.truncf %197 : vector<128x288xf32> to vector<128x288xbf16>
    %cst_42 = arith.constant dense<0.000000e+00> : vector<128x64xf32>
    %199 = tpu.matmul %198, %180, %cst_42 {dimension_numbers = #tpu.dot_dimension_numbers<[1], [0], [0], [1], [0, 0, 1, 1], [], []>} : vector<128x288xbf16>, vector<288x64xbf16>, vector<128x64xf32> -> vector<128x64xf32>
    %cst_43 = arith.constant dense<0.000000e+00> : vector<64xf32>
    %200 = vector.multi_reduction <add>, %199, %cst_43 [0] : vector<128x64xf32> to vector<64xf32>
    %201 = vector.shape_cast %200 : vector<64xf32> to vector<1x64xf32>
    %202 = arith.mulf %199, %199 : vector<128x64xf32>
    %cst_44 = arith.constant dense<0.000000e+00> : vector<64xf32>
    %203 = vector.multi_reduction <add>, %202, %cst_44 [0] : vector<128x64xf32> to vector<64xf32>
    %204 = vector.shape_cast %203 : vector<64xf32> to vector<1x64xf32>
    %cst_45 = arith.constant 7.812500e-03 : f32
    %205 = vector.broadcast %cst_45 : f32 to vector<1x64xf32>
    %206 = arith.mulf %201, %205 : vector<1x64xf32>
    %cst_46 = arith.constant 7.812500e-03 : f32
    %207 = vector.broadcast %cst_46 : f32 to vector<1x64xf32>
    %208 = arith.mulf %204, %207 : vector<1x64xf32>
    %209 = arith.mulf %206, %206 : vector<1x64xf32>
    %210 = arith.subf %208, %209 : vector<1x64xf32>
    %211 = vector.broadcast %206 : vector<1x64xf32> to vector<128x64xf32>
    %212 = arith.subf %199, %211 : vector<128x64xf32>
    %cst_47 = arith.constant 9.99999974E-6 : f32
    %213 = vector.broadcast %cst_47 : f32 to vector<1x64xf32>
    %214 = arith.addf %210, %213 : vector<1x64xf32>
    %215 = math.rsqrt %214 : vector<1x64xf32>
    %216 = vector.broadcast %215 : vector<1x64xf32> to vector<128x64xf32>
    %217 = arith.mulf %212, %216 : vector<128x64xf32>
    %218 = vector.broadcast %181 : vector<1x64xf32> to vector<128x64xf32>
    %219 = arith.mulf %217, %218 : vector<128x64xf32>
    %220 = vector.broadcast %182 : vector<1x64xf32> to vector<128x64xf32>
    %221 = arith.addf %219, %220 : vector<128x64xf32>
    %cst_48 = arith.constant 0.000000e+00 : f32
    %222 = vector.broadcast %cst_48 : f32 to vector<128x64xf32>
    %223 = arith.cmpf oge, %221, %222 : vector<128x64xf32>
    %cst_49 = arith.constant 0.00999999977 : f32
    %224 = vector.broadcast %cst_49 : f32 to vector<128x64xf32>
    %225 = arith.mulf %224, %221 : vector<128x64xf32>
    %226 = arith.select %223, %221, %225 : vector<128x64xi1>, vector<128x64xf32>
    %227 = vector.shape_cast %226 : vector<128x64xf32> to vector<2x8x8x64xf32>
    %c0_50 = arith.constant 0 : index
    %c0_51 = arith.constant 0 : index
    %228 = vector.load %arg11[%c0_50, %c0_51] : memref<576x64xbf16, #tpu.memory_space<vmem>>, vector<576x64xbf16>
    %c0_52 = arith.constant 0 : index
    %c0_53 = arith.constant 0 : index
    %229 = vector.load %arg12[%c0_52, %c0_53] : memref<1x64xf32, #tpu.memory_space<vmem>>, vector<1x64xf32>
    %c0_54 = arith.constant 0 : index
    %c0_55 = arith.constant 0 : index
    %230 = vector.load %arg13[%c0_54, %c0_55] : memref<1x64xf32, #tpu.memory_space<vmem>>, vector<1x64xf32>
    %cst_56 = arith.constant 0.000000e+00 : f32
    %231 = vector.broadcast %cst_56 : f32 to vector<2x1x8x64xf32>
    %232 = tpu.concatenate %231, %227, %231 in 1 : vector<2x1x8x64xf32>, vector<2x8x8x64xf32>, vector<2x1x8x64xf32> -> vector<2x10x8x64xf32>
    %cst_57 = arith.constant 0.000000e+00 : f32
    %233 = vector.broadcast %cst_57 : f32 to vector<2x10x1x64xf32>
    %234 = tpu.concatenate %233, %232, %233 in 2 : vector<2x10x1x64xf32>, vector<2x10x8x64xf32>, vector<2x10x1x64xf32> -> vector<2x10x10x64xf32>
    %235 = vector.extract_strided_slice %234 {offsets = [0, 0, 0, 0], sizes = [2, 8, 8, 64], strides = [1, 1, 1, 1]} : vector<2x10x10x64xf32> to vector<2x8x8x64xf32>
    %236 = vector.extract_strided_slice %234 {offsets = [0, 0, 1, 0], sizes = [2, 8, 8, 64], strides = [1, 1, 1, 1]} : vector<2x10x10x64xf32> to vector<2x8x8x64xf32>
    %237 = vector.extract_strided_slice %234 {offsets = [0, 0, 2, 0], sizes = [2, 8, 8, 64], strides = [1, 1, 1, 1]} : vector<2x10x10x64xf32> to vector<2x8x8x64xf32>
    %238 = vector.extract_strided_slice %234 {offsets = [0, 1, 0, 0], sizes = [2, 8, 8, 64], strides = [1, 1, 1, 1]} : vector<2x10x10x64xf32> to vector<2x8x8x64xf32>
    %239 = vector.extract_strided_slice %234 {offsets = [0, 1, 1, 0], sizes = [2, 8, 8, 64], strides = [1, 1, 1, 1]} : vector<2x10x10x64xf32> to vector<2x8x8x64xf32>
    %240 = vector.extract_strided_slice %234 {offsets = [0, 1, 2, 0], sizes = [2, 8, 8, 64], strides = [1, 1, 1, 1]} : vector<2x10x10x64xf32> to vector<2x8x8x64xf32>
    %241 = vector.extract_strided_slice %234 {offsets = [0, 2, 0, 0], sizes = [2, 8, 8, 64], strides = [1, 1, 1, 1]} : vector<2x10x10x64xf32> to vector<2x8x8x64xf32>
    %242 = vector.extract_strided_slice %234 {offsets = [0, 2, 1, 0], sizes = [2, 8, 8, 64], strides = [1, 1, 1, 1]} : vector<2x10x10x64xf32> to vector<2x8x8x64xf32>
    %243 = vector.extract_strided_slice %234 {offsets = [0, 2, 2, 0], sizes = [2, 8, 8, 64], strides = [1, 1, 1, 1]} : vector<2x10x10x64xf32> to vector<2x8x8x64xf32>
    %244 = tpu.concatenate %235, %236, %237, %238, %239, %240, %241, %242, %243 in 3 : vector<2x8x8x64xf32>, vector<2x8x8x64xf32>, vector<2x8x8x64xf32>, vector<2x8x8x64xf32>, vector<2x8x8x64xf32>, vector<2x8x8x64xf32>, vector<2x8x8x64xf32>, vector<2x8x8x64xf32>, vector<2x8x8x64xf32> -> vector<2x8x8x576xf32>
    %245 = vector.shape_cast %244 : vector<2x8x8x576xf32> to vector<128x576xf32>
    %246 = arith.truncf %245 : vector<128x576xf32> to vector<128x576xbf16>
    %cst_58 = arith.constant dense<0.000000e+00> : vector<128x64xf32>
    %247 = tpu.matmul %246, %228, %cst_58 {dimension_numbers = #tpu.dot_dimension_numbers<[1], [0], [0], [1], [0, 0, 1, 1], [], []>} : vector<128x576xbf16>, vector<576x64xbf16>, vector<128x64xf32> -> vector<128x64xf32>
    %cst_59 = arith.constant dense<0.000000e+00> : vector<64xf32>
    %248 = vector.multi_reduction <add>, %247, %cst_59 [0] : vector<128x64xf32> to vector<64xf32>
    %249 = vector.shape_cast %248 : vector<64xf32> to vector<1x64xf32>
    %250 = arith.mulf %247, %247 : vector<128x64xf32>
    %cst_60 = arith.constant dense<0.000000e+00> : vector<64xf32>
    %251 = vector.multi_reduction <add>, %250, %cst_60 [0] : vector<128x64xf32> to vector<64xf32>
    %252 = vector.shape_cast %251 : vector<64xf32> to vector<1x64xf32>
    %cst_61 = arith.constant 7.812500e-03 : f32
    %253 = vector.broadcast %cst_61 : f32 to vector<1x64xf32>
    %254 = arith.mulf %249, %253 : vector<1x64xf32>
    %cst_62 = arith.constant 7.812500e-03 : f32
    %255 = vector.broadcast %cst_62 : f32 to vector<1x64xf32>
    %256 = arith.mulf %252, %255 : vector<1x64xf32>
    %257 = arith.mulf %254, %254 : vector<1x64xf32>
    %258 = arith.subf %256, %257 : vector<1x64xf32>
    %259 = vector.broadcast %254 : vector<1x64xf32> to vector<128x64xf32>
    %260 = arith.subf %247, %259 : vector<128x64xf32>
    %cst_63 = arith.constant 9.99999974E-6 : f32
    %261 = vector.broadcast %cst_63 : f32 to vector<1x64xf32>
    %262 = arith.addf %258, %261 : vector<1x64xf32>
    %263 = math.rsqrt %262 : vector<1x64xf32>
    %264 = vector.broadcast %263 : vector<1x64xf32> to vector<128x64xf32>
    %265 = arith.mulf %260, %264 : vector<128x64xf32>
    %266 = vector.broadcast %229 : vector<1x64xf32> to vector<128x64xf32>
    %267 = arith.mulf %265, %266 : vector<128x64xf32>
    %268 = vector.broadcast %230 : vector<1x64xf32> to vector<128x64xf32>
    %269 = arith.addf %267, %268 : vector<128x64xf32>
    %cst_64 = arith.constant 0.000000e+00 : f32
    %270 = vector.broadcast %cst_64 : f32 to vector<128x64xf32>
    %271 = arith.cmpf oge, %269, %270 : vector<128x64xf32>
    %cst_65 = arith.constant 0.00999999977 : f32
    %272 = vector.broadcast %cst_65 : f32 to vector<128x64xf32>
    %273 = arith.mulf %272, %269 : vector<128x64xf32>
    %274 = arith.select %271, %269, %273 : vector<128x64xi1>, vector<128x64xf32>
    %275 = vector.shape_cast %274 : vector<128x64xf32> to vector<2x8x8x64xf32>
    %276 = vector.shape_cast %275 : vector<2x8x8x64xf32> to vector<2x4x2x8x64xf32>
    %277 = vector.extract_strided_slice %276 {offsets = [0, 0, 0, 0, 0], sizes = [2, 4, 1, 8, 64], strides = [1, 1, 1, 1, 1]} : vector<2x4x2x8x64xf32> to vector<2x4x1x8x64xf32>
    %278 = vector.shape_cast %277 : vector<2x4x1x8x64xf32> to vector<2x4x8x64xf32>
    %279 = vector.extract_strided_slice %276 {offsets = [0, 0, 1, 0, 0], sizes = [2, 4, 1, 8, 64], strides = [1, 1, 1, 1, 1]} : vector<2x4x2x8x64xf32> to vector<2x4x1x8x64xf32>
    %280 = vector.shape_cast %279 : vector<2x4x1x8x64xf32> to vector<2x4x8x64xf32>
    %281 = arith.maximumf %278, %280 : vector<2x4x8x64xf32>
    %282 = vector.extract_strided_slice %281 {offsets = [0, 0, 0, 0], sizes = [2, 4, 1, 64], strides = [1, 1, 1, 1]} : vector<2x4x8x64xf32> to vector<2x4x1x64xf32>
    %283 = vector.extract_strided_slice %281 {offsets = [0, 0, 1, 0], sizes = [2, 4, 1, 64], strides = [1, 1, 1, 1]} : vector<2x4x8x64xf32> to vector<2x4x1x64xf32>
    %284 = arith.maximumf %282, %283 : vector<2x4x1x64xf32>
    %285 = vector.extract_strided_slice %281 {offsets = [0, 0, 2, 0], sizes = [2, 4, 1, 64], strides = [1, 1, 1, 1]} : vector<2x4x8x64xf32> to vector<2x4x1x64xf32>
    %286 = vector.extract_strided_slice %281 {offsets = [0, 0, 3, 0], sizes = [2, 4, 1, 64], strides = [1, 1, 1, 1]} : vector<2x4x8x64xf32> to vector<2x4x1x64xf32>
    %287 = arith.maximumf %285, %286 : vector<2x4x1x64xf32>
    %288 = vector.extract_strided_slice %281 {offsets = [0, 0, 4, 0], sizes = [2, 4, 1, 64], strides = [1, 1, 1, 1]} : vector<2x4x8x64xf32> to vector<2x4x1x64xf32>
    %289 = vector.extract_strided_slice %281 {offsets = [0, 0, 5, 0], sizes = [2, 4, 1, 64], strides = [1, 1, 1, 1]} : vector<2x4x8x64xf32> to vector<2x4x1x64xf32>
    %290 = arith.maximumf %288, %289 : vector<2x4x1x64xf32>
    %291 = vector.extract_strided_slice %281 {offsets = [0, 0, 6, 0], sizes = [2, 4, 1, 64], strides = [1, 1, 1, 1]} : vector<2x4x8x64xf32> to vector<2x4x1x64xf32>
    %292 = vector.extract_strided_slice %281 {offsets = [0, 0, 7, 0], sizes = [2, 4, 1, 64], strides = [1, 1, 1, 1]} : vector<2x4x8x64xf32> to vector<2x4x1x64xf32>
    %293 = arith.maximumf %291, %292 : vector<2x4x1x64xf32>
    %294 = tpu.concatenate %284, %287, %290, %293 in 2 : vector<2x4x1x64xf32>, vector<2x4x1x64xf32>, vector<2x4x1x64xf32>, vector<2x4x1x64xf32> -> vector<2x4x4x64xf32>
    %295 = vector.extract_strided_slice %294 {offsets = [0, 0, 0, 0], sizes = [2, 1, 1, 64], strides = [1, 1, 1, 1]} : vector<2x4x4x64xf32> to vector<2x1x1x64xf32>
    %296 = vector.shape_cast %295 : vector<2x1x1x64xf32> to vector<2x64xf32>
    %297 = vector.extract_strided_slice %294 {offsets = [0, 0, 1, 0], sizes = [2, 1, 1, 64], strides = [1, 1, 1, 1]} : vector<2x4x4x64xf32> to vector<2x1x1x64xf32>
    %298 = vector.shape_cast %297 : vector<2x1x1x64xf32> to vector<2x64xf32>
    %299 = vector.extract_strided_slice %294 {offsets = [0, 0, 2, 0], sizes = [2, 1, 1, 64], strides = [1, 1, 1, 1]} : vector<2x4x4x64xf32> to vector<2x1x1x64xf32>
    %300 = vector.shape_cast %299 : vector<2x1x1x64xf32> to vector<2x64xf32>
    %301 = vector.extract_strided_slice %294 {offsets = [0, 0, 3, 0], sizes = [2, 1, 1, 64], strides = [1, 1, 1, 1]} : vector<2x4x4x64xf32> to vector<2x1x1x64xf32>
    %302 = vector.shape_cast %301 : vector<2x1x1x64xf32> to vector<2x64xf32>
    %303 = vector.extract_strided_slice %294 {offsets = [0, 1, 0, 0], sizes = [2, 1, 1, 64], strides = [1, 1, 1, 1]} : vector<2x4x4x64xf32> to vector<2x1x1x64xf32>
    %304 = vector.shape_cast %303 : vector<2x1x1x64xf32> to vector<2x64xf32>
    %305 = vector.extract_strided_slice %294 {offsets = [0, 1, 1, 0], sizes = [2, 1, 1, 64], strides = [1, 1, 1, 1]} : vector<2x4x4x64xf32> to vector<2x1x1x64xf32>
    %306 = vector.shape_cast %305 : vector<2x1x1x64xf32> to vector<2x64xf32>
    %307 = vector.extract_strided_slice %294 {offsets = [0, 1, 2, 0], sizes = [2, 1, 1, 64], strides = [1, 1, 1, 1]} : vector<2x4x4x64xf32> to vector<2x1x1x64xf32>
    %308 = vector.shape_cast %307 : vector<2x1x1x64xf32> to vector<2x64xf32>
    %309 = vector.extract_strided_slice %294 {offsets = [0, 1, 3, 0], sizes = [2, 1, 1, 64], strides = [1, 1, 1, 1]} : vector<2x4x4x64xf32> to vector<2x1x1x64xf32>
    %310 = vector.shape_cast %309 : vector<2x1x1x64xf32> to vector<2x64xf32>
    %311 = vector.extract_strided_slice %294 {offsets = [0, 2, 0, 0], sizes = [2, 1, 1, 64], strides = [1, 1, 1, 1]} : vector<2x4x4x64xf32> to vector<2x1x1x64xf32>
    %312 = vector.shape_cast %311 : vector<2x1x1x64xf32> to vector<2x64xf32>
    %313 = vector.extract_strided_slice %294 {offsets = [0, 2, 1, 0], sizes = [2, 1, 1, 64], strides = [1, 1, 1, 1]} : vector<2x4x4x64xf32> to vector<2x1x1x64xf32>
    %314 = vector.shape_cast %313 : vector<2x1x1x64xf32> to vector<2x64xf32>
    %315 = vector.extract_strided_slice %294 {offsets = [0, 2, 2, 0], sizes = [2, 1, 1, 64], strides = [1, 1, 1, 1]} : vector<2x4x4x64xf32> to vector<2x1x1x64xf32>
    %316 = vector.shape_cast %315 : vector<2x1x1x64xf32> to vector<2x64xf32>
    %317 = vector.extract_strided_slice %294 {offsets = [0, 2, 3, 0], sizes = [2, 1, 1, 64], strides = [1, 1, 1, 1]} : vector<2x4x4x64xf32> to vector<2x1x1x64xf32>
    %318 = vector.shape_cast %317 : vector<2x1x1x64xf32> to vector<2x64xf32>
    %319 = vector.extract_strided_slice %294 {offsets = [0, 3, 0, 0], sizes = [2, 1, 1, 64], strides = [1, 1, 1, 1]} : vector<2x4x4x64xf32> to vector<2x1x1x64xf32>
    %320 = vector.shape_cast %319 : vector<2x1x1x64xf32> to vector<2x64xf32>
    %321 = vector.extract_strided_slice %294 {offsets = [0, 3, 1, 0], sizes = [2, 1, 1, 64], strides = [1, 1, 1, 1]} : vector<2x4x4x64xf32> to vector<2x1x1x64xf32>
    %322 = vector.shape_cast %321 : vector<2x1x1x64xf32> to vector<2x64xf32>
    %323 = vector.extract_strided_slice %294 {offsets = [0, 3, 2, 0], sizes = [2, 1, 1, 64], strides = [1, 1, 1, 1]} : vector<2x4x4x64xf32> to vector<2x1x1x64xf32>
    %324 = vector.shape_cast %323 : vector<2x1x1x64xf32> to vector<2x64xf32>
    %325 = vector.extract_strided_slice %294 {offsets = [0, 3, 3, 0], sizes = [2, 1, 1, 64], strides = [1, 1, 1, 1]} : vector<2x4x4x64xf32> to vector<2x1x1x64xf32>
    %326 = vector.shape_cast %325 : vector<2x1x1x64xf32> to vector<2x64xf32>
    %327 = tpu.concatenate %296, %298, %300, %302, %304, %306, %308, %310, %312, %314, %316, %318, %320, %322, %324, %326 in 1 : vector<2x64xf32>, vector<2x64xf32>, vector<2x64xf32>, vector<2x64xf32>, vector<2x64xf32>, vector<2x64xf32>, vector<2x64xf32>, vector<2x64xf32>, vector<2x64xf32>, vector<2x64xf32>, vector<2x64xf32>, vector<2x64xf32>, vector<2x64xf32>, vector<2x64xf32>, vector<2x64xf32>, vector<2x64xf32> -> vector<2x1024xf32>
    %328 = arith.truncf %327 : vector<2x1024xf32> to vector<2x1024xbf16>
    %c0_66 = arith.constant 0 : index
    %c0_67 = arith.constant 0 : index
    %329 = vector.load %arg14[%c0_66, %c0_67] : memref<1024x256xbf16, #tpu.memory_space<vmem>>, vector<1024x256xbf16>
    %cst_68 = arith.constant dense<0.000000e+00> : vector<2x256xf32>
    %330 = tpu.matmul %328, %329, %cst_68 {dimension_numbers = #tpu.dot_dimension_numbers<[1], [0], [0], [1], [0, 0, 1, 1], [], []>} : vector<2x1024xbf16>, vector<1024x256xbf16>, vector<2x256xf32> -> vector<2x256xf32>
    %c0_69 = arith.constant 0 : index
    %c0_70 = arith.constant 0 : index
    %331 = vector.load %arg15[%c0_69, %c0_70] : memref<1x256xf32, #tpu.memory_space<vmem>>, vector<1x256xf32>
    %c0_71 = arith.constant 0 : index
    %c0_72 = arith.constant 0 : index
    %332 = vector.load %arg16[%c0_71, %c0_72] : memref<1x256xf32, #tpu.memory_space<vmem>>, vector<1x256xf32>
    %cst_73 = arith.constant dense<0.000000e+00> : vector<256xf32>
    %333 = vector.multi_reduction <add>, %330, %cst_73 [0] : vector<2x256xf32> to vector<256xf32>
    %334 = vector.shape_cast %333 : vector<256xf32> to vector<1x256xf32>
    %335 = arith.mulf %330, %330 : vector<2x256xf32>
    %cst_74 = arith.constant dense<0.000000e+00> : vector<256xf32>
    %336 = vector.multi_reduction <add>, %335, %cst_74 [0] : vector<2x256xf32> to vector<256xf32>
    %337 = vector.shape_cast %336 : vector<256xf32> to vector<1x256xf32>
    %cst_75 = arith.constant 5.000000e-01 : f32
    %338 = vector.broadcast %cst_75 : f32 to vector<1x256xf32>
    %339 = arith.mulf %334, %338 : vector<1x256xf32>
    %cst_76 = arith.constant 5.000000e-01 : f32
    %340 = vector.broadcast %cst_76 : f32 to vector<1x256xf32>
    %341 = arith.mulf %337, %340 : vector<1x256xf32>
    %342 = arith.mulf %339, %339 : vector<1x256xf32>
    %343 = arith.subf %341, %342 : vector<1x256xf32>
    %344 = vector.broadcast %339 : vector<1x256xf32> to vector<2x256xf32>
    %345 = arith.subf %330, %344 : vector<2x256xf32>
    %cst_77 = arith.constant 9.99999974E-6 : f32
    %346 = vector.broadcast %cst_77 : f32 to vector<1x256xf32>
    %347 = arith.addf %343, %346 : vector<1x256xf32>
    %348 = math.rsqrt %347 : vector<1x256xf32>
    %349 = vector.broadcast %348 : vector<1x256xf32> to vector<2x256xf32>
    %350 = arith.mulf %345, %349 : vector<2x256xf32>
    %351 = vector.broadcast %331 : vector<1x256xf32> to vector<2x256xf32>
    %352 = arith.mulf %350, %351 : vector<2x256xf32>
    %353 = vector.broadcast %332 : vector<1x256xf32> to vector<2x256xf32>
    %354 = arith.addf %352, %353 : vector<2x256xf32>
    %cst_78 = arith.constant 0.000000e+00 : f32
    %355 = vector.broadcast %cst_78 : f32 to vector<2x256xf32>
    %356 = arith.cmpf oge, %354, %355 : vector<2x256xf32>
    %cst_79 = arith.constant 0.00999999977 : f32
    %357 = vector.broadcast %cst_79 : f32 to vector<2x256xf32>
    %358 = arith.mulf %357, %354 : vector<2x256xf32>
    %359 = arith.select %356, %354, %358 : vector<2x256xi1>, vector<2x256xf32>
    %360 = arith.truncf %359 : vector<2x256xf32> to vector<2x256xbf16>
    %c0_80 = arith.constant 0 : index
    %c0_81 = arith.constant 0 : index
    %361 = vector.load %arg17[%c0_80, %c0_81] : memref<256x8xbf16, #tpu.memory_space<vmem>>, vector<256x8xbf16>
    %cst_82 = arith.constant dense<0.000000e+00> : vector<2x8xf32>
    %362 = tpu.matmul %360, %361, %cst_82 {dimension_numbers = #tpu.dot_dimension_numbers<[1], [0], [0], [1], [0, 0, 1, 1], [], []>} : vector<2x256xbf16>, vector<256x8xbf16>, vector<2x8xf32> -> vector<2x8xf32>
    %c0_83 = arith.constant 0 : index
    %c0_84 = arith.constant 0 : index
    %363 = vector.load %arg18[%c0_83, %c0_84] : memref<1x8xf32, #tpu.memory_space<vmem>>, vector<1x8xf32>
    %364 = vector.broadcast %363 : vector<1x8xf32> to vector<2x8xf32>
    %365 = arith.addf %362, %364 : vector<2x8xf32>
    %cst_85 = arith.constant 0.000000e+00 : f32
    %366 = vector.broadcast %cst_85 : f32 to vector<2x8xf32>
    %367 = arith.subf %366, %365 : vector<2x8xf32>
    %368 = math.exp %367 : vector<2x8xf32>
    %cst_86 = arith.constant 1.000000e+00 : f32
    %369 = vector.broadcast %cst_86 : f32 to vector<2x8xf32>
    %370 = arith.addf %369, %368 : vector<2x8xf32>
    %cst_87 = arith.constant 1.000000e+00 : f32
    %371 = vector.broadcast %cst_87 : f32 to vector<2x8xf32>
    %372 = arith.divf %371, %370 : vector<2x8xf32>
    %c0_88 = arith.constant 0 : index
    %c0_89 = arith.constant 0 : index
    %373 = vector.load %arg19[%c0_88, %c0_89] : memref<2x8xf32, #tpu.memory_space<vmem>>, vector<2x8xf32>
    tpu.vector_store %arg19[%c0_88, %c0_89], %372 {strides = array<i32>} : memref<2x8xf32, #tpu.memory_space<vmem>>, vector<2x8xf32>,
    return
  }
  func.func @transform_0(%arg0: i32) -> (i32, i32, i32, i32) {
    %c0_i32 = arith.constant 0 : i32
    %c0_i32_0 = arith.constant 0 : i32
    %c0_i32_1 = arith.constant 0 : i32
    %c0_i32_2 = arith.constant 0 : i32
    %c0_i32_3 = arith.constant 0 : i32
    return %c0_i32, %c0_i32_0, %c0_i32_1, %c0_i32_2 : i32, i32, i32, i32
  }
  func.func @transform_1(%arg0: i32) -> (i32, i32) {
    %c0_i32 = arith.constant 0 : i32
    %c0_i32_0 = arith.constant 0 : i32
    %c0_i32_1 = arith.constant 0 : i32
    return %c0_i32, %c0_i32_0 : i32, i32
  }
  func.func @transform_2(%arg0: i32) -> (i32, i32) {
    %c0_i32 = arith.constant 0 : i32
    %c0_i32_0 = arith.constant 0 : i32
    %c0_i32_1 = arith.constant 0 : i32
    return %c0_i32, %c0_i32_0 : i32, i32
  }
  func.func @transform_3(%arg0: i32) -> (i32, i32) {
    %c0_i32 = arith.constant 0 : i32
    %c0_i32_0 = arith.constant 0 : i32
    %c0_i32_1 = arith.constant 0 : i32
    return %c0_i32, %c0_i32_0 : i32, i32
  }
  func.func @transform_4(%arg0: i32) -> (i32, i32) {
    %c0_i32 = arith.constant 0 : i32
    %c0_i32_0 = arith.constant 0 : i32
    %c0_i32_1 = arith.constant 0 : i32
    return %c0_i32, %c0_i32_0 : i32, i32
  }
  func.func @transform_5(%arg0: i32) -> (i32, i32) {
    %c0_i32 = arith.constant 0 : i32
    %c0_i32_0 = arith.constant 0 : i32
    %c0_i32_1 = arith.constant 0 : i32
    return %c0_i32, %c0_i32_0 : i32, i32
  }
  func.func @transform_6(%arg0: i32) -> (i32, i32) {
    %c0_i32 = arith.constant 0 : i32
    %c0_i32_0 = arith.constant 0 : i32
    %c0_i32_1 = arith.constant 0 : i32
    return %c0_i32, %c0_i32_0 : i32, i32
  }
  func.func @transform_7(%arg0: i32) -> (i32, i32) {
    %c0_i32 = arith.constant 0 : i32
    %c0_i32_0 = arith.constant 0 : i32
    %c0_i32_1 = arith.constant 0 : i32
    return %c0_i32, %c0_i32_0 : i32, i32
  }
  func.func @transform_8(%arg0: i32) -> (i32, i32) {
    %c0_i32 = arith.constant 0 : i32
    %c0_i32_0 = arith.constant 0 : i32
    %c0_i32_1 = arith.constant 0 : i32
    return %c0_i32, %c0_i32_0 : i32, i32
  }
  func.func @transform_9(%arg0: i32) -> (i32, i32) {
    %c0_i32 = arith.constant 0 : i32
    %c0_i32_0 = arith.constant 0 : i32
    %c0_i32_1 = arith.constant 0 : i32
    return %c0_i32, %c0_i32_0 : i32, i32
  }
  func.func @transform_10(%arg0: i32) -> (i32, i32) {
    %c0_i32 = arith.constant 0 : i32
    %c0_i32_0 = arith.constant 0 : i32
    %c0_i32_1 = arith.constant 0 : i32
    return %c0_i32, %c0_i32_0 : i32, i32
  }
  func.func @transform_11(%arg0: i32) -> (i32, i32) {
    %c0_i32 = arith.constant 0 : i32
    %c0_i32_0 = arith.constant 0 : i32
    %c0_i32_1 = arith.constant 0 : i32
    return %c0_i32, %c0_i32_0 : i32, i32
  }
  func.func @transform_12(%arg0: i32) -> (i32, i32) {
    %c0_i32 = arith.constant 0 : i32
    %c0_i32_0 = arith.constant 0 : i32
    %c0_i32_1 = arith.constant 0 : i32
    return %c0_i32, %c0_i32_0 : i32, i32
  }
  func.func @transform_13(%arg0: i32) -> (i32, i32) {
    %c0_i32 = arith.constant 0 : i32
    %c0_i32_0 = arith.constant 0 : i32
    %c0_i32_1 = arith.constant 0 : i32
    return %c0_i32, %c0_i32_0 : i32, i32
  }
  func.func @transform_14(%arg0: i32) -> (i32, i32) {
    %c0_i32 = arith.constant 0 : i32
    %c0_i32_0 = arith.constant 0 : i32
    %c0_i32_1 = arith.constant 0 : i32
    return %c0_i32, %c0_i32_0 : i32, i32
  }
  func.func @transform_15(%arg0: i32) -> (i32, i32) {
    %c0_i32 = arith.constant 0 : i32
    %c0_i32_0 = arith.constant 0 : i32
    %c0_i32_1 = arith.constant 0 : i32
    return %c0_i32, %c0_i32_0 : i32, i32
  }
  func.func @transform_16(%arg0: i32) -> (i32, i32) {
    %c0_i32 = arith.constant 0 : i32
    %c0_i32_0 = arith.constant 0 : i32
    %c0_i32_1 = arith.constant 0 : i32
    return %c0_i32, %c0_i32_0 : i32, i32
  }
  func.func @transform_17(%arg0: i32) -> (i32, i32) {
    %c0_i32 = arith.constant 0 : i32
    %c0_i32_0 = arith.constant 0 : i32
    %c0_i32_1 = arith.constant 0 : i32
    return %c0_i32, %c0_i32_0 : i32, i32
  }
  func.func @transform_18(%arg0: i32) -> (i32, i32) {
    %c0_i32 = arith.constant 0 : i32
    %c0_i32_0 = arith.constant 0 : i32
    %c0_i32_1 = arith.constant 0 : i32
    return %c0_i32, %c0_i32_0 : i32, i32
  }
}

</mosaic_0001>

<llo_original>
// kernel: hpc_cnn_forward.1
$region0: #{hpc_cnn_forward.1}
  #allocation0 [shape = 'u32[]', space=smem, size = 0x4, offset = 0x4, fixed_abs, tag = 'smem constant byte address 0x4 - core index']
  #allocation1 [shape = 'u32[144,128]{1,0:T(1,128)}', space=vmem, size = 0x12000, scoped, tag = 'internal scratch']
  %s0 = inlined_call_operand.vmem [shape: f32[2,16,16,1], index: 0, kind: input, shape index: {}]
  %s1 = inlined_call_operand.vmem [shape: f32[9,32], index: 1, kind: input, shape index: {}]
  %s2 = inlined_call_operand.vmem [shape: f32[1,32], index: 2, kind: input, shape index: {}, may-alias: {2,5}]
  %s3 = inlined_call_operand.vmem [shape: f32[1,32], index: 3, kind: input, shape index: {}, may-alias: {3,6}]
  %s4 = inlined_call_operand.vmem [shape: bf16[288,32], index: 4, kind: input, shape index: {}]
  %s5 = inlined_call_operand.vmem [shape: f32[1,32], index: 5, kind: input, shape index: {}, may-alias: {2,5}]
  %s6 = inlined_call_operand.vmem [shape: f32[1,32], index: 6, kind: input, shape index: {}, may-alias: {3,6}]
  %s7 = inlined_call_operand.vmem [shape: bf16[288,64], index: 7, kind: input, shape index: {}]
  %s8 = inlined_call_operand.vmem [shape: f32[1,64], index: 8, kind: input, shape index: {}, may-alias: {8,11}]
  %s9 = inlined_call_operand.vmem [shape: f32[1,64], index: 9, kind: input, shape index: {}, may-alias: {9,12}]
  %s10 = inlined_call_operand.vmem [shape: bf16[576,64], index: 10, kind: input, shape index: {}]
  %s11 = inlined_call_operand.vmem [shape: f32[1,64], index: 11, kind: input, shape index: {}, may-alias: {8,11}]
  %s12 = inlined_call_operand.vmem [shape: f32[1,64], index: 12, kind: input, shape index: {}, may-alias: {9,12}]
  %s13 = inlined_call_operand.vmem [shape: bf16[1024,256], index: 13, kind: input, shape index: {}]
  %s14 = inlined_call_operand.vmem [shape: f32[1,256], index: 14, kind: input, shape index: {}]
  %s15 = inlined_call_operand.vmem [shape: f32[1,256], index: 15, kind: input, shape index: {}]
  %s16 = inlined_call_operand.vmem [shape: bf16[256,8], index: 16, kind: input, shape index: {}]
  %s17 = inlined_call_operand.vmem [shape: f32[1,8], index: 17, kind: input, shape index: {}]
  %s18 = inlined_call_operand.hbm [shape: f32[2,8], index: 18, kind: output, shape index: {}]
  %s19 = sld [smem:[#allocation0]]
  $region82: #{hpc_cnn_forward.1} parent=0
    _
  %s21 = ssub.s32 1, %s19
  %s22 = scalar_select 0, %s21, %s19
  $region1: #{hpc_cnn_forward.1} parent=0
    #allocation2 [shape = 'u8[1024]{0}', space=vmem, size = 0x400, scoped, tag = 'output window, operand 0, single buffered']
    #allocation3 [shape = 's32[1]{0}', space=sflag, size = 0x4, scoped, tag = 'scoped memory for hpc_cnn_forward.1']
    %23 = vsyncpa [#allocation3], 0
    // Predicated region
    $region2: #{hpc_cnn_forward.1} parent=1 // pred_check
      _
    $region3: #{hpc_cnn_forward.1} parent=1 // pred_check_branch
      %25 = sbr.rel (0) target = $region5
    $region4: #{hpc_cnn_forward.1} parent=1 // pred_region
      _
    $region5: #{hpc_cnn_forward.1} parent=1 // pred_fallthru
      _
    // Predicated region
    $region6: #{hpc_cnn_forward.1} parent=1 // pred_check
      _
    $region7: #{hpc_cnn_forward.1} parent=1 // pred_check_branch
      %27 = sbr.rel (0) target = $region9
    $region8: #{hpc_cnn_forward.1} parent=1 // pred_region
      _
    $region9: #{hpc_cnn_forward.1} parent=1 // pred_fallthru
      _
    // Predicated region
    $region10: #{hpc_cnn_forward.1} parent=1 // pred_check
      _
    $region11: #{hpc_cnn_forward.1} parent=1 // pred_check_branch
      %29 = sbr.rel (0) target = $region13
    $region12: #{hpc_cnn_forward.1} parent=1 // pred_region
      _
    $region13: #{hpc_cnn_forward.1} parent=1 // pred_fallthru
      _
    // Predicated region
    $region14: #{hpc_cnn_forward.1} parent=1 // pred_check
      _
    $region15: #{hpc_cnn_forward.1} parent=1 // pred_check_branch
      %31 = sbr.rel (0) target = $region17
    $region16: #{hpc_cnn_forward.1} parent=1 // pred_region
      _
    $region17: #{hpc_cnn_forward.1} parent=1 // pred_fallthru
      _
    // Predicated region
    $region18: #{hpc_cnn_forward.1} parent=1 // pred_check
      _
    $region19: #{hpc_cnn_forward.1} parent=1 // pred_check_branch
      %33 = sbr.rel (0) target = $region21
    $region20: #{hpc_cnn_forward.1} parent=1 // pred_region
      _
    $region21: #{hpc_cnn_forward.1} parent=1 // pred_fallthru
      _
    // Predicated region
    $region22: #{hpc_cnn_forward.1} parent=1 // pred_check
      _
    $region23: #{hpc_cnn_forward.1} parent=1 // pred_check_branch
      %35 = sbr.rel (0) target = $region25
    $region24: #{hpc_cnn_forward.1} parent=1 // pred_region
      _
    $region25: #{hpc_cnn_forward.1} parent=1 // pred_fallthru
      _
    // Predicated region
    $region26: #{hpc_cnn_forward.1} parent=1 // pred_check
      _
    $region27: #{hpc_cnn_forward.1} parent=1 // pred_check_branch
      %37 = sbr.rel (0) target = $region29
    $region28: #{hpc_cnn_forward.1} parent=1 // pred_region
      _
    $region29: #{hpc_cnn_forward.1} parent=1 // pred_fallthru
      _
    // Predicated region
    $region30: #{hpc_cnn_forward.1} parent=1 // pred_check
      _
    $region31: #{hpc_cnn_forward.1} parent=1 // pred_check_branch
      %39 = sbr.rel (0) target = $region33
    $region32: #{hpc_cnn_forward.1} parent=1 // pred_region
      _
    $region33: #{hpc_cnn_forward.1} parent=1 // pred_fallthru
      _
    // Predicated region
    $region34: #{hpc_cnn_forward.1} parent=1 // pred_check
      _
    $region35: #{hpc_cnn_forward.1} parent=1 // pred_check_branch
      %41 = sbr.rel (0) target = $region37
    $region36: #{hpc_cnn_forward.1} parent=1 // pred_region
      _
    $region37: #{hpc_cnn_forward.1} parent=1 // pred_fallthru
      _
    // Predicated region
    $region38: #{hpc_cnn_forward.1} parent=1 // pred_check
      _
    $region39: #{hpc_cnn_forward.1} parent=1 // pred_check_branch
      %43 = sbr.rel (0) target = $region41
    $region40: #{hpc_cnn_forward.1} parent=1 // pred_region
      _
    $region41: #{hpc_cnn_forward.1} parent=1 // pred_fallthru
      _
    // Predicated region
    $region42: #{hpc_cnn_forward.1} parent=1 // pred_check
      _
    $region43: #{hpc_cnn_forward.1} parent=1 // pred_check_branch
      %45 = sbr.rel (0) target = $region45
    $region44: #{hpc_cnn_forward.1} parent=1 // pred_region
      _
    $region45: #{hpc_cnn_forward.1} parent=1 // pred_fallthru
      _
    // Predicated region
    $region46: #{hpc_cnn_forward.1} parent=1 // pred_check
      _
    $region47: #{hpc_cnn_forward.1} parent=1 // pred_check_branch
      %47 = sbr.rel (0) target = $region49
    $region48: #{hpc_cnn_forward.1} parent=1 // pred_region
      _
    $region49: #{hpc_cnn_forward.1} parent=1 // pred_fallthru
      _
    // Predicated region
    $region50: #{hpc_cnn_forward.1} parent=1 // pred_check
      _
    $region51: #{hpc_cnn_forward.1} parent=1 // pred_check_branch
      %49 = sbr.rel (0) target = $region53
    $region52: #{hpc_cnn_forward.1} parent=1 // pred_region
      _
    $region53: #{hpc_cnn_forward.1} parent=1 // pred_fallthru
      _
    // Predicated region
    $region54: #{hpc_cnn_forward.1} parent=1 // pred_check
      _
    $region55: #{hpc_cnn_forward.1} parent=1 // pred_check_branch
      %51 = sbr.rel (0) target = $region57
    $region56: #{hpc_cnn_forward.1} parent=1 // pred_region
      _
    $region57: #{hpc_cnn_forward.1} parent=1 // pred_fallthru
      _
    // Predicated region
    $region58: #{hpc_cnn_forward.1} parent=1 // pred_check
      _
    $region59: #{hpc_cnn_forward.1} parent=1 // pred_check_branch
      %53 = sbr.rel (0) target = $region61
    $region60: #{hpc_cnn_forward.1} parent=1 // pred_region
      _
    $region61: #{hpc_cnn_forward.1} parent=1 // pred_fallthru
      _
    // Predicated region
    $region62: #{hpc_cnn_forward.1} parent=1 // pred_check
      _
    $region63: #{hpc_cnn_forward.1} parent=1 // pred_check_branch
      %55 = sbr.rel (0) target = $region65
    $region64: #{hpc_cnn_forward.1} parent=1 // pred_region
      _
    $region65: #{hpc_cnn_forward.1} parent=1 // pred_fallthru
      _
    // Predicated region
    $region66: #{hpc_cnn_forward.1} parent=1 // pred_check
      _
    $region67: #{hpc_cnn_forward.1} parent=1 // pred_check_branch
      %57 = sbr.rel (0) target = $region69
    $region68: #{hpc_cnn_forward.1} parent=1 // pred_region
      _
    $region69: #{hpc_cnn_forward.1} parent=1 // pred_fallthru
      _
    // Predicated region
    $region70: #{hpc_cnn_forward.1} parent=1 // pred_check
      _
    $region71: #{hpc_cnn_forward.1} parent=1 // pred_check_branch
      %59 = sbr.rel (0) target = $region73
    $region72: #{hpc_cnn_forward.1} parent=1 // pred_region
      _
    $region73: #{hpc_cnn_forward.1} parent=1 // pred_fallthru
      _
    %v61 = vld [vmem:[%s0] sm:$0xff]
    %v62 = vld [vmem:[%s0 + $0x8] sm:$0xff]
    %v63 = vld [vmem:[%s0 + $0x10] sm:$0xff]
    %v64 = vld [vmem:[%s0 + $0x18] sm:$0xff]
    %v65 = vld [vmem:[%s0 + $0x20] sm:$0xff]
    %v66 = vld [vmem:[%s0 + $0x28] sm:$0xff]
    %v67 = vld [vmem:[%s0 + $0x30] sm:$0xff]
    %v68 = vld [vmem:[%s0 + $0x38] sm:$0xff]
    %v69 = vld [vmem:[%s0 + $0x40] sm:$0xff]
    %v70 = vld [vmem:[%s0 + $0x48] sm:$0xff]
    %v71 = vld [vmem:[%s0 + $0x50] sm:$0xff]
    %v72 = vld [vmem:[%s0 + $0x58] sm:$0xff]
    %v73 = vld [vmem:[%s0 + $0x60] sm:$0xff]
    %v74 = vld [vmem:[%s0 + $0x68] sm:$0xff]
    %v75 = vld [vmem:[%s0 + $0x70] sm:$0xff]
    %v76 = vld [vmem:[%s0 + $0x78] sm:$0xff]
    %v77 = vld [vmem:[%s0 + $0x80] sm:$0xff]
    %v78 = vld [vmem:[%s0 + $0x88] sm:$0xff]
    %v79 = vld [vmem:[%s0 + $0x90] sm:$0xff]
    %v80 = vld [vmem:[%s0 + $0x98] sm:$0xff]
    %v81 = vld [vmem:[%s0 + $0xa0] sm:$0xff]
    %v82 = vld [vmem:[%s0 + $0xa8] sm:$0xff]
    %v83 = vld [vmem:[%s0 + $0xb0] sm:$0xff]
    %v84 = vld [vmem:[%s0 + $0xb8] sm:$0xff]
    %v85 = vld [vmem:[%s0 + $0xc0] sm:$0xff]
    %v86 = vld [vmem:[%s0 + $0xc8] sm:$0xff]
    %v87 = vld [vmem:[%s0 + $0xd0] sm:$0xff]
    %v88 = vld [vmem:[%s0 + $0xd8] sm:$0xff]
    %v89 = vld [vmem:[%s0 + $0xe0] sm:$0xff]
    %v90 = vld [vmem:[%s0 + $0xe8] sm:$0xff]
    %v91 = vld [vmem:[%s0 + $0xf0] sm:$0xff]
    %v92 = vld [vmem:[%s0 + $0xf8] sm:$0xff]
    %v93 = vld [vmem:[%s0 + $0x100] sm:$0xff]
    %v94 = vld [vmem:[%s0 + $0x108] sm:$0xff]
    %v95 = vld [vmem:[%s0 + $0x110] sm:$0xff]
    %v96 = vld [vmem:[%s0 + $0x118] sm:$0xff]
    %v97 = vld [vmem:[%s0 + $0x120] sm:$0xff]
    %v98 = vld [vmem:[%s0 + $0x128] sm:$0xff]
    %v99 = vld [vmem:[%s0 + $0x130] sm:$0xff]
    %v100 = vld [vmem:[%s0 + $0x138] sm:$0xff]
    %v101 = vld [vmem:[%s0 + $0x140] sm:$0xff]
    %v102 = vld [vmem:[%s0 + $0x148] sm:$0xff]
    %v103 = vld [vmem:[%s0 + $0x150] sm:$0xff]
    %v104 = vld [vmem:[%s0 + $0x158] sm:$0xff]
    %v105 = vld [vmem:[%s0 + $0x160] sm:$0xff]
    %v106 = vld [vmem:[%s0 + $0x168] sm:$0xff]
    %v107 = vld [vmem:[%s0 + $0x170] sm:$0xff]
    %v108 = vld [vmem:[%s0 + $0x178] sm:$0xff]
    %v109 = vld [vmem:[%s0 + $0x180] sm:$0xff]
    %v110 = vld [vmem:[%s0 + $0x188] sm:$0xff]
    %v111 = vld [vmem:[%s0 + $0x190] sm:$0xff]
    %v112 = vld [vmem:[%s0 + $0x198] sm:$0xff]
    %v113 = vld [vmem:[%s0 + $0x1a0] sm:$0xff]
    %v114 = vld [vmem:[%s0 + $0x1a8] sm:$0xff]
    %v115 = vld [vmem:[%s0 + $0x1b0] sm:$0xff]
    %v116 = vld [vmem:[%s0 + $0x1b8] sm:$0xff]
    %v117 = vld [vmem:[%s0 + $0x1c0] sm:$0xff]
    %v118 = vld [vmem:[%s0 + $0x1c8] sm:$0xff]
    %v119 = vld [vmem:[%s0 + $0x1d0] sm:$0xff]
    %v120 = vld [vmem:[%s0 + $0x1d8] sm:$0xff]
    %v121 = vld [vmem:[%s0 + $0x1e0] sm:$0xff]
    %v122 = vld [vmem:[%s0 + $0x1e8] sm:$0xff]
    %v123 = vld [vmem:[%s0 + $0x1f0] sm:$0xff]
    %v124 = vld [vmem:[%s0 + $0x1f8] sm:$0xff]
    %vm190 = vcmask 1040384
    %v191 = vrot.slane 0.0, 7
    %v192 = vsel %vm190, %v191, %v191
    %v193 = vrot.slane %v61, 7
    %v194 = vrot.slane %v62, 7
    %v195 = vsel %vm190, %v193, %v194
    %v196 = vrot.slane %v63, 7
    %v197 = vrot.slane %v64, 7
    %v198 = vsel %vm190, %v196, %v197
    %v199 = vrot.slane %v65, 7
    %v200 = vrot.slane %v66, 7
    %v201 = vsel %vm190, %v199, %v200
    %v202 = vrot.slane %v67, 7
    %v203 = vrot.slane %v68, 7
    %v204 = vsel %vm190, %v202, %v203
    %v205 = vrot.slane %v69, 7
    %v206 = vrot.slane %v70, 7
    %v207 = vsel %vm190, %v205, %v206
    %v208 = vrot.slane %v71, 7
    %v209 = vrot.slane %v72, 7
    %v210 = vsel %vm190, %v208, %v209
    %v211 = vrot.slane %v73, 7
    %v212 = vrot.slane %v74, 7
    %v213 = vsel %vm190, %v211, %v212
    %v214 = vrot.slane %v75, 7
    %v215 = vrot.slane %v76, 7
    %v216 = vsel %vm190, %v214, %v215
    %v217 = vrot.slane %v77, 7
    %v218 = vrot.slane %v78, 7
    %v219 = vsel %vm190, %v217, %v218
    %v220 = vrot.slane %v79, 7
    %v221 = vrot.slane %v80, 7
    %v222 = vsel %vm190, %v220, %v221
    %v223 = vrot.slane %v81, 7
    %v224 = vrot.slane %v82, 7
    %v225 = vsel %vm190, %v223, %v224
    %v226 = vrot.slane %v83, 7
    %v227 = vrot.slane %v84, 7
    %v228 = vsel %vm190, %v226, %v227
    %v229 = vrot.slane %v85, 7
    %v230 = vrot.slane %v86, 7
    %v231 = vsel %vm190, %v229, %v230
    %v232 = vrot.slane %v87, 7
    %v233 = vrot.slane %v88, 7
    %v234 = vsel %vm190, %v232, %v233
    %v235 = vrot.slane %v89, 7
    %v236 = vrot.slane %v90, 7
    %v237 = vsel %vm190, %v235, %v236
    %v238 = vrot.slane %v91, 7
    %v239 = vrot.slane %v92, 7
    %v240 = vsel %vm190, %v238, %v239
    %v241 = vrot.slane %v93, 7
    %v242 = vrot.slane %v94, 7
    %v243 = vsel %vm190, %v241, %v242
    %v244 = vrot.slane %v95, 7
    %v245 = vrot.slane %v96, 7
    %v246 = vsel %vm190, %v244, %v245
    %v247 = vrot.slane %v97, 7
    %v248 = vrot.slane %v98, 7
    %v249 = vsel %vm190, %v247, %v248
    %v250 = vrot.slane %v99, 7
    %v251 = vrot.slane %v100, 7
    %v252 = vsel %vm190, %v250, %v251
    %v253 = vrot.slane %v101, 7
    %v254 = vrot.slane %v102, 7
    %v255 = vsel %vm190, %v253, %v254
    %v256 = vrot.slane %v103, 7
    %v257 = vrot.slane %v104, 7
    %v258 = vsel %vm190, %v256, %v257
    %v259 = vrot.slane %v105, 7
    %v260 = vrot.slane %v106, 7
    %v261 = vsel %vm190, %v259, %v260
    %v262 = vrot.slane %v107, 7
    %v263 = vrot.slane %v108, 7
    %v264 = vsel %vm190, %v262, %v263
    %v265 = vrot.slane %v109, 7
    %v266 = vrot.slane %v110, 7
    %v267 = vsel %vm190, %v265, %v266
    %v268 = vrot.slane %v111, 7
    %v269 = vrot.slane %v112, 7
    %v270 = vsel %vm190, %v268, %v269
    %v271 = vrot.slane %v113, 7
    %v272 = vrot.slane %v114, 7
    %v273 = vsel %vm190, %v271, %v272
    %v274 = vrot.slane %v115, 7
    %v275 = vrot.slane %v116, 7
    %v276 = vsel %vm190, %v274, %v275
    %v277 = vrot.slane %v117, 7
    %v278 = vrot.slane %v118, 7
    %v279 = vsel %vm190, %v277, %v278
    %v280 = vrot.slane %v119, 7
    %v281 = vrot.slane %v120, 7
    %v282 = vsel %vm190, %v280, %v281
    %v283 = vrot.slane %v121, 7
    %v284 = vrot.slane %v122, 7
    %v285 = vsel %vm190, %v283, %v284
    %v286 = vrot.slane %v123, 7
    %v287 = vrot.slane %v124, 7
    %v288 = vsel %vm190, %v286, %v287
    %v354 = vsel %vm190, 0.0, %v191
    %v355 = vsel %vm190, 0.0, %v193
    %v356 = vsel %vm190, 0.0, %v196
    %v357 = vsel %vm190, 0.0, %v199
    %v358 = vsel %vm190, 0.0, %v202
    %v359 = vsel %vm190, 0.0, %v205
    %v360 = vsel %vm190, 0.0, %v208
    %v361 = vsel %vm190, 0.0, %v211
    %v362 = vsel %vm190, 0.0, %v214
    %v363 = vsel %vm190, 0.0, %v217
    %v364 = vsel %vm190, 0.0, %v220
    %v365 = vsel %vm190, 0.0, %v223
    %v366 = vsel %vm190, 0.0, %v226
    %v367 = vsel %vm190, 0.0, %v229
    %v368 = vsel %vm190, 0.0, %v232
    %v369 = vsel %vm190, 0.0, %v235
    %v370 = vsel %vm190, 0.0, %v238
    %v371 = vsel %vm190, 0.0, %v241
    %v372 = vsel %vm190, 0.0, %v244
    %v373 = vsel %vm190, 0.0, %v247
    %v374 = vsel %vm190, 0.0, %v250
    %v375 = vsel %vm190, 0.0, %v253
    %v376 = vsel %vm190, 0.0, %v256
    %v377 = vsel %vm190, 0.0, %v259
    %v378 = vsel %vm190, 0.0, %v262
    %v379 = vsel %vm190, 0.0, %v265
    %v380 = vsel %vm190, 0.0, %v268
    %v381 = vsel %vm190, 0.0, %v271
    %v382 = vsel %vm190, 0.0, %v274
    %v383 = vsel %vm190, 0.0, %v277
    %v384 = vsel %vm190, 0.0, %v280
    %v385 = vsel %vm190, 0.0, %v283
    %v386 = vsel %vm190, 0.0, %v286
    %v387 = vsel %vm190, %v191, 0.0
    %v388 = vsel %vm190, %v194, 0.0
    %v389 = vsel %vm190, %v197, 0.0
    %v390 = vsel %vm190, %v200, 0.0
    %v391 = vsel %vm190, %v203, 0.0
    %v392 = vsel %vm190, %v206, 0.0
    %v393 = vsel %vm190, %v209, 0.0
    %v394 = vsel %vm190, %v212, 0.0
    %v395 = vsel %vm190, %v215, 0.0
    %v396 = vsel %vm190, %v218, 0.0
    %v397 = vsel %vm190, %v221, 0.0
    %v398 = vsel %vm190, %v224, 0.0
    %v399 = vsel %vm190, %v227, 0.0
    %v400 = vsel %vm190, %v230, 0.0
    %v401 = vsel %vm190, %v233, 0.0
    %v402 = vsel %vm190, %v236, 0.0
    %v403 = vsel %vm190, %v239, 0.0
    %v404 = vsel %vm190, %v242, 0.0
    %v405 = vsel %vm190, %v245, 0.0
    %v406 = vsel %vm190, %v248, 0.0
    %v407 = vsel %vm190, %v251, 0.0
    %v408 = vsel %vm190, %v254, 0.0
    %v409 = vsel %vm190, %v257, 0.0
    %v410 = vsel %vm190, %v260, 0.0
    %v411 = vsel %vm190, %v263, 0.0
    %v412 = vsel %vm190, %v266, 0.0
    %v413 = vsel %vm190, %v269, 0.0
    %v414 = vsel %vm190, %v272, 0.0
    %v415 = vsel %vm190, %v275, 0.0
    %v416 = vsel %vm190, %v278, 0.0
    %v417 = vsel %vm190, %v281, 0.0
    %v418 = vsel %vm190, %v284, 0.0
    %v419 = vsel %vm190, %v287, 0.0
    %v420 = vld [vmem:[%s1] sm:$0xff]
    %v421 = vld [vmem:[%s1 + $0x8] sm:$0x1]
    %423 = vset.pattern.permute.xlu0 0
    %424 = vperm.xlu0 %423, %v354
    %v425 = vpop.permute.xlu0 %424
    %427 = vset.pattern.permute.xlu0 0
    %428 = vperm.xlu0 %427, %v192
    %v429 = vpop.permute.xlu0 %428
    %432 = vset.pattern.permute.xlu0 0
    %433 = vperm.xlu0 %432, %v355
    %v434 = vpop.permute.xlu0 %433
    %436 = vset.pattern.permute.xlu0 0
    %437 = vperm.xlu0 %436, %v195
    %v438 = vpop.permute.xlu0 %437
    %441 = vset.pattern.permute.xlu0 0
    %442 = vperm.xlu0 %441, %v356
    %v443 = vpop.permute.xlu0 %442
    %445 = vset.pattern.permute.xlu0 0
    %446 = vperm.xlu0 %445, %v198
    %v447 = vpop.permute.xlu0 %446
    %450 = vset.pattern.permute.xlu0 0
    %451 = vperm.xlu0 %450, %v357
    %v452 = vpop.permute.xlu0 %451
    %454 = vset.pattern.permute.xlu0 0
    %455 = vperm.xlu0 %454, %v201
    %v456 = vpop.permute.xlu0 %455
    %459 = vset.pattern.permute.xlu0 0
    %460 = vperm.xlu0 %459, %v358
    %v461 = vpop.permute.xlu0 %460
    %463 = vset.pattern.permute.xlu0 0
    %464 = vperm.xlu0 %463, %v204
    %v465 = vpop.permute.xlu0 %464
    %468 = vset.pattern.permute.xlu0 0
    %469 = vperm.xlu0 %468, %v359
    %v470 = vpop.permute.xlu0 %469
    %472 = vset.pattern.permute.xlu0 0
    %473 = vperm.xlu0 %472, %v207
    %v474 = vpop.permute.xlu0 %473
    %477 = vset.pattern.permute.xlu0 0
    %478 = vperm.xlu0 %477, %v360
    %v479 = vpop.permute.xlu0 %478
    %481 = vset.pattern.permute.xlu0 0
    %482 = vperm.xlu0 %481, %v210
    %v483 = vpop.permute.xlu0 %482
    %486 = vset.pattern.permute.xlu0 0
    %487 = vperm.xlu0 %486, %v361
    %v488 = vpop.permute.xlu0 %487
    %490 = vset.pattern.permute.xlu0 0
    %491 = vperm.xlu0 %490, %v213
    %v492 = vpop.permute.xlu0 %491
    %495 = vset.pattern.permute.xlu0 0
    %496 = vperm.xlu0 %495, %v362
    %v497 = vpop.permute.xlu0 %496
    %499 = vset.pattern.permute.xlu0 0
    %500 = vperm.xlu0 %499, %v216
    %v501 = vpop.permute.xlu0 %500
    %504 = vset.pattern.permute.xlu0 0
    %505 = vperm.xlu0 %504, %v363
    %v506 = vpop.permute.xlu0 %505
    %508 = vset.pattern.permute.xlu0 0
    %509 = vperm.xlu0 %508, %v219
    %v510 = vpop.permute.xlu0 %509
    %513 = vset.pattern.permute.xlu0 0
    %514 = vperm.xlu0 %513, %v364
    %v515 = vpop.permute.xlu0 %514
    %517 = vset.pattern.permute.xlu0 0
    %518 = vperm.xlu0 %517, %v222
    %v519 = vpop.permute.xlu0 %518
    %522 = vset.pattern.permute.xlu0 0
    %523 = vperm.xlu0 %522, %v365
    %v524 = vpop.permute.xlu0 %523
    %526 = vset.pattern.permute.xlu0 0
    %527 = vperm.xlu0 %526, %v225
    %v528 = vpop.permute.xlu0 %527
    %531 = vset.pattern.permute.xlu0 0
    %532 = vperm.xlu0 %531, %v366
    %v533 = vpop.permute.xlu0 %532
    %535 = vset.pattern.permute.xlu0 0
    %536 = vperm.xlu0 %535, %v228
    %v537 = vpop.permute.xlu0 %536
    %540 = vset.pattern.permute.xlu0 0
    %541 = vperm.xlu0 %540, %v367
    %v542 = vpop.permute.xlu0 %541
    %544 = vset.pattern.permute.xlu0 0
    %545 = vperm.xlu0 %544, %v231
    %v546 = vpop.permute.xlu0 %545
    %549 = vset.pattern.permute.xlu0 0
    %550 = vperm.xlu0 %549, %v368
    %v551 = vpop.permute.xlu0 %550
    %553 = vset.pattern.permute.xlu0 0
    %554 = vperm.xlu0 %553, %v234
    %v555 = vpop.permute.xlu0 %554
    %558 = vset.pattern.permute.xlu0 0
    %559 = vperm.xlu0 %558, %v369
    %v560 = vpop.permute.xlu0 %559
    %562 = vset.pattern.permute.xlu0 0
    %563 = vperm.xlu0 %562, %v237
    %v564 = vpop.permute.xlu0 %563
    %567 = vset.pattern.permute.xlu0 0
    %568 = vperm.xlu0 %567, %v371
    %v569 = vpop.permute.xlu0 %568
    %571 = vset.pattern.permute.xlu0 0
    %572 = vperm.xlu0 %571, %v243
    %v573 = vpop.permute.xlu0 %572
    %576 = vset.pattern.permute.xlu0 0
    %577 = vperm.xlu0 %576, %v372
    %v578 = vpop.permute.xlu0 %577
    %580 = vset.pattern.permute.xlu0 0
    %581 = vperm.xlu0 %580, %v246
    %v582 = vpop.permute.xlu0 %581
    %585 = vset.pattern.permute.xlu0 0
    %586 = vperm.xlu0 %585, %v373
    %v587 = vpop.permute.xlu0 %586
    %589 = vset.pattern.permute.xlu0 0
    %590 = vperm.xlu0 %589, %v249
    %v591 = vpop.permute.xlu0 %590
    %594 = vset.pattern.permute.xlu0 0
    %595 = vperm.xlu0 %594, %v374
    %v596 = vpop.permute.xlu0 %595
    %598 = vset.pattern.permute.xlu0 0
    %599 = vperm.xlu0 %598, %v252
    %v600 = vpop.permute.xlu0 %599
    %603 = vset.pattern.permute.xlu0 0
    %604 = vperm.xlu0 %603, %v375
    %v605 = vpop.permute.xlu0 %604
    %607 = vset.pattern.permute.xlu0 0
    %608 = vperm.xlu0 %607, %v255
    %v609 = vpop.permute.xlu0 %608
    %612 = vset.pattern.permute.xlu0 0
    %613 = vperm.xlu0 %612, %v376
    %v614 = vpop.permute.xlu0 %613
    %616 = vset.pattern.permute.xlu0 0
    %617 = vperm.xlu0 %616, %v258
    %v618 = vpop.permute.xlu0 %617
    %621 = vset.pattern.permute.xlu0 0
    %622 = vperm.xlu0 %621, %v377
    %v623 = vpop.permute.xlu0 %622
    %625 = vset.pattern.permute.xlu0 0
    %626 = vperm.xlu0 %625, %v261
    %v627 = vpop.permute.xlu0 %626
    %630 = vset.pattern.permute.xlu0 0
    %631 = vperm.xlu0 %630, %v378
    %v632 = vpop.permute.xlu0 %631
    %634 = vset.pattern.permute.xlu0 0
    %635 = vperm.xlu0 %634, %v264
    %v636 = vpop.permute.xlu0 %635
    %639 = vset.pattern.permute.xlu0 0
    %640 = vperm.xlu0 %639, %v379
    %v641 = vpop.permute.xlu0 %640
    %643 = vset.pattern.permute.xlu0 0
    %644 = vperm.xlu0 %643, %v267
    %v645 = vpop.permute.xlu0 %644
    %648 = vset.pattern.permute.xlu0 0
    %649 = vperm.xlu0 %648, %v380
    %v650 = vpop.permute.xlu0 %649
    %652 = vset.pattern.permute.xlu0 0
    %653 = vperm.xlu0 %652, %v270
    %v654 = vpop.permute.xlu0 %653
    %657 = vset.pattern.permute.xlu0 0
    %658 = vperm.xlu0 %657, %v381
    %v659 = vpop.permute.xlu0 %658
    %661 = vset.pattern.permute.xlu0 0
    %662 = vperm.xlu0 %661, %v273
    %v663 = vpop.permute.xlu0 %662
    %666 = vset.pattern.permute.xlu0 0
    %667 = vperm.xlu0 %666, %v382
    %v668 = vpop.permute.xlu0 %667
    %670 = vset.pattern.permute.xlu0 0
    %671 = vperm.xlu0 %670, %v276
    %v672 = vpop.permute.xlu0 %671
    %675 = vset.pattern.permute.xlu0 0
    %676 = vperm.xlu0 %675, %v383
    %v677 = vpop.permute.xlu0 %676
    %679 = vset.pattern.permute.xlu0 0
    %680 = vperm.xlu0 %679, %v279
    %v681 = vpop.permute.xlu0 %680
    %684 = vset.pattern.permute.xlu0 0
    %685 = vperm.xlu0 %684, %v384
    %v686 = vpop.permute.xlu0 %685
    %688 = vset.pattern.permute.xlu0 0
    %689 = vperm.xlu0 %688, %v282
    %v690 = vpop.permute.xlu0 %689
    %693 = vset.pattern.permute.xlu0 0
    %694 = vperm.xlu0 %693, %v385
    %v695 = vpop.permute.xlu0 %694
    %697 = vset.pattern.permute.xlu0 0
    %698 = vperm.xlu0 %697, %v285
    %v699 = vpop.permute.xlu0 %698
    %v701 = vlaneseq
    %v702 = vshrl.u32 %v701, 7
    %v703 = vsub.s32 0, %v702
    %v704 = vrot.slane %v420, %v703
    %v705 = vmul.f32 %v425, %v704
    %v706 = vmul.f32 %v429, %v704
    %v707 = vmul.f32 %v434, %v704
    %v708 = vmul.f32 %v438, %v704
    %v709 = vmul.f32 %v443, %v704
    %v710 = vmul.f32 %v447, %v704
    %v711 = vmul.f32 %v452, %v704
    %v712 = vmul.f32 %v456, %v704
    %v713 = vmul.f32 %v461, %v704
    %v714 = vmul.f32 %v465, %v704
    %v715 = vmul.f32 %v470, %v704
    %v716 = vmul.f32 %v474, %v704
    %v717 = vmul.f32 %v479, %v704
    %v718 = vmul.f32 %v483, %v704
    %v719 = vmul.f32 %v488, %v704
    %v720 = vmul.f32 %v492, %v704
    %v721 = vmul.f32 %v497, %v704
    %v722 = vmul.f32 %v501, %v704
    %v723 = vmul.f32 %v506, %v704
    %v724 = vmul.f32 %v510, %v704
    %v725 = vmul.f32 %v515, %v704
    %v726 = vmul.f32 %v519, %v704
    %v727 = vmul.f32 %v524, %v704
    %v728 = vmul.f32 %v528, %v704
    %v729 = vmul.f32 %v533, %v704
    %v730 = vmul.f32 %v537, %v704
    %v731 = vmul.f32 %v542, %v704
    %v732 = vmul.f32 %v546, %v704
    %v733 = vmul.f32 %v551, %v704
    %v734 = vmul.f32 %v555, %v704
    %v735 = vmul.f32 %v560, %v704
    %v736 = vmul.f32 %v564, %v704
    %v737 = vmul.f32 %v569, %v704
    %v738 = vmul.f32 %v573, %v704
    %v739 = vmul.f32 %v578, %v704
    %v740 = vmul.f32 %v582, %v704
    %v741 = vmul.f32 %v587, %v704
    %v742 = vmul.f32 %v591, %v704
    %v743 = vmul.f32 %v596, %v704
    %v744 = vmul.f32 %v600, %v704
    %v745 = vmul.f32 %v605, %v704
    %v746 = vmul.f32 %v609, %v704
    %v747 = vmul.f32 %v614, %v704
    %v748 = vmul.f32 %v618, %v704
    %v749 = vmul.f32 %v623, %v704
    %v750 = vmul.f32 %v627, %v704
    %v751 = vmul.f32 %v632, %v704
    %v752 = vmul.f32 %v636, %v704
    %v753 = vmul.f32 %v641, %v704
    %v754 = vmul.f32 %v645, %v704
    %v755 = vmul.f32 %v650, %v704
    %v756 = vmul.f32 %v654, %v704
    %v757 = vmul.f32 %v659, %v704
    %v758 = vmul.f32 %v663, %v704
    %v759 = vmul.f32 %v668, %v704
    %v760 = vmul.f32 %v672, %v704
    %v761 = vmul.f32 %v677, %v704
    %v762 = vmul.f32 %v681, %v704
    %v763 = vmul.f32 %v686, %v704
    %v764 = vmul.f32 %v690, %v704
    %v765 = vmul.f32 %v695, %v704
    %v766 = vmul.f32 %v699, %v704
    %v767 = vadd.f32 %v705, 0.0
    %v768 = vadd.f32 %v706, 0.0
    %v769 = vadd.f32 %v707, 0.0
    %v770 = vadd.f32 %v708, 0.0
    %v771 = vadd.f32 %v709, 0.0
    %v772 = vadd.f32 %v710, 0.0
    %v773 = vadd.f32 %v711, 0.0
    %v774 = vadd.f32 %v712, 0.0
    %v775 = vadd.f32 %v713, 0.0
    %v776 = vadd.f32 %v714, 0.0
    %v777 = vadd.f32 %v715, 0.0
    %v778 = vadd.f32 %v716, 0.0
    %v779 = vadd.f32 %v717, 0.0
    %v780 = vadd.f32 %v718, 0.0
    %v781 = vadd.f32 %v719, 0.0
    %v782 = vadd.f32 %v720, 0.0
    %v783 = vadd.f32 %v721, 0.0
    %v784 = vadd.f32 %v722, 0.0
    %v785 = vadd.f32 %v723, 0.0
    %v786 = vadd.f32 %v724, 0.0
    %v787 = vadd.f32 %v725, 0.0
    %v788 = vadd.f32 %v726, 0.0
    %v789 = vadd.f32 %v727, 0.0
    %v790 = vadd.f32 %v728, 0.0
    %v791 = vadd.f32 %v729, 0.0
    %v792 = vadd.f32 %v730, 0.0
    %v793 = vadd.f32 %v731, 0.0
    %v794 = vadd.f32 %v732, 0.0
    %v795 = vadd.f32 %v733, 0.0
    %v796 = vadd.f32 %v734, 0.0
    %v797 = vadd.f32 %v735, 0.0
    %v798 = vadd.f32 %v736, 0.0
    %v799 = vadd.f32 %v737, 0.0
    %v800 = vadd.f32 %v738, 0.0
    %v801 = vadd.f32 %v739, 0.0
    %v802 = vadd.f32 %v740, 0.0
    %v803 = vadd.f32 %v741, 0.0
    %v804 = vadd.f32 %v742, 0.0
    %v805 = vadd.f32 %v743, 0.0
    %v806 = vadd.f32 %v744, 0.0
    %v807 = vadd.f32 %v745, 0.0
    %v808 = vadd.f32 %v746, 0.0
    %v809 = vadd.f32 %v747, 0.0
    %v810 = vadd.f32 %v748, 0.0
    %v811 = vadd.f32 %v749, 0.0
    %v812 = vadd.f32 %v750, 0.0
    %v813 = vadd.f32 %v751, 0.0
    %v814 = vadd.f32 %v752, 0.0
    %v815 = vadd.f32 %v753, 0.0
    %v816 = vadd.f32 %v754, 0.0
    %v817 = vadd.f32 %v755, 0.0
    %v818 = vadd.f32 %v756, 0.0
    %v819 = vadd.f32 %v757, 0.0
    %v820 = vadd.f32 %v758, 0.0
    %v821 = vadd.f32 %v759, 0.0
    %v822 = vadd.f32 %v760, 0.0
    %v823 = vadd.f32 %v761, 0.0
    %v824 = vadd.f32 %v762, 0.0
    %v825 = vadd.f32 %v763, 0.0
    %v826 = vadd.f32 %v764, 0.0
    %v827 = vadd.f32 %v765, 0.0
    %v828 = vadd.f32 %v766, 0.0
    %830 = vset.pattern.permute.xlu0 0
    %831 = vperm.xlu0 %830, %v387
    %v832 = vpop.permute.xlu0 %831
    %835 = vset.pattern.permute.xlu0 0
    %836 = vperm.xlu0 %835, %v388
    %v837 = vpop.permute.xlu0 %836
    %840 = vset.pattern.permute.xlu0 0
    %841 = vperm.xlu0 %840, %v389
    %v842 = vpop.permute.xlu0 %841
    %845 = vset.pattern.permute.xlu0 0
    %846 = vperm.xlu0 %845, %v390
    %v847 = vpop.permute.xlu0 %846
    %850 = vset.pattern.permute.xlu0 0
    %851 = vperm.xlu0 %850, %v391
    %v852 = vpop.permute.xlu0 %851
    %855 = vset.pattern.permute.xlu0 0
    %856 = vperm.xlu0 %855, %v392
    %v857 = vpop.permute.xlu0 %856
    %860 = vset.pattern.permute.xlu0 0
    %861 = vperm.xlu0 %860, %v393
    %v862 = vpop.permute.xlu0 %861
    %865 = vset.pattern.permute.xlu0 0
    %866 = vperm.xlu0 %865, %v394
    %v867 = vpop.permute.xlu0 %866
    %870 = vset.pattern.permute.xlu0 0
    %871 = vperm.xlu0 %870, %v395
    %v872 = vpop.permute.xlu0 %871
    %875 = vset.pattern.permute.xlu0 0
    %876 = vperm.xlu0 %875, %v396
    %v877 = vpop.permute.xlu0 %876
    %880 = vset.pattern.permute.xlu0 0
    %881 = vperm.xlu0 %880, %v397
    %v882 = vpop.permute.xlu0 %881
    %885 = vset.pattern.permute.xlu0 0
    %886 = vperm.xlu0 %885, %v398
    %v887 = vpop.permute.xlu0 %886
    %890 = vset.pattern.permute.xlu0 0
    %891 = vperm.xlu0 %890, %v399
    %v892 = vpop.permute.xlu0 %891
    %895 = vset.pattern.permute.xlu0 0
    %896 = vperm.xlu0 %895, %v400
    %v897 = vpop.permute.xlu0 %896
    %900 = vset.pattern.permute.xlu0 0
    %901 = vperm.xlu0 %900, %v401
    %v902 = vpop.permute.xlu0 %901
    %905 = vset.pattern.permute.xlu0 0
    %906 = vperm.xlu0 %905, %v402
    %v907 = vpop.permute.xlu0 %906
    %910 = vset.pattern.permute.xlu0 0
    %911 = vperm.xlu0 %910, %v404
    %v912 = vpop.permute.xlu0 %911
    %915 = vset.pattern.permute.xlu0 0
    %916 = vperm.xlu0 %915, %v405
    %v917 = vpop.permute.xlu0 %916
    %920 = vset.pattern.permute.xlu0 0
    %921 = vperm.xlu0 %920, %v406
    %v922 = vpop.permute.xlu0 %921
    %925 = vset.pattern.permute.xlu0 0
    %926 = vperm.xlu0 %925, %v407
    %v927 = vpop.permute.xlu0 %926
    %930 = vset.pattern.permute.xlu0 0
    %931 = vperm.xlu0 %930, %v408
    %v932 = vpop.permute.xlu0 %931
    %935 = vset.pattern.permute.xlu0 0
    %936 = vperm.xlu0 %935, %v409
    %v937 = vpop.permute.xlu0 %936
    %940 = vset.pattern.permute.xlu0 0
    %941 = vperm.xlu0 %940, %v410
    %v942 = vpop.permute.xlu0 %941
    %945 = vset.pattern.permute.xlu0 0
    %946 = vperm.xlu0 %945, %v411
    %v947 = vpop.permute.xlu0 %946
    %950 = vset.pattern.permute.xlu0 0
    %951 = vperm.xlu0 %950, %v412
    %v952 = vpop.permute.xlu0 %951
    %955 = vset.pattern.permute.xlu0 0
    %956 = vperm.xlu0 %955, %v413
    %v957 = vpop.permute.xlu0 %956
    %960 = vset.pattern.permute.xlu0 0
    %961 = vperm.xlu0 %960, %v414
    %v962 = vpop.permute.xlu0 %961
    %965 = vset.pattern.permute.xlu0 0
    %966 = vperm.xlu0 %965, %v415
    %v967 = vpop.permute.xlu0 %966
    %970 = vset.pattern.permute.xlu0 0
    %971 = vperm.xlu0 %970, %v416
    %v972 = vpop.permute.xlu0 %971
    %975 = vset.pattern.permute.xlu0 0
    %976 = vperm.xlu0 %975, %v417
    %v977 = vpop.permute.xlu0 %976
    %980 = vset.pattern.permute.xlu0 0
    %981 = vperm.xlu0 %980, %v418
    %v982 = vpop.permute.xlu0 %981
    %v984 = vlaneseq
    %v985 = vshrl.u32 %v984, 7
    %v986 = vsub.s32 1, %v985
    %v987 = vrot.slane %v420, %v986
    %v988 = vmul.f32 %v425, %v987
    %v989 = vmul.f32 %v429, %v987
    %v990 = vmul.f32 %v832, %v987
    %v991 = vmul.f32 %v434, %v987
    %v992 = vmul.f32 %v438, %v987
    %v993 = vmul.f32 %v837, %v987
    %v994 = vmul.f32 %v443, %v987
    %v995 = vmul.f32 %v447, %v987
    %v996 = vmul.f32 %v842, %v987
    %v997 = vmul.f32 %v452, %v987
    %v998 = vmul.f32 %v456, %v987
    %v999 = vmul.f32 %v847, %v987
    %v1000 = vmul.f32 %v461, %v987
    %v1001 = vmul.f32 %v465, %v987
    %v1002 = vmul.f32 %v852, %v987
    %v1003 = vmul.f32 %v470, %v987
    %v1004 = vmul.f32 %v474, %v987
    %v1005 = vmul.f32 %v857, %v987
    %v1006 = vmul.f32 %v479, %v987
    %v1007 = vmul.f32 %v483, %v987
    %v1008 = vmul.f32 %v862, %v987
    %v1009 = vmul.f32 %v488, %v987
    %v1010 = vmul.f32 %v492, %v987
    %v1011 = vmul.f32 %v867, %v987
    %v1012 = vmul.f32 %v497, %v987
    %v1013 = vmul.f32 %v501, %v987
    %v1014 = vmul.f32 %v872, %v987
    %v1015 = vmul.f32 %v506, %v987
    %v1016 = vmul.f32 %v510, %v987
    %v1017 = vmul.f32 %v877, %v987
    %v1018 = vmul.f32 %v515, %v987
    %v1019 = vmul.f32 %v519, %v987
    %v1020 = vmul.f32 %v882, %v987
    %v1021 = vmul.f32 %v524, %v987
    %v1022 = vmul.f32 %v528, %v987
    %v1023 = vmul.f32 %v887, %v987
    %v1024 = vmul.f32 %v533, %v987
    %v1025 = vmul.f32 %v537, %v987
    %v1026 = vmul.f32 %v892, %v987
    %v1027 = vmul.f32 %v542, %v987
    %v1028 = vmul.f32 %v546, %v987
    %v1029 = vmul.f32 %v897, %v987
    %v1030 = vmul.f32 %v551, %v987
    %v1031 = vmul.f32 %v555, %v987
    %v1032 = vmul.f32 %v902, %v987
    %v1033 = vmul.f32 %v560, %v987
    %v1034 = vmul.f32 %v564, %v987
    %v1035 = vmul.f32 %v907, %v987
    %v1036 = vmul.f32 %v569, %v987
    %v1037 = vmul.f32 %v573, %v987
    %v1038 = vmul.f32 %v912, %v987
    %v1039 = vmul.f32 %v578, %v987
    %v1040 = vmul.f32 %v582, %v987
    %v1041 = vmul.f32 %v917, %v987
    %v1042 = vmul.f32 %v587, %v987
    %v1043 = vmul.f32 %v591, %v987
    %v1044 = vmul.f32 %v922, %v987
    %v1045 = vmul.f32 %v596, %v987
    %v1046 = vmul.f32 %v600, %v987
    %v1047 = vmul.f32 %v927, %v987
    %v1048 = vmul.f32 %v605, %v987
    %v1049 = vmul.f32 %v609, %v987
    %v1050 = vmul.f32 %v932, %v987
    %v1051 = vmul.f32 %v614, %v987
    %v1052 = vmul.f32 %v618, %v987
    %v1053 = vmul.f32 %v937, %v987
    %v1054 = vmul.f32 %v623, %v987
    %v1055 = vmul.f32 %v627, %v987
    %v1056 = vmul.f32 %v942, %v987
    %v1057 = vmul.f32 %v632, %v987
    %v1058 = vmul.f32 %v636, %v987
    %v1059 = vmul.f32 %v947, %v987
    %v1060 = vmul.f32 %v641, %v987
    %v1061 = vmul.f32 %v645, %v987
    %v1062 = vmul.f32 %v952, %v987
    %v1063 = vmul.f32 %v650, %v987
    %v1064 = vmul.f32 %v654, %v987
    %v1065 = vmul.f32 %v957, %v987
    %v1066 = vmul.f32 %v659, %v987
    %v1067 = vmul.f32 %v663, %v987
    %v1068 = vmul.f32 %v962, %v987
    %v1069 = vmul.f32 %v668, %v987
    %v1070 = vmul.f32 %v672, %v987
    %v1071 = vmul.f32 %v967, %v987
    %v1072 = vmul.f32 %v677, %v987
    %v1073 = vmul.f32 %v681, %v987
    %v1074 = vmul.f32 %v972, %v987
    %v1075 = vmul.f32 %v686, %v987
    %v1076 = vmul.f32 %v690, %v987
    %v1077 = vmul.f32 %v977, %v987
    %v1078 = vmul.f32 %v695, %v987
    %v1079 = vmul.f32 %v699, %v987
    %v1080 = vmul.f32 %v982, %v987
    %vm1174 = vcmask 1046528
    %v1175 = vrot.slane %v988, 1
    %v1176 = vrot.slane %v989, 1
    %v1177 = vsel %vm1174, %v1175, %v1176
    %v1178 = vrot.slane %v990, 1
    %v1179 = vsel %vm1174, %v1176, %v1178
    %v1180 = vrot.slane %v991, 1
    %v1181 = vrot.slane %v992, 1
    %v1182 = vsel %vm1174, %v1180, %v1181
    %v1183 = vrot.slane %v993, 1
    %v1184 = vsel %vm1174, %v1181, %v1183
    %v1185 = vrot.slane %v994, 1
    %v1186 = vrot.slane %v995, 1
    %v1187 = vsel %vm1174, %v1185, %v1186
    %v1188 = vrot.slane %v996, 1
    %v1189 = vsel %vm1174, %v1186, %v1188
    %v1190 = vrot.slane %v997, 1
    %v1191 = vrot.slane %v998, 1
    %v1192 = vsel %vm1174, %v1190, %v1191
    %v1193 = vrot.slane %v999, 1
    %v1194 = vsel %vm1174, %v1191, %v1193
    %v1195 = vrot.slane %v1000, 1
    %v1196 = vrot.slane %v1001, 1
    %v1197 = vsel %vm1174, %v1195, %v1196
    %v1198 = vrot.slane %v1002, 1
    %v1199 = vsel %vm1174, %v1196, %v1198
    %v1200 = vrot.slane %v1003, 1
    %v1201 = vrot.slane %v1004, 1
    %v1202 = vsel %vm1174, %v1200, %v1201
    %v1203 = vrot.slane %v1005, 1
    %v1204 = vsel %vm1174, %v1201, %v1203
    %v1205 = vrot.slane %v1006, 1
    %v1206 = vrot.slane %v1007, 1
    %v1207 = vsel %vm1174, %v1205, %v1206
    %v1208 = vrot.slane %v1008, 1
    %v1209 = vsel %vm1174, %v1206, %v1208
    %v1210 = vrot.slane %v1009, 1
    %v1211 = vrot.slane %v1010, 1
    %v1212 = vsel %vm1174, %v1210, %v1211
    %v1213 = vrot.slane %v1011, 1
    %v1214 = vsel %vm1174, %v1211, %v1213
    %v1215 = vrot.slane %v1012, 1
    %v1216 = vrot.slane %v1013, 1
    %v1217 = vsel %vm1174, %v1215, %v1216
    %v1218 = vrot.slane %v1014, 1
    %v1219 = vsel %vm1174, %v1216, %v1218
    %v1220 = vrot.slane %v1015, 1
    %v1221 = vrot.slane %v1016, 1
    %v1222 = vsel %vm1174, %v1220, %v1221
    %v1223 = vrot.slane %v1017, 1
    %v1224 = vsel %vm1174, %v1221, %v1223
    %v1225 = vrot.slane %v1018, 1
    %v1226 = vrot.slane %v1019, 1
    %v1227 = vsel %vm1174, %v1225, %v1226
    %v1228 = vrot.slane %v1020, 1
    %v1229 = vsel %vm1174, %v1226, %v1228
    %v1230 = vrot.slane %v1021, 1
    %v1231 = vrot.slane %v1022, 1
    %v1232 = vsel %vm1174, %v1230, %v1231
    %v1233 = vrot.slane %v1023, 1
    %v1234 = vsel %vm1174, %v1231, %v1233
    %v1235 = vrot.slane %v1024, 1
    %v1236 = vrot.slane %v1025, 1
    %v1237 = vsel %vm1174, %v1235, %v1236
    %v1238 = vrot.slane %v1026, 1
    %v1239 = vsel %vm1174, %v1236, %v1238
    %v1240 = vrot.slane %v1027, 1
    %v1241 = vrot.slane %v1028, 1
    %v1242 = vsel %vm1174, %v1240, %v1241
    %v1243 = vrot.slane %v1029, 1
    %v1244 = vsel %vm1174, %v1241, %v1243
    %v1245 = vrot.slane %v1030, 1
    %v1246 = vrot.slane %v1031, 1
    %v1247 = vsel %vm1174, %v1245, %v1246
    %v1248 = vrot.slane %v1032, 1
    %v1249 = vsel %vm1174, %v1246, %v1248
    %v1250 = vrot.slane %v1033, 1
    %v1251 = vrot.slane %v1034, 1
    %v1252 = vsel %vm1174, %v1250, %v1251
    %v1253 = vrot.slane %v1035, 1
    %v1254 = vsel %vm1174, %v1251, %v1253
    %v1255 = vrot.slane %v1036, 1
    %v1256 = vrot.slane %v1037, 1
    %v1257 = vsel %vm1174, %v1255, %v1256
    %v1258 = vrot.slane %v1038, 1
    %v1259 = vsel %vm1174, %v1256, %v1258
    %v1260 = vrot.slane %v1039, 1
    %v1261 = vrot.slane %v1040, 1
    %v1262 = vsel %vm1174, %v1260, %v1261
    %v1263 = vrot.slane %v1041, 1
    %v1264 = vsel %vm1174, %v1261, %v1263
    %v1265 = vrot.slane %v1042, 1
    %v1266 = vrot.slane %v1043, 1
    %v1267 = vsel %vm1174, %v1265, %v1266
    %v1268 = vrot.slane %v1044, 1
    %v1269 = vsel %vm1174, %v1266, %v1268
    %v1270 = vrot.slane %v1045, 1
    %v1271 = vrot.slane %v1046, 1
    %v1272 = vsel %vm1174, %v1270, %v1271
    %v1273 = vrot.slane %v1047, 1
    %v1274 = vsel %vm1174, %v1271, %v1273
    %v1275 = vrot.slane %v1048, 1
    %v1276 = vrot.slane %v1049, 1
    %v1277 = vsel %vm1174, %v1275, %v1276
    %v1278 = vrot.slane %v1050, 1
    %v1279 = vsel %vm1174, %v1276, %v1278
    %v1280 = vrot.slane %v1051, 1
    %v1281 = vrot.slane %v1052, 1
    %v1282 = vsel %vm1174, %v1280, %v1281
    %v1283 = vrot.slane %v1053, 1
    %v1284 = vsel %vm1174, %v1281, %v1283
    %v1285 = vrot.slane %v1054, 1
    %v1286 = vrot.slane %v1055, 1
    %v1287 = vsel %vm1174, %v1285, %v1286
    %v1288 = vrot.slane %v1056, 1
    %v1289 = vsel %vm1174, %v1286, %v1288
    %v1290 = vrot.slane %v1057, 1
    %v1291 = vrot.slane %v1058, 1
    %v1292 = vsel %vm1174, %v1290, %v1291
    %v1293 = vrot.slane %v1059, 1
    %v1294 = vsel %vm1174, %v1291, %v1293
    %v1295 = vrot.slane %v1060, 1
    %v1296 = vrot.slane %v1061, 1
    %v1297 = vsel %vm1174, %v1295, %v1296
    %v1298 = vrot.slane %v1062, 1
    %v1299 = vsel %vm1174, %v1296, %v1298
    %v1300 = vrot.slane %v1063, 1
    %v1301 = vrot.slane %v1064, 1
    %v1302 = vsel %vm1174, %v1300, %v1301
    %v1303 = vrot.slane %v1065, 1
    %v1304 = vsel %vm1174, %v1301, %v1303
    %v1305 = vrot.slane %v1066, 1
    %v1306 = vrot.slane %v1067, 1
    %v1307 = vsel %vm1174, %v1305, %v1306
    %v1308 = vrot.slane %v1068, 1
    %v1309 = vsel %vm1174, %v1306, %v1308
    %v1310 = vrot.slane %v1069, 1
    %v1311 = vrot.slane %v1070, 1
    %v1312 = vsel %vm1174, %v1310, %v1311
    %v1313 = vrot.slane %v1071, 1
    %v1314 = vsel %vm1174, %v1311, %v1313
    %v1315 = vrot.slane %v1072, 1
    %v1316 = vrot.slane %v1073, 1
    %v1317 = vsel %vm1174, %v1315, %v1316
    %v1318 = vrot.slane %v1074, 1
    %v1319 = vsel %vm1174, %v1316, %v1318
    %v1320 = vrot.slane %v1075, 1
    %v1321 = vrot.slane %v1076, 1
    %v1322 = vsel %vm1174, %v1320, %v1321
    %v1323 = vrot.slane %v1077, 1
    %v1324 = vsel %vm1174, %v1321, %v1323
    %v1325 = vrot.slane %v1078, 1
    %v1326 = vrot.slane %v1079, 1
    %v1327 = vsel %vm1174, %v1325, %v1326
    %v1328 = vrot.slane %v1080, 1
    %v1329 = vsel %vm1174, %v1326, %v1328
    %v1392 = vadd.f32 %v767, %v1177
    %v1393 = vadd.f32 %v768, %v1179
    %v1394 = vadd.f32 %v769, %v1182
    %v1395 = vadd.f32 %v770, %v1184
    %v1396 = vadd.f32 %v771, %v1187
    %v1397 = vadd.f32 %v772, %v1189
    %v1398 = vadd.f32 %v773, %v1192
    %v1399 = vadd.f32 %v774, %v1194
    %v1400 = vadd.f32 %v775, %v1197
    %v1401 = vadd.f32 %v776, %v1199
    %v1402 = vadd.f32 %v777, %v1202
    %v1403 = vadd.f32 %v778, %v1204
    %v1404 = vadd.f32 %v779, %v1207
    %v1405 = vadd.f32 %v780, %v1209
    %v1406 = vadd.f32 %v781, %v1212
    %v1407 = vadd.f32 %v782, %v1214
    %v1408 = vadd.f32 %v783, %v1217
    %v1409 = vadd.f32 %v784, %v1219
    %v1410 = vadd.f32 %v785, %v1222
    %v1411 = vadd.f32 %v786, %v1224
    %v1412 = vadd.f32 %v787, %v1227
    %v1413 = vadd.f32 %v788, %v1229
    %v1414 = vadd.f32 %v789, %v1232
    %v1415 = vadd.f32 %v790, %v1234
    %v1416 = vadd.f32 %v791, %v1237
    %v1417 = vadd.f32 %v792, %v1239
    %v1418 = vadd.f32 %v793, %v1242
    %v1419 = vadd.f32 %v794, %v1244
    %v1420 = vadd.f32 %v795, %v1247
    %v1421 = vadd.f32 %v796, %v1249
    %v1422 = vadd.f32 %v797, %v1252
    %v1423 = vadd.f32 %v798, %v1254
    %v1424 = vadd.f32 %v799, %v1257
    %v1425 = vadd.f32 %v800, %v1259
    %v1426 = vadd.f32 %v801, %v1262
    %v1427 = vadd.f32 %v802, %v1264
    %v1428 = vadd.f32 %v803, %v1267
    %v1429 = vadd.f32 %v804, %v1269
    %v1430 = vadd.f32 %v805, %v1272
    %v1431 = vadd.f32 %v806, %v1274
    %v1432 = vadd.f32 %v807, %v1277
    %v1433 = vadd.f32 %v808, %v1279
    %v1434 = vadd.f32 %v809, %v1282
    %v1435 = vadd.f32 %v810, %v1284
    %v1436 = vadd.f32 %v811, %v1287
    %v1437 = vadd.f32 %v812, %v1289
    %v1438 = vadd.f32 %v813, %v1292
    %v1439 = vadd.f32 %v814, %v1294
    %v1440 = vadd.f32 %v815, %v1297
    %v1441 = vadd.f32 %v816, %v1299
    %v1442 = vadd.f32 %v817, %v1302
    %v1443 = vadd.f32 %v818, %v1304
    %v1444 = vadd.f32 %v819, %v1307
    %v1445 = vadd.f32 %v820, %v1309
    %v1446 = vadd.f32 %v821, %v1312
    %v1447 = vadd.f32 %v822, %v1314
    %v1448 = vadd.f32 %v823, %v1317
    %v1449 = vadd.f32 %v824, %v1319
    %v1450 = vadd.f32 %v825, %v1322
    %v1451 = vadd.f32 %v826, %v1324
    %v1452 = vadd.f32 %v827, %v1327
    %v1453 = vadd.f32 %v828, %v1329
    %v1454 = vlaneseq
    %v1455 = vshrl.u32 %v1454, 7
    %v1456 = vsub.s32 2, %v1455
    %v1457 = vrot.slane %v420, %v1456
    %v1458 = vmul.f32 %v425, %v1457
    %v1459 = vmul.f32 %v429, %v1457
    %v1460 = vmul.f32 %v832, %v1457
    %v1461 = vmul.f32 %v434, %v1457
    %v1462 = vmul.f32 %v438, %v1457
    %v1463 = vmul.f32 %v837, %v1457
    %v1464 = vmul.f32 %v443, %v1457
    %v1465 = vmul.f32 %v447, %v1457
    %v1466 = vmul.f32 %v842, %v1457
    %v1467 = vmul.f32 %v452, %v1457
    %v1468 = vmul.f32 %v456, %v1457
    %v1469 = vmul.f32 %v847, %v1457
    %v1470 = vmul.f32 %v461, %v1457
    %v1471 = vmul.f32 %v465, %v1457
    %v1472 = vmul.f32 %v852, %v1457
    %v1473 = vmul.f32 %v470, %v1457
    %v1474 = vmul.f32 %v474, %v1457
    %v1475 = vmul.f32 %v857, %v1457
    %v1476 = vmul.f32 %v479, %v1457
    %v1477 = vmul.f32 %v483, %v1457
    %v1478 = vmul.f32 %v862, %v1457
    %v1479 = vmul.f32 %v488, %v1457
    %v1480 = vmul.f32 %v492, %v1457
    %v1481 = vmul.f32 %v867, %v1457
    %v1482 = vmul.f32 %v497, %v1457
    %v1483 = vmul.f32 %v501, %v1457
    %v1484 = vmul.f32 %v872, %v1457
    %v1485 = vmul.f32 %v506, %v1457
    %v1486 = vmul.f32 %v510, %v1457
    %v1487 = vmul.f32 %v877, %v1457
    %v1488 = vmul.f32 %v515, %v1457
    %v1489 = vmul.f32 %v519, %v1457
    %v1490 = vmul.f32 %v882, %v1457
    %v1491 = vmul.f32 %v524, %v1457
    %v1492 = vmul.f32 %v528, %v1457
    %v1493 = vmul.f32 %v887, %v1457
    %v1494 = vmul.f32 %v533, %v1457
    %v1495 = vmul.f32 %v537, %v1457
    %v1496 = vmul.f32 %v892, %v1457
    %v1497 = vmul.f32 %v542, %v1457
    %v1498 = vmul.f32 %v546, %v1457
    %v1499 = vmul.f32 %v897, %v1457
    %v1500 = vmul.f32 %v551, %v1457
    %v1501 = vmul.f32 %v555, %v1457
    %v1502 = vmul.f32 %v902, %v1457
    %v1503 = vmul.f32 %v560, %v1457
    %v1504 = vmul.f32 %v564, %v1457
    %v1505 = vmul.f32 %v907, %v1457
    %v1506 = vmul.f32 %v569, %v1457
    %v1507 = vmul.f32 %v573, %v1457
    %v1508 = vmul.f32 %v912, %v1457
    %v1509 = vmul.f32 %v578, %v1457
    %v1510 = vmul.f32 %v582, %v1457
    %v1511 = vmul.f32 %v917, %v1457
    %v1512 = vmul.f32 %v587, %v1457
    %v1513 = vmul.f32 %v591, %v1457
    %v1514 = vmul.f32 %v922, %v1457
    %v1515 = vmul.f32 %v596, %v1457
    %v1516 = vmul.f32 %v600, %v1457
    %v1517 = vmul.f32 %v927, %v1457
    %v1518 = vmul.f32 %v605, %v1457
    %v1519 = vmul.f32 %v609, %v1457
    %v1520 = vmul.f32 %v932, %v1457
    %v1521 = vmul.f32 %v614, %v1457
    %v1522 = vmul.f32 %v618, %v1457
    %v1523 = vmul.f32 %v937, %v1457
    %v1524 = vmul.f32 %v623, %v1457
    %v1525 = vmul.f32 %v627, %v1457
    %v1526 = vmul.f32 %v942, %v1457
    %v1527 = vmul.f32 %v632, %v1457
    %v1528 = vmul.f32 %v636, %v1457
    %v1529 = vmul.f32 %v947, %v1457
    %v1530 = vmul.f32 %v641, %v1457
    %v1531 = vmul.f32 %v645, %v1457
    %v1532 = vmul.f32 %v952, %v1457
    %v1533 = vmul.f32 %v650, %v1457
    %v1534 = vmul.f32 %v654, %v1457
    %v1535 = vmul.f32 %v957, %v1457
    %v1536 = vmul.f32 %v659, %v1457
    %v1537 = vmul.f32 %v663, %v1457
    %v1538 = vmul.f32 %v962, %v1457
    %v1539 = vmul.f32 %v668, %v1457
    %v1540 = vmul.f32 %v672, %v1457
    %v1541 = vmul.f32 %v967, %v1457
    %v1542 = vmul.f32 %v677, %v1457
    %v1543 = vmul.f32 %v681, %v1457
    %v1544 = vmul.f32 %v972, %v1457
    %v1545 = vmul.f32 %v686, %v1457
    %v1546 = vmul.f32 %v690, %v1457
    %v1547 = vmul.f32 %v977, %v1457
    %v1548 = vmul.f32 %v695, %v1457
    %v1549 = vmul.f32 %v699, %v1457
    %v1550 = vmul.f32 %v982, %v1457
    %vm1644 = vcmask 1045504
    %v1645 = vrot.slane %v1458, 2
    %v1646 = vrot.slane %v1459, 2
    %v1647 = vsel %vm1644, %v1645, %v1646
    %v1648 = vrot.slane %v1460, 2
    %v1649 = vsel %vm1644, %v1646, %v1648
    %v1650 = vrot.slane %v1461, 2
    %v1651 = vrot.slane %v1462, 2
    %v1652 = vsel %vm1644, %v1650, %v1651
    %v1653 = vrot.slane %v1463, 2
    %v1654 = vsel %vm1644, %v1651, %v1653
    %v1655 = vrot.slane %v1464, 2
    %v1656 = vrot.slane %v1465, 2
    %v1657 = vsel %vm1644, %v1655, %v1656
    %v1658 = vrot.slane %v1466, 2
    %v1659 = vsel %vm1644, %v1656, %v1658
    %v1660 = vrot.slane %v1467, 2
    %v1661 = vrot.slane %v1468, 2
    %v1662 = vsel %vm1644, %v1660, %v1661
    %v1663 = vrot.slane %v1469, 2
    %v1664 = vsel %vm1644, %v1661, %v1663
    %v1665 = vrot.slane %v1470, 2
    %v1666 = vrot.slane %v1471, 2
    %v1667 = vsel %vm1644, %v1665, %v1666
    %v1668 = vrot.slane %v1472, 2
    %v1669 = vsel %vm1644, %v1666, %v1668
    %v1670 = vrot.slane %v1473, 2
    %v1671 = vrot.slane %v1474, 2
    %v1672 = vsel %vm1644, %v1670, %v1671
    %v1673 = vrot.slane %v1475, 2
    %v1674 = vsel %vm1644, %v1671, %v1673
    %v1675 = vrot.slane %v1476, 2
    %v1676 = vrot.slane %v1477, 2
    %v1677 = vsel %vm1644, %v1675, %v1676
    %v1678 = vrot.slane %v1478, 2
    %v1679 = vsel %vm1644, %v1676, %v1678
    %v1680 = vrot.slane %v1479, 2
    %v1681 = vrot.slane %v1480, 2
    %v1682 = vsel %vm1644, %v1680, %v1681
    %v1683 = vrot.slane %v1481, 2
    %v1684 = vsel %vm1644, %v1681, %v1683
    %v1685 = vrot.slane %v1482, 2
    %v1686 = vrot.slane %v1483, 2
    %v1687 = vsel %vm1644, %v1685, %v1686
    %v1688 = vrot.slane %v1484, 2
    %v1689 = vsel %vm1644, %v1686, %v1688
    %v1690 = vrot.slane %v1485, 2
    %v1691 = vrot.slane %v1486, 2
    %v1692 = vsel %vm1644, %v1690, %v1691
    %v1693 = vrot.slane %v1487, 2
    %v1694 = vsel %vm1644, %v1691, %v1693
    %v1695 = vrot.slane %v1488, 2
    %v1696 = vrot.slane %v1489, 2
    %v1697 = vsel %vm1644, %v1695, %v1696
    %v1698 = vrot.slane %v1490, 2
    %v1699 = vsel %vm1644, %v1696, %v1698
    %v1700 = vrot.slane %v1491, 2
    %v1701 = vrot.slane %v1492, 2
    %v1702 = vsel %vm1644, %v1700, %v1701
    %v1703 = vrot.slane %v1493, 2
    %v1704 = vsel %vm1644, %v1701, %v1703
    %v1705 = vrot.slane %v1494, 2
    %v1706 = vrot.slane %v1495, 2
    %v1707 = vsel %vm1644, %v1705, %v1706
    %v1708 = vrot.slane %v1496, 2
    %v1709 = vsel %vm1644, %v1706, %v1708
    %v1710 = vrot.slane %v1497, 2
    %v1711 = vrot.slane %v1498, 2
    %v1712 = vsel %vm1644, %v1710, %v1711
    %v1713 = vrot.slane %v1499, 2
    %v1714 = vsel %vm1644, %v1711, %v1713
    %v1715 = vrot.slane %v1500, 2
    %v1716 = vrot.slane %v1501, 2
    %v1717 = vsel %vm1644, %v1715, %v1716
    %v1718 = vrot.slane %v1502, 2
    %v1719 = vsel %vm1644, %v1716, %v1718
    %v1720 = vrot.slane %v1503, 2
    %v1721 = vrot.slane %v1504, 2
    %v1722 = vsel %vm1644, %v1720, %v1721
    %v1723 = vrot.slane %v1505, 2
    %v1724 = vsel %vm1644, %v1721, %v1723
    %v1725 = vrot.slane %v1506, 2
    %v1726 = vrot.slane %v1507, 2
    %v1727 = vsel %vm1644, %v1725, %v1726
    %v1728 = vrot.slane %v1508, 2
    %v1729 = vsel %vm1644, %v1726, %v1728
    %v1730 = vrot.slane %v1509, 2
    %v1731 = vrot.slane %v1510, 2
    %v1732 = vsel %vm1644, %v1730, %v1731
    %v1733 = vrot.slane %v1511, 2
    %v1734 = vsel %vm1644, %v1731, %v1733
    %v1735 = vrot.slane %v1512, 2
    %v1736 = vrot.slane %v1513, 2
    %v1737 = vsel %vm1644, %v1735, %v1736
    %v1738 = vrot.slane %v1514, 2
    %v1739 = vsel %vm1644, %v1736, %v1738
    %v1740 = vrot.slane %v1515, 2
    %v1741 = vrot.slane %v1516, 2
    %v1742 = vsel %vm1644, %v1740, %v1741
    %v1743 = vrot.slane %v1517, 2
    %v1744 = vsel %vm1644, %v1741, %v1743
    %v1745 = vrot.slane %v1518, 2
    %v1746 = vrot.slane %v1519, 2
    %v1747 = vsel %vm1644, %v1745, %v1746
    %v1748 = vrot.slane %v1520, 2
    %v1749 = vsel %vm1644, %v1746, %v1748
    %v1750 = vrot.slane %v1521, 2
    %v1751 = vrot.slane %v1522, 2
    %v1752 = vsel %vm1644, %v1750, %v1751
    %v1753 = vrot.slane %v1523, 2
    %v1754 = vsel %vm1644, %v1751, %v1753
    %v1755 = vrot.slane %v1524, 2
    %v1756 = vrot.slane %v1525, 2
    %v1757 = vsel %vm1644, %v1755, %v1756
    %v1758 = vrot.slane %v1526, 2
    %v1759 = vsel %vm1644, %v1756, %v1758
    %v1760 = vrot.slane %v1527, 2
    %v1761 = vrot.slane %v1528, 2
    %v1762 = vsel %vm1644, %v1760, %v1761
    %v1763 = vrot.slane %v1529, 2
    %v1764 = vsel %vm1644, %v1761, %v1763
    %v1765 = vrot.slane %v1530, 2
    %v1766 = vrot.slane %v1531, 2
    %v1767 = vsel %vm1644, %v1765, %v1766
    %v1768 = vrot.slane %v1532, 2
    %v1769 = vsel %vm1644, %v1766, %v1768
    %v1770 = vrot.slane %v1533, 2
    %v1771 = vrot.slane %v1534, 2
    %v1772 = vsel %vm1644, %v1770, %v1771
    %v1773 = vrot.slane %v1535, 2
    %v1774 = vsel %vm1644, %v1771, %v1773
    %v1775 = vrot.slane %v1536, 2
    %v1776 = vrot.slane %v1537, 2
    %v1777 = vsel %vm1644, %v1775, %v1776
    %v1778 = vrot.slane %v1538, 2
    %v1779 = vsel %vm1644, %v1776, %v1778
    %v1780 = vrot.slane %v1539, 2
    %v1781 = vrot.slane %v1540, 2
    %v1782 = vsel %vm1644, %v1780, %v1781
    %v1783 = vrot.slane %v1541, 2
    %v1784 = vsel %vm1644, %v1781, %v1783
    %v1785 = vrot.slane %v1542, 2
    %v1786 = vrot.slane %v1543, 2
    %v1787 = vsel %vm1644, %v1785, %v1786
    %v1788 = vrot.slane %v1544, 2
    %v1789 = vsel %vm1644, %v1786, %v1788
    %v1790 = vrot.slane %v1545, 2
    %v1791 = vrot.slane %v1546, 2
    %v1792 = vsel %vm1644, %v1790, %v1791
    %v1793 = vrot.slane %v1547, 2
    %v1794 = vsel %vm1644, %v1791, %v1793
    %v1795 = vrot.slane %v1548, 2
    %v1796 = vrot.slane %v1549, 2
    %v1797 = vsel %vm1644, %v1795, %v1796
    %v1798 = vrot.slane %v1550, 2
    %v1799 = vsel %vm1644, %v1796, %v1798
    %v1862 = vadd.f32 %v1392, %v1647
    %v1863 = vadd.f32 %v1393, %v1649
    %v1864 = vadd.f32 %v1394, %v1652
    %v1865 = vadd.f32 %v1395, %v1654
    %v1866 = vadd.f32 %v1396, %v1657
    %v1867 = vadd.f32 %v1397, %v1659
    %v1868 = vadd.f32 %v1398, %v1662
    %v1869 = vadd.f32 %v1399, %v1664
    %v1870 = vadd.f32 %v1400, %v1667
    %v1871 = vadd.f32 %v1401, %v1669
    %v1872 = vadd.f32 %v1402, %v1672
    %v1873 = vadd.f32 %v1403, %v1674
    %v1874 = vadd.f32 %v1404, %v1677
    %v1875 = vadd.f32 %v1405, %v1679
    %v1876 = vadd.f32 %v1406, %v1682
    %v1877 = vadd.f32 %v1407, %v1684
    %v1878 = vadd.f32 %v1408, %v1687
    %v1879 = vadd.f32 %v1409, %v1689
    %v1880 = vadd.f32 %v1410, %v1692
    %v1881 = vadd.f32 %v1411, %v1694
    %v1882 = vadd.f32 %v1412, %v1697
    %v1883 = vadd.f32 %v1413, %v1699
    %v1884 = vadd.f32 %v1414, %v1702
    %v1885 = vadd.f32 %v1415, %v1704
    %v1886 = vadd.f32 %v1416, %v1707
    %v1887 = vadd.f32 %v1417, %v1709
    %v1888 = vadd.f32 %v1418, %v1712
    %v1889 = vadd.f32 %v1419, %v1714
    %v1890 = vadd.f32 %v1420, %v1717
    %v1891 = vadd.f32 %v1421, %v1719
    %v1892 = vadd.f32 %v1422, %v1722
    %v1893 = vadd.f32 %v1423, %v1724
    %v1894 = vadd.f32 %v1424, %v1727
    %v1895 = vadd.f32 %v1425, %v1729
    %v1896 = vadd.f32 %v1426, %v1732
    %v1897 = vadd.f32 %v1427, %v1734
    %v1898 = vadd.f32 %v1428, %v1737
    %v1899 = vadd.f32 %v1429, %v1739
    %v1900 = vadd.f32 %v1430, %v1742
    %v1901 = vadd.f32 %v1431, %v1744
    %v1902 = vadd.f32 %v1432, %v1747
    %v1903 = vadd.f32 %v1433, %v1749
    %v1904 = vadd.f32 %v1434, %v1752
    %v1905 = vadd.f32 %v1435, %v1754
    %v1906 = vadd.f32 %v1436, %v1757
    %v1907 = vadd.f32 %v1437, %v1759
    %v1908 = vadd.f32 %v1438, %v1762
    %v1909 = vadd.f32 %v1439, %v1764
    %v1910 = vadd.f32 %v1440, %v1767
    %v1911 = vadd.f32 %v1441, %v1769
    %v1912 = vadd.f32 %v1442, %v1772
    %v1913 = vadd.f32 %v1443, %v1774
    %v1914 = vadd.f32 %v1444, %v1777
    %v1915 = vadd.f32 %v1445, %v1779
    %v1916 = vadd.f32 %v1446, %v1782
    %v1917 = vadd.f32 %v1447, %v1784
    %v1918 = vadd.f32 %v1448, %v1787
    %v1919 = vadd.f32 %v1449, %v1789
    %v1920 = vadd.f32 %v1450, %v1792
    %v1921 = vadd.f32 %v1451, %v1794
    %v1922 = vadd.f32 %v1452, %v1797
    %v1923 = vadd.f32 %v1453, %v1799
    %1925 = vset.pattern.permute.xlu0 0
    %1926 = vperm.xlu0 %1925, %v370
    %v1927 = vpop.permute.xlu0 %1926
    %1929 = vset.pattern.permute.xlu0 0
    %1930 = vperm.xlu0 %1929, %v240
    %v1931 = vpop.permute.xlu0 %1930
    %1934 = vset.pattern.permute.xlu0 0
    %1935 = vperm.xlu0 %1934, %v386
    %v1936 = vpop.permute.xlu0 %1935
    %1938 = vset.pattern.permute.xlu0 0
    %1939 = vperm.xlu0 %1938, %v288
    %v1940 = vpop.permute.xlu0 %1939
    %v1942 = vlaneseq
    %v1943 = vshrl.u32 %v1942, 7
    %v1944 = vsub.s32 3, %v1943
    %v1945 = vrot.slane %v420, %v1944
    %v1946 = vmul.f32 %v434, %v1945
    %v1947 = vmul.f32 %v438, %v1945
    %v1948 = vmul.f32 %v443, %v1945
    %v1949 = vmul.f32 %v447, %v1945
    %v1950 = vmul.f32 %v452, %v1945
    %v1951 = vmul.f32 %v456, %v1945
    %v1952 = vmul.f32 %v461, %v1945
    %v1953 = vmul.f32 %v465, %v1945
    %v1954 = vmul.f32 %v470, %v1945
    %v1955 = vmul.f32 %v474, %v1945
    %v1956 = vmul.f32 %v479, %v1945
    %v1957 = vmul.f32 %v483, %v1945
    %v1958 = vmul.f32 %v488, %v1945
    %v1959 = vmul.f32 %v492, %v1945
    %v1960 = vmul.f32 %v497, %v1945
    %v1961 = vmul.f32 %v501, %v1945
    %v1962 = vmul.f32 %v506, %v1945
    %v1963 = vmul.f32 %v510, %v1945
    %v1964 = vmul.f32 %v515, %v1945
    %v1965 = vmul.f32 %v519, %v1945
    %v1966 = vmul.f32 %v524, %v1945
    %v1967 = vmul.f32 %v528, %v1945
    %v1968 = vmul.f32 %v533, %v1945
    %v1969 = vmul.f32 %v537, %v1945
    %v1970 = vmul.f32 %v542, %v1945
    %v1971 = vmul.f32 %v546, %v1945
    %v1972 = vmul.f32 %v551, %v1945
    %v1973 = vmul.f32 %v555, %v1945
    %v1974 = vmul.f32 %v560, %v1945
    %v1975 = vmul.f32 %v564, %v1945
    %v1976 = vmul.f32 %v1927, %v1945
    %v1977 = vmul.f32 %v1931, %v1945
    %v1978 = vmul.f32 %v569, %v1945
    %v1979 = vmul.f32 %v573, %v1945
    %v1980 = vmul.f32 %v578, %v1945
    %v1981 = vmul.f32 %v582, %v1945
    %v1982 = vmul.f32 %v587, %v1945
    %v1983 = vmul.f32 %v591, %v1945
    %v1984 = vmul.f32 %v596, %v1945
    %v1985 = vmul.f32 %v600, %v1945
    %v1986 = vmul.f32 %v605, %v1945
    %v1987 = vmul.f32 %v609, %v1945
    %v1988 = vmul.f32 %v614, %v1945
    %v1989 = vmul.f32 %v618, %v1945
    %v1990 = vmul.f32 %v623, %v1945
    %v1991 = vmul.f32 %v627, %v1945
    %v1992 = vmul.f32 %v632, %v1945
    %v1993 = vmul.f32 %v636, %v1945
    %v1994 = vmul.f32 %v641, %v1945
    %v1995 = vmul.f32 %v645, %v1945
    %v1996 = vmul.f32 %v650, %v1945
    %v1997 = vmul.f32 %v654, %v1945
    %v1998 = vmul.f32 %v659, %v1945
    %v1999 = vmul.f32 %v663, %v1945
    %v2000 = vmul.f32 %v668, %v1945
    %v2001 = vmul.f32 %v672, %v1945
    %v2002 = vmul.f32 %v677, %v1945
    %v2003 = vmul.f32 %v681, %v1945
    %v2004 = vmul.f32 %v686, %v1945
    %v2005 = vmul.f32 %v690, %v1945
    %v2006 = vmul.f32 %v695, %v1945
    %v2007 = vmul.f32 %v699, %v1945
    %v2008 = vmul.f32 %v1936, %v1945
    %v2009 = vmul.f32 %v1940, %v1945
    %v2010 = vadd.f32 %v1862, %v1946
    %v2011 = vadd.f32 %v1863, %v1947
    %v2012 = vadd.f32 %v1864, %v1948
    %v2013 = vadd.f32 %v1865, %v1949
    %v2014 = vadd.f32 %v1866, %v1950
    %v2015 = vadd.f32 %v1867, %v1951
    %v2016 = vadd.f32 %v1868, %v1952
    %v2017 = vadd.f32 %v1869, %v1953
    %v2018 = vadd.f32 %v1870, %v1954
    %v2019 = vadd.f32 %v1871, %v1955
    %v2020 = vadd.f32 %v1872, %v1956
    %v2021 = vadd.f32 %v1873, %v1957
    %v2022 = vadd.f32 %v1874, %v1958
    %v2023 = vadd.f32 %v1875, %v1959
    %v2024 = vadd.f32 %v1876, %v1960
    %v2025 = vadd.f32 %v1877, %v1961
    %v2026 = vadd.f32 %v1878, %v1962
    %v2027 = vadd.f32 %v1879, %v1963
    %v2028 = vadd.f32 %v1880, %v1964
    %v2029 = vadd.f32 %v1881, %v1965
    %v2030 = vadd.f32 %v1882, %v1966
    %v2031 = vadd.f32 %v1883, %v1967
    %v2032 = vadd.f32 %v1884, %v1968
    %v2033 = vadd.f32 %v1885, %v1969
    %v2034 = vadd.f32 %v1886, %v1970
    %v2035 = vadd.f32 %v1887, %v1971
    %v2036 = vadd.f32 %v1888, %v1972
    %v2037 = vadd.f32 %v1889, %v1973
    %v2038 = vadd.f32 %v1890, %v1974
    %v2039 = vadd.f32 %v1891, %v1975
    %v2040 = vadd.f32 %v1892, %v1976
    %v2041 = vadd.f32 %v1893, %v1977
    %v2042 = vadd.f32 %v1862, %v1978
    %v2043 = vadd.f32 %v1863, %v1979
    %v2044 = vadd.f32 %v1894, %v1980
    %v2045 = vadd.f32 %v1895, %v1981
    %v2046 = vadd.f32 %v1896, %v1982
    %v2047 = vadd.f32 %v1897, %v1983
    %v2048 = vadd.f32 %v1898, %v1984
    %v2049 = vadd.f32 %v1899, %v1985
    %v2050 = vadd.f32 %v1900, %v1986
    %v2051 = vadd.f32 %v1901, %v1987
    %v2052 = vadd.f32 %v1902, %v1988
    %v2053 = vadd.f32 %v1903, %v1989
    %v2054 = vadd.f32 %v1904, %v1990
    %v2055 = vadd.f32 %v1905, %v1991
    %v2056 = vadd.f32 %v1906, %v1992
    %v2057 = vadd.f32 %v1907, %v1993
    %v2058 = vadd.f32 %v1908, %v1994
    %v2059 = vadd.f32 %v1909, %v1995
    %v2060 = vadd.f32 %v1910, %v1996
    %v2061 = vadd.f32 %v1911, %v1997
    %v2062 = vadd.f32 %v1912, %v1998
    %v2063 = vadd.f32 %v1913, %v1999
    %v2064 = vadd.f32 %v1914, %v2000
    %v2065 = vadd.f32 %v1915, %v2001
    %v2066 = vadd.f32 %v1916, %v2002
    %v2067 = vadd.f32 %v1917, %v2003
    %v2068 = vadd.f32 %v1918, %v2004
    %v2069 = vadd.f32 %v1919, %v2005
    %v2070 = vadd.f32 %v1920, %v2006
    %v2071 = vadd.f32 %v1921, %v2007
    %v2072 = vadd.f32 %v1922, %v2008
    %v2073 = vadd.f32 %v1923, %v2009
    %2075 = vset.pattern.permute.xlu0 0
    %2076 = vperm.xlu0 %2075, %v403
    %v2077 = vpop.permute.xlu0 %2076
    %2080 = vset.pattern.permute.xlu0 0
    %2081 = vperm.xlu0 %2080, %v419
    %v2082 = vpop.permute.xlu0 %2081
    %v2084 = vlaneseq
    %v2085 = vshrl.u32 %v2084, 7
    %v2086 = vsub.s32 4, %v2085
    %v2087 = vrot.slane %v420, %v2086
    %v2088 = vmul.f32 %v434, %v2087
    %v2089 = vmul.f32 %v438, %v2087
    %v2090 = vmul.f32 %v837, %v2087
    %v2091 = vmul.f32 %v443, %v2087
    %v2092 = vmul.f32 %v447, %v2087
    %v2093 = vmul.f32 %v842, %v2087
    %v2094 = vmul.f32 %v452, %v2087
    %v2095 = vmul.f32 %v456, %v2087
    %v2096 = vmul.f32 %v847, %v2087
    %v2097 = vmul.f32 %v461, %v2087
    %v2098 = vmul.f32 %v465, %v2087
    %v2099 = vmul.f32 %v852, %v2087
    %v2100 = vmul.f32 %v470, %v2087
    %v2101 = vmul.f32 %v474, %v2087
    %v2102 = vmul.f32 %v857, %v2087
    %v2103 = vmul.f32 %v479, %v2087
    %v2104 = vmul.f32 %v483, %v2087
    %v2105 = vmul.f32 %v862, %v2087
    %v2106 = vmul.f32 %v488, %v2087
    %v2107 = vmul.f32 %v492, %v2087
    %v2108 = vmul.f32 %v867, %v2087
    %v2109 = vmul.f32 %v497, %v2087
    %v2110 = vmul.f32 %v501, %v2087
    %v2111 = vmul.f32 %v872, %v2087
    %v2112 = vmul.f32 %v506, %v2087
    %v2113 = vmul.f32 %v510, %v2087
    %v2114 = vmul.f32 %v877, %v2087
    %v2115 = vmul.f32 %v515, %v2087
    %v2116 = vmul.f32 %v519, %v2087
    %v2117 = vmul.f32 %v882, %v2087
    %v2118 = vmul.f32 %v524, %v2087
    %v2119 = vmul.f32 %v528, %v2087
    %v2120 = vmul.f32 %v887, %v2087
    %v2121 = vmul.f32 %v533, %v2087
    %v2122 = vmul.f32 %v537, %v2087
    %v2123 = vmul.f32 %v892, %v2087
    %v2124 = vmul.f32 %v542, %v2087
    %v2125 = vmul.f32 %v546, %v2087
    %v2126 = vmul.f32 %v897, %v2087
    %v2127 = vmul.f32 %v551, %v2087
    %v2128 = vmul.f32 %v555, %v2087
    %v2129 = vmul.f32 %v902, %v2087
    %v2130 = vmul.f32 %v560, %v2087
    %v2131 = vmul.f32 %v564, %v2087
    %v2132 = vmul.f32 %v907, %v2087
    %v2133 = vmul.f32 %v1927, %v2087
    %v2134 = vmul.f32 %v1931, %v2087
    %v2135 = vmul.f32 %v2077, %v2087
    %v2136 = vmul.f32 %v569, %v2087
    %v2137 = vmul.f32 %v573, %v2087
    %v2138 = vmul.f32 %v912, %v2087
    %v2139 = vmul.f32 %v578, %v2087
    %v2140 = vmul.f32 %v582, %v2087
    %v2141 = vmul.f32 %v917, %v2087
    %v2142 = vmul.f32 %v587, %v2087
    %v2143 = vmul.f32 %v591, %v2087
    %v2144 = vmul.f32 %v922, %v2087
    %v2145 = vmul.f32 %v596, %v2087
    %v2146 = vmul.f32 %v600, %v2087
    %v2147 = vmul.f32 %v927, %v2087
    %v2148 = vmul.f32 %v605, %v2087
    %v2149 = vmul.f32 %v609, %v2087
    %v2150 = vmul.f32 %v932, %v2087
    %v2151 = vmul.f32 %v614, %v2087
    %v2152 = vmul.f32 %v618, %v2087
    %v2153 = vmul.f32 %v937, %v2087
    %v2154 = vmul.f32 %v623, %v2087
    %v2155 = vmul.f32 %v627, %v2087
    %v2156 = vmul.f32 %v942, %v2087
    %v2157 = vmul.f32 %v632, %v2087
    %v2158 = vmul.f32 %v636, %v2087
    %v2159 = vmul.f32 %v947, %v2087
    %v2160 = vmul.f32 %v641, %v2087
    %v2161 = vmul.f32 %v645, %v2087
    %v2162 = vmul.f32 %v952, %v2087
    %v2163 = vmul.f32 %v650, %v2087
    %v2164 = vmul.f32 %v654, %v2087
    %v2165 = vmul.f32 %v957, %v2087
    %v2166 = vmul.f32 %v659, %v2087
    %v2167 = vmul.f32 %v663, %v2087
    %v2168 = vmul.f32 %v962, %v2087
    %v2169 = vmul.f32 %v668, %v2087
    %v2170 = vmul.f32 %v672, %v2087
    %v2171 = vmul.f32 %v967, %v2087
    %v2172 = vmul.f32 %v677, %v2087
    %v2173 = vmul.f32 %v681, %v2087
    %v2174 = vmul.f32 %v972, %v2087
    %v2175 = vmul.f32 %v686, %v2087
    %v2176 = vmul.f32 %v690, %v2087
    %v2177 = vmul.f32 %v977, %v2087
    %v2178 = vmul.f32 %v695, %v2087
    %v2179 = vmul.f32 %v699, %v2087
    %v2180 = vmul.f32 %v982, %v2087
    %v2181 = vmul.f32 %v1936, %v2087
    %v2182 = vmul.f32 %v1940, %v2087
    %v2183 = vmul.f32 %v2082, %v2087
    %v2280 = vrot.slane %v2088, 1
    %v2281 = vrot.slane %v2089, 1
    %v2282 = vsel %vm1174, %v2280, %v2281
    %v2283 = vrot.slane %v2090, 1
    %v2284 = vsel %vm1174, %v2281, %v2283
    %v2285 = vrot.slane %v2091, 1
    %v2286 = vrot.slane %v2092, 1
    %v2287 = vsel %vm1174, %v2285, %v2286
    %v2288 = vrot.slane %v2093, 1
    %v2289 = vsel %vm1174, %v2286, %v2288
    %v2290 = vrot.slane %v2094, 1
    %v2291 = vrot.slane %v2095, 1
    %v2292 = vsel %vm1174, %v2290, %v2291
    %v2293 = vrot.slane %v2096, 1
    %v2294 = vsel %vm1174, %v2291, %v2293
    %v2295 = vrot.slane %v2097, 1
    %v2296 = vrot.slane %v2098, 1
    %v2297 = vsel %vm1174, %v2295, %v2296
    %v2298 = vrot.slane %v2099, 1
    %v2299 = vsel %vm1174, %v2296, %v2298
    %v2300 = vrot.slane %v2100, 1
    %v2301 = vrot.slane %v2101, 1
    %v2302 = vsel %vm1174, %v2300, %v2301
    %v2303 = vrot.slane %v2102, 1
    %v2304 = vsel %vm1174, %v2301, %v2303
    %v2305 = vrot.slane %v2103, 1
    %v2306 = vrot.slane %v2104, 1
    %v2307 = vsel %vm1174, %v2305, %v2306
    %v2308 = vrot.slane %v2105, 1
    %v2309 = vsel %vm1174, %v2306, %v2308
    %v2310 = vrot.slane %v2106, 1
    %v2311 = vrot.slane %v2107, 1
    %v2312 = vsel %vm1174, %v2310, %v2311
    %v2313 = vrot.slane %v2108, 1
    %v2314 = vsel %vm1174, %v2311, %v2313
    %v2315 = vrot.slane %v2109, 1
    %v2316 = vrot.slane %v2110, 1
    %v2317 = vsel %vm1174, %v2315, %v2316
    %v2318 = vrot.slane %v2111, 1
    %v2319 = vsel %vm1174, %v2316, %v2318
    %v2320 = vrot.slane %v2112, 1
    %v2321 = vrot.slane %v2113, 1
    %v2322 = vsel %vm1174, %v2320, %v2321
    %v2323 = vrot.slane %v2114, 1
    %v2324 = vsel %vm1174, %v2321, %v2323
    %v2325 = vrot.slane %v2115, 1
    %v2326 = vrot.slane %v2116, 1
    %v2327 = vsel %vm1174, %v2325, %v2326
    %v2328 = vrot.slane %v2117, 1
    %v2329 = vsel %vm1174, %v2326, %v2328
    %v2330 = vrot.slane %v2118, 1
    %v2331 = vrot.slane %v2119, 1
    %v2332 = vsel %vm1174, %v2330, %v2331
    %v2333 = vrot.slane %v2120, 1
    %v2334 = vsel %vm1174, %v2331, %v2333
    %v2335 = vrot.slane %v2121, 1
    %v2336 = vrot.slane %v2122, 1
    %v2337 = vsel %vm1174, %v2335, %v2336
    %v2338 = vrot.slane %v2123, 1
    %v2339 = vsel %vm1174, %v2336, %v2338
    %v2340 = vrot.slane %v2124, 1
    %v2341 = vrot.slane %v2125, 1
    %v2342 = vsel %vm1174, %v2340, %v2341
    %v2343 = vrot.slane %v2126, 1
    %v2344 = vsel %vm1174, %v2341, %v2343
    %v2345 = vrot.slane %v2127, 1
    %v2346 = vrot.slane %v2128, 1
    %v2347 = vsel %vm1174, %v2345, %v2346
    %v2348 = vrot.slane %v2129, 1
    %v2349 = vsel %vm1174, %v2346, %v2348
    %v2350 = vrot.slane %v2130, 1
    %v2351 = vrot.slane %v2131, 1
    %v2352 = vsel %vm1174, %v2350, %v2351
    %v2353 = vrot.slane %v2132, 1
    %v2354 = vsel %vm1174, %v2351, %v2353
    %v2355 = vrot.slane %v2133, 1
    %v2356 = vrot.slane %v2134, 1
    %v2357 = vsel %vm1174, %v2355, %v2356
    %v2358 = vrot.slane %v2135, 1
    %v2359 = vsel %vm1174, %v2356, %v2358
    %v2360 = vrot.slane %v2136, 1
    %v2361 = vrot.slane %v2137, 1
    %v2362 = vsel %vm1174, %v2360, %v2361
    %v2363 = vrot.slane %v2138, 1
    %v2364 = vsel %vm1174, %v2361, %v2363
    %v2365 = vrot.slane %v2139, 1
    %v2366 = vrot.slane %v2140, 1
    %v2367 = vsel %vm1174, %v2365, %v2366
    %v2368 = vrot.slane %v2141, 1
    %v2369 = vsel %vm1174, %v2366, %v2368
    %v2370 = vrot.slane %v2142, 1
    %v2371 = vrot.slane %v2143, 1
    %v2372 = vsel %vm1174, %v2370, %v2371
    %v2373 = vrot.slane %v2144, 1
    %v2374 = vsel %vm1174, %v2371, %v2373
    %v2375 = vrot.slane %v2145, 1
    %v2376 = vrot.slane %v2146, 1
    %v2377 = vsel %vm1174, %v2375, %v2376
    %v2378 = vrot.slane %v2147, 1
    %v2379 = vsel %vm1174, %v2376, %v2378
    %v2380 = vrot.slane %v2148, 1
    %v2381 = vrot.slane %v2149, 1
    %v2382 = vsel %vm1174, %v2380, %v2381
    %v2383 = vrot.slane %v2150, 1
    %v2384 = vsel %vm1174, %v2381, %v2383
    %v2385 = vrot.slane %v2151, 1
    %v2386 = vrot.slane %v2152, 1
    %v2387 = vsel %vm1174, %v2385, %v2386
    %v2388 = vrot.slane %v2153, 1
    %v2389 = vsel %vm1174, %v2386, %v2388
    %v2390 = vrot.slane %v2154, 1
    %v2391 = vrot.slane %v2155, 1
    %v2392 = vsel %vm1174, %v2390, %v2391
    %v2393 = vrot.slane %v2156, 1
    %v2394 = vsel %vm1174, %v2391, %v2393
    %v2395 = vrot.slane %v2157, 1
    %v2396 = vrot.slane %v2158, 1
    %v2397 = vsel %vm1174, %v2395, %v2396
    %v2398 = vrot.slane %v2159, 1
    %v2399 = vsel %vm1174, %v2396, %v2398
    %v2400 = vrot.slane %v2160, 1
    %v2401 = vrot.slane %v2161, 1
    %v2402 = vsel %vm1174, %v2400, %v2401
    %v2403 = vrot.slane %v2162, 1
    %v2404 = vsel %vm1174, %v2401, %v2403
    %v2405 = vrot.slane %v2163, 1
    %v2406 = vrot.slane %v2164, 1
    %v2407 = vsel %vm1174, %v2405, %v2406
    %v2408 = vrot.slane %v2165, 1
    %v2409 = vsel %vm1174, %v2406, %v2408
    %v2410 = vrot.slane %v2166, 1
    %v2411 = vrot.slane %v2167, 1
    %v2412 = vsel %vm1174, %v2410, %v2411
    %v2413 = vrot.slane %v2168, 1
    %v2414 = vsel %vm1174, %v2411, %v2413
    %v2415 = vrot.slane %v2169, 1
    %v2416 = vrot.slane %v2170, 1
    %v2417 = vsel %vm1174, %v2415, %v2416
    %v2418 = vrot.slane %v2171, 1
    %v2419 = vsel %vm1174, %v2416, %v2418
    %v2420 = vrot.slane %v2172, 1
    %v2421 = vrot.slane %v2173, 1
    %v2422 = vsel %vm1174, %v2420, %v2421
    %v2423 = vrot.slane %v2174, 1
    %v2424 = vsel %vm1174, %v2421, %v2423
    %v2425 = vrot.slane %v2175, 1
    %v2426 = vrot.slane %v2176, 1
    %v2427 = vsel %vm1174, %v2425, %v2426
    %v2428 = vrot.slane %v2177, 1
    %v2429 = vsel %vm1174, %v2426, %v2428
    %v2430 = vrot.slane %v2178, 1
    %v2431 = vrot.slane %v2179, 1
    %v2432 = vsel %vm1174, %v2430, %v2431
    %v2433 = vrot.slane %v2180, 1
    %v2434 = vsel %vm1174, %v2431, %v2433
    %v2435 = vrot.slane %v2181, 1
    %v2436 = vrot.slane %v2182, 1
    %v2437 = vsel %vm1174, %v2435, %v2436
    %v2438 = vrot.slane %v2183, 1
    %v2439 = vsel %vm1174, %v2436, %v2438
    %v2504 = vadd.f32 %v2010, %v2282
    %v2505 = vadd.f32 %v2011, %v2284
    %v2506 = vadd.f32 %v2012, %v2287
    %v2507 = vadd.f32 %v2013, %v2289
    %v2508 = vadd.f32 %v2014, %v2292
    %v2509 = vadd.f32 %v2015, %v2294
    %v2510 = vadd.f32 %v2016, %v2297
    %v2511 = vadd.f32 %v2017, %v2299
    %v2512 = vadd.f32 %v2018, %v2302
    %v2513 = vadd.f32 %v2019, %v2304
    %v2514 = vadd.f32 %v2020, %v2307
    %v2515 = vadd.f32 %v2021, %v2309
    %v2516 = vadd.f32 %v2022, %v2312
    %v2517 = vadd.f32 %v2023, %v2314
    %v2518 = vadd.f32 %v2024, %v2317
    %v2519 = vadd.f32 %v2025, %v2319
    %v2520 = vadd.f32 %v2026, %v2322
    %v2521 = vadd.f32 %v2027, %v2324
    %v2522 = vadd.f32 %v2028, %v2327
    %v2523 = vadd.f32 %v2029, %v2329
    %v2524 = vadd.f32 %v2030, %v2332
    %v2525 = vadd.f32 %v2031, %v2334
    %v2526 = vadd.f32 %v2032, %v2337
    %v2527 = vadd.f32 %v2033, %v2339
    %v2528 = vadd.f32 %v2034, %v2342
    %v2529 = vadd.f32 %v2035, %v2344
    %v2530 = vadd.f32 %v2036, %v2347
    %v2531 = vadd.f32 %v2037, %v2349
    %v2532 = vadd.f32 %v2038, %v2352
    %v2533 = vadd.f32 %v2039, %v2354
    %v2534 = vadd.f32 %v2040, %v2357
    %v2535 = vadd.f32 %v2041, %v2359
    %v2536 = vadd.f32 %v2042, %v2362
    %v2537 = vadd.f32 %v2043, %v2364
    %v2538 = vadd.f32 %v2044, %v2367
    %v2539 = vadd.f32 %v2045, %v2369
    %v2540 = vadd.f32 %v2046, %v2372
    %v2541 = vadd.f32 %v2047, %v2374
    %v2542 = vadd.f32 %v2048, %v2377
    %v2543 = vadd.f32 %v2049, %v2379
    %v2544 = vadd.f32 %v2050, %v2382
    %v2545 = vadd.f32 %v2051, %v2384
    %v2546 = vadd.f32 %v2052, %v2387
    %v2547 = vadd.f32 %v2053, %v2389
    %v2548 = vadd.f32 %v2054, %v2392
    %v2549 = vadd.f32 %v2055, %v2394
    %v2550 = vadd.f32 %v2056, %v2397
    %v2551 = vadd.f32 %v2057, %v2399
    %v2552 = vadd.f32 %v2058, %v2402
    %v2553 = vadd.f32 %v2059, %v2404
    %v2554 = vadd.f32 %v2060, %v2407
    %v2555 = vadd.f32 %v2061, %v2409
    %v2556 = vadd.f32 %v2062, %v2412
    %v2557 = vadd.f32 %v2063, %v2414
    %v2558 = vadd.f32 %v2064, %v2417
    %v2559 = vadd.f32 %v2065, %v2419
    %v2560 = vadd.f32 %v2066, %v2422
    %v2561 = vadd.f32 %v2067, %v2424
    %v2562 = vadd.f32 %v2068, %v2427
    %v2563 = vadd.f32 %v2069, %v2429
    %v2564 = vadd.f32 %v2070, %v2432
    %v2565 = vadd.f32 %v2071, %v2434
    %v2566 = vadd.f32 %v2072, %v2437
    %v2567 = vadd.f32 %v2073, %v2439
    %v2568 = vlaneseq
    %v2569 = vshrl.u32 %v2568, 7
    %v2570 = vsub.s32 5, %v2569
    %v2571 = vrot.slane %v420, %v2570
    %v2572 = vmul.f32 %v434, %v2571
    %v2573 = vmul.f32 %v438, %v2571
    %v2574 = vmul.f32 %v837, %v2571
    %v2575 = vmul.f32 %v443, %v2571
    %v2576 = vmul.f32 %v447, %v2571
    %v2577 = vmul.f32 %v842, %v2571
    %v2578 = vmul.f32 %v452, %v2571
    %v2579 = vmul.f32 %v456, %v2571
    %v2580 = vmul.f32 %v847, %v2571
    %v2581 = vmul.f32 %v461, %v2571
    %v2582 = vmul.f32 %v465, %v2571
    %v2583 = vmul.f32 %v852, %v2571
    %v2584 = vmul.f32 %v470, %v2571
    %v2585 = vmul.f32 %v474, %v2571
    %v2586 = vmul.f32 %v857, %v2571
    %v2587 = vmul.f32 %v479, %v2571
    %v2588 = vmul.f32 %v483, %v2571
    %v2589 = vmul.f32 %v862, %v2571
    %v2590 = vmul.f32 %v488, %v2571
    %v2591 = vmul.f32 %v492, %v2571
    %v2592 = vmul.f32 %v867, %v2571
    %v2593 = vmul.f32 %v497, %v2571
    %v2594 = vmul.f32 %v501, %v2571
    %v2595 = vmul.f32 %v872, %v2571
    %v2596 = vmul.f32 %v506, %v2571
    %v2597 = vmul.f32 %v510, %v2571
    %v2598 = vmul.f32 %v877, %v2571
    %v2599 = vmul.f32 %v515, %v2571
    %v2600 = vmul.f32 %v519, %v2571
    %v2601 = vmul.f32 %v882, %v2571
    %v2602 = vmul.f32 %v524, %v2571
    %v2603 = vmul.f32 %v528, %v2571
    %v2604 = vmul.f32 %v887, %v2571
    %v2605 = vmul.f32 %v533, %v2571
    %v2606 = vmul.f32 %v537, %v2571
    %v2607 = vmul.f32 %v892, %v2571
    %v2608 = vmul.f32 %v542, %v2571
    %v2609 = vmul.f32 %v546, %v2571
    %v2610 = vmul.f32 %v897, %v2571
    %v2611 = vmul.f32 %v551, %v2571
    %v2612 = vmul.f32 %v555, %v2571
    %v2613 = vmul.f32 %v902, %v2571
    %v2614 = vmul.f32 %v560, %v2571
    %v2615 = vmul.f32 %v564, %v2571
    %v2616 = vmul.f32 %v907, %v2571
    %v2617 = vmul.f32 %v1927, %v2571
    %v2618 = vmul.f32 %v1931, %v2571
    %v2619 = vmul.f32 %v2077, %v2571
    %v2620 = vmul.f32 %v569, %v2571
    %v2621 = vmul.f32 %v573, %v2571
    %v2622 = vmul.f32 %v912, %v2571
    %v2623 = vmul.f32 %v578, %v2571
    %v2624 = vmul.f32 %v582, %v2571
    %v2625 = vmul.f32 %v917, %v2571
    %v2626 = vmul.f32 %v587, %v2571
    %v2627 = vmul.f32 %v591, %v2571
    %v2628 = vmul.f32 %v922, %v2571
    %v2629 = vmul.f32 %v596, %v2571
    %v2630 = vmul.f32 %v600, %v2571
    %v2631 = vmul.f32 %v927, %v2571
    %v2632 = vmul.f32 %v605, %v2571
    %v2633 = vmul.f32 %v609, %v2571
    %v2634 = vmul.f32 %v932, %v2571
    %v2635 = vmul.f32 %v614, %v2571
    %v2636 = vmul.f32 %v618, %v2571
    %v2637 = vmul.f32 %v937, %v2571
    %v2638 = vmul.f32 %v623, %v2571
    %v2639 = vmul.f32 %v627, %v2571
    %v2640 = vmul.f32 %v942, %v2571
    %v2641 = vmul.f32 %v632, %v2571
    %v2642 = vmul.f32 %v636, %v2571
    %v2643 = vmul.f32 %v947, %v2571
    %v2644 = vmul.f32 %v641, %v2571
    %v2645 = vmul.f32 %v645, %v2571
    %v2646 = vmul.f32 %v952, %v2571
    %v2647 = vmul.f32 %v650, %v2571
    %v2648 = vmul.f32 %v654, %v2571
    %v2649 = vmul.f32 %v957, %v2571
    %v2650 = vmul.f32 %v659, %v2571
    %v2651 = vmul.f32 %v663, %v2571
    %v2652 = vmul.f32 %v962, %v2571
    %v2653 = vmul.f32 %v668, %v2571
    %v2654 = vmul.f32 %v672, %v2571
    %v2655 = vmul.f32 %v967, %v2571
    %v2656 = vmul.f32 %v677, %v2571
    %v2657 = vmul.f32 %v681, %v2571
    %v2658 = vmul.f32 %v972, %v2571
    %v2659 = vmul.f32 %v686, %v2571
    %v2660 = vmul.f32 %v690, %v2571
    %v2661 = vmul.f32 %v977, %v2571
    %v2662 = vmul.f32 %v695, %v2571
    %v2663 = vmul.f32 %v699, %v2571
    %v2664 = vmul.f32 %v982, %v2571
    %v2665 = vmul.f32 %v1936, %v2571
    %v2666 = vmul.f32 %v1940, %v2571
    %v2667 = vmul.f32 %v2082, %v2571
    %v2764 = vrot.slane %v2572, 2
    %v2765 = vrot.slane %v2573, 2
    %v2766 = vsel %vm1644, %v2764, %v2765
    %v2767 = vrot.slane %v2574, 2
    %v2768 = vsel %vm1644, %v2765, %v2767
    %v2769 = vrot.slane %v2575, 2
    %v2770 = vrot.slane %v2576, 2
    %v2771 = vsel %vm1644, %v2769, %v2770
    %v2772 = vrot.slane %v2577, 2
    %v2773 = vsel %vm1644, %v2770, %v2772
    %v2774 = vrot.slane %v2578, 2
    %v2775 = vrot.slane %v2579, 2
    %v2776 = vsel %vm1644, %v2774, %v2775
    %v2777 = vrot.slane %v2580, 2
    %v2778 = vsel %vm1644, %v2775, %v2777
    %v2779 = vrot.slane %v2581, 2
    %v2780 = vrot.slane %v2582, 2
    %v2781 = vsel %vm1644, %v2779, %v2780
    %v2782 = vrot.slane %v2583, 2
    %v2783 = vsel %vm1644, %v2780, %v2782
    %v2784 = vrot.slane %v2584, 2
    %v2785 = vrot.slane %v2585, 2
    %v2786 = vsel %vm1644, %v2784, %v2785
    %v2787 = vrot.slane %v2586, 2
    %v2788 = vsel %vm1644, %v2785, %v2787
    %v2789 = vrot.slane %v2587, 2
    %v2790 = vrot.slane %v2588, 2
    %v2791 = vsel %vm1644, %v2789, %v2790
    %v2792 = vrot.slane %v2589, 2
    %v2793 = vsel %vm1644, %v2790, %v2792
    %v2794 = vrot.slane %v2590, 2
    %v2795 = vrot.slane %v2591, 2
    %v2796 = vsel %vm1644, %v2794, %v2795
    %v2797 = vrot.slane %v2592, 2
    %v2798 = vsel %vm1644, %v2795, %v2797
    %v2799 = vrot.slane %v2593, 2
    %v2800 = vrot.slane %v2594, 2
    %v2801 = vsel %vm1644, %v2799, %v2800
    %v2802 = vrot.slane %v2595, 2
    %v2803 = vsel %vm1644, %v2800, %v2802
    %v2804 = vrot.slane %v2596, 2
    %v2805 = vrot.slane %v2597, 2
    %v2806 = vsel %vm1644, %v2804, %v2805
    %v2807 = vrot.slane %v2598, 2
    %v2808 = vsel %vm1644, %v2805, %v2807
    %v2809 = vrot.slane %v2599, 2
    %v2810 = vrot.slane %v2600, 2
    %v2811 = vsel %vm1644, %v2809, %v2810
    %v2812 = vrot.slane %v2601, 2
    %v2813 = vsel %vm1644, %v2810, %v2812
    %v2814 = vrot.slane %v2602, 2
    %v2815 = vrot.slane %v2603, 2
    %v2816 = vsel %vm1644, %v2814, %v2815
    %v2817 = vrot.slane %v2604, 2
    %v2818 = vsel %vm1644, %v2815, %v2817
    %v2819 = vrot.slane %v2605, 2
    %v2820 = vrot.slane %v2606, 2
    %v2821 = vsel %vm1644, %v2819, %v2820
    %v2822 = vrot.slane %v2607, 2
    %v2823 = vsel %vm1644, %v2820, %v2822
    %v2824 = vrot.slane %v2608, 2
    %v2825 = vrot.slane %v2609, 2
    %v2826 = vsel %vm1644, %v2824, %v2825
    %v2827 = vrot.slane %v2610, 2
    %v2828 = vsel %vm1644, %v2825, %v2827
    %v2829 = vrot.slane %v2611, 2
    %v2830 = vrot.slane %v2612, 2
    %v2831 = vsel %vm1644, %v2829, %v2830
    %v2832 = vrot.slane %v2613, 2
    %v2833 = vsel %vm1644, %v2830, %v2832
    %v2834 = vrot.slane %v2614, 2
    %v2835 = vrot.slane %v2615, 2
    %v2836 = vsel %vm1644, %v2834, %v2835
    %v2837 = vrot.slane %v2616, 2
    %v2838 = vsel %vm1644, %v2835, %v2837
    %v2839 = vrot.slane %v2617, 2
    %v2840 = vrot.slane %v2618, 2
    %v2841 = vsel %vm1644, %v2839, %v2840
    %v2842 = vrot.slane %v2619, 2
    %v2843 = vsel %vm1644, %v2840, %v2842
    %v2844 = vrot.slane %v2620, 2
    %v2845 = vrot.slane %v2621, 2
    %v2846 = vsel %vm1644, %v2844, %v2845
    %v2847 = vrot.slane %v2622, 2
    %v2848 = vsel %vm1644, %v2845, %v2847
    %v2849 = vrot.slane %v2623, 2
    %v2850 = vrot.slane %v2624, 2
    %v2851 = vsel %vm1644, %v2849, %v2850
    %v2852 = vrot.slane %v2625, 2
    %v2853 = vsel %vm1644, %v2850, %v2852
    %v2854 = vrot.slane %v2626, 2
    %v2855 = vrot.slane %v2627, 2
    %v2856 = vsel %vm1644, %v2854, %v2855
    %v2857 = vrot.slane %v2628, 2
    %v2858 = vsel %vm1644, %v2855, %v2857
    %v2859 = vrot.slane %v2629, 2
    %v2860 = vrot.slane %v2630, 2
    %v2861 = vsel %vm1644, %v2859, %v2860
    %v2862 = vrot.slane %v2631, 2
    %v2863 = vsel %vm1644, %v2860, %v2862
    %v2864 = vrot.slane %v2632, 2
    %v2865 = vrot.slane %v2633, 2
    %v2866 = vsel %vm1644, %v2864, %v2865
    %v2867 = vrot.slane %v2634, 2
    %v2868 = vsel %vm1644, %v2865, %v2867
    %v2869 = vrot.slane %v2635, 2
    %v2870 = vrot.slane %v2636, 2
    %v2871 = vsel %vm1644, %v2869, %v2870
    %v2872 = vrot.slane %v2637, 2
    %v2873 = vsel %vm1644, %v2870, %v2872
    %v2874 = vrot.slane %v2638, 2
    %v2875 = vrot.slane %v2639, 2
    %v2876 = vsel %vm1644, %v2874, %v2875
    %v2877 = vrot.slane %v2640, 2
    %v2878 = vsel %vm1644, %v2875, %v2877
    %v2879 = vrot.slane %v2641, 2
    %v2880 = vrot.slane %v2642, 2
    %v2881 = vsel %vm1644, %v2879, %v2880
    %v2882 = vrot.slane %v2643, 2
    %v2883 = vsel %vm1644, %v2880, %v2882
    %v2884 = vrot.slane %v2644, 2
    %v2885 = vrot.slane %v2645, 2
    %v2886 = vsel %vm1644, %v2884, %v2885
    %v2887 = vrot.slane %v2646, 2
    %v2888 = vsel %vm1644, %v2885, %v2887
    %v2889 = vrot.slane %v2647, 2
    %v2890 = vrot.slane %v2648, 2
    %v2891 = vsel %vm1644, %v2889, %v2890
    %v2892 = vrot.slane %v2649, 2
    %v2893 = vsel %vm1644, %v2890, %v2892
    %v2894 = vrot.slane %v2650, 2
    %v2895 = vrot.slane %v2651, 2
    %v2896 = vsel %vm1644, %v2894, %v2895
    %v2897 = vrot.slane %v2652, 2
    %v2898 = vsel %vm1644, %v2895, %v2897
    %v2899 = vrot.slane %v2653, 2
    %v2900 = vrot.slane %v2654, 2
    %v2901 = vsel %vm1644, %v2899, %v2900
    %v2902 = vrot.slane %v2655, 2
    %v2903 = vsel %vm1644, %v2900, %v2902
    %v2904 = vrot.slane %v2656, 2
    %v2905 = vrot.slane %v2657, 2
    %v2906 = vsel %vm1644, %v2904, %v2905
    %v2907 = vrot.slane %v2658, 2
    %v2908 = vsel %vm1644, %v2905, %v2907
    %v2909 = vrot.slane %v2659, 2
    %v2910 = vrot.slane %v2660, 2
    %v2911 = vsel %vm1644, %v2909, %v2910
    %v2912 = vrot.slane %v2661, 2
    %v2913 = vsel %vm1644, %v2910, %v2912
    %v2914 = vrot.slane %v2662, 2
    %v2915 = vrot.slane %v2663, 2
    %v2916 = vsel %vm1644, %v2914, %v2915
    %v2917 = vrot.slane %v2664, 2
    %v2918 = vsel %vm1644, %v2915, %v2917
    %v2919 = vrot.slane %v2665, 2
    %v2920 = vrot.slane %v2666, 2
    %v2921 = vsel %vm1644, %v2919, %v2920
    %v2922 = vrot.slane %v2667, 2
    %v2923 = vsel %vm1644, %v2920, %v2922
    %v2988 = vadd.f32 %v2504, %v2766
    %v2989 = vadd.f32 %v2505, %v2768
    %v2990 = vadd.f32 %v2506, %v2771
    %v2991 = vadd.f32 %v2507, %v2773
    %v2992 = vadd.f32 %v2508, %v2776
    %v2993 = vadd.f32 %v2509, %v2778
    %v2994 = vadd.f32 %v2510, %v2781
    %v2995 = vadd.f32 %v2511, %v2783
    %v2996 = vadd.f32 %v2512, %v2786
    %v2997 = vadd.f32 %v2513, %v2788
    %v2998 = vadd.f32 %v2514, %v2791
    %v2999 = vadd.f32 %v2515, %v2793
    %v3000 = vadd.f32 %v2516, %v2796
    %v3001 = vadd.f32 %v2517, %v2798
    %v3002 = vadd.f32 %v2518, %v2801
    %v3003 = vadd.f32 %v2519, %v2803
    %v3004 = vadd.f32 %v2520, %v2806
    %v3005 = vadd.f32 %v2521, %v2808
    %v3006 = vadd.f32 %v2522, %v2811
    %v3007 = vadd.f32 %v2523, %v2813
    %v3008 = vadd.f32 %v2524, %v2816
    %v3009 = vadd.f32 %v2525, %v2818
    %v3010 = vadd.f32 %v2526, %v2821
    %v3011 = vadd.f32 %v2527, %v2823
    %v3012 = vadd.f32 %v2528, %v2826
    %v3013 = vadd.f32 %v2529, %v2828
    %v3014 = vadd.f32 %v2530, %v2831
    %v3015 = vadd.f32 %v2531, %v2833
    %v3016 = vadd.f32 %v2532, %v2836
    %v3017 = vadd.f32 %v2533, %v2838
    %v3018 = vadd.f32 %v2534, %v2841
    %v3019 = vadd.f32 %v2535, %v2843
    %v3020 = vadd.f32 %v2536, %v2846
    %v3021 = vadd.f32 %v2537, %v2848
    %v3022 = vadd.f32 %v2538, %v2851
    %v3023 = vadd.f32 %v2539, %v2853
    %v3024 = vadd.f32 %v2540, %v2856
    %v3025 = vadd.f32 %v2541, %v2858
    %v3026 = vadd.f32 %v2542, %v2861
    %v3027 = vadd.f32 %v2543, %v2863
    %v3028 = vadd.f32 %v2544, %v2866
    %v3029 = vadd.f32 %v2545, %v2868
    %v3030 = vadd.f32 %v2546, %v2871
    %v3031 = vadd.f32 %v2547, %v2873
    %v3032 = vadd.f32 %v2548, %v2876
    %v3033 = vadd.f32 %v2549, %v2878
    %v3034 = vadd.f32 %v2550, %v2881
    %v3035 = vadd.f32 %v2551, %v2883
    %v3036 = vadd.f32 %v2552, %v2886
    %v3037 = vadd.f32 %v2553, %v2888
    %v3038 = vadd.f32 %v2554, %v2891
    %v3039 = vadd.f32 %v2555, %v2893
    %v3040 = vadd.f32 %v2556, %v2896
    %v3041 = vadd.f32 %v2557, %v2898
    %v3042 = vadd.f32 %v2558, %v2901
    %v3043 = vadd.f32 %v2559, %v2903
    %v3044 = vadd.f32 %v2560, %v2906
    %v3045 = vadd.f32 %v2561, %v2908
    %v3046 = vadd.f32 %v2562, %v2911
    %v3047 = vadd.f32 %v2563, %v2913
    %v3048 = vadd.f32 %v2564, %v2916
    %v3049 = vadd.f32 %v2565, %v2918
    %v3050 = vadd.f32 %v2566, %v2921
    %v3051 = vadd.f32 %v2567, %v2923
    %v3052 = vlaneseq
    %v3053 = vshrl.u32 %v3052, 7
    %v3054 = vsub.s32 6, %v3053
    %v3055 = vrot.slane %v420, %v3054
    %v3056 = vmul.f32 %v443, %v3055
    %v3057 = vmul.f32 %v447, %v3055
    %v3058 = vmul.f32 %v452, %v3055
    %v3059 = vmul.f32 %v456, %v3055
    %v3060 = vmul.f32 %v461, %v3055
    %v3061 = vmul.f32 %v465, %v3055
    %v3062 = vmul.f32 %v470, %v3055
    %v3063 = vmul.f32 %v474, %v3055
    %v3064 = vmul.f32 %v479, %v3055
    %v3065 = vmul.f32 %v483, %v3055
    %v3066 = vmul.f32 %v488, %v3055
    %v3067 = vmul.f32 %v492, %v3055
    %v3068 = vmul.f32 %v497, %v3055
    %v3069 = vmul.f32 %v501, %v3055
    %v3070 = vmul.f32 %v506, %v3055
    %v3071 = vmul.f32 %v510, %v3055
    %v3072 = vmul.f32 %v515, %v3055
    %v3073 = vmul.f32 %v519, %v3055
    %v3074 = vmul.f32 %v524, %v3055
    %v3075 = vmul.f32 %v528, %v3055
    %v3076 = vmul.f32 %v533, %v3055
    %v3077 = vmul.f32 %v537, %v3055
    %v3078 = vmul.f32 %v542, %v3055
    %v3079 = vmul.f32 %v546, %v3055
    %v3080 = vmul.f32 %v551, %v3055
    %v3081 = vmul.f32 %v555, %v3055
    %v3082 = vmul.f32 %v560, %v3055
    %v3083 = vmul.f32 %v564, %v3055
    %v3084 = vmul.f32 %v1927, %v3055
    %v3085 = vmul.f32 %v1931, %v3055
    %v3086 = vmul.f32 %v425, %v3055
    %v3087 = vmul.f32 %v429, %v3055
    %v3088 = vmul.f32 %v578, %v3055
    %v3089 = vmul.f32 %v582, %v3055
    %v3090 = vmul.f32 %v587, %v3055
    %v3091 = vmul.f32 %v591, %v3055
    %v3092 = vmul.f32 %v596, %v3055
    %v3093 = vmul.f32 %v600, %v3055
    %v3094 = vmul.f32 %v605, %v3055
    %v3095 = vmul.f32 %v609, %v3055
    %v3096 = vmul.f32 %v614, %v3055
    %v3097 = vmul.f32 %v618, %v3055
    %v3098 = vmul.f32 %v623, %v3055
    %v3099 = vmul.f32 %v627, %v3055
    %v3100 = vmul.f32 %v632, %v3055
    %v3101 = vmul.f32 %v636, %v3055
    %v3102 = vmul.f32 %v641, %v3055
    %v3103 = vmul.f32 %v645, %v3055
    %v3104 = vmul.f32 %v650, %v3055
    %v3105 = vmul.f32 %v654, %v3055
    %v3106 = vmul.f32 %v659, %v3055
    %v3107 = vmul.f32 %v663, %v3055
    %v3108 = vmul.f32 %v668, %v3055
    %v3109 = vmul.f32 %v672, %v3055
    %v3110 = vmul.f32 %v677, %v3055
    %v3111 = vmul.f32 %v681, %v3055
    %v3112 = vmul.f32 %v686, %v3055
    %v3113 = vmul.f32 %v690, %v3055
    %v3114 = vmul.f32 %v695, %v3055
    %v3115 = vmul.f32 %v699, %v3055
    %v3116 = vmul.f32 %v1936, %v3055
    %v3117 = vmul.f32 %v1940, %v3055
    %v3118 = vadd.f32 %v2988, %v3056
    %v3119 = vadd.f32 %v2989, %v3057
    %v3120 = vadd.f32 %v2990, %v3058
    %v3121 = vadd.f32 %v2991, %v3059
    %v3122 = vadd.f32 %v2992, %v3060
    %v3123 = vadd.f32 %v2993, %v3061
    %v3124 = vadd.f32 %v2994, %v3062
    %v3125 = vadd.f32 %v2995, %v3063
    %v3126 = vadd.f32 %v2996, %v3064
    %v3127 = vadd.f32 %v2997, %v3065
    %v3128 = vadd.f32 %v2998, %v3066
    %v3129 = vadd.f32 %v2999, %v3067
    %v3130 = vadd.f32 %v3000, %v3068
    %v3131 = vadd.f32 %v3001, %v3069
    %v3132 = vadd.f32 %v3002, %v3070
    %v3133 = vadd.f32 %v3003, %v3071
    %v3134 = vadd.f32 %v3004, %v3072
    %v3135 = vadd.f32 %v3005, %v3073
    %v3136 = vadd.f32 %v3006, %v3074
    %v3137 = vadd.f32 %v3007, %v3075
    %v3138 = vadd.f32 %v3008, %v3076
    %v3139 = vadd.f32 %v3009, %v3077
    %v3140 = vadd.f32 %v3010, %v3078
    %v3141 = vadd.f32 %v3011, %v3079
    %v3142 = vadd.f32 %v3012, %v3080
    %v3143 = vadd.f32 %v3013, %v3081
    %v3144 = vadd.f32 %v3014, %v3082
    %v3145 = vadd.f32 %v3015, %v3083
    %v3146 = vadd.f32 %v3016, %v3084
    %v3147 = vadd.f32 %v3017, %v3085
    %v3148 = vadd.f32 %v3018, %v3086
    %v3149 = vadd.f32 %v3019, %v3087
    %v3150 = vadd.f32 %v3020, %v3088
    %v3151 = vadd.f32 %v3021, %v3089
    %v3152 = vadd.f32 %v3022, %v3090
    %v3153 = vadd.f32 %v3023, %v3091
    %v3154 = vadd.f32 %v3024, %v3092
    %v3155 = vadd.f32 %v3025, %v3093
    %v3156 = vadd.f32 %v3026, %v3094
    %v3157 = vadd.f32 %v3027, %v3095
    %v3158 = vadd.f32 %v3028, %v3096
    %v3159 = vadd.f32 %v3029, %v3097
    %v3160 = vadd.f32 %v3030, %v3098
    %v3161 = vadd.f32 %v3031, %v3099
    %v3162 = vadd.f32 %v3032, %v3100
    %v3163 = vadd.f32 %v3033, %v3101
    %v3164 = vadd.f32 %v3034, %v3102
    %v3165 = vadd.f32 %v3035, %v3103
    %v3166 = vadd.f32 %v3036, %v3104
    %v3167 = vadd.f32 %v3037, %v3105
    %v3168 = vadd.f32 %v3038, %v3106
    %v3169 = vadd.f32 %v3039, %v3107
    %v3170 = vadd.f32 %v3040, %v3108
    %v3171 = vadd.f32 %v3041, %v3109
    %v3172 = vadd.f32 %v3042, %v3110
    %v3173 = vadd.f32 %v3043, %v3111
    %v3174 = vadd.f32 %v3044, %v3112
    %v3175 = vadd.f32 %v3045, %v3113
    %v3176 = vadd.f32 %v3046, %v3114
    %v3177 = vadd.f32 %v3047, %v3115
    %v3178 = vadd.f32 %v3048, %v3116
    %v3179 = vadd.f32 %v3049, %v3117
    %v3180 = vadd.f32 %v3050, %v3086
    %v3181 = vadd.f32 %v3051, %v3087
    %v3182 = vlaneseq
    %v3183 = vshrl.u32 %v3182, 7
    %v3184 = vsub.s32 7, %v3183
    %v3185 = vrot.slane %v420, %v3184
    %v3186 = vmul.f32 %v443, %v3185
    %v3187 = vmul.f32 %v447, %v3185
    %v3188 = vmul.f32 %v842, %v3185
    %v3189 = vmul.f32 %v452, %v3185
    %v3190 = vmul.f32 %v456, %v3185
    %v3191 = vmul.f32 %v847, %v3185
    %v3192 = vmul.f32 %v461, %v3185
    %v3193 = vmul.f32 %v465, %v3185
    %v3194 = vmul.f32 %v852, %v3185
    %v3195 = vmul.f32 %v470, %v3185
    %v3196 = vmul.f32 %v474, %v3185
    %v3197 = vmul.f32 %v857, %v3185
    %v3198 = vmul.f32 %v479, %v3185
    %v3199 = vmul.f32 %v483, %v3185
    %v3200 = vmul.f32 %v862, %v3185
    %v3201 = vmul.f32 %v488, %v3185
    %v3202 = vmul.f32 %v492, %v3185
    %v3203 = vmul.f32 %v867, %v3185
    %v3204 = vmul.f32 %v497, %v3185
    %v3205 = vmul.f32 %v501, %v3185
    %v3206 = vmul.f32 %v872, %v3185
    %v3207 = vmul.f32 %v506, %v3185
    %v3208 = vmul.f32 %v510, %v3185
    %v3209 = vmul.f32 %v877, %v3185
    %v3210 = vmul.f32 %v515, %v3185
    %v3211 = vmul.f32 %v519, %v3185
    %v3212 = vmul.f32 %v882, %v3185
    %v3213 = vmul.f32 %v524, %v3185
    %v3214 = vmul.f32 %v528, %v3185
    %v3215 = vmul.f32 %v887, %v3185
    %v3216 = vmul.f32 %v533, %v3185
    %v3217 = vmul.f32 %v537, %v3185
    %v3218 = vmul.f32 %v892, %v3185
    %v3219 = vmul.f32 %v542, %v3185
    %v3220 = vmul.f32 %v546, %v3185
    %v3221 = vmul.f32 %v897, %v3185
    %v3222 = vmul.f32 %v551, %v3185
    %v3223 = vmul.f32 %v555, %v3185
    %v3224 = vmul.f32 %v902, %v3185
    %v3225 = vmul.f32 %v560, %v3185
    %v3226 = vmul.f32 %v564, %v3185
    %v3227 = vmul.f32 %v907, %v3185
    %v3228 = vmul.f32 %v1927, %v3185
    %v3229 = vmul.f32 %v1931, %v3185
    %v3230 = vmul.f32 %v2077, %v3185
    %v3231 = vmul.f32 %v425, %v3185
    %v3232 = vmul.f32 %v429, %v3185
    %v3233 = vmul.f32 %v832, %v3185
    %v3234 = vmul.f32 %v578, %v3185
    %v3235 = vmul.f32 %v582, %v3185
    %v3236 = vmul.f32 %v917, %v3185
    %v3237 = vmul.f32 %v587, %v3185
    %v3238 = vmul.f32 %v591, %v3185
    %v3239 = vmul.f32 %v922, %v3185
    %v3240 = vmul.f32 %v596, %v3185
    %v3241 = vmul.f32 %v600, %v3185
    %v3242 = vmul.f32 %v927, %v3185
    %v3243 = vmul.f32 %v605, %v3185
    %v3244 = vmul.f32 %v609, %v3185
    %v3245 = vmul.f32 %v932, %v3185
    %v3246 = vmul.f32 %v614, %v3185
    %v3247 = vmul.f32 %v618, %v3185
    %v3248 = vmul.f32 %v937, %v3185
    %v3249 = vmul.f32 %v623, %v3185
    %v3250 = vmul.f32 %v627, %v3185
    %v3251 = vmul.f32 %v942, %v3185
    %v3252 = vmul.f32 %v632, %v3185
    %v3253 = vmul.f32 %v636, %v3185
    %v3254 = vmul.f32 %v947, %v3185
    %v3255 = vmul.f32 %v641, %v3185
    %v3256 = vmul.f32 %v645, %v3185
    %v3257 = vmul.f32 %v952, %v3185
    %v3258 = vmul.f32 %v650, %v3185
    %v3259 = vmul.f32 %v654, %v3185
    %v3260 = vmul.f32 %v957, %v3185
    %v3261 = vmul.f32 %v659, %v3185
    %v3262 = vmul.f32 %v663, %v3185
    %v3263 = vmul.f32 %v962, %v3185
    %v3264 = vmul.f32 %v668, %v3185
    %v3265 = vmul.f32 %v672, %v3185
    %v3266 = vmul.f32 %v967, %v3185
    %v3267 = vmul.f32 %v677, %v3185
    %v3268 = vmul.f32 %v681, %v3185
    %v3269 = vmul.f32 %v972, %v3185
    %v3270 = vmul.f32 %v686, %v3185
    %v3271 = vmul.f32 %v690, %v3185
    %v3272 = vmul.f32 %v977, %v3185
    %v3273 = vmul.f32 %v695, %v3185
    %v3274 = vmul.f32 %v699, %v3185
    %v3275 = vmul.f32 %v982, %v3185
    %v3276 = vmul.f32 %v1936, %v3185
    %v3277 = vmul.f32 %v1940, %v3185
    %v3278 = vmul.f32 %v2082, %v3185
    %v3372 = vrot.slane %v3186, 1
    %v3373 = vrot.slane %v3187, 1
    %v3374 = vsel %vm1174, %v3372, %v3373
    %v3375 = vrot.slane %v3188, 1
    %v3376 = vsel %vm1174, %v3373, %v3375
    %v3377 = vrot.slane %v3189, 1
    %v3378 = vrot.slane %v3190, 1
    %v3379 = vsel %vm1174, %v3377, %v3378
    %v3380 = vrot.slane %v3191, 1
    %v3381 = vsel %vm1174, %v3378, %v3380
    %v3382 = vrot.slane %v3192, 1
    %v3383 = vrot.slane %v3193, 1
    %v3384 = vsel %vm1174, %v3382, %v3383
    %v3385 = vrot.slane %v3194, 1
    %v3386 = vsel %vm1174, %v3383, %v3385
    %v3387 = vrot.slane %v3195, 1
    %v3388 = vrot.slane %v3196, 1
    %v3389 = vsel %vm1174, %v3387, %v3388
    %v3390 = vrot.slane %v3197, 1
    %v3391 = vsel %vm1174, %v3388, %v3390
    %v3392 = vrot.slane %v3198, 1
    %v3393 = vrot.slane %v3199, 1
    %v3394 = vsel %vm1174, %v3392, %v3393
    %v3395 = vrot.slane %v3200, 1
    %v3396 = vsel %vm1174, %v3393, %v3395
    %v3397 = vrot.slane %v3201, 1
    %v3398 = vrot.slane %v3202, 1
    %v3399 = vsel %vm1174, %v3397, %v3398
    %v3400 = vrot.slane %v3203, 1
    %v3401 = vsel %vm1174, %v3398, %v3400
    %v3402 = vrot.slane %v3204, 1
    %v3403 = vrot.slane %v3205, 1
    %v3404 = vsel %vm1174, %v3402, %v3403
    %v3405 = vrot.slane %v3206, 1
    %v3406 = vsel %vm1174, %v3403, %v3405
    %v3407 = vrot.slane %v3207, 1
    %v3408 = vrot.slane %v3208, 1
    %v3409 = vsel %vm1174, %v3407, %v3408
    %v3410 = vrot.slane %v3209, 1
    %v3411 = vsel %vm1174, %v3408, %v3410
    %v3412 = vrot.slane %v3210, 1
    %v3413 = vrot.slane %v3211, 1
    %v3414 = vsel %vm1174, %v3412, %v3413
    %v3415 = vrot.slane %v3212, 1
    %v3416 = vsel %vm1174, %v3413, %v3415
    %v3417 = vrot.slane %v3213, 1
    %v3418 = vrot.slane %v3214, 1
    %v3419 = vsel %vm1174, %v3417, %v3418
    %v3420 = vrot.slane %v3215, 1
    %v3421 = vsel %vm1174, %v3418, %v3420
    %v3422 = vrot.slane %v3216, 1
    %v3423 = vrot.slane %v3217, 1
    %v3424 = vsel %vm1174, %v3422, %v3423
    %v3425 = vrot.slane %v3218, 1
    %v3426 = vsel %vm1174, %v3423, %v3425
    %v3427 = vrot.slane %v3219, 1
    %v3428 = vrot.slane %v3220, 1
    %v3429 = vsel %vm1174, %v3427, %v3428
    %v3430 = vrot.slane %v3221, 1
    %v3431 = vsel %vm1174, %v3428, %v3430
    %v3432 = vrot.slane %v3222, 1
    %v3433 = vrot.slane %v3223, 1
    %v3434 = vsel %vm1174, %v3432, %v3433
    %v3435 = vrot.slane %v3224, 1
    %v3436 = vsel %vm1174, %v3433, %v3435
    %v3437 = vrot.slane %v3225, 1
    %v3438 = vrot.slane %v3226, 1
    %v3439 = vsel %vm1174, %v3437, %v3438
    %v3440 = vrot.slane %v3227, 1
    %v3441 = vsel %vm1174, %v3438, %v3440
    %v3442 = vrot.slane %v3228, 1
    %v3443 = vrot.slane %v3229, 1
    %v3444 = vsel %vm1174, %v3442, %v3443
    %v3445 = vrot.slane %v3230, 1
    %v3446 = vsel %vm1174, %v3443, %v3445
    %v3447 = vrot.slane %v3231, 1
    %v3448 = vrot.slane %v3232, 1
    %v3449 = vsel %vm1174, %v3447, %v3448
    %v3450 = vrot.slane %v3233, 1
    %v3451 = vsel %vm1174, %v3448, %v3450
    %v3452 = vrot.slane %v3234, 1
    %v3453 = vrot.slane %v3235, 1
    %v3454 = vsel %vm1174, %v3452, %v3453
    %v3455 = vrot.slane %v3236, 1
    %v3456 = vsel %vm1174, %v3453, %v3455
    %v3457 = vrot.slane %v3237, 1
    %v3458 = vrot.slane %v3238, 1
    %v3459 = vsel %vm1174, %v3457, %v3458
    %v3460 = vrot.slane %v3239, 1
    %v3461 = vsel %vm1174, %v3458, %v3460
    %v3462 = vrot.slane %v3240, 1
    %v3463 = vrot.slane %v3241, 1
    %v3464 = vsel %vm1174, %v3462, %v3463
    %v3465 = vrot.slane %v3242, 1
    %v3466 = vsel %vm1174, %v3463, %v3465
    %v3467 = vrot.slane %v3243, 1
    %v3468 = vrot.slane %v3244, 1
    %v3469 = vsel %vm1174, %v3467, %v3468
    %v3470 = vrot.slane %v3245, 1
    %v3471 = vsel %vm1174, %v3468, %v3470
    %v3472 = vrot.slane %v3246, 1
    %v3473 = vrot.slane %v3247, 1
    %v3474 = vsel %vm1174, %v3472, %v3473
    %v3475 = vrot.slane %v3248, 1
    %v3476 = vsel %vm1174, %v3473, %v3475
    %v3477 = vrot.slane %v3249, 1
    %v3478 = vrot.slane %v3250, 1
    %v3479 = vsel %vm1174, %v3477, %v3478
    %v3480 = vrot.slane %v3251, 1
    %v3481 = vsel %vm1174, %v3478, %v3480
    %v3482 = vrot.slane %v3252, 1
    %v3483 = vrot.slane %v3253, 1
    %v3484 = vsel %vm1174, %v3482, %v3483
    %v3485 = vrot.slane %v3254, 1
    %v3486 = vsel %vm1174, %v3483, %v3485
    %v3487 = vrot.slane %v3255, 1
    %v3488 = vrot.slane %v3256, 1
    %v3489 = vsel %vm1174, %v3487, %v3488
    %v3490 = vrot.slane %v3257, 1
    %v3491 = vsel %vm1174, %v3488, %v3490
    %v3492 = vrot.slane %v3258, 1
    %v3493 = vrot.slane %v3259, 1
    %v3494 = vsel %vm1174, %v3492, %v3493
    %v3495 = vrot.slane %v3260, 1
    %v3496 = vsel %vm1174, %v3493, %v3495
    %v3497 = vrot.slane %v3261, 1
    %v3498 = vrot.slane %v3262, 1
    %v3499 = vsel %vm1174, %v3497, %v3498
    %v3500 = vrot.slane %v3263, 1
    %v3501 = vsel %vm1174, %v3498, %v3500
    %v3502 = vrot.slane %v3264, 1
    %v3503 = vrot.slane %v3265, 1
    %v3504 = vsel %vm1174, %v3502, %v3503
    %v3505 = vrot.slane %v3266, 1
    %v3506 = vsel %vm1174, %v3503, %v3505
    %v3507 = vrot.slane %v3267, 1
    %v3508 = vrot.slane %v3268, 1
    %v3509 = vsel %vm1174, %v3507, %v3508
    %v3510 = vrot.slane %v3269, 1
    %v3511 = vsel %vm1174, %v3508, %v3510
    %v3512 = vrot.slane %v3270, 1
    %v3513 = vrot.slane %v3271, 1
    %v3514 = vsel %vm1174, %v3512, %v3513
    %v3515 = vrot.slane %v3272, 1
    %v3516 = vsel %vm1174, %v3513, %v3515
    %v3517 = vrot.slane %v3273, 1
    %v3518 = vrot.slane %v3274, 1
    %v3519 = vsel %vm1174, %v3517, %v3518
    %v3520 = vrot.slane %v3275, 1
    %v3521 = vsel %vm1174, %v3518, %v3520
    %v3522 = vrot.slane %v3276, 1
    %v3523 = vrot.slane %v3277, 1
    %v3524 = vsel %vm1174, %v3522, %v3523
    %v3525 = vrot.slane %v3278, 1
    %v3526 = vsel %vm1174, %v3523, %v3525
    %v3589 = vadd.f32 %v3118, %v3374
    %v3590 = vadd.f32 %v3119, %v3376
    %v3591 = vadd.f32 %v3120, %v3379
    %v3592 = vadd.f32 %v3121, %v3381
    %v3593 = vadd.f32 %v3122, %v3384
    %v3594 = vadd.f32 %v3123, %v3386
    %v3595 = vadd.f32 %v3124, %v3389
    %v3596 = vadd.f32 %v3125, %v3391
    %v3597 = vadd.f32 %v3126, %v3394
    %v3598 = vadd.f32 %v3127, %v3396
    %v3599 = vadd.f32 %v3128, %v3399
    %v3600 = vadd.f32 %v3129, %v3401
    %v3601 = vadd.f32 %v3130, %v3404
    %v3602 = vadd.f32 %v3131, %v3406
    %v3603 = vadd.f32 %v3132, %v3409
    %v3604 = vadd.f32 %v3133, %v3411
    %v3605 = vadd.f32 %v3134, %v3414
    %v3606 = vadd.f32 %v3135, %v3416
    %v3607 = vadd.f32 %v3136, %v3419
    %v3608 = vadd.f32 %v3137, %v3421
    %v3609 = vadd.f32 %v3138, %v3424
    %v3610 = vadd.f32 %v3139, %v3426
    %v3611 = vadd.f32 %v3140, %v3429
    %v3612 = vadd.f32 %v3141, %v3431
    %v3613 = vadd.f32 %v3142, %v3434
    %v3614 = vadd.f32 %v3143, %v3436
    %v3615 = vadd.f32 %v3144, %v3439
    %v3616 = vadd.f32 %v3145, %v3441
    %v3617 = vadd.f32 %v3146, %v3444
    %v3618 = vadd.f32 %v3147, %v3446
    %v3619 = vadd.f32 %v3148, %v3449
    %v3620 = vadd.f32 %v3149, %v3451
    %v3621 = vadd.f32 %v3150, %v3454
    %v3622 = vadd.f32 %v3151, %v3456
    %v3623 = vadd.f32 %v3152, %v3459
    %v3624 = vadd.f32 %v3153, %v3461
    %v3625 = vadd.f32 %v3154, %v3464
    %v3626 = vadd.f32 %v3155, %v3466
    %v3627 = vadd.f32 %v3156, %v3469
    %v3628 = vadd.f32 %v3157, %v3471
    %v3629 = vadd.f32 %v3158, %v3474
    %v3630 = vadd.f32 %v3159, %v3476
    %v3631 = vadd.f32 %v3160, %v3479
    %v3632 = vadd.f32 %v3161, %v3481
    %v3633 = vadd.f32 %v3162, %v3484
    %v3634 = vadd.f32 %v3163, %v3486
    %v3635 = vadd.f32 %v3164, %v3489
    %v3636 = vadd.f32 %v3165, %v3491
    %v3637 = vadd.f32 %v3166, %v3494
    %v3638 = vadd.f32 %v3167, %v3496
    %v3639 = vadd.f32 %v3168, %v3499
    %v3640 = vadd.f32 %v3169, %v3501
    %v3641 = vadd.f32 %v3170, %v3504
    %v3642 = vadd.f32 %v3171, %v3506
    %v3643 = vadd.f32 %v3172, %v3509
    %v3644 = vadd.f32 %v3173, %v3511
    %v3645 = vadd.f32 %v3174, %v3514
    %v3646 = vadd.f32 %v3175, %v3516
    %v3647 = vadd.f32 %v3176, %v3519
    %v3648 = vadd.f32 %v3177, %v3521
    %v3649 = vadd.f32 %v3178, %v3524
    %v3650 = vadd.f32 %v3179, %v3526
    %v3651 = vadd.f32 %v3180, %v3449
    %v3652 = vadd.f32 %v3181, %v3451
    %v3653 = vlaneseq
    %v3654 = vshrl.u32 %v3653, 7
    %v3655 = vsub.s32 0, %v3654
    %v3656 = vrot.slane %v421, %v3655
    %v3657 = vmul.f32 %v443, %v3656
    %v3658 = vmul.f32 %v447, %v3656
    %v3659 = vmul.f32 %v842, %v3656
    %v3660 = vmul.f32 %v452, %v3656
    %v3661 = vmul.f32 %v456, %v3656
    %v3662 = vmul.f32 %v847, %v3656
    %v3663 = vmul.f32 %v461, %v3656
    %v3664 = vmul.f32 %v465, %v3656
    %v3665 = vmul.f32 %v852, %v3656
    %v3666 = vmul.f32 %v470, %v3656
    %v3667 = vmul.f32 %v474, %v3656
    %v3668 = vmul.f32 %v857, %v3656
    %v3669 = vmul.f32 %v479, %v3656
    %v3670 = vmul.f32 %v483, %v3656
    %v3671 = vmul.f32 %v862, %v3656
    %v3672 = vmul.f32 %v488, %v3656
    %v3673 = vmul.f32 %v492, %v3656
    %v3674 = vmul.f32 %v867, %v3656
    %v3675 = vmul.f32 %v497, %v3656
    %v3676 = vmul.f32 %v501, %v3656
    %v3677 = vmul.f32 %v872, %v3656
    %v3678 = vmul.f32 %v506, %v3656
    %v3679 = vmul.f32 %v510, %v3656
    %v3680 = vmul.f32 %v877, %v3656
    %v3681 = vmul.f32 %v515, %v3656
    %v3682 = vmul.f32 %v519, %v3656
    %v3683 = vmul.f32 %v882, %v3656
    %v3684 = vmul.f32 %v524, %v3656
    %v3685 = vmul.f32 %v528, %v3656
    %v3686 = vmul.f32 %v887, %v3656
    %v3687 = vmul.f32 %v533, %v3656
    %v3688 = vmul.f32 %v537, %v3656
    %v3689 = vmul.f32 %v892, %v3656
    %v3690 = vmul.f32 %v542, %v3656
    %v3691 = vmul.f32 %v546, %v3656
    %v3692 = vmul.f32 %v897, %v3656
    %v3693 = vmul.f32 %v551, %v3656
    %v3694 = vmul.f32 %v555, %v3656
    %v3695 = vmul.f32 %v902, %v3656
    %v3696 = vmul.f32 %v560, %v3656
    %v3697 = vmul.f32 %v564, %v3656
    %v3698 = vmul.f32 %v907, %v3656
    %v3699 = vmul.f32 %v1927, %v3656
    %v3700 = vmul.f32 %v1931, %v3656
    %v3701 = vmul.f32 %v2077, %v3656
    %v3702 = vmul.f32 %v425, %v3656
    %v3703 = vmul.f32 %v429, %v3656
    %v3704 = vmul.f32 %v832, %v3656
    %v3705 = vmul.f32 %v578, %v3656
    %v3706 = vmul.f32 %v582, %v3656
    %v3707 = vmul.f32 %v917, %v3656
    %v3708 = vmul.f32 %v587, %v3656
    %v3709 = vmul.f32 %v591, %v3656
    %v3710 = vmul.f32 %v922, %v3656
    %v3711 = vmul.f32 %v596, %v3656
    %v3712 = vmul.f32 %v600, %v3656
    %v3713 = vmul.f32 %v927, %v3656
    %v3714 = vmul.f32 %v605, %v3656
    %v3715 = vmul.f32 %v609, %v3656
    %v3716 = vmul.f32 %v932, %v3656
    %v3717 = vmul.f32 %v614, %v3656
    %v3718 = vmul.f32 %v618, %v3656
    %v3719 = vmul.f32 %v937, %v3656
    %v3720 = vmul.f32 %v623, %v3656
    %v3721 = vmul.f32 %v627, %v3656
    %v3722 = vmul.f32 %v942, %v3656
    %v3723 = vmul.f32 %v632, %v3656
    %v3724 = vmul.f32 %v636, %v3656
    %v3725 = vmul.f32 %v947, %v3656
    %v3726 = vmul.f32 %v641, %v3656
    %v3727 = vmul.f32 %v645, %v3656
    %v3728 = vmul.f32 %v952, %v3656
    %v3729 = vmul.f32 %v650, %v3656
    %v3730 = vmul.f32 %v654, %v3656
    %v3731 = vmul.f32 %v957, %v3656
    %v3732 = vmul.f32 %v659, %v3656
    %v3733 = vmul.f32 %v663, %v3656
    %v3734 = vmul.f32 %v962, %v3656
    %v3735 = vmul.f32 %v668, %v3656
    %v3736 = vmul.f32 %v672, %v3656
    %v3737 = vmul.f32 %v967, %v3656
    %v3738 = vmul.f32 %v677, %v3656
    %v3739 = vmul.f32 %v681, %v3656
    %v3740 = vmul.f32 %v972, %v3656
    %v3741 = vmul.f32 %v686, %v3656
    %v3742 = vmul.f32 %v690, %v3656
    %v3743 = vmul.f32 %v977, %v3656
    %v3744 = vmul.f32 %v695, %v3656
    %v3745 = vmul.f32 %v699, %v3656
    %v3746 = vmul.f32 %v982, %v3656
    %v3747 = vmul.f32 %v1936, %v3656
    %v3748 = vmul.f32 %v1940, %v3656
    %v3749 = vmul.f32 %v2082, %v3656
    %v3843 = vrot.slane %v3657, 2
    %v3844 = vrot.slane %v3658, 2
    %v3845 = vsel %vm1644, %v3843, %v3844
    %v3846 = vrot.slane %v3659, 2
    %v3847 = vsel %vm1644, %v3844, %v3846
    %v3848 = vrot.slane %v3660, 2
    %v3849 = vrot.slane %v3661, 2
    %v3850 = vsel %vm1644, %v3848, %v3849
    %v3851 = vrot.slane %v3662, 2
    %v3852 = vsel %vm1644, %v3849, %v3851
    %v3853 = vrot.slane %v3663, 2
    %v3854 = vrot.slane %v3664, 2
    %v3855 = vsel %vm1644, %v3853, %v3854
    %v3856 = vrot.slane %v3665, 2
    %v3857 = vsel %vm1644, %v3854, %v3856
    %v3858 = vrot.slane %v3666, 2
    %v3859 = vrot.slane %v3667, 2
    %v3860 = vsel %vm1644, %v3858, %v3859
    %v3861 = vrot.slane %v3668, 2
    %v3862 = vsel %vm1644, %v3859, %v3861
    %v3863 = vrot.slane %v3669, 2
    %v3864 = vrot.slane %v3670, 2
    %v3865 = vsel %vm1644, %v3863, %v3864
    %v3866 = vrot.slane %v3671, 2
    %v3867 = vsel %vm1644, %v3864, %v3866
    %v3868 = vrot.slane %v3672, 2
    %v3869 = vrot.slane %v3673, 2
    %v3870 = vsel %vm1644, %v3868, %v3869
    %v3871 = vrot.slane %v3674, 2
    %v3872 = vsel %vm1644, %v3869, %v3871
    %v3873 = vrot.slane %v3675, 2
    %v3874 = vrot.slane %v3676, 2
    %v3875 = vsel %vm1644, %v3873, %v3874
    %v3876 = vrot.slane %v3677, 2
    %v3877 = vsel %vm1644, %v3874, %v3876
    %v3878 = vrot.slane %v3678, 2
    %v3879 = vrot.slane %v3679, 2
    %v3880 = vsel %vm1644, %v3878, %v3879
    %v3881 = vrot.slane %v3680, 2
    %v3882 = vsel %vm1644, %v3879, %v3881
    %v3883 = vrot.slane %v3681, 2
    %v3884 = vrot.slane %v3682, 2
    %v3885 = vsel %vm1644, %v3883, %v3884
    %v3886 = vrot.slane %v3683, 2
    %v3887 = vsel %vm1644, %v3884, %v3886
    %v3888 = vrot.slane %v3684, 2
    %v3889 = vrot.slane %v3685, 2
    %v3890 = vsel %vm1644, %v3888, %v3889
    %v3891 = vrot.slane %v3686, 2
    %v3892 = vsel %vm1644, %v3889, %v3891
    %v3893 = vrot.slane %v3687, 2
    %v3894 = vrot.slane %v3688, 2
    %v3895 = vsel %vm1644, %v3893, %v3894
    %v3896 = vrot.slane %v3689, 2
    %v3897 = vsel %vm1644, %v3894, %v3896
    %v3898 = vrot.slane %v3690, 2
    %v3899 = vrot.slane %v3691, 2
    %v3900 = vsel %vm1644, %v3898, %v3899
    %v3901 = vrot.slane %v3692, 2
    %v3902 = vsel %vm1644, %v3899, %v3901
    %v3903 = vrot.slane %v3693, 2
    %v3904 = vrot.slane %v3694, 2
    %v3905 = vsel %vm1644, %v3903, %v3904
    %v3906 = vrot.slane %v3695, 2
    %v3907 = vsel %vm1644, %v3904, %v3906
    %v3908 = vrot.slane %v3696, 2
    %v3909 = vrot.slane %v3697, 2
    %v3910 = vsel %vm1644, %v3908, %v3909
    %v3911 = vrot.slane %v3698, 2
    %v3912 = vsel %vm1644, %v3909, %v3911
    %v3913 = vrot.slane %v3699, 2
    %v3914 = vrot.slane %v3700, 2
    %v3915 = vsel %vm1644, %v3913, %v3914
    %v3916 = vrot.slane %v3701, 2
    %v3917 = vsel %vm1644, %v3914, %v3916
    %v3918 = vrot.slane %v3702, 2
    %v3919 = vrot.slane %v3703, 2
    %v3920 = vsel %vm1644, %v3918, %v3919
    %v3921 = vrot.slane %v3704, 2
    %v3922 = vsel %vm1644, %v3919, %v3921
    %v3923 = vrot.slane %v3705, 2
    %v3924 = vrot.slane %v3706, 2
    %v3925 = vsel %vm1644, %v3923, %v3924
    %v3926 = vrot.slane %v3707, 2
    %v3927 = vsel %vm1644, %v3924, %v3926
    %v3928 = vrot.slane %v3708, 2
    %v3929 = vrot.slane %v3709, 2
    %v3930 = vsel %vm1644, %v3928, %v3929
    %v3931 = vrot.slane %v3710, 2
    %v3932 = vsel %vm1644, %v3929, %v3931
    %v3933 = vrot.slane %v3711, 2
    %v3934 = vrot.slane %v3712, 2
    %v3935 = vsel %vm1644, %v3933, %v3934
    %v3936 = vrot.slane %v3713, 2
    %v3937 = vsel %vm1644, %v3934, %v3936
    %v3938 = vrot.slane %v3714, 2
    %v3939 = vrot.slane %v3715, 2
    %v3940 = vsel %vm1644, %v3938, %v3939
    %v3941 = vrot.slane %v3716, 2
    %v3942 = vsel %vm1644, %v3939, %v3941
    %v3943 = vrot.slane %v3717, 2
    %v3944 = vrot.slane %v3718, 2
    %v3945 = vsel %vm1644, %v3943, %v3944
    %v3946 = vrot.slane %v3719, 2
    %v3947 = vsel %vm1644, %v3944, %v3946
    %v3948 = vrot.slane %v3720, 2
    %v3949 = vrot.slane %v3721, 2
    %v3950 = vsel %vm1644, %v3948, %v3949
    %v3951 = vrot.slane %v3722, 2
    %v3952 = vsel %vm1644, %v3949, %v3951
    %v3953 = vrot.slane %v3723, 2
    %v3954 = vrot.slane %v3724, 2
    %v3955 = vsel %vm1644, %v3953, %v3954
    %v3956 = vrot.slane %v3725, 2
    %v3957 = vsel %vm1644, %v3954, %v3956
    %v3958 = vrot.slane %v3726, 2
    %v3959 = vrot.slane %v3727, 2
    %v3960 = vsel %vm1644, %v3958, %v3959
    %v3961 = vrot.slane %v3728, 2
    %v3962 = vsel %vm1644, %v3959, %v3961
    %v3963 = vrot.slane %v3729, 2
    %v3964 = vrot.slane %v3730, 2
    %v3965 = vsel %vm1644, %v3963, %v3964
    %v3966 = vrot.slane %v3731, 2
    %v3967 = vsel %vm1644, %v3964, %v3966
    %v3968 = vrot.slane %v3732, 2
    %v3969 = vrot.slane %v3733, 2
    %v3970 = vsel %vm1644, %v3968, %v3969
    %v3971 = vrot.slane %v3734, 2
    %v3972 = vsel %vm1644, %v3969, %v3971
    %v3973 = vrot.slane %v3735, 2
    %v3974 = vrot.slane %v3736, 2
    %v3975 = vsel %vm1644, %v3973, %v3974
    %v3976 = vrot.slane %v3737, 2
    %v3977 = vsel %vm1644, %v3974, %v3976
    %v3978 = vrot.slane %v3738, 2
    %v3979 = vrot.slane %v3739, 2
    %v3980 = vsel %vm1644, %v3978, %v3979
    %v3981 = vrot.slane %v3740, 2
    %v3982 = vsel %vm1644, %v3979, %v3981
    %v3983 = vrot.slane %v3741, 2
    %v3984 = vrot.slane %v3742, 2
    %v3985 = vsel %vm1644, %v3983, %v3984
    %v3986 = vrot.slane %v3743, 2
    %v3987 = vsel %vm1644, %v3984, %v3986
    %v3988 = vrot.slane %v3744, 2
    %v3989 = vrot.slane %v3745, 2
    %v3990 = vsel %vm1644, %v3988, %v3989
    %v3991 = vrot.slane %v3746, 2
    %v3992 = vsel %vm1644, %v3989, %v3991
    %v3993 = vrot.slane %v3747, 2
    %v3994 = vrot.slane %v3748, 2
    %v3995 = vsel %vm1644, %v3993, %v3994
    %v3996 = vrot.slane %v3749, 2
    %v3997 = vsel %vm1644, %v3994, %v3996
    %v4060 = vadd.f32 %v3589, %v3845
    %v4061 = vadd.f32 %v3590, %v3847
    %v4062 = vadd.f32 %v3591, %v3850
    %v4063 = vadd.f32 %v3592, %v3852
    %v4064 = vadd.f32 %v3593, %v3855
    %v4065 = vadd.f32 %v3594, %v3857
    %v4066 = vadd.f32 %v3595, %v3860
    %v4067 = vadd.f32 %v3596, %v3862
    %v4068 = vadd.f32 %v3597, %v3865
    %v4069 = vadd.f32 %v3598, %v3867
    %v4070 = vadd.f32 %v3599, %v3870
    %v4071 = vadd.f32 %v3600, %v3872
    %v4072 = vadd.f32 %v3601, %v3875
    %v4073 = vadd.f32 %v3602, %v3877
    %v4074 = vadd.f32 %v3603, %v3880
    %v4075 = vadd.f32 %v3604, %v3882
    %v4076 = vadd.f32 %v3605, %v3885
    %v4077 = vadd.f32 %v3606, %v3887
    %v4078 = vadd.f32 %v3607, %v3890
    %v4079 = vadd.f32 %v3608, %v3892
    %v4080 = vadd.f32 %v3609, %v3895
    %v4081 = vadd.f32 %v3610, %v3897
    %v4082 = vadd.f32 %v3611, %v3900
    %v4083 = vadd.f32 %v3612, %v3902
    %v4084 = vadd.f32 %v3613, %v3905
    %v4085 = vadd.f32 %v3614, %v3907
    %v4086 = vadd.f32 %v3615, %v3910
    %v4087 = vadd.f32 %v3616, %v3912
    %v4088 = vadd.f32 %v3617, %v3915
    %v4089 = vadd.f32 %v3618, %v3917
    %v4090 = vadd.f32 %v3619, %v3920
    %v4091 = vadd.f32 %v3620, %v3922
    %v4092 = vadd.f32 %v3621, %v3925
    %v4093 = vadd.f32 %v3622, %v3927
    %v4094 = vadd.f32 %v3623, %v3930
    %v4095 = vadd.f32 %v3624, %v3932
    %v4096 = vadd.f32 %v3625, %v3935
    %v4097 = vadd.f32 %v3626, %v3937
    %v4098 = vadd.f32 %v3627, %v3940
    %v4099 = vadd.f32 %v3628, %v3942
    %v4100 = vadd.f32 %v3629, %v3945
    %v4101 = vadd.f32 %v3630, %v3947
    %v4102 = vadd.f32 %v3631, %v3950
    %v4103 = vadd.f32 %v3632, %v3952
    %v4104 = vadd.f32 %v3633, %v3955
    %v4105 = vadd.f32 %v3634, %v3957
    %v4106 = vadd.f32 %v3635, %v3960
    %v4107 = vadd.f32 %v3636, %v3962
    %v4108 = vadd.f32 %v3637, %v3965
    %v4109 = vadd.f32 %v3638, %v3967
    %v4110 = vadd.f32 %v3639, %v3970
    %v4111 = vadd.f32 %v3640, %v3972
    %v4112 = vadd.f32 %v3641, %v3975
    %v4113 = vadd.f32 %v3642, %v3977
    %v4114 = vadd.f32 %v3643, %v3980
    %v4115 = vadd.f32 %v3644, %v3982
    %v4116 = vadd.f32 %v3645, %v3985
    %v4117 = vadd.f32 %v3646, %v3987
    %v4118 = vadd.f32 %v3647, %v3990
    %v4119 = vadd.f32 %v3648, %v3992
    %v4120 = vadd.f32 %v3649, %v3995
    %v4121 = vadd.f32 %v3650, %v3997
    %v4122 = vadd.f32 %v3651, %v3920
    %v4123 = vadd.f32 %v3652, %v3922
    %v4124 = vld [vmem:[%s2] sm:$0x1]
    %v4125 = vld [vmem:[%s3] sm:$0x1]
    %vm4126 = vcmask 261120
    %v4127 = vsel %vm4126, %v4060, 0.0
    %v4128 = vsel %vm4126, %v4061, 0.0
    %v4129 = vadd.f32 %v4127, %v4128
    %v4130 = vsel %vm4126, %v4062, 0.0
    %v4131 = vadd.f32 %v4129, %v4130
    %v4132 = vsel %vm4126, %v4063, 0.0
    %v4133 = vadd.f32 %v4131, %v4132
    %v4134 = vsel %vm4126, %v4064, 0.0
    %v4135 = vadd.f32 %v4133, %v4134
    %v4136 = vsel %vm4126, %v4065, 0.0
    %v4137 = vadd.f32 %v4135, %v4136
    %v4138 = vsel %vm4126, %v4066, 0.0
    %v4139 = vadd.f32 %v4137, %v4138
    %v4140 = vsel %vm4126, %v4067, 0.0
    %v4141 = vadd.f32 %v4139, %v4140
    %v4142 = vsel %vm4126, %v4068, 0.0
    %v4143 = vadd.f32 %v4141, %v4142
    %v4144 = vsel %vm4126, %v4069, 0.0
    %v4145 = vadd.f32 %v4143, %v4144
    %v4146 = vsel %vm4126, %v4070, 0.0
    %v4147 = vadd.f32 %v4145, %v4146
    %v4148 = vsel %vm4126, %v4071, 0.0
    %v4149 = vadd.f32 %v4147, %v4148
    %v4150 = vsel %vm4126, %v4072, 0.0
    %v4151 = vadd.f32 %v4149, %v4150
    %v4152 = vsel %vm4126, %v4073, 0.0
    %v4153 = vadd.f32 %v4151, %v4152
    %v4154 = vsel %vm4126, %v4074, 0.0
    %v4155 = vadd.f32 %v4153, %v4154
    %v4156 = vsel %vm4126, %v4075, 0.0
    %v4157 = vadd.f32 %v4155, %v4156
    %v4158 = vsel %vm4126, %v4076, 0.0
    %v4159 = vadd.f32 %v4157, %v4158
    %v4160 = vsel %vm4126, %v4077, 0.0
    %v4161 = vadd.f32 %v4159, %v4160
    %v4162 = vsel %vm4126, %v4078, 0.0
    %v4163 = vadd.f32 %v4161, %v4162
    %v4164 = vsel %vm4126, %v4079, 0.0
    %v4165 = vadd.f32 %v4163, %v4164
    %v4166 = vsel %vm4126, %v4080, 0.0
    %v4167 = vadd.f32 %v4165, %v4166
    %v4168 = vsel %vm4126, %v4081, 0.0
    %v4169 = vadd.f32 %v4167, %v4168
    %v4170 = vsel %vm4126, %v4082, 0.0
    %v4171 = vadd.f32 %v4169, %v4170
    %v4172 = vsel %vm4126, %v4083, 0.0
    %v4173 = vadd.f32 %v4171, %v4172
    %v4174 = vsel %vm4126, %v4084, 0.0
    %v4175 = vadd.f32 %v4173, %v4174
    %v4176 = vsel %vm4126, %v4085, 0.0
    %v4177 = vadd.f32 %v4175, %v4176
    %v4178 = vsel %vm4126, %v4086, 0.0
    %v4179 = vadd.f32 %v4177, %v4178
    %v4180 = vsel %vm4126, %v4087, 0.0
    %v4181 = vadd.f32 %v4179, %v4180
    %v4182 = vsel %vm4126, %v4088, 0.0
    %v4183 = vadd.f32 %v4181, %v4182
    %v4184 = vsel %vm4126, %v4089, 0.0
    %v4185 = vadd.f32 %v4183, %v4184
    %v4186 = vsel %vm4126, %v4090, 0.0
    %v4187 = vadd.f32 %v4185, %v4186
    %v4188 = vsel %vm4126, %v4091, 0.0
    %v4189 = vadd.f32 %v4187, %v4188
    %v4190 = vsel %vm4126, %v4092, 0.0
    %v4191 = vadd.f32 %v4189, %v4190
    %v4192 = vsel %vm4126, %v4093, 0.0
    %v4193 = vadd.f32 %v4191, %v4192
    %v4194 = vsel %vm4126, %v4094, 0.0
    %v4195 = vadd.f32 %v4193, %v4194
    %v4196 = vsel %vm4126, %v4095, 0.0
    %v4197 = vadd.f32 %v4195, %v4196
    %v4198 = vsel %vm4126, %v4096, 0.0
    %v4199 = vadd.f32 %v4197, %v4198
    %v4200 = vsel %vm4126, %v4097, 0.0
    %v4201 = vadd.f32 %v4199, %v4200
    %v4202 = vsel %vm4126, %v4098, 0.0
    %v4203 = vadd.f32 %v4201, %v4202
    %v4204 = vsel %vm4126, %v4099, 0.0
    %v4205 = vadd.f32 %v4203, %v4204
    %v4206 = vsel %vm4126, %v4100, 0.0
    %v4207 = vadd.f32 %v4205, %v4206
    %v4208 = vsel %vm4126, %v4101, 0.0
    %v4209 = vadd.f32 %v4207, %v4208
    %v4210 = vsel %vm4126, %v4102, 0.0
    %v4211 = vadd.f32 %v4209, %v4210
    %v4212 = vsel %vm4126, %v4103, 0.0
    %v4213 = vadd.f32 %v4211, %v4212
    %v4214 = vsel %vm4126, %v4104, 0.0
    %v4215 = vadd.f32 %v4213, %v4214
    %v4216 = vsel %vm4126, %v4105, 0.0
    %v4217 = vadd.f32 %v4215, %v4216
    %v4218 = vsel %vm4126, %v4106, 0.0
    %v4219 = vadd.f32 %v4217, %v4218
    %v4220 = vsel %vm4126, %v4107, 0.0
    %v4221 = vadd.f32 %v4219, %v4220
    %v4222 = vsel %vm4126, %v4108, 0.0
    %v4223 = vadd.f32 %v4221, %v4222
    %v4224 = vsel %vm4126, %v4109, 0.0
    %v4225 = vadd.f32 %v4223, %v4224
    %v4226 = vsel %vm4126, %v4110, 0.0
    %v4227 = vadd.f32 %v4225, %v4226
    %v4228 = vsel %vm4126, %v4111, 0.0
    %v4229 = vadd.f32 %v4227, %v4228
    %v4230 = vsel %vm4126, %v4112, 0.0
    %v4231 = vadd.f32 %v4229, %v4230
    %v4232 = vsel %vm4126, %v4113, 0.0
    %v4233 = vadd.f32 %v4231, %v4232
    %v4234 = vsel %vm4126, %v4114, 0.0
    %v4235 = vadd.f32 %v4233, %v4234
    %v4236 = vsel %vm4126, %v4115, 0.0
    %v4237 = vadd.f32 %v4235, %v4236
    %v4238 = vsel %vm4126, %v4116, 0.0
    %v4239 = vadd.f32 %v4237, %v4238
    %v4240 = vsel %vm4126, %v4117, 0.0
    %v4241 = vadd.f32 %v4239, %v4240
    %v4242 = vsel %vm4126, %v4118, 0.0
    %v4243 = vadd.f32 %v4241, %v4242
    %v4244 = vsel %vm4126, %v4119, 0.0
    %v4245 = vadd.f32 %v4243, %v4244
    %v4246 = vsel %vm4126, %v4120, 0.0
    %v4247 = vadd.f32 %v4245, %v4246
    %v4248 = vsel %vm4126, %v4121, 0.0
    %v4249 = vadd.f32 %v4247, %v4248
    %v4250 = vsel %vm4126, %v4122, 0.0
    %v4251 = vadd.f32 %v4249, %v4250
    %v4252 = vsel %vm4126, %v4123, 0.0
    %v4253 = vadd.f32 %v4251, %v4252
    %v4254 = vrot.slane %v4253, 4
    %v4255 = vadd.f32 %v4253, %v4254
    %v4256 = vrot.slane %v4255, 2
    %v4257 = vadd.f32 %v4255, %v4256
    %v4258 = vrot.slane %v4257, 1
    %v4259 = vadd.f32 %v4257, %v4258
    %v4260 = vmul.f32 %v4060, %v4060
    %v4261 = vmul.f32 %v4061, %v4061
    %v4262 = vmul.f32 %v4062, %v4062
    %v4263 = vmul.f32 %v4063, %v4063
    %v4264 = vmul.f32 %v4064, %v4064
    %v4265 = vmul.f32 %v4065, %v4065
    %v4266 = vmul.f32 %v4066, %v4066
    %v4267 = vmul.f32 %v4067, %v4067
    %v4268 = vmul.f32 %v4068, %v4068
    %v4269 = vmul.f32 %v4069, %v4069
    %v4270 = vmul.f32 %v4070, %v4070
    %v4271 = vmul.f32 %v4071, %v4071
    %v4272 = vmul.f32 %v4072, %v4072
    %v4273 = vmul.f32 %v4073, %v4073
    %v4274 = vmul.f32 %v4074, %v4074
    %v4275 = vmul.f32 %v4075, %v4075
    %v4276 = vmul.f32 %v4076, %v4076
    %v4277 = vmul.f32 %v4077, %v4077
    %v4278 = vmul.f32 %v4078, %v4078
    %v4279 = vmul.f32 %v4079, %v4079
    %v4280 = vmul.f32 %v4080, %v4080
    %v4281 = vmul.f32 %v4081, %v4081
    %v4282 = vmul.f32 %v4082, %v4082
    %v4283 = vmul.f32 %v4083, %v4083
    %v4284 = vmul.f32 %v4084, %v4084
    %v4285 = vmul.f32 %v4085, %v4085
    %v4286 = vmul.f32 %v4086, %v4086
    %v4287 = vmul.f32 %v4087, %v4087
    %v4288 = vmul.f32 %v4088, %v4088
    %v4289 = vmul.f32 %v4089, %v4089
    %v4290 = vmul.f32 %v4090, %v4090
    %v4291 = vmul.f32 %v4091, %v4091
    %v4292 = vmul.f32 %v4092, %v4092
    %v4293 = vmul.f32 %v4093, %v4093
    %v4294 = vmul.f32 %v4094, %v4094
    %v4295 = vmul.f32 %v4095, %v4095
    %v4296 = vmul.f32 %v4096, %v4096
    %v4297 = vmul.f32 %v4097, %v4097
    %v4298 = vmul.f32 %v4098, %v4098
    %v4299 = vmul.f32 %v4099, %v4099
    %v4300 = vmul.f32 %v4100, %v4100
    %v4301 = vmul.f32 %v4101, %v4101
    %v4302 = vmul.f32 %v4102, %v4102
    %v4303 = vmul.f32 %v4103, %v4103
    %v4304 = vmul.f32 %v4104, %v4104
    %v4305 = vmul.f32 %v4105, %v4105
    %v4306 = vmul.f32 %v4106, %v4106
    %v4307 = vmul.f32 %v4107, %v4107
    %v4308 = vmul.f32 %v4108, %v4108
    %v4309 = vmul.f32 %v4109, %v4109
    %v4310 = vmul.f32 %v4110, %v4110
    %v4311 = vmul.f32 %v4111, %v4111
    %v4312 = vmul.f32 %v4112, %v4112
    %v4313 = vmul.f32 %v4113, %v4113
    %v4314 = vmul.f32 %v4114, %v4114
    %v4315 = vmul.f32 %v4115, %v4115
    %v4316 = vmul.f32 %v4116, %v4116
    %v4317 = vmul.f32 %v4117, %v4117
    %v4318 = vmul.f32 %v4118, %v4118
    %v4319 = vmul.f32 %v4119, %v4119
    %v4320 = vmul.f32 %v4120, %v4120
    %v4321 = vmul.f32 %v4121, %v4121
    %v4322 = vmul.f32 %v4122, %v4122
    %v4323 = vmul.f32 %v4123, %v4123
    %v4324 = vsel %vm4126, %v4260, 0.0
    %v4325 = vsel %vm4126, %v4261, 0.0
    %v4326 = vadd.f32 %v4324, %v4325
    %v4327 = vsel %vm4126, %v4262, 0.0
    %v4328 = vadd.f32 %v4326, %v4327
    %v4329 = vsel %vm4126, %v4263, 0.0
    %v4330 = vadd.f32 %v4328, %v4329
    %v4331 = vsel %vm4126, %v4264, 0.0
    %v4332 = vadd.f32 %v4330, %v4331
    %v4333 = vsel %vm4126, %v4265, 0.0
    %v4334 = vadd.f32 %v4332, %v4333
    %v4335 = vsel %vm4126, %v4266, 0.0
    %v4336 = vadd.f32 %v4334, %v4335
    %v4337 = vsel %vm4126, %v4267, 0.0
    %v4338 = vadd.f32 %v4336, %v4337
    %v4339 = vsel %vm4126, %v4268, 0.0
    %v4340 = vadd.f32 %v4338, %v4339
    %v4341 = vsel %vm4126, %v4269, 0.0
    %v4342 = vadd.f32 %v4340, %v4341
    %v4343 = vsel %vm4126, %v4270, 0.0
    %v4344 = vadd.f32 %v4342, %v4343
    %v4345 = vsel %vm4126, %v4271, 0.0
    %v4346 = vadd.f32 %v4344, %v4345
    %v4347 = vsel %vm4126, %v4272, 0.0
    %v4348 = vadd.f32 %v4346, %v4347
    %v4349 = vsel %vm4126, %v4273, 0.0
    %v4350 = vadd.f32 %v4348, %v4349
    %v4351 = vsel %vm4126, %v4274, 0.0
    %v4352 = vadd.f32 %v4350, %v4351
    %v4353 = vsel %vm4126, %v4275, 0.0
    %v4354 = vadd.f32 %v4352, %v4353
    %v4355 = vsel %vm4126, %v4276, 0.0
    %v4356 = vadd.f32 %v4354, %v4355
    %v4357 = vsel %vm4126, %v4277, 0.0
    %v4358 = vadd.f32 %v4356, %v4357
    %v4359 = vsel %vm4126, %v4278, 0.0
    %v4360 = vadd.f32 %v4358, %v4359
    %v4361 = vsel %vm4126, %v4279, 0.0
    %v4362 = vadd.f32 %v4360, %v4361
    %v4363 = vsel %vm4126, %v4280, 0.0
    %v4364 = vadd.f32 %v4362, %v4363
    %v4365 = vsel %vm4126, %v4281, 0.0
    %v4366 = vadd.f32 %v4364, %v4365
    %v4367 = vsel %vm4126, %v4282, 0.0
    %v4368 = vadd.f32 %v4366, %v4367
    %v4369 = vsel %vm4126, %v4283, 0.0
    %v4370 = vadd.f32 %v4368, %v4369
    %v4371 = vsel %vm4126, %v4284, 0.0
    %v4372 = vadd.f32 %v4370, %v4371
    %v4373 = vsel %vm4126, %v4285, 0.0
    %v4374 = vadd.f32 %v4372, %v4373
    %v4375 = vsel %vm4126, %v4286, 0.0
    %v4376 = vadd.f32 %v4374, %v4375
    %v4377 = vsel %vm4126, %v4287, 0.0
    %v4378 = vadd.f32 %v4376, %v4377
    %v4379 = vsel %vm4126, %v4288, 0.0
    %v4380 = vadd.f32 %v4378, %v4379
    %v4381 = vsel %vm4126, %v4289, 0.0
    %v4382 = vadd.f32 %v4380, %v4381
    %v4383 = vsel %vm4126, %v4290, 0.0
    %v4384 = vadd.f32 %v4382, %v4383
    %v4385 = vsel %vm4126, %v4291, 0.0
    %v4386 = vadd.f32 %v4384, %v4385
    %v4387 = vsel %vm4126, %v4292, 0.0
    %v4388 = vadd.f32 %v4386, %v4387
    %v4389 = vsel %vm4126, %v4293, 0.0
    %v4390 = vadd.f32 %v4388, %v4389
    %v4391 = vsel %vm4126, %v4294, 0.0
    %v4392 = vadd.f32 %v4390, %v4391
    %v4393 = vsel %vm4126, %v4295, 0.0
    %v4394 = vadd.f32 %v4392, %v4393
    %v4395 = vsel %vm4126, %v4296, 0.0
    %v4396 = vadd.f32 %v4394, %v4395
    %v4397 = vsel %vm4126, %v4297, 0.0
    %v4398 = vadd.f32 %v4396, %v4397
    %v4399 = vsel %vm4126, %v4298, 0.0
    %v4400 = vadd.f32 %v4398, %v4399
    %v4401 = vsel %vm4126, %v4299, 0.0
    %v4402 = vadd.f32 %v4400, %v4401
    %v4403 = vsel %vm4126, %v4300, 0.0
    %v4404 = vadd.f32 %v4402, %v4403
    %v4405 = vsel %vm4126, %v4301, 0.0
    %v4406 = vadd.f32 %v4404, %v4405
    %v4407 = vsel %vm4126, %v4302, 0.0
    %v4408 = vadd.f32 %v4406, %v4407
    %v4409 = vsel %vm4126, %v4303, 0.0
    %v4410 = vadd.f32 %v4408, %v4409
    %v4411 = vsel %vm4126, %v4304, 0.0
    %v4412 = vadd.f32 %v4410, %v4411
    %v4413 = vsel %vm4126, %v4305, 0.0
    %v4414 = vadd.f32 %v4412, %v4413
    %v4415 = vsel %vm4126, %v4306, 0.0
    %v4416 = vadd.f32 %v4414, %v4415
    %v4417 = vsel %vm4126, %v4307, 0.0
    %v4418 = vadd.f32 %v4416, %v4417
    %v4419 = vsel %vm4126, %v4308, 0.0
    %v4420 = vadd.f32 %v4418, %v4419
    %v4421 = vsel %vm4126, %v4309, 0.0
    %v4422 = vadd.f32 %v4420, %v4421
    %v4423 = vsel %vm4126, %v4310, 0.0
    %v4424 = vadd.f32 %v4422, %v4423
    %v4425 = vsel %vm4126, %v4311, 0.0
    %v4426 = vadd.f32 %v4424, %v4425
    %v4427 = vsel %vm4126, %v4312, 0.0
    %v4428 = vadd.f32 %v4426, %v4427
    %v4429 = vsel %vm4126, %v4313, 0.0
    %v4430 = vadd.f32 %v4428, %v4429
    %v4431 = vsel %vm4126, %v4314, 0.0
    %v4432 = vadd.f32 %v4430, %v4431
    %v4433 = vsel %vm4126, %v4315, 0.0
    %v4434 = vadd.f32 %v4432, %v4433
    %v4435 = vsel %vm4126, %v4316, 0.0
    %v4436 = vadd.f32 %v4434, %v4435
    %v4437 = vsel %vm4126, %v4317, 0.0
    %v4438 = vadd.f32 %v4436, %v4437
    %v4439 = vsel %vm4126, %v4318, 0.0
    %v4440 = vadd.f32 %v4438, %v4439
    %v4441 = vsel %vm4126, %v4319, 0.0
    %v4442 = vadd.f32 %v4440, %v4441
    %v4443 = vsel %vm4126, %v4320, 0.0
    %v4444 = vadd.f32 %v4442, %v4443
    %v4445 = vsel %vm4126, %v4321, 0.0
    %v4446 = vadd.f32 %v4444, %v4445
    %v4447 = vsel %vm4126, %v4322, 0.0
    %v4448 = vadd.f32 %v4446, %v4447
    %v4449 = vsel %vm4126, %v4323, 0.0
    %v4450 = vadd.f32 %v4448, %v4449
    %v4451 = vrot.slane %v4450, 4
    %v4452 = vadd.f32 %v4450, %v4451
    %v4453 = vrot.slane %v4452, 2
    %v4454 = vadd.f32 %v4452, %v4453
    %v4455 = vrot.slane %v4454, 1
    %v4456 = vadd.f32 %v4454, %v4455
    %v4457 = vmul.f32 %v4259, 0.001953125
    %v4458 = vmul.f32 %v4456, 0.001953125
    %v4459 = vmul.f32 %v4457, %v4457
    %v4460 = vsub.f32 %v4458, %v4459
    %v4461 = vsub.f32 %v4060, %v4457
    %v4462 = vsub.f32 %v4061, %v4457
    %v4463 = vsub.f32 %v4062, %v4457
    %v4464 = vsub.f32 %v4063, %v4457
    %v4465 = vsub.f32 %v4064, %v4457
    %v4466 = vsub.f32 %v4065, %v4457
    %v4467 = vsub.f32 %v4066, %v4457
    %v4468 = vsub.f32 %v4067, %v4457
    %v4469 = vsub.f32 %v4068, %v4457
    %v4470 = vsub.f32 %v4069, %v4457
    %v4471 = vsub.f32 %v4070, %v4457
    %v4472 = vsub.f32 %v4071, %v4457
    %v4473 = vsub.f32 %v4072, %v4457
    %v4474 = vsub.f32 %v4073, %v4457
    %v4475 = vsub.f32 %v4074, %v4457
    %v4476 = vsub.f32 %v4075, %v4457
    %v4477 = vsub.f32 %v4076, %v4457
    %v4478 = vsub.f32 %v4077, %v4457
    %v4479 = vsub.f32 %v4078, %v4457
    %v4480 = vsub.f32 %v4079, %v4457
    %v4481 = vsub.f32 %v4080, %v4457
    %v4482 = vsub.f32 %v4081, %v4457
    %v4483 = vsub.f32 %v4082, %v4457
    %v4484 = vsub.f32 %v4083, %v4457
    %v4485 = vsub.f32 %v4084, %v4457
    %v4486 = vsub.f32 %v4085, %v4457
    %v4487 = vsub.f32 %v4086, %v4457
    %v4488 = vsub.f32 %v4087, %v4457
    %v4489 = vsub.f32 %v4088, %v4457
    %v4490 = vsub.f32 %v4089, %v4457
    %v4491 = vsub.f32 %v4090, %v4457
    %v4492 = vsub.f32 %v4091, %v4457
    %v4493 = vsub.f32 %v4092, %v4457
    %v4494 = vsub.f32 %v4093, %v4457
    %v4495 = vsub.f32 %v4094, %v4457
    %v4496 = vsub.f32 %v4095, %v4457
    %v4497 = vsub.f32 %v4096, %v4457
    %v4498 = vsub.f32 %v4097, %v4457
    %v4499 = vsub.f32 %v4098, %v4457
    %v4500 = vsub.f32 %v4099, %v4457
    %v4501 = vsub.f32 %v4100, %v4457
    %v4502 = vsub.f32 %v4101, %v4457
    %v4503 = vsub.f32 %v4102, %v4457
    %v4504 = vsub.f32 %v4103, %v4457
    %v4505 = vsub.f32 %v4104, %v4457
    %v4506 = vsub.f32 %v4105, %v4457
    %v4507 = vsub.f32 %v4106, %v4457
    %v4508 = vsub.f32 %v4107, %v4457
    %v4509 = vsub.f32 %v4108, %v4457
    %v4510 = vsub.f32 %v4109, %v4457
    %v4511 = vsub.f32 %v4110, %v4457
    %v4512 = vsub.f32 %v4111, %v4457
    %v4513 = vsub.f32 %v4112, %v4457
    %v4514 = vsub.f32 %v4113, %v4457
    %v4515 = vsub.f32 %v4114, %v4457
    %v4516 = vsub.f32 %v4115, %v4457
    %v4517 = vsub.f32 %v4116, %v4457
    %v4518 = vsub.f32 %v4117, %v4457
    %v4519 = vsub.f32 %v4118, %v4457
    %v4520 = vsub.f32 %v4119, %v4457
    %v4521 = vsub.f32 %v4120, %v4457
    %v4522 = vsub.f32 %v4121, %v4457
    %v4523 = vsub.f32 %v4122, %v4457
    %v4524 = vsub.f32 %v4123, %v4457
    %v4525 = vadd.f32 %v4460, 1e-05
    %v4526 = vrsqrt.pop %v4525
    %v4527 = vmul.f32 %v4461, %v4526
    %v4528 = vmul.f32 %v4462, %v4526
    %v4529 = vmul.f32 %v4463, %v4526
    %v4530 = vmul.f32 %v4464, %v4526
    %v4531 = vmul.f32 %v4465, %v4526
    %v4532 = vmul.f32 %v4466, %v4526
    %v4533 = vmul.f32 %v4467, %v4526
    %v4534 = vmul.f32 %v4468, %v4526
    %v4535 = vmul.f32 %v4469, %v4526
    %v4536 = vmul.f32 %v4470, %v4526
    %v4537 = vmul.f32 %v4471, %v4526
    %v4538 = vmul.f32 %v4472, %v4526
    %v4539 = vmul.f32 %v4473, %v4526
    %v4540 = vmul.f32 %v4474, %v4526
    %v4541 = vmul.f32 %v4475, %v4526
    %v4542 = vmul.f32 %v4476, %v4526
    %v4543 = vmul.f32 %v4477, %v4526
    %v4544 = vmul.f32 %v4478, %v4526
    %v4545 = vmul.f32 %v4479, %v4526
    %v4546 = vmul.f32 %v4480, %v4526
    %v4547 = vmul.f32 %v4481, %v4526
    %v4548 = vmul.f32 %v4482, %v4526
    %v4549 = vmul.f32 %v4483, %v4526
    %v4550 = vmul.f32 %v4484, %v4526
    %v4551 = vmul.f32 %v4485, %v4526
    %v4552 = vmul.f32 %v4486, %v4526
    %v4553 = vmul.f32 %v4487, %v4526
    %v4554 = vmul.f32 %v4488, %v4526
    %v4555 = vmul.f32 %v4489, %v4526
    %v4556 = vmul.f32 %v4490, %v4526
    %v4557 = vmul.f32 %v4491, %v4526
    %v4558 = vmul.f32 %v4492, %v4526
    %v4559 = vmul.f32 %v4493, %v4526
    %v4560 = vmul.f32 %v4494, %v4526
    %v4561 = vmul.f32 %v4495, %v4526
    %v4562 = vmul.f32 %v4496, %v4526
    %v4563 = vmul.f32 %v4497, %v4526
    %v4564 = vmul.f32 %v4498, %v4526
    %v4565 = vmul.f32 %v4499, %v4526
    %v4566 = vmul.f32 %v4500, %v4526
    %v4567 = vmul.f32 %v4501, %v4526
    %v4568 = vmul.f32 %v4502, %v4526
    %v4569 = vmul.f32 %v4503, %v4526
    %v4570 = vmul.f32 %v4504, %v4526
    %v4571 = vmul.f32 %v4505, %v4526
    %v4572 = vmul.f32 %v4506, %v4526
    %v4573 = vmul.f32 %v4507, %v4526
    %v4574 = vmul.f32 %v4508, %v4526
    %v4575 = vmul.f32 %v4509, %v4526
    %v4576 = vmul.f32 %v4510, %v4526
    %v4577 = vmul.f32 %v4511, %v4526
    %v4578 = vmul.f32 %v4512, %v4526
    %v4579 = vmul.f32 %v4513, %v4526
    %v4580 = vmul.f32 %v4514, %v4526
    %v4581 = vmul.f32 %v4515, %v4526
    %v4582 = vmul.f32 %v4516, %v4526
    %v4583 = vmul.f32 %v4517, %v4526
    %v4584 = vmul.f32 %v4518, %v4526
    %v4585 = vmul.f32 %v4519, %v4526
    %v4586 = vmul.f32 %v4520, %v4526
    %v4587 = vmul.f32 %v4521, %v4526
    %v4588 = vmul.f32 %v4522, %v4526
    %v4589 = vmul.f32 %v4523, %v4526
    %v4590 = vmul.f32 %v4524, %v4526
    %v4592 = vlaneseq
    %v4593 = vshrl.u32 %v4592, 7
    %v4594 = vsub.s32 0, %v4593
    %v4595 = vrot.slane %v4124, %v4594
    %v4597 = vmul.f32 %v4527, %v4595
    %v4598 = vmul.f32 %v4528, %v4595
    %v4599 = vmul.f32 %v4529, %v4595
    %v4600 = vmul.f32 %v4530, %v4595
    %v4601 = vmul.f32 %v4531, %v4595
    %v4602 = vmul.f32 %v4532, %v4595
    %v4603 = vmul.f32 %v4533, %v4595
    %v4604 = vmul.f32 %v4534, %v4595
    %v4605 = vmul.f32 %v4535, %v4595
    %v4606 = vmul.f32 %v4536, %v4595
    %v4607 = vmul.f32 %v4537, %v4595
    %v4608 = vmul.f32 %v4538, %v4595
    %v4609 = vmul.f32 %v4539, %v4595
    %v4610 = vmul.f32 %v4540, %v4595
    %v4611 = vmul.f32 %v4541, %v4595
    %v4612 = vmul.f32 %v4542, %v4595
    %v4613 = vmul.f32 %v4543, %v4595
    %v4614 = vmul.f32 %v4544, %v4595
    %v4615 = vmul.f32 %v4545, %v4595
    %v4616 = vmul.f32 %v4546, %v4595
    %v4617 = vmul.f32 %v4547, %v4595
    %v4618 = vmul.f32 %v4548, %v4595
    %v4619 = vmul.f32 %v4549, %v4595
    %v4620 = vmul.f32 %v4550, %v4595
    %v4621 = vmul.f32 %v4551, %v4595
    %v4622 = vmul.f32 %v4552, %v4595
    %v4623 = vmul.f32 %v4553, %v4595
    %v4624 = vmul.f32 %v4554, %v4595
    %v4625 = vmul.f32 %v4555, %v4595
    %v4626 = vmul.f32 %v4556, %v4595
    %v4627 = vmul.f32 %v4557, %v4595
    %v4628 = vmul.f32 %v4558, %v4595
    %v4629 = vmul.f32 %v4559, %v4595
    %v4630 = vmul.f32 %v4560, %v4595
    %v4631 = vmul.f32 %v4561, %v4595
    %v4632 = vmul.f32 %v4562, %v4595
    %v4633 = vmul.f32 %v4563, %v4595
    %v4634 = vmul.f32 %v4564, %v4595
    %v4635 = vmul.f32 %v4565, %v4595
    %v4636 = vmul.f32 %v4566, %v4595
    %v4637 = vmul.f32 %v4567, %v4595
    %v4638 = vmul.f32 %v4568, %v4595
    %v4639 = vmul.f32 %v4569, %v4595
    %v4640 = vmul.f32 %v4570, %v4595
    %v4641 = vmul.f32 %v4571, %v4595
    %v4642 = vmul.f32 %v4572, %v4595
    %v4643 = vmul.f32 %v4573, %v4595
    %v4644 = vmul.f32 %v4574, %v4595
    %v4645 = vmul.f32 %v4575, %v4595
    %v4646 = vmul.f32 %v4576, %v4595
    %v4647 = vmul.f32 %v4577, %v4595
    %v4648 = vmul.f32 %v4578, %v4595
    %v4649 = vmul.f32 %v4579, %v4595
    %v4650 = vmul.f32 %v4580, %v4595
    %v4651 = vmul.f32 %v4581, %v4595
    %v4652 = vmul.f32 %v4582, %v4595
    %v4653 = vmul.f32 %v4583, %v4595
    %v4654 = vmul.f32 %v4584, %v4595
    %v4655 = vmul.f32 %v4585, %v4595
    %v4656 = vmul.f32 %v4586, %v4595
    %v4657 = vmul.f32 %v4587, %v4595
    %v4658 = vmul.f32 %v4588, %v4595
    %v4659 = vmul.f32 %v4589, %v4595
    %v4660 = vmul.f32 %v4590, %v4595
    %v4662 = vlaneseq
    %v4663 = vshrl.u32 %v4662, 7
    %v4664 = vsub.s32 0, %v4663
    %v4665 = vrot.slane %v4125, %v4664
    %v4667 = vadd.f32 %v4597, %v4665
    %v4668 = vadd.f32 %v4598, %v4665
    %v4669 = vadd.f32 %v4599, %v4665
    %v4670 = vadd.f32 %v4600, %v4665
    %v4671 = vadd.f32 %v4601, %v4665
    %v4672 = vadd.f32 %v4602, %v4665
    %v4673 = vadd.f32 %v4603, %v4665
    %v4674 = vadd.f32 %v4604, %v4665
    %v4675 = vadd.f32 %v4605, %v4665
    %v4676 = vadd.f32 %v4606, %v4665
    %v4677 = vadd.f32 %v4607, %v4665
    %v4678 = vadd.f32 %v4608, %v4665
    %v4679 = vadd.f32 %v4609, %v4665
    %v4680 = vadd.f32 %v4610, %v4665
    %v4681 = vadd.f32 %v4611, %v4665
    %v4682 = vadd.f32 %v4612, %v4665
    %v4683 = vadd.f32 %v4613, %v4665
    %v4684 = vadd.f32 %v4614, %v4665
    %v4685 = vadd.f32 %v4615, %v4665
    %v4686 = vadd.f32 %v4616, %v4665
    %v4687 = vadd.f32 %v4617, %v4665
    %v4688 = vadd.f32 %v4618, %v4665
    %v4689 = vadd.f32 %v4619, %v4665
    %v4690 = vadd.f32 %v4620, %v4665
    %v4691 = vadd.f32 %v4621, %v4665
    %v4692 = vadd.f32 %v4622, %v4665
    %v4693 = vadd.f32 %v4623, %v4665
    %v4694 = vadd.f32 %v4624, %v4665
    %v4695 = vadd.f32 %v4625, %v4665
    %v4696 = vadd.f32 %v4626, %v4665
    %v4697 = vadd.f32 %v4627, %v4665
    %v4698 = vadd.f32 %v4628, %v4665
    %v4699 = vadd.f32 %v4629, %v4665
    %v4700 = vadd.f32 %v4630, %v4665
    %v4701 = vadd.f32 %v4631, %v4665
    %v4702 = vadd.f32 %v4632, %v4665
    %v4703 = vadd.f32 %v4633, %v4665
    %v4704 = vadd.f32 %v4634, %v4665
    %v4705 = vadd.f32 %v4635, %v4665
    %v4706 = vadd.f32 %v4636, %v4665
    %v4707 = vadd.f32 %v4637, %v4665
    %v4708 = vadd.f32 %v4638, %v4665
    %v4709 = vadd.f32 %v4639, %v4665
    %v4710 = vadd.f32 %v4640, %v4665
    %v4711 = vadd.f32 %v4641, %v4665
    %v4712 = vadd.f32 %v4642, %v4665
    %v4713 = vadd.f32 %v4643, %v4665
    %v4714 = vadd.f32 %v4644, %v4665
    %v4715 = vadd.f32 %v4645, %v4665
    %v4716 = vadd.f32 %v4646, %v4665
    %v4717 = vadd.f32 %v4647, %v4665
    %v4718 = vadd.f32 %v4648, %v4665
    %v4719 = vadd.f32 %v4649, %v4665
    %v4720 = vadd.f32 %v4650, %v4665
    %v4721 = vadd.f32 %v4651, %v4665
    %v4722 = vadd.f32 %v4652, %v4665
    %v4723 = vadd.f32 %v4653, %v4665
    %v4724 = vadd.f32 %v4654, %v4665
    %v4725 = vadd.f32 %v4655, %v4665
    %v4726 = vadd.f32 %v4656, %v4665
    %v4727 = vadd.f32 %v4657, %v4665
    %v4728 = vadd.f32 %v4658, %v4665
    %v4729 = vadd.f32 %v4659, %v4665
    %v4730 = vadd.f32 %v4660, %v4665
    %vm4731 = vcmp.ge.f32.partialorder %v4667, 0.0
    %vm4732 = vcmp.ge.f32.partialorder %v4668, 0.0
    %vm4733 = vcmp.ge.f32.partialorder %v4669, 0.0
    %vm4734 = vcmp.ge.f32.partialorder %v4670, 0.0
    %vm4735 = vcmp.ge.f32.partialorder %v4671, 0.0
    %vm4736 = vcmp.ge.f32.partialorder %v4672, 0.0
    %vm4737 = vcmp.ge.f32.partialorder %v4673, 0.0
    %vm4738 = vcmp.ge.f32.partialorder %v4674, 0.0
    %vm4739 = vcmp.ge.f32.partialorder %v4675, 0.0
    %vm4740 = vcmp.ge.f32.partialorder %v4676, 0.0
    %vm4741 = vcmp.ge.f32.partialorder %v4677, 0.0
    %vm4742 = vcmp.ge.f32.partialorder %v4678, 0.0
    %vm4743 = vcmp.ge.f32.partialorder %v4679, 0.0
    %vm4744 = vcmp.ge.f32.partialorder %v4680, 0.0
    %vm4745 = vcmp.ge.f32.partialorder %v4681, 0.0
    %vm4746 = vcmp.ge.f32.partialorder %v4682, 0.0
    %vm4747 = vcmp.ge.f32.partialorder %v4683, 0.0
    %vm4748 = vcmp.ge.f32.partialorder %v4684, 0.0
    %vm4749 = vcmp.ge.f32.partialorder %v4685, 0.0
    %vm4750 = vcmp.ge.f32.partialorder %v4686, 0.0
    %vm4751 = vcmp.ge.f32.partialorder %v4687, 0.0
    %vm4752 = vcmp.ge.f32.partialorder %v4688, 0.0
    %vm4753 = vcmp.ge.f32.partialorder %v4689, 0.0
    %vm4754 = vcmp.ge.f32.partialorder %v4690, 0.0
    %vm4755 = vcmp.ge.f32.partialorder %v4691, 0.0
    %vm4756 = vcmp.ge.f32.partialorder %v4692, 0.0
    %vm4757 = vcmp.ge.f32.partialorder %v4693, 0.0
    %vm4758 = vcmp.ge.f32.partialorder %v4694, 0.0
    %vm4759 = vcmp.ge.f32.partialorder %v4695, 0.0
    %vm4760 = vcmp.ge.f32.partialorder %v4696, 0.0
    %vm4761 = vcmp.ge.f32.partialorder %v4697, 0.0
    %vm4762 = vcmp.ge.f32.partialorder %v4698, 0.0
    %vm4763 = vcmp.ge.f32.partialorder %v4699, 0.0
    %vm4764 = vcmp.ge.f32.partialorder %v4700, 0.0
    %vm4765 = vcmp.ge.f32.partialorder %v4701, 0.0
    %vm4766 = vcmp.ge.f32.partialorder %v4702, 0.0
    %vm4767 = vcmp.ge.f32.partialorder %v4703, 0.0
    %vm4768 = vcmp.ge.f32.partialorder %v4704, 0.0
    %vm4769 = vcmp.ge.f32.partialorder %v4705, 0.0
    %vm4770 = vcmp.ge.f32.partialorder %v4706, 0.0
    %vm4771 = vcmp.ge.f32.partialorder %v4707, 0.0
    %vm4772 = vcmp.ge.f32.partialorder %v4708, 0.0
    %vm4773 = vcmp.ge.f32.partialorder %v4709, 0.0
    %vm4774 = vcmp.ge.f32.partialorder %v4710, 0.0
    %vm4775 = vcmp.ge.f32.partialorder %v4711, 0.0
    %vm4776 = vcmp.ge.f32.partialorder %v4712, 0.0
    %vm4777 = vcmp.ge.f32.partialorder %v4713, 0.0
    %vm4778 = vcmp.ge.f32.partialorder %v4714, 0.0
    %vm4779 = vcmp.ge.f32.partialorder %v4715, 0.0
    %vm4780 = vcmp.ge.f32.partialorder %v4716, 0.0
    %vm4781 = vcmp.ge.f32.partialorder %v4717, 0.0
    %vm4782 = vcmp.ge.f32.partialorder %v4718, 0.0
    %vm4783 = vcmp.ge.f32.partialorder %v4719, 0.0
    %vm4784 = vcmp.ge.f32.partialorder %v4720, 0.0
    %vm4785 = vcmp.ge.f32.partialorder %v4721, 0.0
    %vm4786 = vcmp.ge.f32.partialorder %v4722, 0.0
    %vm4787 = vcmp.ge.f32.partialorder %v4723, 0.0
    %vm4788 = vcmp.ge.f32.partialorder %v4724, 0.0
    %vm4789 = vcmp.ge.f32.partialorder %v4725, 0.0
    %vm4790 = vcmp.ge.f32.partialorder %v4726, 0.0
    %vm4791 = vcmp.ge.f32.partialorder %v4727, 0.0
    %vm4792 = vcmp.ge.f32.partialorder %v4728, 0.0
    %vm4793 = vcmp.ge.f32.partialorder %v4729, 0.0
    %vm4794 = vcmp.ge.f32.partialorder %v4730, 0.0
    %v4795 = vmul.f32 %v4667, 0.01
    %v4796 = vmul.f32 %v4668, 0.01
    %v4797 = vmul.f32 %v4669, 0.01
    %v4798 = vmul.f32 %v4670, 0.01
    %v4799 = vmul.f32 %v4671, 0.01
    %v4800 = vmul.f32 %v4672, 0.01
    %v4801 = vmul.f32 %v4673, 0.01
    %v4802 = vmul.f32 %v4674, 0.01
    %v4803 = vmul.f32 %v4675, 0.01
    %v4804 = vmul.f32 %v4676, 0.01
    %v4805 = vmul.f32 %v4677, 0.01
    %v4806 = vmul.f32 %v4678, 0.01
    %v4807 = vmul.f32 %v4679, 0.01
    %v4808 = vmul.f32 %v4680, 0.01
    %v4809 = vmul.f32 %v4681, 0.01
    %v4810 = vmul.f32 %v4682, 0.01
    %v4811 = vmul.f32 %v4683, 0.01
    %v4812 = vmul.f32 %v4684, 0.01
    %v4813 = vmul.f32 %v4685, 0.01
    %v4814 = vmul.f32 %v4686, 0.01
    %v4815 = vmul.f32 %v4687, 0.01
    %v4816 = vmul.f32 %v4688, 0.01
    %v4817 = vmul.f32 %v4689, 0.01
    %v4818 = vmul.f32 %v4690, 0.01
    %v4819 = vmul.f32 %v4691, 0.01
    %v4820 = vmul.f32 %v4692, 0.01
    %v4821 = vmul.f32 %v4693, 0.01
    %v4822 = vmul.f32 %v4694, 0.01
    %v4823 = vmul.f32 %v4695, 0.01
    %v4824 = vmul.f32 %v4696, 0.01
    %v4825 = vmul.f32 %v4697, 0.01
    %v4826 = vmul.f32 %v4698, 0.01
    %v4827 = vmul.f32 %v4699, 0.01
    %v4828 = vmul.f32 %v4700, 0.01
    %v4829 = vmul.f32 %v4701, 0.01
    %v4830 = vmul.f32 %v4702, 0.01
    %v4831 = vmul.f32 %v4703, 0.01
    %v4832 = vmul.f32 %v4704, 0.01
    %v4833 = vmul.f32 %v4705, 0.01
    %v4834 = vmul.f32 %v4706, 0.01
    %v4835 = vmul.f32 %v4707, 0.01
    %v4836 = vmul.f32 %v4708, 0.01
    %v4837 = vmul.f32 %v4709, 0.01
    %v4838 = vmul.f32 %v4710, 0.01
    %v4839 = vmul.f32 %v4711, 0.01
    %v4840 = vmul.f32 %v4712, 0.01
    %v4841 = vmul.f32 %v4713, 0.01
    %v4842 = vmul.f32 %v4714, 0.01
    %v4843 = vmul.f32 %v4715, 0.01
    %v4844 = vmul.f32 %v4716, 0.01
    %v4845 = vmul.f32 %v4717, 0.01
    %v4846 = vmul.f32 %v4718, 0.01
    %v4847 = vmul.f32 %v4719, 0.01
    %v4848 = vmul.f32 %v4720, 0.01
    %v4849 = vmul.f32 %v4721, 0.01
    %v4850 = vmul.f32 %v4722, 0.01
    %v4851 = vmul.f32 %v4723, 0.01
    %v4852 = vmul.f32 %v4724, 0.01
    %v4853 = vmul.f32 %v4725, 0.01
    %v4854 = vmul.f32 %v4726, 0.01
    %v4855 = vmul.f32 %v4727, 0.01
    %v4856 = vmul.f32 %v4728, 0.01
    %v4857 = vmul.f32 %v4729, 0.01
    %v4858 = vmul.f32 %v4730, 0.01
    %v4859 = vsel %vm4731, %v4667, %v4795
    %v4860 = vsel %vm4732, %v4668, %v4796
    %v4861 = vsel %vm4733, %v4669, %v4797
    %v4862 = vsel %vm4734, %v4670, %v4798
    %v4863 = vsel %vm4735, %v4671, %v4799
    %v4864 = vsel %vm4736, %v4672, %v4800
    %v4865 = vsel %vm4737, %v4673, %v4801
    %v4866 = vsel %vm4738, %v4674, %v4802
    %v4867 = vsel %vm4739, %v4675, %v4803
    %v4868 = vsel %vm4740, %v4676, %v4804
    %v4869 = vsel %vm4741, %v4677, %v4805
    %v4870 = vsel %vm4742, %v4678, %v4806
    %v4871 = vsel %vm4743, %v4679, %v4807
    %v4872 = vsel %vm4744, %v4680, %v4808
    %v4873 = vsel %vm4745, %v4681, %v4809
    %v4874 = vsel %vm4746, %v4682, %v4810
    %v4875 = vsel %vm4747, %v4683, %v4811
    %v4876 = vsel %vm4748, %v4684, %v4812
    %v4877 = vsel %vm4749, %v4685, %v4813
    %v4878 = vsel %vm4750, %v4686, %v4814
    %v4879 = vsel %vm4751, %v4687, %v4815
    %v4880 = vsel %vm4752, %v4688, %v4816
    %v4881 = vsel %vm4753, %v4689, %v4817
    %v4882 = vsel %vm4754, %v4690, %v4818
    %v4883 = vsel %vm4755, %v4691, %v4819
    %v4884 = vsel %vm4756, %v4692, %v4820
    %v4885 = vsel %vm4757, %v4693, %v4821
    %v4886 = vsel %vm4758, %v4694, %v4822
    %v4887 = vsel %vm4759, %v4695, %v4823
    %v4888 = vsel %vm4760, %v4696, %v4824
    %v4889 = vsel %vm4761, %v4697, %v4825
    %v4890 = vsel %vm4762, %v4698, %v4826
    %v4891 = vsel %vm4763, %v4699, %v4827
    %v4892 = vsel %vm4764, %v4700, %v4828
    %v4893 = vsel %vm4765, %v4701, %v4829
    %v4894 = vsel %vm4766, %v4702, %v4830
    %v4895 = vsel %vm4767, %v4703, %v4831
    %v4896 = vsel %vm4768, %v4704, %v4832
    %v4897 = vsel %vm4769, %v4705, %v4833
    %v4898 = vsel %vm4770, %v4706, %v4834
    %v4899 = vsel %vm4771, %v4707, %v4835
    %v4900 = vsel %vm4772, %v4708, %v4836
    %v4901 = vsel %vm4773, %v4709, %v4837
    %v4902 = vsel %vm4774, %v4710, %v4838
    %v4903 = vsel %vm4775, %v4711, %v4839
    %v4904 = vsel %vm4776, %v4712, %v4840
    %v4905 = vsel %vm4777, %v4713, %v4841
    %v4906 = vsel %vm4778, %v4714, %v4842
    %v4907 = vsel %vm4779, %v4715, %v4843
    %v4908 = vsel %vm4780, %v4716, %v4844
    %v4909 = vsel %vm4781, %v4717, %v4845
    %v4910 = vsel %vm4782, %v4718, %v4846
    %v4911 = vsel %vm4783, %v4719, %v4847
    %v4912 = vsel %vm4784, %v4720, %v4848
    %v4913 = vsel %vm4785, %v4721, %v4849
    %v4914 = vsel %vm4786, %v4722, %v4850
    %v4915 = vsel %vm4787, %v4723, %v4851
    %v4916 = vsel %vm4788, %v4724, %v4852
    %v4917 = vsel %vm4789, %v4725, %v4853
    %v4918 = vsel %vm4790, %v4726, %v4854
    %v4919 = vsel %vm4791, %v4727, %v4855
    %v4920 = vsel %vm4792, %v4728, %v4856
    %v4921 = vsel %vm4793, %v4729, %v4857
    %v4922 = vsel %vm4794, %v4730, %v4858
    %v4923 = vld [vmem:[%s4] sm:$0xf]
    %v4924 = vld [vmem:[%s4 + $0x4] sm:$0xf]
    %v4925 = vld [vmem:[%s4 + $0x8] sm:$0xf]
    %v4926 = vld [vmem:[%s4 + $0xc] sm:$0xf]
    %v4927 = vld [vmem:[%s4 + $0x10] sm:$0xf]
    %v4928 = vld [vmem:[%s4 + $0x14] sm:$0xf]
    %v4929 = vld [vmem:[%s4 + $0x18] sm:$0xf]
    %v4930 = vld [vmem:[%s4 + $0x1c] sm:$0xf]
    %v4931 = vld [vmem:[%s4 + $0x20] sm:$0xf]
    %v4932 = vld [vmem:[%s4 + $0x24] sm:$0xf]
    %v4933 = vld [vmem:[%s4 + $0x28] sm:$0xf]
    %v4934 = vld [vmem:[%s4 + $0x2c] sm:$0xf]
    %v4935 = vld [vmem:[%s4 + $0x30] sm:$0xf]
    %v4936 = vld [vmem:[%s4 + $0x34] sm:$0xf]
    %v4937 = vld [vmem:[%s4 + $0x38] sm:$0xf]
    %v4938 = vld [vmem:[%s4 + $0x3c] sm:$0xf]
    %v4939 = vld [vmem:[%s4 + $0x40] sm:$0xf]
    %v4940 = vld [vmem:[%s4 + $0x44] sm:$0xf]
    %v4941 = vld [vmem:[%s4 + $0x48] sm:$0xf]
    %v4942 = vld [vmem:[%s4 + $0x4c] sm:$0xf]
    %v4943 = vld [vmem:[%s4 + $0x50] sm:$0xf]
    %v4944 = vld [vmem:[%s4 + $0x54] sm:$0xf]
    %v4945 = vld [vmem:[%s4 + $0x58] sm:$0xf]
    %v4946 = vld [vmem:[%s4 + $0x5c] sm:$0xf]
    %v4947 = vld [vmem:[%s4 + $0x60] sm:$0xf]
    %v4948 = vld [vmem:[%s4 + $0x64] sm:$0xf]
    %v4949 = vld [vmem:[%s4 + $0x68] sm:$0xf]
    %v4950 = vld [vmem:[%s4 + $0x6c] sm:$0xf]
    %v4951 = vld [vmem:[%s4 + $0x70] sm:$0xf]
    %v4952 = vld [vmem:[%s4 + $0x74] sm:$0xf]
    %v4953 = vld [vmem:[%s4 + $0x78] sm:$0xf]
    %v4954 = vld [vmem:[%s4 + $0x7c] sm:$0xf]
    %v4955 = vld [vmem:[%s4 + $0x80] sm:$0xf]
    %v4956 = vld [vmem:[%s4 + $0x84] sm:$0xf]
    %v4957 = vld [vmem:[%s4 + $0x88] sm:$0xf]
    %v4958 = vld [vmem:[%s4 + $0x8c] sm:$0xf]
    %v4959 = vld [vmem:[%s5] sm:$0x1]
    %v4960 = vld [vmem:[%s6] sm:$0x1]
    %v5025 = vrot.slane %v4859, 7
    %v5026 = vrot.slane %v4860, 7
    %v5027 = vsel %vm190, %v5025, %v5026
    %v5028 = vrot.slane %v4861, 7
    %v5029 = vrot.slane %v4862, 7
    %v5030 = vsel %vm190, %v5028, %v5029
    %v5031 = vrot.slane %v4863, 7
    %v5032 = vrot.slane %v4864, 7
    %v5033 = vsel %vm190, %v5031, %v5032
    %v5034 = vrot.slane %v4865, 7
    %v5035 = vrot.slane %v4866, 7
    %v5036 = vsel %vm190, %v5034, %v5035
    %v5037 = vrot.slane %v4867, 7
    %v5038 = vrot.slane %v4868, 7
    %v5039 = vsel %vm190, %v5037, %v5038
    %v5040 = vrot.slane %v4869, 7
    %v5041 = vrot.slane %v4870, 7
    %v5042 = vsel %vm190, %v5040, %v5041
    %v5043 = vrot.slane %v4871, 7
    %v5044 = vrot.slane %v4872, 7
    %v5045 = vsel %vm190, %v5043, %v5044
    %v5046 = vrot.slane %v4873, 7
    %v5047 = vrot.slane %v4874, 7
    %v5048 = vsel %vm190, %v5046, %v5047
    %v5049 = vrot.slane %v4875, 7
    %v5050 = vrot.slane %v4876, 7
    %v5051 = vsel %vm190, %v5049, %v5050
    %v5052 = vrot.slane %v4877, 7
    %v5053 = vrot.slane %v4878, 7
    %v5054 = vsel %vm190, %v5052, %v5053
    %v5055 = vrot.slane %v4879, 7
    %v5056 = vrot.slane %v4880, 7
    %v5057 = vsel %vm190, %v5055, %v5056
    %v5058 = vrot.slane %v4881, 7
    %v5059 = vrot.slane %v4882, 7
    %v5060 = vsel %vm190, %v5058, %v5059
    %v5061 = vrot.slane %v4883, 7
    %v5062 = vrot.slane %v4884, 7
    %v5063 = vsel %vm190, %v5061, %v5062
    %v5064 = vrot.slane %v4885, 7
    %v5065 = vrot.slane %v4886, 7
    %v5066 = vsel %vm190, %v5064, %v5065
    %v5067 = vrot.slane %v4887, 7
    %v5068 = vrot.slane %v4888, 7
    %v5069 = vsel %vm190, %v5067, %v5068
    %v5070 = vrot.slane %v4889, 7
    %v5071 = vrot.slane %v4890, 7
    %v5072 = vsel %vm190, %v5070, %v5071
    %v5073 = vrot.slane %v4891, 7
    %v5074 = vrot.slane %v4892, 7
    %v5075 = vsel %vm190, %v5073, %v5074
    %v5076 = vrot.slane %v4893, 7
    %v5077 = vrot.slane %v4894, 7
    %v5078 = vsel %vm190, %v5076, %v5077
    %v5079 = vrot.slane %v4895, 7
    %v5080 = vrot.slane %v4896, 7
    %v5081 = vsel %vm190, %v5079, %v5080
    %v5082 = vrot.slane %v4897, 7
    %v5083 = vrot.slane %v4898, 7
    %v5084 = vsel %vm190, %v5082, %v5083
    %v5085 = vrot.slane %v4899, 7
    %v5086 = vrot.slane %v4900, 7
    %v5087 = vsel %vm190, %v5085, %v5086
    %v5088 = vrot.slane %v4901, 7
    %v5089 = vrot.slane %v4902, 7
    %v5090 = vsel %vm190, %v5088, %v5089
    %v5091 = vrot.slane %v4903, 7
    %v5092 = vrot.slane %v4904, 7
    %v5093 = vsel %vm190, %v5091, %v5092
    %v5094 = vrot.slane %v4905, 7
    %v5095 = vrot.slane %v4906, 7
    %v5096 = vsel %vm190, %v5094, %v5095
    %v5097 = vrot.slane %v4907, 7
    %v5098 = vrot.slane %v4908, 7
    %v5099 = vsel %vm190, %v5097, %v5098
    %v5100 = vrot.slane %v4909, 7
    %v5101 = vrot.slane %v4910, 7
    %v5102 = vsel %vm190, %v5100, %v5101
    %v5103 = vrot.slane %v4911, 7
    %v5104 = vrot.slane %v4912, 7
    %v5105 = vsel %vm190, %v5103, %v5104
    %v5106 = vrot.slane %v4913, 7
    %v5107 = vrot.slane %v4914, 7
    %v5108 = vsel %vm190, %v5106, %v5107
    %v5109 = vrot.slane %v4915, 7
    %v5110 = vrot.slane %v4916, 7
    %v5111 = vsel %vm190, %v5109, %v5110
    %v5112 = vrot.slane %v4917, 7
    %v5113 = vrot.slane %v4918, 7
    %v5114 = vsel %vm190, %v5112, %v5113
    %v5115 = vrot.slane %v4919, 7
    %v5116 = vrot.slane %v4920, 7
    %v5117 = vsel %vm190, %v5115, %v5116
    %v5118 = vrot.slane %v4921, 7
    %v5119 = vrot.slane %v4922, 7
    %v5120 = vsel %vm190, %v5118, %v5119
    %v5216 = vsel %vm190, 0.0, %v5025
    %v5217 = vsel %vm190, 0.0, %v5028
    %v5218 = vsel %vm190, 0.0, %v5031
    %v5219 = vsel %vm190, 0.0, %v5034
    %v5220 = vsel %vm190, 0.0, %v5037
    %v5221 = vsel %vm190, 0.0, %v5040
    %v5222 = vsel %vm190, 0.0, %v5043
    %v5223 = vsel %vm190, 0.0, %v5046
    %v5224 = vsel %vm190, 0.0, %v5049
    %v5225 = vsel %vm190, 0.0, %v5052
    %v5226 = vsel %vm190, 0.0, %v5055
    %v5227 = vsel %vm190, 0.0, %v5058
    %v5228 = vsel %vm190, 0.0, %v5061
    %v5229 = vsel %vm190, 0.0, %v5064
    %v5230 = vsel %vm190, 0.0, %v5067
    %v5231 = vsel %vm190, 0.0, %v5070
    %v5232 = vsel %vm190, 0.0, %v5073
    %v5233 = vsel %vm190, 0.0, %v5076
    %v5234 = vsel %vm190, 0.0, %v5079
    %v5235 = vsel %vm190, 0.0, %v5082
    %v5236 = vsel %vm190, 0.0, %v5085
    %v5237 = vsel %vm190, 0.0, %v5088
    %v5238 = vsel %vm190, 0.0, %v5091
    %v5239 = vsel %vm190, 0.0, %v5094
    %v5240 = vsel %vm190, 0.0, %v5097
    %v5241 = vsel %vm190, 0.0, %v5100
    %v5242 = vsel %vm190, 0.0, %v5103
    %v5243 = vsel %vm190, 0.0, %v5106
    %v5244 = vsel %vm190, 0.0, %v5109
    %v5245 = vsel %vm190, 0.0, %v5112
    %v5246 = vsel %vm190, 0.0, %v5115
    %v5247 = vsel %vm190, 0.0, %v5118
    %v5248 = vsel %vm190, %v5026, 0.0
    %v5249 = vsel %vm190, %v5029, 0.0
    %v5250 = vsel %vm190, %v5032, 0.0
    %v5251 = vsel %vm190, %v5035, 0.0
    %v5252 = vsel %vm190, %v5038, 0.0
    %v5253 = vsel %vm190, %v5041, 0.0
    %v5254 = vsel %vm190, %v5044, 0.0
    %v5255 = vsel %vm190, %v5047, 0.0
    %v5256 = vsel %vm190, %v5050, 0.0
    %v5257 = vsel %vm190, %v5053, 0.0
    %v5258 = vsel %vm190, %v5056, 0.0
    %v5259 = vsel %vm190, %v5059, 0.0
    %v5260 = vsel %vm190, %v5062, 0.0
    %v5261 = vsel %vm190, %v5065, 0.0
    %v5262 = vsel %vm190, %v5068, 0.0
    %v5263 = vsel %vm190, %v5071, 0.0
    %v5264 = vsel %vm190, %v5074, 0.0
    %v5265 = vsel %vm190, %v5077, 0.0
    %v5266 = vsel %vm190, %v5080, 0.0
    %v5267 = vsel %vm190, %v5083, 0.0
    %v5268 = vsel %vm190, %v5086, 0.0
    %v5269 = vsel %vm190, %v5089, 0.0
    %v5270 = vsel %vm190, %v5092, 0.0
    %v5271 = vsel %vm190, %v5095, 0.0
    %v5272 = vsel %vm190, %v5098, 0.0
    %v5273 = vsel %vm190, %v5101, 0.0
    %v5274 = vsel %vm190, %v5104, 0.0
    %v5275 = vsel %vm190, %v5107, 0.0
    %v5276 = vsel %vm190, %v5110, 0.0
    %v5277 = vsel %vm190, %v5113, 0.0
    %v5278 = vsel %vm190, %v5116, 0.0
    %v5279 = vsel %vm190, %v5119, 0.0
    %v5340 = vrot.slane %v354, 1
    %v5341 = vrot.slane %v192, 1
    %v5342 = vsel %vm1174, %v5340, %v5341
    %v5343 = vrot.slane %v387, 1
    %v5344 = vsel %vm1174, %v5341, %v5343
    %v5345 = vrot.slane %v5216, 1
    %v5346 = vrot.slane %v5027, 1
    %v5347 = vsel %vm1174, %v5345, %v5346
    %v5348 = vrot.slane %v5248, 1
    %v5349 = vsel %vm1174, %v5346, %v5348
    %v5350 = vrot.slane %v5217, 1
    %v5351 = vrot.slane %v5030, 1
    %v5352 = vsel %vm1174, %v5350, %v5351
    %v5353 = vrot.slane %v5249, 1
    %v5354 = vsel %vm1174, %v5351, %v5353
    %v5355 = vrot.slane %v5218, 1
    %v5356 = vrot.slane %v5033, 1
    %v5357 = vsel %vm1174, %v5355, %v5356
    %v5358 = vrot.slane %v5250, 1
    %v5359 = vsel %vm1174, %v5356, %v5358
    %v5360 = vrot.slane %v5219, 1
    %v5361 = vrot.slane %v5036, 1
    %v5362 = vsel %vm1174, %v5360, %v5361
    %v5363 = vrot.slane %v5251, 1
    %v5364 = vsel %vm1174, %v5361, %v5363
    %v5365 = vrot.slane %v5220, 1
    %v5366 = vrot.slane %v5039, 1
    %v5367 = vsel %vm1174, %v5365, %v5366
    %v5368 = vrot.slane %v5252, 1
    %v5369 = vsel %vm1174, %v5366, %v5368
    %v5370 = vrot.slane %v5221, 1
    %v5371 = vrot.slane %v5042, 1
    %v5372 = vsel %vm1174, %v5370, %v5371
    %v5373 = vrot.slane %v5253, 1
    %v5374 = vsel %vm1174, %v5371, %v5373
    %v5375 = vrot.slane %v5222, 1
    %v5376 = vrot.slane %v5045, 1
    %v5377 = vsel %vm1174, %v5375, %v5376
    %v5378 = vrot.slane %v5254, 1
    %v5379 = vsel %vm1174, %v5376, %v5378
    %v5380 = vrot.slane %v5223, 1
    %v5381 = vrot.slane %v5048, 1
    %v5382 = vsel %vm1174, %v5380, %v5381
    %v5383 = vrot.slane %v5255, 1
    %v5384 = vsel %vm1174, %v5381, %v5383
    %v5385 = vrot.slane %v5224, 1
    %v5386 = vrot.slane %v5051, 1
    %v5387 = vsel %vm1174, %v5385, %v5386
    %v5388 = vrot.slane %v5256, 1
    %v5389 = vsel %vm1174, %v5386, %v5388
    %v5390 = vrot.slane %v5225, 1
    %v5391 = vrot.slane %v5054, 1
    %v5392 = vsel %vm1174, %v5390, %v5391
    %v5393 = vrot.slane %v5257, 1
    %v5394 = vsel %vm1174, %v5391, %v5393
    %v5395 = vrot.slane %v5226, 1
    %v5396 = vrot.slane %v5057, 1
    %v5397 = vsel %vm1174, %v5395, %v5396
    %v5398 = vrot.slane %v5258, 1
    %v5399 = vsel %vm1174, %v5396, %v5398
    %v5400 = vrot.slane %v5227, 1
    %v5401 = vrot.slane %v5060, 1
    %v5402 = vsel %vm1174, %v5400, %v5401
    %v5403 = vrot.slane %v5259, 1
    %v5404 = vsel %vm1174, %v5401, %v5403
    %v5405 = vrot.slane %v5228, 1
    %v5406 = vrot.slane %v5063, 1
    %v5407 = vsel %vm1174, %v5405, %v5406
    %v5408 = vrot.slane %v5260, 1
    %v5409 = vsel %vm1174, %v5406, %v5408
    %v5410 = vrot.slane %v5229, 1
    %v5411 = vrot.slane %v5066, 1
    %v5412 = vsel %vm1174, %v5410, %v5411
    %v5413 = vrot.slane %v5261, 1
    %v5414 = vsel %vm1174, %v5411, %v5413
    %v5415 = vrot.slane %v5230, 1
    %v5416 = vrot.slane %v5069, 1
    %v5417 = vsel %vm1174, %v5415, %v5416
    %v5418 = vrot.slane %v5262, 1
    %v5419 = vsel %vm1174, %v5416, %v5418
    %v5420 = vrot.slane %v5232, 1
    %v5421 = vrot.slane %v5075, 1
    %v5422 = vsel %vm1174, %v5420, %v5421
    %v5423 = vrot.slane %v5264, 1
    %v5424 = vsel %vm1174, %v5421, %v5423
    %v5425 = vrot.slane %v5233, 1
    %v5426 = vrot.slane %v5078, 1
    %v5427 = vsel %vm1174, %v5425, %v5426
    %v5428 = vrot.slane %v5265, 1
    %v5429 = vsel %vm1174, %v5426, %v5428
    %v5430 = vrot.slane %v5234, 1
    %v5431 = vrot.slane %v5081, 1
    %v5432 = vsel %vm1174, %v5430, %v5431
    %v5433 = vrot.slane %v5266, 1
    %v5434 = vsel %vm1174, %v5431, %v5433
    %v5435 = vrot.slane %v5235, 1
    %v5436 = vrot.slane %v5084, 1
    %v5437 = vsel %vm1174, %v5435, %v5436
    %v5438 = vrot.slane %v5267, 1
    %v5439 = vsel %vm1174, %v5436, %v5438
    %v5440 = vrot.slane %v5236, 1
    %v5441 = vrot.slane %v5087, 1
    %v5442 = vsel %vm1174, %v5440, %v5441
    %v5443 = vrot.slane %v5268, 1
    %v5444 = vsel %vm1174, %v5441, %v5443
    %v5445 = vrot.slane %v5237, 1
    %v5446 = vrot.slane %v5090, 1
    %v5447 = vsel %vm1174, %v5445, %v5446
    %v5448 = vrot.slane %v5269, 1
    %v5449 = vsel %vm1174, %v5446, %v5448
    %v5450 = vrot.slane %v5238, 1
    %v5451 = vrot.slane %v5093, 1
    %v5452 = vsel %vm1174, %v5450, %v5451
    %v5453 = vrot.slane %v5270, 1
    %v5454 = vsel %vm1174, %v5451, %v5453
    %v5455 = vrot.slane %v5239, 1
    %v5456 = vrot.slane %v5096, 1
    %v5457 = vsel %vm1174, %v5455, %v5456
    %v5458 = vrot.slane %v5271, 1
    %v5459 = vsel %vm1174, %v5456, %v5458
    %v5460 = vrot.slane %v5240, 1
    %v5461 = vrot.slane %v5099, 1
    %v5462 = vsel %vm1174, %v5460, %v5461
    %v5463 = vrot.slane %v5272, 1
    %v5464 = vsel %vm1174, %v5461, %v5463
    %v5465 = vrot.slane %v5241, 1
    %v5466 = vrot.slane %v5102, 1
    %v5467 = vsel %vm1174, %v5465, %v5466
    %v5468 = vrot.slane %v5273, 1
    %v5469 = vsel %vm1174, %v5466, %v5468
    %v5470 = vrot.slane %v5242, 1
    %v5471 = vrot.slane %v5105, 1
    %v5472 = vsel %vm1174, %v5470, %v5471
    %v5473 = vrot.slane %v5274, 1
    %v5474 = vsel %vm1174, %v5471, %v5473
    %v5475 = vrot.slane %v5243, 1
    %v5476 = vrot.slane %v5108, 1
    %v5477 = vsel %vm1174, %v5475, %v5476
    %v5478 = vrot.slane %v5275, 1
    %v5479 = vsel %vm1174, %v5476, %v5478
    %v5480 = vrot.slane %v5244, 1
    %v5481 = vrot.slane %v5111, 1
    %v5482 = vsel %vm1174, %v5480, %v5481
    %v5483 = vrot.slane %v5276, 1
    %v5484 = vsel %vm1174, %v5481, %v5483
    %v5485 = vrot.slane %v5245, 1
    %v5486 = vrot.slane %v5114, 1
    %v5487 = vsel %vm1174, %v5485, %v5486
    %v5488 = vrot.slane %v5277, 1
    %v5489 = vsel %vm1174, %v5486, %v5488
    %v5490 = vrot.slane %v5246, 1
    %v5491 = vrot.slane %v5117, 1
    %v5492 = vsel %vm1174, %v5490, %v5491
    %v5493 = vrot.slane %v5278, 1
    %v5494 = vsel %vm1174, %v5491, %v5493
    %5495 = vrot.lane.b32.xlu0 %v5342, 32
    %v5496 = vpop.permute.xlu0 %5495
    %5497 = vrot.lane.b32.xlu0 %v5344, 32
    %v5498 = vpop.permute.xlu0 %5497
    %5499 = vrot.lane.b32.xlu0 %v5347, 32
    %v5500 = vpop.permute.xlu0 %5499
    %5501 = vrot.lane.b32.xlu0 %v5349, 32
    %v5502 = vpop.permute.xlu0 %5501
    %5503 = vrot.lane.b32.xlu0 %v5352, 32
    %v5504 = vpop.permute.xlu0 %5503
    %5505 = vrot.lane.b32.xlu0 %v5354, 32
    %v5506 = vpop.permute.xlu0 %5505
    %5507 = vrot.lane.b32.xlu0 %v5357, 32
    %v5508 = vpop.permute.xlu0 %5507
    %5509 = vrot.lane.b32.xlu0 %v5359, 32
    %v5510 = vpop.permute.xlu0 %5509
    %5511 = vrot.lane.b32.xlu0 %v5362, 32
    %v5512 = vpop.permute.xlu0 %5511
    %5513 = vrot.lane.b32.xlu0 %v5364, 32
    %v5514 = vpop.permute.xlu0 %5513
    %5515 = vrot.lane.b32.xlu0 %v5367, 32
    %v5516 = vpop.permute.xlu0 %5515
    %5517 = vrot.lane.b32.xlu0 %v5369, 32
    %v5518 = vpop.permute.xlu0 %5517
    %5519 = vrot.lane.b32.xlu0 %v5372, 32
    %v5520 = vpop.permute.xlu0 %5519
    %5521 = vrot.lane.b32.xlu0 %v5374, 32
    %v5522 = vpop.permute.xlu0 %5521
    %5523 = vrot.lane.b32.xlu0 %v5377, 32
    %v5524 = vpop.permute.xlu0 %5523
    %5525 = vrot.lane.b32.xlu0 %v5379, 32
    %v5526 = vpop.permute.xlu0 %5525
    %5527 = vrot.lane.b32.xlu0 %v5382, 32
    %v5528 = vpop.permute.xlu0 %5527
    %5529 = vrot.lane.b32.xlu0 %v5384, 32
    %v5530 = vpop.permute.xlu0 %5529
    %5531 = vrot.lane.b32.xlu0 %v5387, 32
    %v5532 = vpop.permute.xlu0 %5531
    %5533 = vrot.lane.b32.xlu0 %v5389, 32
    %v5534 = vpop.permute.xlu0 %5533
    %5535 = vrot.lane.b32.xlu0 %v5392, 32
    %v5536 = vpop.permute.xlu0 %5535
    %5537 = vrot.lane.b32.xlu0 %v5394, 32
    %v5538 = vpop.permute.xlu0 %5537
    %5539 = vrot.lane.b32.xlu0 %v5397, 32
    %v5540 = vpop.permute.xlu0 %5539
    %5541 = vrot.lane.b32.xlu0 %v5399, 32
    %v5542 = vpop.permute.xlu0 %5541
    %5543 = vrot.lane.b32.xlu0 %v5402, 32
    %v5544 = vpop.permute.xlu0 %5543
    %5545 = vrot.lane.b32.xlu0 %v5404, 32
    %v5546 = vpop.permute.xlu0 %5545
    %5547 = vrot.lane.b32.xlu0 %v5407, 32
    %v5548 = vpop.permute.xlu0 %5547
    %5549 = vrot.lane.b32.xlu0 %v5409, 32
    %v5550 = vpop.permute.xlu0 %5549
    %5551 = vrot.lane.b32.xlu0 %v5412, 32
    %v5552 = vpop.permute.xlu0 %5551
    %5553 = vrot.lane.b32.xlu0 %v5414, 32
    %v5554 = vpop.permute.xlu0 %5553
    %5555 = vrot.lane.b32.xlu0 %v5417, 32
    %v5556 = vpop.permute.xlu0 %5555
    %5557 = vrot.lane.b32.xlu0 %v5419, 32
    %v5558 = vpop.permute.xlu0 %5557
    %5559 = vrot.lane.b32.xlu0 %v5422, 32
    %v5560 = vpop.permute.xlu0 %5559
    %5561 = vrot.lane.b32.xlu0 %v5424, 32
    %v5562 = vpop.permute.xlu0 %5561
    %5563 = vrot.lane.b32.xlu0 %v5427, 32
    %v5564 = vpop.permute.xlu0 %5563
    %5565 = vrot.lane.b32.xlu0 %v5429, 32
    %v5566 = vpop.permute.xlu0 %5565
    %5567 = vrot.lane.b32.xlu0 %v5432, 32
    %v5568 = vpop.permute.xlu0 %5567
    %5569 = vrot.lane.b32.xlu0 %v5434, 32
    %v5570 = vpop.permute.xlu0 %5569
    %5571 = vrot.lane.b32.xlu0 %v5437, 32
    %v5572 = vpop.permute.xlu0 %5571
    %5573 = vrot.lane.b32.xlu0 %v5439, 32
    %v5574 = vpop.permute.xlu0 %5573
    %5575 = vrot.lane.b32.xlu0 %v5442, 32
    %v5576 = vpop.permute.xlu0 %5575
    %5577 = vrot.lane.b32.xlu0 %v5444, 32
    %v5578 = vpop.permute.xlu0 %5577
    %5579 = vrot.lane.b32.xlu0 %v5447, 32
    %v5580 = vpop.permute.xlu0 %5579
    %5581 = vrot.lane.b32.xlu0 %v5449, 32
    %v5582 = vpop.permute.xlu0 %5581
    %5583 = vrot.lane.b32.xlu0 %v5452, 32
    %v5584 = vpop.permute.xlu0 %5583
    %5585 = vrot.lane.b32.xlu0 %v5454, 32
    %v5586 = vpop.permute.xlu0 %5585
    %5587 = vrot.lane.b32.xlu0 %v5457, 32
    %v5588 = vpop.permute.xlu0 %5587
    %5589 = vrot.lane.b32.xlu0 %v5459, 32
    %v5590 = vpop.permute.xlu0 %5589
    %5591 = vrot.lane.b32.xlu0 %v5462, 32
    %v5592 = vpop.permute.xlu0 %5591
    %5593 = vrot.lane.b32.xlu0 %v5464, 32
    %v5594 = vpop.permute.xlu0 %5593
    %5595 = vrot.lane.b32.xlu0 %v5467, 32
    %v5596 = vpop.permute.xlu0 %5595
    %5597 = vrot.lane.b32.xlu0 %v5469, 32
    %v5598 = vpop.permute.xlu0 %5597
    %5599 = vrot.lane.b32.xlu0 %v5472, 32
    %v5600 = vpop.permute.xlu0 %5599
    %5601 = vrot.lane.b32.xlu0 %v5474, 32
    %v5602 = vpop.permute.xlu0 %5601
    %5603 = vrot.lane.b32.xlu0 %v5477, 32
    %v5604 = vpop.permute.xlu0 %5603
    %5605 = vrot.lane.b32.xlu0 %v5479, 32
    %v5606 = vpop.permute.xlu0 %5605
    %5607 = vrot.lane.b32.xlu0 %v5482, 32
    %v5608 = vpop.permute.xlu0 %5607
    %5609 = vrot.lane.b32.xlu0 %v5484, 32
    %v5610 = vpop.permute.xlu0 %5609
    %5611 = vrot.lane.b32.xlu0 %v5487, 32
    %v5612 = vpop.permute.xlu0 %5611
    %5613 = vrot.lane.b32.xlu0 %v5489, 32
    %v5614 = vpop.permute.xlu0 %5613
    %5615 = vrot.lane.b32.xlu0 %v5492, 32
    %v5616 = vpop.permute.xlu0 %5615
    %5617 = vrot.lane.b32.xlu0 %v5494, 32
    %v5618 = vpop.permute.xlu0 %5617
    %v5681 = vrot.slane %v354, 2
    %v5682 = vrot.slane %v192, 2
    %v5683 = vsel %vm1644, %v5681, %v5682
    %v5684 = vrot.slane %v387, 2
    %v5685 = vsel %vm1644, %v5682, %v5684
    %v5686 = vrot.slane %v5216, 2
    %v5687 = vrot.slane %v5027, 2
    %v5688 = vsel %vm1644, %v5686, %v5687
    %v5689 = vrot.slane %v5248, 2
    %v5690 = vsel %vm1644, %v5687, %v5689
    %v5691 = vrot.slane %v5217, 2
    %v5692 = vrot.slane %v5030, 2
    %v5693 = vsel %vm1644, %v5691, %v5692
    %v5694 = vrot.slane %v5249, 2
    %v5695 = vsel %vm1644, %v5692, %v5694
    %v5696 = vrot.slane %v5218, 2
    %v5697 = vrot.slane %v5033, 2
    %v5698 = vsel %vm1644, %v5696, %v5697
    %v5699 = vrot.slane %v5250, 2
    %v5700 = vsel %vm1644, %v5697, %v5699
    %v5701 = vrot.slane %v5219, 2
    %v5702 = vrot.slane %v5036, 2
    %v5703 = vsel %vm1644, %v5701, %v5702
    %v5704 = vrot.slane %v5251, 2
    %v5705 = vsel %vm1644, %v5702, %v5704
    %v5706 = vrot.slane %v5220, 2
    %v5707 = vrot.slane %v5039, 2
    %v5708 = vsel %vm1644, %v5706, %v5707
    %v5709 = vrot.slane %v5252, 2
    %v5710 = vsel %vm1644, %v5707, %v5709
    %v5711 = vrot.slane %v5221, 2
    %v5712 = vrot.slane %v5042, 2
    %v5713 = vsel %vm1644, %v5711, %v5712
    %v5714 = vrot.slane %v5253, 2
    %v5715 = vsel %vm1644, %v5712, %v5714
    %v5716 = vrot.slane %v5222, 2
    %v5717 = vrot.slane %v5045, 2
    %v5718 = vsel %vm1644, %v5716, %v5717
    %v5719 = vrot.slane %v5254, 2
    %v5720 = vsel %vm1644, %v5717, %v5719
    %v5721 = vrot.slane %v5223, 2
    %v5722 = vrot.slane %v5048, 2
    %v5723 = vsel %vm1644, %v5721, %v5722
    %v5724 = vrot.slane %v5255, 2
    %v5725 = vsel %vm1644, %v5722, %v5724
    %v5726 = vrot.slane %v5224, 2
    %v5727 = vrot.slane %v5051, 2
    %v5728 = vsel %vm1644, %v5726, %v5727
    %v5729 = vrot.slane %v5256, 2
    %v5730 = vsel %vm1644, %v5727, %v5729
    %v5731 = vrot.slane %v5225, 2
    %v5732 = vrot.slane %v5054, 2
    %v5733 = vsel %vm1644, %v5731, %v5732
    %v5734 = vrot.slane %v5257, 2
    %v5735 = vsel %vm1644, %v5732, %v5734
    %v5736 = vrot.slane %v5226, 2
    %v5737 = vrot.slane %v5057, 2
    %v5738 = vsel %vm1644, %v5736, %v5737
    %v5739 = vrot.slane %v5258, 2
    %v5740 = vsel %vm1644, %v5737, %v5739
    %v5741 = vrot.slane %v5227, 2
    %v5742 = vrot.slane %v5060, 2
    %v5743 = vsel %vm1644, %v5741, %v5742
    %v5744 = vrot.slane %v5259, 2
    %v5745 = vsel %vm1644, %v5742, %v5744
    %v5746 = vrot.slane %v5228, 2
    %v5747 = vrot.slane %v5063, 2
    %v5748 = vsel %vm1644, %v5746, %v5747
    %v5749 = vrot.slane %v5260, 2
    %v5750 = vsel %vm1644, %v5747, %v5749
    %v5751 = vrot.slane %v5229, 2
    %v5752 = vrot.slane %v5066, 2
    %v5753 = vsel %vm1644, %v5751, %v5752
    %v5754 = vrot.slane %v5261, 2
    %v5755 = vsel %vm1644, %v5752, %v5754
    %v5756 = vrot.slane %v5230, 2
    %v5757 = vrot.slane %v5069, 2
    %v5758 = vsel %vm1644, %v5756, %v5757
    %v5759 = vrot.slane %v5262, 2
    %v5760 = vsel %vm1644, %v5757, %v5759
    %v5761 = vrot.slane %v5232, 2
    %v5762 = vrot.slane %v5075, 2
    %v5763 = vsel %vm1644, %v5761, %v5762
    %v5764 = vrot.slane %v5264, 2
    %v5765 = vsel %vm1644, %v5762, %v5764
    %v5766 = vrot.slane %v5233, 2
    %v5767 = vrot.slane %v5078, 2
    %v5768 = vsel %vm1644, %v5766, %v5767
    %v5769 = vrot.slane %v5265, 2
    %v5770 = vsel %vm1644, %v5767, %v5769
    %v5771 = vrot.slane %v5234, 2
    %v5772 = vrot.slane %v5081, 2
    %v5773 = vsel %vm1644, %v5771, %v5772
    %v5774 = vrot.slane %v5266, 2
    %v5775 = vsel %vm1644, %v5772, %v5774
    %v5776 = vrot.slane %v5235, 2
    %v5777 = vrot.slane %v5084, 2
    %v5778 = vsel %vm1644, %v5776, %v5777
    %v5779 = vrot.slane %v5267, 2
    %v5780 = vsel %vm1644, %v5777, %v5779
    %v5781 = vrot.slane %v5236, 2
    %v5782 = vrot.slane %v5087, 2
    %v5783 = vsel %vm1644, %v5781, %v5782
    %v5784 = vrot.slane %v5268, 2
    %v5785 = vsel %vm1644, %v5782, %v5784
    %v5786 = vrot.slane %v5237, 2
    %v5787 = vrot.slane %v5090, 2
    %v5788 = vsel %vm1644, %v5786, %v5787
    %v5789 = vrot.slane %v5269, 2
    %v5790 = vsel %vm1644, %v5787, %v5789
    %v5791 = vrot.slane %v5238, 2
    %v5792 = vrot.slane %v5093, 2
    %v5793 = vsel %vm1644, %v5791, %v5792
    %v5794 = vrot.slane %v5270, 2
    %v5795 = vsel %vm1644, %v5792, %v5794
    %v5796 = vrot.slane %v5239, 2
    %v5797 = vrot.slane %v5096, 2
    %v5798 = vsel %vm1644, %v5796, %v5797
    %v5799 = vrot.slane %v5271, 2
    %v5800 = vsel %vm1644, %v5797, %v5799
    %v5801 = vrot.slane %v5240, 2
    %v5802 = vrot.slane %v5099, 2
    %v5803 = vsel %vm1644, %v5801, %v5802
    %v5804 = vrot.slane %v5272, 2
    %v5805 = vsel %vm1644, %v5802, %v5804
    %v5806 = vrot.slane %v5241, 2
    %v5807 = vrot.slane %v5102, 2
    %v5808 = vsel %vm1644, %v5806, %v5807
    %v5809 = vrot.slane %v5273, 2
    %v5810 = vsel %vm1644, %v5807, %v5809
    %v5811 = vrot.slane %v5242, 2
    %v5812 = vrot.slane %v5105, 2
    %v5813 = vsel %vm1644, %v5811, %v5812
    %v5814 = vrot.slane %v5274, 2
    %v5815 = vsel %vm1644, %v5812, %v5814
    %v5816 = vrot.slane %v5243, 2
    %v5817 = vrot.slane %v5108, 2
    %v5818 = vsel %vm1644, %v5816, %v5817
    %v5819 = vrot.slane %v5275, 2
    %v5820 = vsel %vm1644, %v5817, %v5819
    %v5821 = vrot.slane %v5244, 2
    %v5822 = vrot.slane %v5111, 2
    %v5823 = vsel %vm1644, %v5821, %v5822
    %v5824 = vrot.slane %v5276, 2
    %v5825 = vsel %vm1644, %v5822, %v5824
    %v5826 = vrot.slane %v5245, 2
    %v5827 = vrot.slane %v5114, 2
    %v5828 = vsel %vm1644, %v5826, %v5827
    %v5829 = vrot.slane %v5277, 2
    %v5830 = vsel %vm1644, %v5827, %v5829
    %v5831 = vrot.slane %v5246, 2
    %v5832 = vrot.slane %v5117, 2
    %v5833 = vsel %vm1644, %v5831, %v5832
    %v5834 = vrot.slane %v5278, 2
    %v5835 = vsel %vm1644, %v5832, %v5834
    %5836 = vrot.lane.b32.xlu0 %v5683, 64
    %v5837 = vpop.permute.xlu0 %5836
    %5838 = vrot.lane.b32.xlu0 %v5685, 64
    %v5839 = vpop.permute.xlu0 %5838
    %5840 = vrot.lane.b32.xlu0 %v5688, 64
    %v5841 = vpop.permute.xlu0 %5840
    %5842 = vrot.lane.b32.xlu0 %v5690, 64
    %v5843 = vpop.permute.xlu0 %5842
    %5844 = vrot.lane.b32.xlu0 %v5693, 64
    %v5845 = vpop.permute.xlu0 %5844
    %5846 = vrot.lane.b32.xlu0 %v5695, 64
    %v5847 = vpop.permute.xlu0 %5846
    %5848 = vrot.lane.b32.xlu0 %v5698, 64
    %v5849 = vpop.permute.xlu0 %5848
    %5850 = vrot.lane.b32.xlu0 %v5700, 64
    %v5851 = vpop.permute.xlu0 %5850
    %5852 = vrot.lane.b32.xlu0 %v5703, 64
    %v5853 = vpop.permute.xlu0 %5852
    %5854 = vrot.lane.b32.xlu0 %v5705, 64
    %v5855 = vpop.permute.xlu0 %5854
    %5856 = vrot.lane.b32.xlu0 %v5708, 64
    %v5857 = vpop.permute.xlu0 %5856
    %5858 = vrot.lane.b32.xlu0 %v5710, 64
    %v5859 = vpop.permute.xlu0 %5858
    %5860 = vrot.lane.b32.xlu0 %v5713, 64
    %v5861 = vpop.permute.xlu0 %5860
    %5862 = vrot.lane.b32.xlu0 %v5715, 64
    %v5863 = vpop.permute.xlu0 %5862
    %5864 = vrot.lane.b32.xlu0 %v5718, 64
    %v5865 = vpop.permute.xlu0 %5864
    %5866 = vrot.lane.b32.xlu0 %v5720, 64
    %v5867 = vpop.permute.xlu0 %5866
    %5868 = vrot.lane.b32.xlu0 %v5723, 64
    %v5869 = vpop.permute.xlu0 %5868
    %5870 = vrot.lane.b32.xlu0 %v5725, 64
    %v5871 = vpop.permute.xlu0 %5870
    %5872 = vrot.lane.b32.xlu0 %v5728, 64
    %v5873 = vpop.permute.xlu0 %5872
    %5874 = vrot.lane.b32.xlu0 %v5730, 64
    %v5875 = vpop.permute.xlu0 %5874
    %5876 = vrot.lane.b32.xlu0 %v5733, 64
    %v5877 = vpop.permute.xlu0 %5876
    %5878 = vrot.lane.b32.xlu0 %v5735, 64
    %v5879 = vpop.permute.xlu0 %5878
    %5880 = vrot.lane.b32.xlu0 %v5738, 64
    %v5881 = vpop.permute.xlu0 %5880
    %5882 = vrot.lane.b32.xlu0 %v5740, 64
    %v5883 = vpop.permute.xlu0 %5882
    %5884 = vrot.lane.b32.xlu0 %v5743, 64
    %v5885 = vpop.permute.xlu0 %5884
    %5886 = vrot.lane.b32.xlu0 %v5745, 64
    %v5887 = vpop.permute.xlu0 %5886
    %5888 = vrot.lane.b32.xlu0 %v5748, 64
    %v5889 = vpop.permute.xlu0 %5888
    %5890 = vrot.lane.b32.xlu0 %v5750, 64
    %v5891 = vpop.permute.xlu0 %5890
    %5892 = vrot.lane.b32.xlu0 %v5753, 64
    %v5893 = vpop.permute.xlu0 %5892
    %5894 = vrot.lane.b32.xlu0 %v5755, 64
    %v5895 = vpop.permute.xlu0 %5894
    %5896 = vrot.lane.b32.xlu0 %v5758, 64
    %v5897 = vpop.permute.xlu0 %5896
    %5898 = vrot.lane.b32.xlu0 %v5760, 64
    %v5899 = vpop.permute.xlu0 %5898
    %5900 = vrot.lane.b32.xlu0 %v5763, 64
    %v5901 = vpop.permute.xlu0 %5900
    %5902 = vrot.lane.b32.xlu0 %v5765, 64
    %v5903 = vpop.permute.xlu0 %5902
    %5904 = vrot.lane.b32.xlu0 %v5768, 64
    %v5905 = vpop.permute.xlu0 %5904
    %5906 = vrot.lane.b32.xlu0 %v5770, 64
    %v5907 = vpop.permute.xlu0 %5906
    %5908 = vrot.lane.b32.xlu0 %v5773, 64
    %v5909 = vpop.permute.xlu0 %5908
    %5910 = vrot.lane.b32.xlu0 %v5775, 64
    %v5911 = vpop.permute.xlu0 %5910
    %5912 = vrot.lane.b32.xlu0 %v5778, 64
    %v5913 = vpop.permute.xlu0 %5912
    %5914 = vrot.lane.b32.xlu0 %v5780, 64
    %v5915 = vpop.permute.xlu0 %5914
    %5916 = vrot.lane.b32.xlu0 %v5783, 64
    %v5917 = vpop.permute.xlu0 %5916
    %5918 = vrot.lane.b32.xlu0 %v5785, 64
    %v5919 = vpop.permute.xlu0 %5918
    %5920 = vrot.lane.b32.xlu0 %v5788, 64
    %v5921 = vpop.permute.xlu0 %5920
    %5922 = vrot.lane.b32.xlu0 %v5790, 64
    %v5923 = vpop.permute.xlu0 %5922
    %5924 = vrot.lane.b32.xlu0 %v5793, 64
    %v5925 = vpop.permute.xlu0 %5924
    %5926 = vrot.lane.b32.xlu0 %v5795, 64
    %v5927 = vpop.permute.xlu0 %5926
    %5928 = vrot.lane.b32.xlu0 %v5798, 64
    %v5929 = vpop.permute.xlu0 %5928
    %5930 = vrot.lane.b32.xlu0 %v5800, 64
    %v5931 = vpop.permute.xlu0 %5930
    %5932 = vrot.lane.b32.xlu0 %v5803, 64
    %v5933 = vpop.permute.xlu0 %5932
    %5934 = vrot.lane.b32.xlu0 %v5805, 64
    %v5935 = vpop.permute.xlu0 %5934
    %5936 = vrot.lane.b32.xlu0 %v5808, 64
    %v5937 = vpop.permute.xlu0 %5936
    %5938 = vrot.lane.b32.xlu0 %v5810, 64
    %v5939 = vpop.permute.xlu0 %5938
    %5940 = vrot.lane.b32.xlu0 %v5813, 64
    %v5941 = vpop.permute.xlu0 %5940
    %5942 = vrot.lane.b32.xlu0 %v5815, 64
    %v5943 = vpop.permute.xlu0 %5942
    %5944 = vrot.lane.b32.xlu0 %v5818, 64
    %v5945 = vpop.permute.xlu0 %5944
    %5946 = vrot.lane.b32.xlu0 %v5820, 64
    %v5947 = vpop.permute.xlu0 %5946
    %5948 = vrot.lane.b32.xlu0 %v5823, 64
    %v5949 = vpop.permute.xlu0 %5948
    %5950 = vrot.lane.b32.xlu0 %v5825, 64
    %v5951 = vpop.permute.xlu0 %5950
    %5952 = vrot.lane.b32.xlu0 %v5828, 64
    %v5953 = vpop.permute.xlu0 %5952
    %5954 = vrot.lane.b32.xlu0 %v5830, 64
    %v5955 = vpop.permute.xlu0 %5954
    %5956 = vrot.lane.b32.xlu0 %v5833, 64
    %v5957 = vpop.permute.xlu0 %5956
    %5958 = vrot.lane.b32.xlu0 %v5835, 64
    %v5959 = vpop.permute.xlu0 %5958
    %6024 = vrot.lane.b32.xlu0 %v5216, 96
    %v6025 = vpop.permute.xlu0 %6024
    %6026 = vrot.lane.b32.xlu0 %v5027, 96
    %v6027 = vpop.permute.xlu0 %6026
    %6028 = vrot.lane.b32.xlu0 %v5217, 96
    %v6029 = vpop.permute.xlu0 %6028
    %6030 = vrot.lane.b32.xlu0 %v5030, 96
    %v6031 = vpop.permute.xlu0 %6030
    %6032 = vrot.lane.b32.xlu0 %v5218, 96
    %v6033 = vpop.permute.xlu0 %6032
    %6034 = vrot.lane.b32.xlu0 %v5033, 96
    %v6035 = vpop.permute.xlu0 %6034
    %6036 = vrot.lane.b32.xlu0 %v5219, 96
    %v6037 = vpop.permute.xlu0 %6036
    %6038 = vrot.lane.b32.xlu0 %v5036, 96
    %v6039 = vpop.permute.xlu0 %6038
    %6040 = vrot.lane.b32.xlu0 %v5220, 96
    %v6041 = vpop.permute.xlu0 %6040
    %6042 = vrot.lane.b32.xlu0 %v5039, 96
    %v6043 = vpop.permute.xlu0 %6042
    %6044 = vrot.lane.b32.xlu0 %v5221, 96
    %v6045 = vpop.permute.xlu0 %6044
    %6046 = vrot.lane.b32.xlu0 %v5042, 96
    %v6047 = vpop.permute.xlu0 %6046
    %6048 = vrot.lane.b32.xlu0 %v5222, 96
    %v6049 = vpop.permute.xlu0 %6048
    %6050 = vrot.lane.b32.xlu0 %v5045, 96
    %v6051 = vpop.permute.xlu0 %6050
    %6052 = vrot.lane.b32.xlu0 %v5223, 96
    %v6053 = vpop.permute.xlu0 %6052
    %6054 = vrot.lane.b32.xlu0 %v5048, 96
    %v6055 = vpop.permute.xlu0 %6054
    %6056 = vrot.lane.b32.xlu0 %v5224, 96
    %v6057 = vpop.permute.xlu0 %6056
    %6058 = vrot.lane.b32.xlu0 %v5051, 96
    %v6059 = vpop.permute.xlu0 %6058
    %6060 = vrot.lane.b32.xlu0 %v5225, 96
    %v6061 = vpop.permute.xlu0 %6060
    %6062 = vrot.lane.b32.xlu0 %v5054, 96
    %v6063 = vpop.permute.xlu0 %6062
    %6064 = vrot.lane.b32.xlu0 %v5226, 96
    %v6065 = vpop.permute.xlu0 %6064
    %6066 = vrot.lane.b32.xlu0 %v5057, 96
    %v6067 = vpop.permute.xlu0 %6066
    %6068 = vrot.lane.b32.xlu0 %v5227, 96
    %v6069 = vpop.permute.xlu0 %6068
    %6070 = vrot.lane.b32.xlu0 %v5060, 96
    %v6071 = vpop.permute.xlu0 %6070
    %6072 = vrot.lane.b32.xlu0 %v5228, 96
    %v6073 = vpop.permute.xlu0 %6072
    %6074 = vrot.lane.b32.xlu0 %v5063, 96
    %v6075 = vpop.permute.xlu0 %6074
    %6076 = vrot.lane.b32.xlu0 %v5229, 96
    %v6077 = vpop.permute.xlu0 %6076
    %6078 = vrot.lane.b32.xlu0 %v5066, 96
    %v6079 = vpop.permute.xlu0 %6078
    %6080 = vrot.lane.b32.xlu0 %v5230, 96
    %v6081 = vpop.permute.xlu0 %6080
    %6082 = vrot.lane.b32.xlu0 %v5069, 96
    %v6083 = vpop.permute.xlu0 %6082
    %6084 = vrot.lane.b32.xlu0 %v5231, 96
    %v6085 = vpop.permute.xlu0 %6084
    %6086 = vrot.lane.b32.xlu0 %v5072, 96
    %v6087 = vpop.permute.xlu0 %6086
    %6088 = vrot.lane.b32.xlu0 %v5232, 96
    %v6089 = vpop.permute.xlu0 %6088
    %6090 = vrot.lane.b32.xlu0 %v5075, 96
    %v6091 = vpop.permute.xlu0 %6090
    %6092 = vrot.lane.b32.xlu0 %v5233, 96
    %v6093 = vpop.permute.xlu0 %6092
    %6094 = vrot.lane.b32.xlu0 %v5078, 96
    %v6095 = vpop.permute.xlu0 %6094
    %6096 = vrot.lane.b32.xlu0 %v5234, 96
    %v6097 = vpop.permute.xlu0 %6096
    %6098 = vrot.lane.b32.xlu0 %v5081, 96
    %v6099 = vpop.permute.xlu0 %6098
    %6100 = vrot.lane.b32.xlu0 %v5235, 96
    %v6101 = vpop.permute.xlu0 %6100
    %6102 = vrot.lane.b32.xlu0 %v5084, 96
    %v6103 = vpop.permute.xlu0 %6102
    %6104 = vrot.lane.b32.xlu0 %v5236, 96
    %v6105 = vpop.permute.xlu0 %6104
    %6106 = vrot.lane.b32.xlu0 %v5087, 96
    %v6107 = vpop.permute.xlu0 %6106
    %6108 = vrot.lane.b32.xlu0 %v5237, 96
    %v6109 = vpop.permute.xlu0 %6108
    %6110 = vrot.lane.b32.xlu0 %v5090, 96
    %v6111 = vpop.permute.xlu0 %6110
    %6112 = vrot.lane.b32.xlu0 %v5238, 96
    %v6113 = vpop.permute.xlu0 %6112
    %6114 = vrot.lane.b32.xlu0 %v5093, 96
    %v6115 = vpop.permute.xlu0 %6114
    %6116 = vrot.lane.b32.xlu0 %v5239, 96
    %v6117 = vpop.permute.xlu0 %6116
    %6118 = vrot.lane.b32.xlu0 %v5096, 96
    %v6119 = vpop.permute.xlu0 %6118
    %6120 = vrot.lane.b32.xlu0 %v5240, 96
    %v6121 = vpop.permute.xlu0 %6120
    %6122 = vrot.lane.b32.xlu0 %v5099, 96
    %v6123 = vpop.permute.xlu0 %6122
    %6124 = vrot.lane.b32.xlu0 %v5241, 96
    %v6125 = vpop.permute.xlu0 %6124
    %6126 = vrot.lane.b32.xlu0 %v5102, 96
    %v6127 = vpop.permute.xlu0 %6126
    %6128 = vrot.lane.b32.xlu0 %v5242, 96
    %v6129 = vpop.permute.xlu0 %6128
    %6130 = vrot.lane.b32.xlu0 %v5105, 96
    %v6131 = vpop.permute.xlu0 %6130
    %6132 = vrot.lane.b32.xlu0 %v5243, 96
    %v6133 = vpop.permute.xlu0 %6132
    %6134 = vrot.lane.b32.xlu0 %v5108, 96
    %v6135 = vpop.permute.xlu0 %6134
    %6136 = vrot.lane.b32.xlu0 %v5244, 96
    %v6137 = vpop.permute.xlu0 %6136
    %6138 = vrot.lane.b32.xlu0 %v5111, 96
    %v6139 = vpop.permute.xlu0 %6138
    %6140 = vrot.lane.b32.xlu0 %v5245, 96
    %v6141 = vpop.permute.xlu0 %6140
    %6142 = vrot.lane.b32.xlu0 %v5114, 96
    %v6143 = vpop.permute.xlu0 %6142
    %6144 = vrot.lane.b32.xlu0 %v5246, 96
    %v6145 = vpop.permute.xlu0 %6144
    %6146 = vrot.lane.b32.xlu0 %v5117, 96
    %v6147 = vpop.permute.xlu0 %6146
    %6148 = vrot.lane.b32.xlu0 %v5247, 96
    %v6149 = vpop.permute.xlu0 %6148
    %6150 = vrot.lane.b32.xlu0 %v5120, 96
    %v6151 = vpop.permute.xlu0 %6150
    %v6218 = vrot.slane %v5231, 1
    %v6219 = vrot.slane %v5072, 1
    %v6220 = vsel %vm1174, %v6218, %v6219
    %v6221 = vrot.slane %v5263, 1
    %v6222 = vsel %vm1174, %v6219, %v6221
    %v6223 = vrot.slane %v5247, 1
    %v6224 = vrot.slane %v5120, 1
    %v6225 = vsel %vm1174, %v6223, %v6224
    %v6226 = vrot.slane %v5279, 1
    %v6227 = vsel %vm1174, %v6224, %v6226
    %v6292 = vrot.slane %v5231, 2
    %v6293 = vrot.slane %v5072, 2
    %v6294 = vsel %vm1644, %v6292, %v6293
    %v6295 = vrot.slane %v5263, 2
    %v6296 = vsel %vm1644, %v6293, %v6295
    %v6297 = vrot.slane %v5247, 2
    %v6298 = vrot.slane %v5120, 2
    %v6299 = vsel %vm1644, %v6297, %v6298
    %v6300 = vrot.slane %v5279, 2
    %v6301 = vsel %vm1644, %v6298, %v6300
    %6302 = vrot.lane.b32.xlu0 %v5688, 32
    %v6303 = vpop.permute.xlu0 %6302
    %6304 = vrot.lane.b32.xlu0 %v5690, 32
    %v6305 = vpop.permute.xlu0 %6304
    %6306 = vrot.lane.b32.xlu0 %v5693, 32
    %v6307 = vpop.permute.xlu0 %6306
    %6308 = vrot.lane.b32.xlu0 %v5695, 32
    %v6309 = vpop.permute.xlu0 %6308
    %6310 = vrot.lane.b32.xlu0 %v5698, 32
    %v6311 = vpop.permute.xlu0 %6310
    %6312 = vrot.lane.b32.xlu0 %v5700, 32
    %v6313 = vpop.permute.xlu0 %6312
    %6314 = vrot.lane.b32.xlu0 %v5703, 32
    %v6315 = vpop.permute.xlu0 %6314
    %6316 = vrot.lane.b32.xlu0 %v5705, 32
    %v6317 = vpop.permute.xlu0 %6316
    %6318 = vrot.lane.b32.xlu0 %v5708, 32
    %v6319 = vpop.permute.xlu0 %6318
    %6320 = vrot.lane.b32.xlu0 %v5710, 32
    %v6321 = vpop.permute.xlu0 %6320
    %6322 = vrot.lane.b32.xlu0 %v5713, 32
    %v6323 = vpop.permute.xlu0 %6322
    %6324 = vrot.lane.b32.xlu0 %v5715, 32
    %v6325 = vpop.permute.xlu0 %6324
    %6326 = vrot.lane.b32.xlu0 %v5718, 32
    %v6327 = vpop.permute.xlu0 %6326
    %6328 = vrot.lane.b32.xlu0 %v5720, 32
    %v6329 = vpop.permute.xlu0 %6328
    %6330 = vrot.lane.b32.xlu0 %v5723, 32
    %v6331 = vpop.permute.xlu0 %6330
    %6332 = vrot.lane.b32.xlu0 %v5725, 32
    %v6333 = vpop.permute.xlu0 %6332
    %6334 = vrot.lane.b32.xlu0 %v5728, 32
    %v6335 = vpop.permute.xlu0 %6334
    %6336 = vrot.lane.b32.xlu0 %v5730, 32
    %v6337 = vpop.permute.xlu0 %6336
    %6338 = vrot.lane.b32.xlu0 %v5733, 32
    %v6339 = vpop.permute.xlu0 %6338
    %6340 = vrot.lane.b32.xlu0 %v5735, 32
    %v6341 = vpop.permute.xlu0 %6340
    %6342 = vrot.lane.b32.xlu0 %v5738, 32
    %v6343 = vpop.permute.xlu0 %6342
    %6344 = vrot.lane.b32.xlu0 %v5740, 32
    %v6345 = vpop.permute.xlu0 %6344
    %6346 = vrot.lane.b32.xlu0 %v5743, 32
    %v6347 = vpop.permute.xlu0 %6346
    %6348 = vrot.lane.b32.xlu0 %v5745, 32
    %v6349 = vpop.permute.xlu0 %6348
    %6350 = vrot.lane.b32.xlu0 %v5748, 32
    %v6351 = vpop.permute.xlu0 %6350
    %6352 = vrot.lane.b32.xlu0 %v5750, 32
    %v6353 = vpop.permute.xlu0 %6352
    %6354 = vrot.lane.b32.xlu0 %v5753, 32
    %v6355 = vpop.permute.xlu0 %6354
    %6356 = vrot.lane.b32.xlu0 %v5755, 32
    %v6357 = vpop.permute.xlu0 %6356
    %6358 = vrot.lane.b32.xlu0 %v5758, 32
    %v6359 = vpop.permute.xlu0 %6358
    %6360 = vrot.lane.b32.xlu0 %v5760, 32
    %v6361 = vpop.permute.xlu0 %6360
    %6362 = vrot.lane.b32.xlu0 %v6294, 32
    %v6363 = vpop.permute.xlu0 %6362
    %6364 = vrot.lane.b32.xlu0 %v6296, 32
    %v6365 = vpop.permute.xlu0 %6364
    %6366 = vrot.lane.b32.xlu0 %v5763, 32
    %v6367 = vpop.permute.xlu0 %6366
    %6368 = vrot.lane.b32.xlu0 %v5765, 32
    %v6369 = vpop.permute.xlu0 %6368
    %6370 = vrot.lane.b32.xlu0 %v5768, 32
    %v6371 = vpop.permute.xlu0 %6370
    %6372 = vrot.lane.b32.xlu0 %v5770, 32
    %v6373 = vpop.permute.xlu0 %6372
    %6374 = vrot.lane.b32.xlu0 %v5773, 32
    %v6375 = vpop.permute.xlu0 %6374
    %6376 = vrot.lane.b32.xlu0 %v5775, 32
    %v6377 = vpop.permute.xlu0 %6376
    %6378 = vrot.lane.b32.xlu0 %v5778, 32
    %v6379 = vpop.permute.xlu0 %6378
    %6380 = vrot.lane.b32.xlu0 %v5780, 32
    %v6381 = vpop.permute.xlu0 %6380
    %6382 = vrot.lane.b32.xlu0 %v5783, 32
    %v6383 = vpop.permute.xlu0 %6382
    %6384 = vrot.lane.b32.xlu0 %v5785, 32
    %v6385 = vpop.permute.xlu0 %6384
    %6386 = vrot.lane.b32.xlu0 %v5788, 32
    %v6387 = vpop.permute.xlu0 %6386
    %6388 = vrot.lane.b32.xlu0 %v5790, 32
    %v6389 = vpop.permute.xlu0 %6388
    %6390 = vrot.lane.b32.xlu0 %v5793, 32
    %v6391 = vpop.permute.xlu0 %6390
    %6392 = vrot.lane.b32.xlu0 %v5795, 32
    %v6393 = vpop.permute.xlu0 %6392
    %6394 = vrot.lane.b32.xlu0 %v5798, 32
    %v6395 = vpop.permute.xlu0 %6394
    %6396 = vrot.lane.b32.xlu0 %v5800, 32
    %v6397 = vpop.permute.xlu0 %6396
    %6398 = vrot.lane.b32.xlu0 %v5803, 32
    %v6399 = vpop.permute.xlu0 %6398
    %6400 = vrot.lane.b32.xlu0 %v5805, 32
    %v6401 = vpop.permute.xlu0 %6400
    %6402 = vrot.lane.b32.xlu0 %v5808, 32
    %v6403 = vpop.permute.xlu0 %6402
    %6404 = vrot.lane.b32.xlu0 %v5810, 32
    %v6405 = vpop.permute.xlu0 %6404
    %6406 = vrot.lane.b32.xlu0 %v5813, 32
    %v6407 = vpop.permute.xlu0 %6406
    %6408 = vrot.lane.b32.xlu0 %v5815, 32
    %v6409 = vpop.permute.xlu0 %6408
    %6410 = vrot.lane.b32.xlu0 %v5818, 32
    %v6411 = vpop.permute.xlu0 %6410
    %6412 = vrot.lane.b32.xlu0 %v5820, 32
    %v6413 = vpop.permute.xlu0 %6412
    %6414 = vrot.lane.b32.xlu0 %v5823, 32
    %v6415 = vpop.permute.xlu0 %6414
    %6416 = vrot.lane.b32.xlu0 %v5825, 32
    %v6417 = vpop.permute.xlu0 %6416
    %6418 = vrot.lane.b32.xlu0 %v5828, 32
    %v6419 = vpop.permute.xlu0 %6418
    %6420 = vrot.lane.b32.xlu0 %v5830, 32
    %v6421 = vpop.permute.xlu0 %6420
    %6422 = vrot.lane.b32.xlu0 %v5833, 32
    %v6423 = vpop.permute.xlu0 %6422
    %6424 = vrot.lane.b32.xlu0 %v5835, 32
    %v6425 = vpop.permute.xlu0 %6424
    %6426 = vrot.lane.b32.xlu0 %v6299, 32
    %v6427 = vpop.permute.xlu0 %6426
    %6428 = vrot.lane.b32.xlu0 %v6301, 32
    %v6429 = vpop.permute.xlu0 %6428
    %6494 = vrot.lane.b32.xlu0 %v5217, 64
    %v6495 = vpop.permute.xlu0 %6494
    %6496 = vrot.lane.b32.xlu0 %v5030, 64
    %v6497 = vpop.permute.xlu0 %6496
    %6498 = vrot.lane.b32.xlu0 %v5218, 64
    %v6499 = vpop.permute.xlu0 %6498
    %6500 = vrot.lane.b32.xlu0 %v5033, 64
    %v6501 = vpop.permute.xlu0 %6500
    %6502 = vrot.lane.b32.xlu0 %v5219, 64
    %v6503 = vpop.permute.xlu0 %6502
    %6504 = vrot.lane.b32.xlu0 %v5036, 64
    %v6505 = vpop.permute.xlu0 %6504
    %6506 = vrot.lane.b32.xlu0 %v5220, 64
    %v6507 = vpop.permute.xlu0 %6506
    %6508 = vrot.lane.b32.xlu0 %v5039, 64
    %v6509 = vpop.permute.xlu0 %6508
    %6510 = vrot.lane.b32.xlu0 %v5221, 64
    %v6511 = vpop.permute.xlu0 %6510
    %6512 = vrot.lane.b32.xlu0 %v5042, 64
    %v6513 = vpop.permute.xlu0 %6512
    %6514 = vrot.lane.b32.xlu0 %v5222, 64
    %v6515 = vpop.permute.xlu0 %6514
    %6516 = vrot.lane.b32.xlu0 %v5045, 64
    %v6517 = vpop.permute.xlu0 %6516
    %6518 = vrot.lane.b32.xlu0 %v5223, 64
    %v6519 = vpop.permute.xlu0 %6518
    %6520 = vrot.lane.b32.xlu0 %v5048, 64
    %v6521 = vpop.permute.xlu0 %6520
    %6522 = vrot.lane.b32.xlu0 %v5224, 64
    %v6523 = vpop.permute.xlu0 %6522
    %6524 = vrot.lane.b32.xlu0 %v5051, 64
    %v6525 = vpop.permute.xlu0 %6524
    %6526 = vrot.lane.b32.xlu0 %v5225, 64
    %v6527 = vpop.permute.xlu0 %6526
    %6528 = vrot.lane.b32.xlu0 %v5054, 64
    %v6529 = vpop.permute.xlu0 %6528
    %6530 = vrot.lane.b32.xlu0 %v5226, 64
    %v6531 = vpop.permute.xlu0 %6530
    %6532 = vrot.lane.b32.xlu0 %v5057, 64
    %v6533 = vpop.permute.xlu0 %6532
    %6534 = vrot.lane.b32.xlu0 %v5227, 64
    %v6535 = vpop.permute.xlu0 %6534
    %6536 = vrot.lane.b32.xlu0 %v5060, 64
    %v6537 = vpop.permute.xlu0 %6536
    %6538 = vrot.lane.b32.xlu0 %v5228, 64
    %v6539 = vpop.permute.xlu0 %6538
    %6540 = vrot.lane.b32.xlu0 %v5063, 64
    %v6541 = vpop.permute.xlu0 %6540
    %6542 = vrot.lane.b32.xlu0 %v5229, 64
    %v6543 = vpop.permute.xlu0 %6542
    %6544 = vrot.lane.b32.xlu0 %v5066, 64
    %v6545 = vpop.permute.xlu0 %6544
    %6546 = vrot.lane.b32.xlu0 %v5230, 64
    %v6547 = vpop.permute.xlu0 %6546
    %6548 = vrot.lane.b32.xlu0 %v5069, 64
    %v6549 = vpop.permute.xlu0 %6548
    %6550 = vrot.lane.b32.xlu0 %v5231, 64
    %v6551 = vpop.permute.xlu0 %6550
    %6552 = vrot.lane.b32.xlu0 %v5072, 64
    %v6553 = vpop.permute.xlu0 %6552
    %6554 = vrot.lane.b32.xlu0 %v354, 64
    %v6555 = vpop.permute.xlu0 %6554
    %6556 = vrot.lane.b32.xlu0 %v192, 64
    %v6557 = vpop.permute.xlu0 %6556
    %6558 = vrot.lane.b32.xlu0 %v5233, 64
    %v6559 = vpop.permute.xlu0 %6558
    %6560 = vrot.lane.b32.xlu0 %v5078, 64
    %v6561 = vpop.permute.xlu0 %6560
    %6562 = vrot.lane.b32.xlu0 %v5234, 64
    %v6563 = vpop.permute.xlu0 %6562
    %6564 = vrot.lane.b32.xlu0 %v5081, 64
    %v6565 = vpop.permute.xlu0 %6564
    %6566 = vrot.lane.b32.xlu0 %v5235, 64
    %v6567 = vpop.permute.xlu0 %6566
    %6568 = vrot.lane.b32.xlu0 %v5084, 64
    %v6569 = vpop.permute.xlu0 %6568
    %6570 = vrot.lane.b32.xlu0 %v5236, 64
    %v6571 = vpop.permute.xlu0 %6570
    %6572 = vrot.lane.b32.xlu0 %v5087, 64
    %v6573 = vpop.permute.xlu0 %6572
    %6574 = vrot.lane.b32.xlu0 %v5237, 64
    %v6575 = vpop.permute.xlu0 %6574
    %6576 = vrot.lane.b32.xlu0 %v5090, 64
    %v6577 = vpop.permute.xlu0 %6576
    %6578 = vrot.lane.b32.xlu0 %v5238, 64
    %v6579 = vpop.permute.xlu0 %6578
    %6580 = vrot.lane.b32.xlu0 %v5093, 64
    %v6581 = vpop.permute.xlu0 %6580
    %6582 = vrot.lane.b32.xlu0 %v5239, 64
    %v6583 = vpop.permute.xlu0 %6582
    %6584 = vrot.lane.b32.xlu0 %v5096, 64
    %v6585 = vpop.permute.xlu0 %6584
    %6586 = vrot.lane.b32.xlu0 %v5240, 64
    %v6587 = vpop.permute.xlu0 %6586
    %6588 = vrot.lane.b32.xlu0 %v5099, 64
    %v6589 = vpop.permute.xlu0 %6588
    %6590 = vrot.lane.b32.xlu0 %v5241, 64
    %v6591 = vpop.permute.xlu0 %6590
    %6592 = vrot.lane.b32.xlu0 %v5102, 64
    %v6593 = vpop.permute.xlu0 %6592
    %6594 = vrot.lane.b32.xlu0 %v5242, 64
    %v6595 = vpop.permute.xlu0 %6594
    %6596 = vrot.lane.b32.xlu0 %v5105, 64
    %v6597 = vpop.permute.xlu0 %6596
    %6598 = vrot.lane.b32.xlu0 %v5243, 64
    %v6599 = vpop.permute.xlu0 %6598
    %6600 = vrot.lane.b32.xlu0 %v5108, 64
    %v6601 = vpop.permute.xlu0 %6600
    %6602 = vrot.lane.b32.xlu0 %v5244, 64
    %v6603 = vpop.permute.xlu0 %6602
    %6604 = vrot.lane.b32.xlu0 %v5111, 64
    %v6605 = vpop.permute.xlu0 %6604
    %6606 = vrot.lane.b32.xlu0 %v5245, 64
    %v6607 = vpop.permute.xlu0 %6606
    %6608 = vrot.lane.b32.xlu0 %v5114, 64
    %v6609 = vpop.permute.xlu0 %6608
    %6610 = vrot.lane.b32.xlu0 %v5246, 64
    %v6611 = vpop.permute.xlu0 %6610
    %6612 = vrot.lane.b32.xlu0 %v5117, 64
    %v6613 = vpop.permute.xlu0 %6612
    %6614 = vrot.lane.b32.xlu0 %v5247, 64
    %v6615 = vpop.permute.xlu0 %6614
    %6616 = vrot.lane.b32.xlu0 %v5120, 64
    %v6617 = vpop.permute.xlu0 %6616
    %6680 = vrot.lane.b32.xlu0 %v5352, 96
    %v6681 = vpop.permute.xlu0 %6680
    %6682 = vrot.lane.b32.xlu0 %v5354, 96
    %v6683 = vpop.permute.xlu0 %6682
    %6684 = vrot.lane.b32.xlu0 %v5357, 96
    %v6685 = vpop.permute.xlu0 %6684
    %6686 = vrot.lane.b32.xlu0 %v5359, 96
    %v6687 = vpop.permute.xlu0 %6686
    %6688 = vrot.lane.b32.xlu0 %v5362, 96
    %v6689 = vpop.permute.xlu0 %6688
    %6690 = vrot.lane.b32.xlu0 %v5364, 96
    %v6691 = vpop.permute.xlu0 %6690
    %6692 = vrot.lane.b32.xlu0 %v5367, 96
    %v6693 = vpop.permute.xlu0 %6692
    %6694 = vrot.lane.b32.xlu0 %v5369, 96
    %v6695 = vpop.permute.xlu0 %6694
    %6696 = vrot.lane.b32.xlu0 %v5372, 96
    %v6697 = vpop.permute.xlu0 %6696
    %6698 = vrot.lane.b32.xlu0 %v5374, 96
    %v6699 = vpop.permute.xlu0 %6698
    %6700 = vrot.lane.b32.xlu0 %v5377, 96
    %v6701 = vpop.permute.xlu0 %6700
    %6702 = vrot.lane.b32.xlu0 %v5379, 96
    %v6703 = vpop.permute.xlu0 %6702
    %6704 = vrot.lane.b32.xlu0 %v5382, 96
    %v6705 = vpop.permute.xlu0 %6704
    %6706 = vrot.lane.b32.xlu0 %v5384, 96
    %v6707 = vpop.permute.xlu0 %6706
    %6708 = vrot.lane.b32.xlu0 %v5387, 96
    %v6709 = vpop.permute.xlu0 %6708
    %6710 = vrot.lane.b32.xlu0 %v5389, 96
    %v6711 = vpop.permute.xlu0 %6710
    %6712 = vrot.lane.b32.xlu0 %v5392, 96
    %v6713 = vpop.permute.xlu0 %6712
    %6714 = vrot.lane.b32.xlu0 %v5394, 96
    %v6715 = vpop.permute.xlu0 %6714
    %6716 = vrot.lane.b32.xlu0 %v5397, 96
    %v6717 = vpop.permute.xlu0 %6716
    %6718 = vrot.lane.b32.xlu0 %v5399, 96
    %v6719 = vpop.permute.xlu0 %6718
    %6720 = vrot.lane.b32.xlu0 %v5402, 96
    %v6721 = vpop.permute.xlu0 %6720
    %6722 = vrot.lane.b32.xlu0 %v5404, 96
    %v6723 = vpop.permute.xlu0 %6722
    %6724 = vrot.lane.b32.xlu0 %v5407, 96
    %v6725 = vpop.permute.xlu0 %6724
    %6726 = vrot.lane.b32.xlu0 %v5409, 96
    %v6727 = vpop.permute.xlu0 %6726
    %6728 = vrot.lane.b32.xlu0 %v5412, 96
    %v6729 = vpop.permute.xlu0 %6728
    %6730 = vrot.lane.b32.xlu0 %v5414, 96
    %v6731 = vpop.permute.xlu0 %6730
    %6732 = vrot.lane.b32.xlu0 %v5417, 96
    %v6733 = vpop.permute.xlu0 %6732
    %6734 = vrot.lane.b32.xlu0 %v5419, 96
    %v6735 = vpop.permute.xlu0 %6734
    %6736 = vrot.lane.b32.xlu0 %v6220, 96
    %v6737 = vpop.permute.xlu0 %6736
    %6738 = vrot.lane.b32.xlu0 %v6222, 96
    %v6739 = vpop.permute.xlu0 %6738
    %6740 = vrot.lane.b32.xlu0 %v5342, 96
    %v6741 = vpop.permute.xlu0 %6740
    %6742 = vrot.lane.b32.xlu0 %v5344, 96
    %v6743 = vpop.permute.xlu0 %6742
    %6744 = vrot.lane.b32.xlu0 %v5427, 96
    %v6745 = vpop.permute.xlu0 %6744
    %6746 = vrot.lane.b32.xlu0 %v5429, 96
    %v6747 = vpop.permute.xlu0 %6746
    %6748 = vrot.lane.b32.xlu0 %v5432, 96
    %v6749 = vpop.permute.xlu0 %6748
    %6750 = vrot.lane.b32.xlu0 %v5434, 96
    %v6751 = vpop.permute.xlu0 %6750
    %6752 = vrot.lane.b32.xlu0 %v5437, 96
    %v6753 = vpop.permute.xlu0 %6752
    %6754 = vrot.lane.b32.xlu0 %v5439, 96
    %v6755 = vpop.permute.xlu0 %6754
    %6756 = vrot.lane.b32.xlu0 %v5442, 96
    %v6757 = vpop.permute.xlu0 %6756
    %6758 = vrot.lane.b32.xlu0 %v5444, 96
    %v6759 = vpop.permute.xlu0 %6758
    %6760 = vrot.lane.b32.xlu0 %v5447, 96
    %v6761 = vpop.permute.xlu0 %6760
    %6762 = vrot.lane.b32.xlu0 %v5449, 96
    %v6763 = vpop.permute.xlu0 %6762
    %6764 = vrot.lane.b32.xlu0 %v5452, 96
    %v6765 = vpop.permute.xlu0 %6764
    %6766 = vrot.lane.b32.xlu0 %v5454, 96
    %v6767 = vpop.permute.xlu0 %6766
    %6768 = vrot.lane.b32.xlu0 %v5457, 96
    %v6769 = vpop.permute.xlu0 %6768
    %6770 = vrot.lane.b32.xlu0 %v5459, 96
    %v6771 = vpop.permute.xlu0 %6770
    %6772 = vrot.lane.b32.xlu0 %v5462, 96
    %v6773 = vpop.permute.xlu0 %6772
    %6774 = vrot.lane.b32.xlu0 %v5464, 96
    %v6775 = vpop.permute.xlu0 %6774
    %6776 = vrot.lane.b32.xlu0 %v5467, 96
    %v6777 = vpop.permute.xlu0 %6776
    %6778 = vrot.lane.b32.xlu0 %v5469, 96
    %v6779 = vpop.permute.xlu0 %6778
    %6780 = vrot.lane.b32.xlu0 %v5472, 96
    %v6781 = vpop.permute.xlu0 %6780
    %6782 = vrot.lane.b32.xlu0 %v5474, 96
    %v6783 = vpop.permute.xlu0 %6782
    %6784 = vrot.lane.b32.xlu0 %v5477, 96
    %v6785 = vpop.permute.xlu0 %6784
    %6786 = vrot.lane.b32.xlu0 %v5479, 96
    %v6787 = vpop.permute.xlu0 %6786
    %6788 = vrot.lane.b32.xlu0 %v5482, 96
    %v6789 = vpop.permute.xlu0 %6788
    %6790 = vrot.lane.b32.xlu0 %v5484, 96
    %v6791 = vpop.permute.xlu0 %6790
    %6792 = vrot.lane.b32.xlu0 %v5487, 96
    %v6793 = vpop.permute.xlu0 %6792
    %6794 = vrot.lane.b32.xlu0 %v5489, 96
    %v6795 = vpop.permute.xlu0 %6794
    %6796 = vrot.lane.b32.xlu0 %v5492, 96
    %v6797 = vpop.permute.xlu0 %6796
    %6798 = vrot.lane.b32.xlu0 %v5494, 96
    %v6799 = vpop.permute.xlu0 %6798
    %6800 = vrot.lane.b32.xlu0 %v6225, 96
    %v6801 = vpop.permute.xlu0 %6800
    %6802 = vrot.lane.b32.xlu0 %v6227, 96
    %v6803 = vpop.permute.xlu0 %6802
    %v6928 = vsel %vm4126, %v354, %v5496
    %v6929 = vsel %vm4126, %v192, %v5498
    %v6930 = vsel %vm4126, %v5216, %v5500
    %v6931 = vsel %vm4126, %v5027, %v5502
    %v6932 = vsel %vm4126, %v5217, %v5504
    %v6933 = vsel %vm4126, %v5030, %v5506
    %v6934 = vsel %vm4126, %v5218, %v5508
    %v6935 = vsel %vm4126, %v5033, %v5510
    %v6936 = vsel %vm4126, %v5219, %v5512
    %v6937 = vsel %vm4126, %v5036, %v5514
    %v6938 = vsel %vm4126, %v5220, %v5516
    %v6939 = vsel %vm4126, %v5039, %v5518
    %v6940 = vsel %vm4126, %v5221, %v5520
    %v6941 = vsel %vm4126, %v5042, %v5522
    %v6942 = vsel %vm4126, %v5222, %v5524
    %v6943 = vsel %vm4126, %v5045, %v5526
    %v6944 = vsel %vm4126, %v5223, %v5528
    %v6945 = vsel %vm4126, %v5048, %v5530
    %v6946 = vsel %vm4126, %v5224, %v5532
    %v6947 = vsel %vm4126, %v5051, %v5534
    %v6948 = vsel %vm4126, %v5225, %v5536
    %v6949 = vsel %vm4126, %v5054, %v5538
    %v6950 = vsel %vm4126, %v5226, %v5540
    %v6951 = vsel %vm4126, %v5057, %v5542
    %v6952 = vsel %vm4126, %v5227, %v5544
    %v6953 = vsel %vm4126, %v5060, %v5546
    %v6954 = vsel %vm4126, %v5228, %v5548
    %v6955 = vsel %vm4126, %v5063, %v5550
    %v6956 = vsel %vm4126, %v5229, %v5552
    %v6957 = vsel %vm4126, %v5066, %v5554
    %v6958 = vsel %vm4126, %v5230, %v5556
    %v6959 = vsel %vm4126, %v5069, %v5558
    %v6960 = vsel %vm4126, %v5232, %v5560
    %v6961 = vsel %vm4126, %v5075, %v5562
    %v6962 = vsel %vm4126, %v5233, %v5564
    %v6963 = vsel %vm4126, %v5078, %v5566
    %v6964 = vsel %vm4126, %v5234, %v5568
    %v6965 = vsel %vm4126, %v5081, %v5570
    %v6966 = vsel %vm4126, %v5235, %v5572
    %v6967 = vsel %vm4126, %v5084, %v5574
    %v6968 = vsel %vm4126, %v5236, %v5576
    %v6969 = vsel %vm4126, %v5087, %v5578
    %v6970 = vsel %vm4126, %v5237, %v5580
    %v6971 = vsel %vm4126, %v5090, %v5582
    %v6972 = vsel %vm4126, %v5238, %v5584
    %v6973 = vsel %vm4126, %v5093, %v5586
    %v6974 = vsel %vm4126, %v5239, %v5588
    %v6975 = vsel %vm4126, %v5096, %v5590
    %v6976 = vsel %vm4126, %v5240, %v5592
    %v6977 = vsel %vm4126, %v5099, %v5594
    %v6978 = vsel %vm4126, %v5241, %v5596
    %v6979 = vsel %vm4126, %v5102, %v5598
    %v6980 = vsel %vm4126, %v5242, %v5600
    %v6981 = vsel %vm4126, %v5105, %v5602
    %v6982 = vsel %vm4126, %v5243, %v5604
    %v6983 = vsel %vm4126, %v5108, %v5606
    %v6984 = vsel %vm4126, %v5244, %v5608
    %v6985 = vsel %vm4126, %v5111, %v5610
    %v6986 = vsel %vm4126, %v5245, %v5612
    %v6987 = vsel %vm4126, %v5114, %v5614
    %v6988 = vsel %vm4126, %v5246, %v5616
    %v6989 = vsel %vm4126, %v5117, %v5618
    %vm6990 = vcmask 523264
    %v6991 = vsel %vm6990, %v6928, %v5837
    %v6992 = vsel %vm6990, %v6929, %v5839
    %v6993 = vsel %vm6990, %v6930, %v5841
    %v6994 = vsel %vm6990, %v6931, %v5843
    %v6995 = vsel %vm6990, %v6932, %v5845
    %v6996 = vsel %vm6990, %v6933, %v5847
    %v6997 = vsel %vm6990, %v6934, %v5849
    %v6998 = vsel %vm6990, %v6935, %v5851
    %v6999 = vsel %vm6990, %v6936, %v5853
    %v7000 = vsel %vm6990, %v6937, %v5855
    %v7001 = vsel %vm6990, %v6938, %v5857
    %v7002 = vsel %vm6990, %v6939, %v5859
    %v7003 = vsel %vm6990, %v6940, %v5861
    %v7004 = vsel %vm6990, %v6941, %v5863
    %v7005 = vsel %vm6990, %v6942, %v5865
    %v7006 = vsel %vm6990, %v6943, %v5867
    %v7007 = vsel %vm6990, %v6944, %v5869
    %v7008 = vsel %vm6990, %v6945, %v5871
    %v7009 = vsel %vm6990, %v6946, %v5873
    %v7010 = vsel %vm6990, %v6947, %v5875
    %v7011 = vsel %vm6990, %v6948, %v5877
    %v7012 = vsel %vm6990, %v6949, %v5879
    %v7013 = vsel %vm6990, %v6950, %v5881
    %v7014 = vsel %vm6990, %v6951, %v5883
    %v7015 = vsel %vm6990, %v6952, %v5885
    %v7016 = vsel %vm6990, %v6953, %v5887
    %v7017 = vsel %vm6990, %v6954, %v5889
    %v7018 = vsel %vm6990, %v6955, %v5891
    %v7019 = vsel %vm6990, %v6956, %v5893
    %v7020 = vsel %vm6990, %v6957, %v5895
    %v7021 = vsel %vm6990, %v6958, %v5897
    %v7022 = vsel %vm6990, %v6959, %v5899
    %v7023 = vsel %vm6990, %v6960, %v5901
    %v7024 = vsel %vm6990, %v6961, %v5903
    %v7025 = vsel %vm6990, %v6962, %v5905
    %v7026 = vsel %vm6990, %v6963, %v5907
    %v7027 = vsel %vm6990, %v6964, %v5909
    %v7028 = vsel %vm6990, %v6965, %v5911
    %v7029 = vsel %vm6990, %v6966, %v5913
    %v7030 = vsel %vm6990, %v6967, %v5915
    %v7031 = vsel %vm6990, %v6968, %v5917
    %v7032 = vsel %vm6990, %v6969, %v5919
    %v7033 = vsel %vm6990, %v6970, %v5921
    %v7034 = vsel %vm6990, %v6971, %v5923
    %v7035 = vsel %vm6990, %v6972, %v5925
    %v7036 = vsel %vm6990, %v6973, %v5927
    %v7037 = vsel %vm6990, %v6974, %v5929
    %v7038 = vsel %vm6990, %v6975, %v5931
    %v7039 = vsel %vm6990, %v6976, %v5933
    %v7040 = vsel %vm6990, %v6977, %v5935
    %v7041 = vsel %vm6990, %v6978, %v5937
    %v7042 = vsel %vm6990, %v6979, %v5939
    %v7043 = vsel %vm6990, %v6980, %v5941
    %v7044 = vsel %vm6990, %v6981, %v5943
    %v7045 = vsel %vm6990, %v6982, %v5945
    %v7046 = vsel %vm6990, %v6983, %v5947
    %v7047 = vsel %vm6990, %v6984, %v5949
    %v7048 = vsel %vm6990, %v6985, %v5951
    %v7049 = vsel %vm6990, %v6986, %v5953
    %v7050 = vsel %vm6990, %v6987, %v5955
    %v7051 = vsel %vm6990, %v6988, %v5957
    %v7052 = vsel %vm6990, %v6989, %v5959
    %vm7053 = vcmask 785408
    %v7054 = vsel %vm7053, %v6991, %v6025
    %v7055 = vsel %vm7053, %v6992, %v6027
    %v7056 = vsel %vm7053, %v6993, %v6029
    %v7057 = vsel %vm7053, %v6994, %v6031
    %v7058 = vsel %vm7053, %v6995, %v6033
    %v7059 = vsel %vm7053, %v6996, %v6035
    %v7060 = vsel %vm7053, %v6997, %v6037
    %v7061 = vsel %vm7053, %v6998, %v6039
    %v7062 = vsel %vm7053, %v6999, %v6041
    %v7063 = vsel %vm7053, %v7000, %v6043
    %v7064 = vsel %vm7053, %v7001, %v6045
    %v7065 = vsel %vm7053, %v7002, %v6047
    %v7066 = vsel %vm7053, %v7003, %v6049
    %v7067 = vsel %vm7053, %v7004, %v6051
    %v7068 = vsel %vm7053, %v7005, %v6053
    %v7069 = vsel %vm7053, %v7006, %v6055
    %v7070 = vsel %vm7053, %v7007, %v6057
    %v7071 = vsel %vm7053, %v7008, %v6059
    %v7072 = vsel %vm7053, %v7009, %v6061
    %v7073 = vsel %vm7053, %v7010, %v6063
    %v7074 = vsel %vm7053, %v7011, %v6065
    %v7075 = vsel %vm7053, %v7012, %v6067
    %v7076 = vsel %vm7053, %v7013, %v6069
    %v7077 = vsel %vm7053, %v7014, %v6071
    %v7078 = vsel %vm7053, %v7015, %v6073
    %v7079 = vsel %vm7053, %v7016, %v6075
    %v7080 = vsel %vm7053, %v7017, %v6077
    %v7081 = vsel %vm7053, %v7018, %v6079
    %v7082 = vsel %vm7053, %v7019, %v6081
    %v7083 = vsel %vm7053, %v7020, %v6083
    %v7084 = vsel %vm7053, %v7021, %v6085
    %v7085 = vsel %vm7053, %v7022, %v6087
    %v7086 = vsel %vm7053, %v6991, %v6089
    %v7087 = vsel %vm7053, %v6992, %v6091
    %v7088 = vsel %vm7053, %v7023, %v6093
    %v7089 = vsel %vm7053, %v7024, %v6095
    %v7090 = vsel %vm7053, %v7025, %v6097
    %v7091 = vsel %vm7053, %v7026, %v6099
    %v7092 = vsel %vm7053, %v7027, %v6101
    %v7093 = vsel %vm7053, %v7028, %v6103
    %v7094 = vsel %vm7053, %v7029, %v6105
    %v7095 = vsel %vm7053, %v7030, %v6107
    %v7096 = vsel %vm7053, %v7031, %v6109
    %v7097 = vsel %vm7053, %v7032, %v6111
    %v7098 = vsel %vm7053, %v7033, %v6113
    %v7099 = vsel %vm7053, %v7034, %v6115
    %v7100 = vsel %vm7053, %v7035, %v6117
    %v7101 = vsel %vm7053, %v7036, %v6119
    %v7102 = vsel %vm7053, %v7037, %v6121
    %v7103 = vsel %vm7053, %v7038, %v6123
    %v7104 = vsel %vm7053, %v7039, %v6125
    %v7105 = vsel %vm7053, %v7040, %v6127
    %v7106 = vsel %vm7053, %v7041, %v6129
    %v7107 = vsel %vm7053, %v7042, %v6131
    %v7108 = vsel %vm7053, %v7043, %v6133
    %v7109 = vsel %vm7053, %v7044, %v6135
    %v7110 = vsel %vm7053, %v7045, %v6137
    %v7111 = vsel %vm7053, %v7046, %v6139
    %v7112 = vsel %vm7053, %v7047, %v6141
    %v7113 = vsel %vm7053, %v7048, %v6143
    %v7114 = vsel %vm7053, %v7049, %v6145
    %v7115 = vsel %vm7053, %v7050, %v6147
    %v7116 = vsel %vm7053, %v7051, %v6149
    %v7117 = vsel %vm7053, %v7052, %v6151
    %v7118 = vsel %vm4126, %v5347, %v6303
    %v7119 = vsel %vm4126, %v5349, %v6305
    %v7120 = vsel %vm4126, %v5352, %v6307
    %v7121 = vsel %vm4126, %v5354, %v6309
    %v7122 = vsel %vm4126, %v5357, %v6311
    %v7123 = vsel %vm4126, %v5359, %v6313
    %v7124 = vsel %vm4126, %v5362, %v6315
    %v7125 = vsel %vm4126, %v5364, %v6317
    %v7126 = vsel %vm4126, %v5367, %v6319
    %v7127 = vsel %vm4126, %v5369, %v6321
    %v7128 = vsel %vm4126, %v5372, %v6323
    %v7129 = vsel %vm4126, %v5374, %v6325
    %v7130 = vsel %vm4126, %v5377, %v6327
    %v7131 = vsel %vm4126, %v5379, %v6329
    %v7132 = vsel %vm4126, %v5382, %v6331
    %v7133 = vsel %vm4126, %v5384, %v6333
    %v7134 = vsel %vm4126, %v5387, %v6335
    %v7135 = vsel %vm4126, %v5389, %v6337
    %v7136 = vsel %vm4126, %v5392, %v6339
    %v7137 = vsel %vm4126, %v5394, %v6341
    %v7138 = vsel %vm4126, %v5397, %v6343
    %v7139 = vsel %vm4126, %v5399, %v6345
    %v7140 = vsel %vm4126, %v5402, %v6347
    %v7141 = vsel %vm4126, %v5404, %v6349
    %v7142 = vsel %vm4126, %v5407, %v6351
    %v7143 = vsel %vm4126, %v5409, %v6353
    %v7144 = vsel %vm4126, %v5412, %v6355
    %v7145 = vsel %vm4126, %v5414, %v6357
    %v7146 = vsel %vm4126, %v5417, %v6359
    %v7147 = vsel %vm4126, %v5419, %v6361
    %v7148 = vsel %vm4126, %v6220, %v6363
    %v7149 = vsel %vm4126, %v6222, %v6365
    %v7150 = vsel %vm4126, %v5422, %v6367
    %v7151 = vsel %vm4126, %v5424, %v6369
    %v7152 = vsel %vm4126, %v5427, %v6371
    %v7153 = vsel %vm4126, %v5429, %v6373
    %v7154 = vsel %vm4126, %v5432, %v6375
    %v7155 = vsel %vm4126, %v5434, %v6377
    %v7156 = vsel %vm4126, %v5437, %v6379
    %v7157 = vsel %vm4126, %v5439, %v6381
    %v7158 = vsel %vm4126, %v5442, %v6383
    %v7159 = vsel %vm4126, %v5444, %v6385
    %v7160 = vsel %vm4126, %v5447, %v6387
    %v7161 = vsel %vm4126, %v5449, %v6389
    %v7162 = vsel %vm4126, %v5452, %v6391
    %v7163 = vsel %vm4126, %v5454, %v6393
    %v7164 = vsel %vm4126, %v5457, %v6395
    %v7165 = vsel %vm4126, %v5459, %v6397
    %v7166 = vsel %vm4126, %v5462, %v6399
    %v7167 = vsel %vm4126, %v5464, %v6401
    %v7168 = vsel %vm4126, %v5467, %v6403
    %v7169 = vsel %vm4126, %v5469, %v6405
    %v7170 = vsel %vm4126, %v5472, %v6407
    %v7171 = vsel %vm4126, %v5474, %v6409
    %v7172 = vsel %vm4126, %v5477, %v6411
    %v7173 = vsel %vm4126, %v5479, %v6413
    %v7174 = vsel %vm4126, %v5482, %v6415
    %v7175 = vsel %vm4126, %v5484, %v6417
    %v7176 = vsel %vm4126, %v5487, %v6419
    %v7177 = vsel %vm4126, %v5489, %v6421
    %v7178 = vsel %vm4126, %v5492, %v6423
    %v7179 = vsel %vm4126, %v5494, %v6425
    %v7180 = vsel %vm4126, %v6225, %v6427
    %v7181 = vsel %vm4126, %v6227, %v6429
    %v7182 = vsel %vm6990, %v7118, %v6495
    %v7183 = vsel %vm6990, %v7119, %v6497
    %v7184 = vsel %vm6990, %v7120, %v6499
    %v7185 = vsel %vm6990, %v7121, %v6501
    %v7186 = vsel %vm6990, %v7122, %v6503
    %v7187 = vsel %vm6990, %v7123, %v6505
    %v7188 = vsel %vm6990, %v7124, %v6507
    %v7189 = vsel %vm6990, %v7125, %v6509
    %v7190 = vsel %vm6990, %v7126, %v6511
    %v7191 = vsel %vm6990, %v7127, %v6513
    %v7192 = vsel %vm6990, %v7128, %v6515
    %v7193 = vsel %vm6990, %v7129, %v6517
    %v7194 = vsel %vm6990, %v7130, %v6519
    %v7195 = vsel %vm6990, %v7131, %v6521
    %v7196 = vsel %vm6990, %v7132, %v6523
    %v7197 = vsel %vm6990, %v7133, %v6525
    %v7198 = vsel %vm6990, %v7134, %v6527
    %v7199 = vsel %vm6990, %v7135, %v6529
    %v7200 = vsel %vm6990, %v7136, %v6531
    %v7201 = vsel %vm6990, %v7137, %v6533
    %v7202 = vsel %vm6990, %v7138, %v6535
    %v7203 = vsel %vm6990, %v7139, %v6537
    %v7204 = vsel %vm6990, %v7140, %v6539
    %v7205 = vsel %vm6990, %v7141, %v6541
    %v7206 = vsel %vm6990, %v7142, %v6543
    %v7207 = vsel %vm6990, %v7143, %v6545
    %v7208 = vsel %vm6990, %v7144, %v6547
    %v7209 = vsel %vm6990, %v7145, %v6549
    %v7210 = vsel %vm6990, %v7146, %v6551
    %v7211 = vsel %vm6990, %v7147, %v6553
    %v7212 = vsel %vm6990, %v7148, %v6555
    %v7213 = vsel %vm6990, %v7149, %v6557
    %v7214 = vsel %vm6990, %v7150, %v6559
    %v7215 = vsel %vm6990, %v7151, %v6561
    %v7216 = vsel %vm6990, %v7152, %v6563
    %v7217 = vsel %vm6990, %v7153, %v6565
    %v7218 = vsel %vm6990, %v7154, %v6567
    %v7219 = vsel %vm6990, %v7155, %v6569
    %v7220 = vsel %vm6990, %v7156, %v6571
    %v7221 = vsel %vm6990, %v7157, %v6573
    %v7222 = vsel %vm6990, %v7158, %v6575
    %v7223 = vsel %vm6990, %v7159, %v6577
    %v7224 = vsel %vm6990, %v7160, %v6579
    %v7225 = vsel %vm6990, %v7161, %v6581
    %v7226 = vsel %vm6990, %v7162, %v6583
    %v7227 = vsel %vm6990, %v7163, %v6585
    %v7228 = vsel %vm6990, %v7164, %v6587
    %v7229 = vsel %vm6990, %v7165, %v6589
    %v7230 = vsel %vm6990, %v7166, %v6591
    %v7231 = vsel %vm6990, %v7167, %v6593
    %v7232 = vsel %vm6990, %v7168, %v6595
    %v7233 = vsel %vm6990, %v7169, %v6597
    %v7234 = vsel %vm6990, %v7170, %v6599
    %v7235 = vsel %vm6990, %v7171, %v6601
    %v7236 = vsel %vm6990, %v7172, %v6603
    %v7237 = vsel %vm6990, %v7173, %v6605
    %v7238 = vsel %vm6990, %v7174, %v6607
    %v7239 = vsel %vm6990, %v7175, %v6609
    %v7240 = vsel %vm6990, %v7176, %v6611
    %v7241 = vsel %vm6990, %v7177, %v6613
    %v7242 = vsel %vm6990, %v7178, %v6615
    %v7243 = vsel %vm6990, %v7179, %v6617
    %v7244 = vsel %vm6990, %v7180, %v6555
    %v7245 = vsel %vm6990, %v7181, %v6557
    %v7246 = vsel %vm7053, %v7182, %v6681
    %v7247 = vsel %vm7053, %v7183, %v6683
    %v7248 = vsel %vm7053, %v7184, %v6685
    %v7249 = vsel %vm7053, %v7185, %v6687
    %v7250 = vsel %vm7053, %v7186, %v6689
    %v7251 = vsel %vm7053, %v7187, %v6691
    %v7252 = vsel %vm7053, %v7188, %v6693
    %v7253 = vsel %vm7053, %v7189, %v6695
    %v7254 = vsel %vm7053, %v7190, %v6697
    %v7255 = vsel %vm7053, %v7191, %v6699
    %v7256 = vsel %vm7053, %v7192, %v6701
    %v7257 = vsel %vm7053, %v7193, %v6703
    %v7258 = vsel %vm7053, %v7194, %v6705
    %v7259 = vsel %vm7053, %v7195, %v6707
    %v7260 = vsel %vm7053, %v7196, %v6709
    %v7261 = vsel %vm7053, %v7197, %v6711
    %v7262 = vsel %vm7053, %v7198, %v6713
    %v7263 = vsel %vm7053, %v7199, %v6715
    %v7264 = vsel %vm7053, %v7200, %v6717
    %v7265 = vsel %vm7053, %v7201, %v6719
    %v7266 = vsel %vm7053, %v7202, %v6721
    %v7267 = vsel %vm7053, %v7203, %v6723
    %v7268 = vsel %vm7053, %v7204, %v6725
    %v7269 = vsel %vm7053, %v7205, %v6727
    %v7270 = vsel %vm7053, %v7206, %v6729
    %v7271 = vsel %vm7053, %v7207, %v6731
    %v7272 = vsel %vm7053, %v7208, %v6733
    %v7273 = vsel %vm7053, %v7209, %v6735
    %v7274 = vsel %vm7053, %v7210, %v6737
    %v7275 = vsel %vm7053, %v7211, %v6739
    %v7276 = vsel %vm7053, %v7212, %v6741
    %v7277 = vsel %vm7053, %v7213, %v6743
    %v7278 = vsel %vm7053, %v7214, %v6745
    %v7279 = vsel %vm7053, %v7215, %v6747
    %v7280 = vsel %vm7053, %v7216, %v6749
    %v7281 = vsel %vm7053, %v7217, %v6751
    %v7282 = vsel %vm7053, %v7218, %v6753
    %v7283 = vsel %vm7053, %v7219, %v6755
    %v7284 = vsel %vm7053, %v7220, %v6757
    %v7285 = vsel %vm7053, %v7221, %v6759
    %v7286 = vsel %vm7053, %v7222, %v6761
    %v7287 = vsel %vm7053, %v7223, %v6763
    %v7288 = vsel %vm7053, %v7224, %v6765
    %v7289 = vsel %vm7053, %v7225, %v6767
    %v7290 = vsel %vm7053, %v7226, %v6769
    %v7291 = vsel %vm7053, %v7227, %v6771
    %v7292 = vsel %vm7053, %v7228, %v6773
    %v7293 = vsel %vm7053, %v7229, %v6775
    %v7294 = vsel %vm7053, %v7230, %v6777
    %v7295 = vsel %vm7053, %v7231, %v6779
    %v7296 = vsel %vm7053, %v7232, %v6781
    %v7297 = vsel %vm7053, %v7233, %v6783
    %v7298 = vsel %vm7053, %v7234, %v6785
    %v7299 = vsel %vm7053, %v7235, %v6787
    %v7300 = vsel %vm7053, %v7236, %v6789
    %v7301 = vsel %vm7053, %v7237, %v6791
    %v7302 = vsel %vm7053, %v7238, %v6793
    %v7303 = vsel %vm7053, %v7239, %v6795
    %v7304 = vsel %vm7053, %v7240, %v6797
    %v7305 = vsel %vm7053, %v7241, %v6799
    %v7306 = vsel %vm7053, %v7242, %v6801
    %v7307 = vsel %vm7053, %v7243, %v6803
    %v7308 = vsel %vm7053, %v7244, %v6741
    %v7309 = vsel %vm7053, %v7245, %v6743
    %v7310 = vpack.c.bf16 %v7055, %v7054
    %v7311 = vpack.c.bf16 %v7247, %v7246
    %v7312 = vpack.c.bf16 %v5695, %v5693
    %v7313 = vpack.c.bf16 %v7057, %v7056
    %v7314 = vpack.c.bf16 %v7249, %v7248
    %v7315 = vpack.c.bf16 %v5700, %v5698
    %v7316 = vpack.c.bf16 %v7059, %v7058
    %v7317 = vpack.c.bf16 %v7251, %v7250
    %v7318 = vpack.c.bf16 %v5705, %v5703
    %v7319 = vpack.c.bf16 %v7061, %v7060
    %v7320 = vpack.c.bf16 %v7253, %v7252
    %v7321 = vpack.c.bf16 %v5710, %v5708
    %v7322 = vpack.c.bf16 %v7063, %v7062
    %v7323 = vpack.c.bf16 %v7255, %v7254
    %v7324 = vpack.c.bf16 %v5715, %v5713
    %v7325 = vpack.c.bf16 %v7065, %v7064
    %v7326 = vpack.c.bf16 %v7257, %v7256
    %v7327 = vpack.c.bf16 %v5720, %v5718
    %v7328 = vpack.c.bf16 %v7067, %v7066
    %v7329 = vpack.c.bf16 %v7259, %v7258
    %v7330 = vpack.c.bf16 %v5725, %v5723
    %v7331 = vpack.c.bf16 %v7069, %v7068
    %v7332 = vpack.c.bf16 %v7261, %v7260
    %v7333 = vpack.c.bf16 %v5730, %v5728
    %v7334 = vpack.c.bf16 %v7071, %v7070
    %v7335 = vpack.c.bf16 %v7263, %v7262
    %v7336 = vpack.c.bf16 %v5735, %v5733
    %v7337 = vpack.c.bf16 %v7073, %v7072
    %v7338 = vpack.c.bf16 %v7265, %v7264
    %v7339 = vpack.c.bf16 %v5740, %v5738
    %v7340 = vpack.c.bf16 %v7075, %v7074
    %v7341 = vpack.c.bf16 %v7267, %v7266
    %v7342 = vpack.c.bf16 %v5745, %v5743
    %v7343 = vpack.c.bf16 %v7077, %v7076
    %v7344 = vpack.c.bf16 %v7269, %v7268
    %v7345 = vpack.c.bf16 %v5750, %v5748
    %v7346 = vpack.c.bf16 %v7079, %v7078
    %v7347 = vpack.c.bf16 %v7271, %v7270
    %v7348 = vpack.c.bf16 %v5755, %v5753
    %v7349 = vpack.c.bf16 %v7081, %v7080
    %v7350 = vpack.c.bf16 %v7273, %v7272
    %v7351 = vpack.c.bf16 %v5760, %v5758
    %v7352 = vpack.c.bf16 %v7083, %v7082
    %v7353 = vpack.c.bf16 %v7275, %v7274
    %v7354 = vpack.c.bf16 %v6296, %v6294
    %v7355 = vpack.c.bf16 %v7085, %v7084
    %v7356 = vpack.c.bf16 %v7277, %v7276
    %v7357 = vpack.c.bf16 %v5685, %v5683
    %v7358 = vpack.c.bf16 %v7087, %v7086
    %v7359 = vpack.c.bf16 %v7279, %v7278
    %v7360 = vpack.c.bf16 %v5770, %v5768
    %v7361 = vpack.c.bf16 %v7089, %v7088
    %v7362 = vpack.c.bf16 %v7281, %v7280
    %v7363 = vpack.c.bf16 %v5775, %v5773
    %v7364 = vpack.c.bf16 %v7091, %v7090
    %v7365 = vpack.c.bf16 %v7283, %v7282
    %v7366 = vpack.c.bf16 %v5780, %v5778
    %v7367 = vpack.c.bf16 %v7093, %v7092
    %v7368 = vpack.c.bf16 %v7285, %v7284
    %v7369 = vpack.c.bf16 %v5785, %v5783
    %v7370 = vpack.c.bf16 %v7095, %v7094
    %v7371 = vpack.c.bf16 %v7287, %v7286
    %v7372 = vpack.c.bf16 %v5790, %v5788
    %v7373 = vpack.c.bf16 %v7097, %v7096
    %v7374 = vpack.c.bf16 %v7289, %v7288
    %v7375 = vpack.c.bf16 %v5795, %v5793
    %v7376 = vpack.c.bf16 %v7099, %v7098
    %v7377 = vpack.c.bf16 %v7291, %v7290
    %v7378 = vpack.c.bf16 %v5800, %v5798
    %v7379 = vpack.c.bf16 %v7101, %v7100
    %v7380 = vpack.c.bf16 %v7293, %v7292
    %v7381 = vpack.c.bf16 %v5805, %v5803
    %v7382 = vpack.c.bf16 %v7103, %v7102
    %v7383 = vpack.c.bf16 %v7295, %v7294
    %v7384 = vpack.c.bf16 %v5810, %v5808
    %v7385 = vpack.c.bf16 %v7105, %v7104
    %v7386 = vpack.c.bf16 %v7297, %v7296
    %v7387 = vpack.c.bf16 %v5815, %v5813
    %v7388 = vpack.c.bf16 %v7107, %v7106
    %v7389 = vpack.c.bf16 %v7299, %v7298
    %v7390 = vpack.c.bf16 %v5820, %v5818
    %v7391 = vpack.c.bf16 %v7109, %v7108
    %v7392 = vpack.c.bf16 %v7301, %v7300
    %v7393 = vpack.c.bf16 %v5825, %v5823
    %v7394 = vpack.c.bf16 %v7111, %v7110
    %v7395 = vpack.c.bf16 %v7303, %v7302
    %v7396 = vpack.c.bf16 %v5830, %v5828
    %v7397 = vpack.c.bf16 %v7113, %v7112
    %v7398 = vpack.c.bf16 %v7305, %v7304
    %v7399 = vpack.c.bf16 %v5835, %v5833
    %v7400 = vpack.c.bf16 %v7115, %v7114
    %v7401 = vpack.c.bf16 %v7307, %v7306
    %v7402 = vpack.c.bf16 %v6301, %v6299
    %v7403 = vpack.c.bf16 %v7117, %v7116
    %v7404 = vpack.c.bf16 %v7309, %v7308
    %v7441 = vunpack.c.l.b16 %v4923
    %v7442 = vunpack.c.l.b16 %v4924
    %v7443 = vunpack.c.l.b16 %v4925
    %v7444 = vunpack.c.l.b16 %v4926
    %v7445 = vunpack.c.l.b16 %v4927
    %v7446 = vunpack.c.l.b16 %v4928
    %v7447 = vunpack.c.l.b16 %v4929
    %v7448 = vunpack.c.l.b16 %v4930
    %v7449 = vunpack.c.l.b16 %v4931
    %v7450 = vunpack.c.l.b16 %v4932
    %v7451 = vunpack.c.l.b16 %v4933
    %v7452 = vunpack.c.l.b16 %v4934
    %v7453 = vunpack.c.l.b16 %v4935
    %v7454 = vunpack.c.l.b16 %v4936
    %v7455 = vunpack.c.l.b16 %v4937
    %v7456 = vunpack.c.l.b16 %v4938
    %v7457 = vunpack.c.l.b16 %v4939
    %v7458 = vunpack.c.l.b16 %v4940
    %v7459 = vunpack.c.l.b16 %v4941
    %v7460 = vunpack.c.l.b16 %v4942
    %v7461 = vunpack.c.l.b16 %v4943
    %v7462 = vunpack.c.l.b16 %v4944
    %v7463 = vunpack.c.l.b16 %v4945
    %v7464 = vunpack.c.l.b16 %v4946
    %v7465 = vunpack.c.l.b16 %v4947
    %v7466 = vunpack.c.l.b16 %v4948
    %v7467 = vunpack.c.l.b16 %v4949
    %v7468 = vunpack.c.l.b16 %v4950
    %v7469 = vunpack.c.l.b16 %v4951
    %v7470 = vunpack.c.l.b16 %v4952
    %v7471 = vunpack.c.l.b16 %v4953
    %v7472 = vunpack.c.l.b16 %v4954
    %v7473 = vunpack.c.l.b16 %v4955
    %v7474 = vunpack.c.l.b16 %v4956
    %v7475 = vunpack.c.l.b16 %v4957
    %v7476 = vunpack.c.l.b16 %v4958
    %v7477 = vpack.c.b16 %v7442, %v7441
    %v7478 = vpack.c.b16 %v7444, %v7443
    %v7479 = vpack.c.b16 %v7446, %v7445
    %v7480 = vpack.c.b16 %v7448, %v7447
    %v7481 = vpack.c.b16 %v7450, %v7449
    %v7482 = vpack.c.b16 %v7452, %v7451
    %v7483 = vpack.c.b16 %v7454, %v7453
    %v7484 = vpack.c.b16 %v7456, %v7455
    %v7485 = vpack.c.b16 %v7458, %v7457
    %v7486 = vpack.c.b16 %v7460, %v7459
    %v7487 = vpack.c.b16 %v7462, %v7461
    %v7488 = vpack.c.b16 %v7464, %v7463
    %v7489 = vpack.c.b16 %v7466, %v7465
    %v7490 = vpack.c.b16 %v7468, %v7467
    %v7491 = vpack.c.b16 %v7470, %v7469
    %v7492 = vpack.c.b16 %v7472, %v7471
    %v7493 = vpack.c.b16 %v7474, %v7473
    %v7494 = vpack.c.b16 %v7476, %v7475
    %v7514 = vsel %vm4126, %v7312, 0
    %v7517 = vsel %vm4126, %v7315, 0
    %v7520 = vsel %vm4126, %v7318, 0
    %v7523 = vsel %vm4126, %v7321, 0
    %v7526 = vsel %vm4126, %v7324, 0
    %v7529 = vsel %vm4126, %v7327, 0
    %v7532 = vsel %vm4126, %v7330, 0
    %v7535 = vsel %vm4126, %v7333, 0
    %v7538 = vsel %vm4126, %v7336, 0
    %v7541 = vsel %vm4126, %v7339, 0
    %v7544 = vsel %vm4126, %v7342, 0
    %v7547 = vsel %vm4126, %v7345, 0
    %v7550 = vsel %vm4126, %v7348, 0
    %v7553 = vsel %vm4126, %v7351, 0
    %v7556 = vsel %vm4126, %v7354, 0
    %v7559 = vsel %vm4126, %v7357, 0
    %v7562 = vsel %vm4126, %v7360, 0
    %v7565 = vsel %vm4126, %v7363, 0
    %v7568 = vsel %vm4126, %v7366, 0
    %v7571 = vsel %vm4126, %v7369, 0
    %v7574 = vsel %vm4126, %v7372, 0
    %v7577 = vsel %vm4126, %v7375, 0
    %v7580 = vsel %vm4126, %v7378, 0
    %v7583 = vsel %vm4126, %v7381, 0
    %v7586 = vsel %vm4126, %v7384, 0
    %v7589 = vsel %vm4126, %v7387, 0
    %v7592 = vsel %vm4126, %v7390, 0
    %v7595 = vsel %vm4126, %v7393, 0
    %v7598 = vsel %vm4126, %v7396, 0
    %v7601 = vsel %vm4126, %v7399, 0
    %v7604 = vsel %vm4126, %v7402, 0
    %7606 = vmatprep.subr.bf16.mxu0 0
    %7607 = vmatpush1.bf16.msra.mxu0 %v7477
    %7608 = vmatprep.subr.bf16.mxu0 0
    %7609 = vmatpush1.bf16.msra.mxu0 %v7478
    %7610 = vmatprep.subr.bf16.mxu0 0
    %7611 = vmatpush1.bf16.msra.mxu0 %v7479
    %7612 = vmatprep.subr.bf16.mxu0 0
    %7613 = vmatpush1.bf16.msra.mxu0 %v7480
    %7614 = vmatprep.subr.bf16.mxu0 0
    %7615 = vmatpush1.bf16.msra.mxu0 %v7481
    %7616 = vmatprep.subr.bf16.mxu0 0
    %7617 = vmatpush1.bf16.msra.mxu0 %v7482
    %7618 = vmatprep.subr.bf16.mxu0 0
    %7619 = vmatpush1.bf16.msra.mxu0 %v7483
    %7620 = vmatprep.subr.bf16.mxu0 0
    %7621 = vmatpush1.bf16.msra.mxu0 %v7484
    %7622 = vmatprep.subr.bf16.mxu0 0
    %7623 = vmatpush1.bf16.msra.mxu0 %v7485
    %7624 = vmatprep.subr.bf16.mxu0 0
    %7625 = vmatpush1.bf16.msra.mxu0 %v7486
    %7626 = vmatprep.subr.bf16.mxu0 0
    %7627 = vmatpush1.bf16.msra.mxu0 %v7487
    %7628 = vmatprep.subr.bf16.mxu0 0
    %7629 = vmatpush1.bf16.msra.mxu0 %v7488
    %7630 = vmatprep.subr.bf16.mxu0 0
    %7631 = vmatpush1.bf16.msra.mxu0 %v7489
    %7632 = vmatprep.subr.bf16.mxu0 0
    %7633 = vmatpush1.bf16.msra.mxu0 %v7490
    %7634 = vmatprep.subr.bf16.mxu0 0
    %7635 = vmatpush1.bf16.msra.mxu0 %v7491
    %7636 = vmatprep.subr.bf16.mxu0 0
    %7637 = vmatpush1.bf16.msra.mxu0 %v7492
    %7638 = vmatprep.mubr.bf16.mxu0 %v7311
    %7639 = vmatmul.mubr.bf16.gmra.mrb[0].mxu0 %v7310
    %v7640 = vpop.f32.mrb[0].mxu0
    %v7641 = vadd.f32 0.0, %v7640
    %v7642 = vpop.f32.mrb[0].mxu0
    %v7643 = vpop.f32.mrb[0].mxu0
    %v7644 = vadd.f32 0.0, %v7643
    %v7645 = vpop.f32.mrb[0].mxu0
    %7646 = vmatprep.mubr.bf16.mxu0 %v7314
    %7647 = vmatmul.mubr.bf16.gmra.mrb[0].mxu0 %v7313
    %v7648 = vpop.f32.mrb[0].mxu0
    %v7649 = vadd.f32 0.0, %v7648
    %v7650 = vpop.f32.mrb[0].mxu0
    %v7651 = vpop.f32.mrb[0].mxu0
    %v7652 = vadd.f32 0.0, %v7651
    %v7653 = vpop.f32.mrb[0].mxu0
    %7654 = vmatprep.mubr.bf16.mxu0 %v7317
    %7655 = vmatmul.mubr.bf16.gmra.mrb[0].mxu0 %v7316
    %v7656 = vpop.f32.mrb[0].mxu0
    %v7657 = vadd.f32 0.0, %v7656
    %v7658 = vpop.f32.mrb[0].mxu0
    %v7659 = vpop.f32.mrb[0].mxu0
    %v7660 = vadd.f32 0.0, %v7659
    %v7661 = vpop.f32.mrb[0].mxu0
    %7662 = vmatprep.mubr.bf16.mxu0 %v7320
    %7663 = vmatmul.mubr.bf16.gmra.mrb[0].mxu0 %v7319
    %v7664 = vpop.f32.mrb[0].mxu0
    %v7665 = vadd.f32 0.0, %v7664
    %v7666 = vpop.f32.mrb[0].mxu0
    %v7667 = vpop.f32.mrb[0].mxu0
    %v7668 = vadd.f32 0.0, %v7667
    %v7669 = vpop.f32.mrb[0].mxu0
    %7670 = vmatprep.mubr.bf16.mxu0 %v7323
    %7671 = vmatmul.mubr.bf16.gmra.mrb[0].mxu0 %v7322
    %v7672 = vpop.f32.mrb[0].mxu0
    %v7673 = vadd.f32 0.0, %v7672
    %v7674 = vpop.f32.mrb[0].mxu0
    %v7675 = vpop.f32.mrb[0].mxu0
    %v7676 = vadd.f32 0.0, %v7675
    %v7677 = vpop.f32.mrb[0].mxu0
    %7678 = vmatprep.mubr.bf16.mxu0 %v7326
    %7679 = vmatmul.mubr.bf16.gmra.mrb[0].mxu0 %v7325
    %v7680 = vpop.f32.mrb[0].mxu0
    %v7681 = vadd.f32 0.0, %v7680
    %v7682 = vpop.f32.mrb[0].mxu0
    %v7683 = vpop.f32.mrb[0].mxu0
    %v7684 = vadd.f32 0.0, %v7683
    %v7685 = vpop.f32.mrb[0].mxu0
    %7686 = vmatprep.mubr.bf16.mxu0 %v7329
    %7687 = vmatmul.mubr.bf16.gmra.mrb[0].mxu0 %v7328
    %v7688 = vpop.f32.mrb[0].mxu0
    %v7689 = vadd.f32 0.0, %v7688
    %v7690 = vpop.f32.mrb[0].mxu0
    %v7691 = vpop.f32.mrb[0].mxu0
    %v7692 = vadd.f32 0.0, %v7691
    %v7693 = vpop.f32.mrb[0].mxu0
    %7694 = vmatprep.mubr.bf16.mxu0 %v7332
    %7695 = vmatmul.mubr.bf16.gmra.mrb[0].mxu0 %v7331
    %v7696 = vpop.f32.mrb[0].mxu0
    %v7697 = vadd.f32 0.0, %v7696
    %v7698 = vpop.f32.mrb[0].mxu0
    %v7699 = vpop.f32.mrb[0].mxu0
    %v7700 = vadd.f32 0.0, %v7699
    %v7701 = vpop.f32.mrb[0].mxu0
    %7702 = vmatprep.mubr.bf16.mxu0 %v7335
    %7703 = vmatmul.mubr.bf16.gmra.mrb[0].mxu0 %v7334
    %v7704 = vpop.f32.mrb[0].mxu0
    %v7705 = vadd.f32 0.0, %v7704
    %v7706 = vpop.f32.mrb[0].mxu0
    %v7707 = vpop.f32.mrb[0].mxu0
    %v7708 = vadd.f32 0.0, %v7707
    %v7709 = vpop.f32.mrb[0].mxu0
    %7710 = vmatprep.mubr.bf16.mxu0 %v7338
    %7711 = vmatmul.mubr.bf16.gmra.mrb[0].mxu0 %v7337
    %v7712 = vpop.f32.mrb[0].mxu0
    %v7713 = vadd.f32 0.0, %v7712
    %v7714 = vpop.f32.mrb[0].mxu0
    %v7715 = vpop.f32.mrb[0].mxu0
    %v7716 = vadd.f32 0.0, %v7715
    %v7717 = vpop.f32.mrb[0].mxu0
    %7718 = vmatprep.mubr.bf16.mxu0 %v7341
    %7719 = vmatmul.mubr.bf16.gmra.mrb[0].mxu0 %v7340
    %v7720 = vpop.f32.mrb[0].mxu0
    %v7721 = vadd.f32 0.0, %v7720
    %v7722 = vpop.f32.mrb[0].mxu0
    %v7723 = vpop.f32.mrb[0].mxu0
    %v7724 = vadd.f32 0.0, %v7723
    %v7725 = vpop.f32.mrb[0].mxu0
    %7726 = vmatprep.mubr.bf16.mxu0 %v7344
    %7727 = vmatmul.mubr.bf16.gmra.mrb[0].mxu0 %v7343
    %v7728 = vpop.f32.mrb[0].mxu0
    %v7729 = vadd.f32 0.0, %v7728
    %v7730 = vpop.f32.mrb[0].mxu0
    %v7731 = vpop.f32.mrb[0].mxu0
    %v7732 = vadd.f32 0.0, %v7731
    %v7733 = vpop.f32.mrb[0].mxu0
    %7734 = vmatprep.mubr.bf16.mxu0 %v7347
    %7735 = vmatmul.mubr.bf16.gmra.mrb[0].mxu0 %v7346
    %v7736 = vpop.f32.mrb[0].mxu0
    %v7737 = vadd.f32 0.0, %v7736
    %v7738 = vpop.f32.mrb[0].mxu0
    %v7739 = vpop.f32.mrb[0].mxu0
    %v7740 = vadd.f32 0.0, %v7739
    %v7741 = vpop.f32.mrb[0].mxu0
    %7742 = vmatprep.mubr.bf16.mxu0 %v7350
    %7743 = vmatmul.mubr.bf16.gmra.mrb[0].mxu0 %v7349
    %v7744 = vpop.f32.mrb[0].mxu0
    %v7745 = vadd.f32 0.0, %v7744
    %v7746 = vpop.f32.mrb[0].mxu0
    %v7747 = vpop.f32.mrb[0].mxu0
    %v7748 = vadd.f32 0.0, %v7747
    %v7749 = vpop.f32.mrb[0].mxu0
    %7750 = vmatprep.mubr.bf16.mxu0 %v7353
    %7751 = vmatmul.mubr.bf16.gmra.mrb[0].mxu0 %v7352
    %v7752 = vpop.f32.mrb[0].mxu0
    %v7753 = vadd.f32 0.0, %v7752
    %v7754 = vpop.f32.mrb[0].mxu0
    %v7755 = vpop.f32.mrb[0].mxu0
    %v7756 = vadd.f32 0.0, %v7755
    %v7757 = vpop.f32.mrb[0].mxu0
    %7758 = vmatprep.mubr.bf16.mxu0 %v7356
    %7759 = vmatmul.mubr.bf16.gmra.mrb[0].mxu0 %v7355
    %v7760 = vpop.f32.mrb[0].mxu0
    %v7761 = vadd.f32 0.0, %v7760
    %v7762 = vpop.f32.mrb[0].mxu0
    %v7763 = vpop.f32.mrb[0].mxu0
    %v7764 = vadd.f32 0.0, %v7763
    %v7765 = vpop.f32.mrb[0].mxu0
    %7766 = vmatprep.mubr.bf16.mxu0 %v7359
    %7767 = vmatmul.mubr.bf16.gmra.mrb[0].mxu0 %v7358
    %v7768 = vpop.f32.mrb[0].mxu0
    %v7769 = vadd.f32 0.0, %v7768
    %v7770 = vpop.f32.mrb[0].mxu0
    %v7771 = vpop.f32.mrb[0].mxu0
    %v7772 = vadd.f32 0.0, %v7771
    %v7773 = vpop.f32.mrb[0].mxu0
    %7774 = vmatprep.mubr.bf16.mxu0 %v7362
    %7775 = vmatmul.mubr.bf16.gmra.mrb[0].mxu0 %v7361
    %v7776 = vpop.f32.mrb[0].mxu0
    %v7777 = vadd.f32 0.0, %v7776
    %v7778 = vpop.f32.mrb[0].mxu0
    %v7779 = vpop.f32.mrb[0].mxu0
    %v7780 = vadd.f32 0.0, %v7779
    %v7781 = vpop.f32.mrb[0].mxu0
    %7782 = vmatprep.mubr.bf16.mxu0 %v7365
    %7783 = vmatmul.mubr.bf16.gmra.mrb[0].mxu0 %v7364
    %v7784 = vpop.f32.mrb[0].mxu0
    %v7785 = vadd.f32 0.0, %v7784
    %v7786 = vpop.f32.mrb[0].mxu0
    %v7787 = vpop.f32.mrb[0].mxu0
    %v7788 = vadd.f32 0.0, %v7787
    %v7789 = vpop.f32.mrb[0].mxu0
    %7790 = vmatprep.mubr.bf16.mxu0 %v7368
    %7791 = vmatmul.mubr.bf16.gmra.mrb[0].mxu0 %v7367
    %v7792 = vpop.f32.mrb[0].mxu0
    %v7793 = vadd.f32 0.0, %v7792
    %v7794 = vpop.f32.mrb[0].mxu0
    %v7795 = vpop.f32.mrb[0].mxu0
    %v7796 = vadd.f32 0.0, %v7795
    %v7797 = vpop.f32.mrb[0].mxu0
    %7798 = vmatprep.mubr.bf16.mxu0 %v7371
    %7799 = vmatmul.mubr.bf16.gmra.mrb[0].mxu0 %v7370
    %v7800 = vpop.f32.mrb[0].mxu0
    %v7801 = vadd.f32 0.0, %v7800
    %v7802 = vpop.f32.mrb[0].mxu0
    %v7803 = vpop.f32.mrb[0].mxu0
    %v7804 = vadd.f32 0.0, %v7803
    %v7805 = vpop.f32.mrb[0].mxu0
    %7806 = vmatprep.mubr.bf16.mxu0 %v7374
    %7807 = vmatmul.mubr.bf16.gmra.mrb[0].mxu0 %v7373
    %v7808 = vpop.f32.mrb[0].mxu0
    %v7809 = vadd.f32 0.0, %v7808
    %v7810 = vpop.f32.mrb[0].mxu0
    %v7811 = vpop.f32.mrb[0].mxu0
    %v7812 = vadd.f32 0.0, %v7811
    %v7813 = vpop.f32.mrb[0].mxu0
    %7814 = vmatprep.mubr.bf16.mxu0 %v7377
    %7815 = vmatmul.mubr.bf16.gmra.mrb[0].mxu0 %v7376
    %v7816 = vpop.f32.mrb[0].mxu0
    %v7817 = vadd.f32 0.0, %v7816
    %v7818 = vpop.f32.mrb[0].mxu0
    %v7819 = vpop.f32.mrb[0].mxu0
    %v7820 = vadd.f32 0.0, %v7819
    %v7821 = vpop.f32.mrb[0].mxu0
    %7822 = vmatprep.mubr.bf16.mxu0 %v7380
    %7823 = vmatmul.mubr.bf16.gmra.mrb[0].mxu0 %v7379
    %v7824 = vpop.f32.mrb[0].mxu0
    %v7825 = vadd.f32 0.0, %v7824
    %v7826 = vpop.f32.mrb[0].mxu0
    %v7827 = vpop.f32.mrb[0].mxu0
    %v7828 = vadd.f32 0.0, %v7827
    %v7829 = vpop.f32.mrb[0].mxu0
    %7830 = vmatprep.mubr.bf16.mxu0 %v7383
    %7831 = vmatmul.mubr.bf16.gmra.mrb[0].mxu0 %v7382
    %v7832 = vpop.f32.mrb[0].mxu0
    %v7833 = vadd.f32 0.0, %v7832
    %v7834 = vpop.f32.mrb[0].mxu0
    %v7835 = vpop.f32.mrb[0].mxu0
    %v7836 = vadd.f32 0.0, %v7835
    %v7837 = vpop.f32.mrb[0].mxu0
    %7838 = vmatprep.mubr.bf16.mxu0 %v7386
    %7839 = vmatmul.mubr.bf16.gmra.mrb[0].mxu0 %v7385
    %v7840 = vpop.f32.mrb[0].mxu0
    %v7841 = vadd.f32 0.0, %v7840
    %v7842 = vpop.f32.mrb[0].mxu0
    %v7843 = vpop.f32.mrb[0].mxu0
    %v7844 = vadd.f32 0.0, %v7843
    %v7845 = vpop.f32.mrb[0].mxu0
    %7846 = vmatprep.mubr.bf16.mxu0 %v7389
    %7847 = vmatmul.mubr.bf16.gmra.mrb[0].mxu0 %v7388
    %v7848 = vpop.f32.mrb[0].mxu0
    %v7849 = vadd.f32 0.0, %v7848
    %v7850 = vpop.f32.mrb[0].mxu0
    %v7851 = vpop.f32.mrb[0].mxu0
    %v7852 = vadd.f32 0.0, %v7851
    %v7853 = vpop.f32.mrb[0].mxu0
    %7854 = vmatprep.mubr.bf16.mxu0 %v7392
    %7855 = vmatmul.mubr.bf16.gmra.mrb[0].mxu0 %v7391
    %v7856 = vpop.f32.mrb[0].mxu0
    %v7857 = vadd.f32 0.0, %v7856
    %v7858 = vpop.f32.mrb[0].mxu0
    %v7859 = vpop.f32.mrb[0].mxu0
    %v7860 = vadd.f32 0.0, %v7859
    %v7861 = vpop.f32.mrb[0].mxu0
    %7862 = vmatprep.mubr.bf16.mxu0 %v7395
    %7863 = vmatmul.mubr.bf16.gmra.mrb[0].mxu0 %v7394
    %v7864 = vpop.f32.mrb[0].mxu0
    %v7865 = vadd.f32 0.0, %v7864
    %v7866 = vpop.f32.mrb[0].mxu0
    %v7867 = vpop.f32.mrb[0].mxu0
    %v7868 = vadd.f32 0.0, %v7867
    %v7869 = vpop.f32.mrb[0].mxu0
    %7870 = vmatprep.mubr.bf16.mxu0 %v7398
    %7871 = vmatmul.mubr.bf16.gmra.mrb[0].mxu0 %v7397
    %v7872 = vpop.f32.mrb[0].mxu0
    %v7873 = vadd.f32 0.0, %v7872
    %v7874 = vpop.f32.mrb[0].mxu0
    %v7875 = vpop.f32.mrb[0].mxu0
    %v7876 = vadd.f32 0.0, %v7875
    %v7877 = vpop.f32.mrb[0].mxu0
    %7878 = vmatprep.mubr.bf16.mxu0 %v7401
    %7879 = vmatmul.mubr.bf16.gmra.mrb[0].mxu0 %v7400
    %v7880 = vpop.f32.mrb[0].mxu0
    %v7881 = vadd.f32 0.0, %v7880
    %v7882 = vpop.f32.mrb[0].mxu0
    %v7883 = vpop.f32.mrb[0].mxu0
    %v7884 = vadd.f32 0.0, %v7883
    %v7885 = vpop.f32.mrb[0].mxu0
    %7886 = vmatprep.mubr.bf16.mxu0 %v7404
    %7887 = vmatmul.mubr.bf16.gmra.mrb[0].mxu0 %v7403
    %v7888 = vpop.f32.mrb[0].mxu0
    %v7889 = vadd.f32 0.0, %v7888
    %v7890 = vpop.f32.mrb[0].mxu0
    %v7891 = vpop.f32.mrb[0].mxu0
    %v7892 = vadd.f32 0.0, %v7891
    %v7893 = vpop.f32.mrb[0].mxu0
    %7894 = vdwg.mxu0
    %7895 = vmatprep.subr.bf16.mxu0 0
    %7896 = vmatpush1.bf16.msra.mxu0 %v7493
    %7897 = vmatprep.subr.bf16.mxu0 0
    %7898 = vmatpush1.bf16.msra.mxu0 %v7494
    %7899 = vmatprep.subr.bf16.mxu0 0
    %7900 = vmatpush1.bf16.msra.mxu0 0
    %7901 = vmatprep.subr.bf16.mxu0 0
    %7902 = vmatpush1.bf16.msra.mxu0 0
    %7903 = vmatprep.subr.bf16.mxu0 0
    %7904 = vmatpush1.bf16.msra.mxu0 0
    %7905 = vmatprep.subr.bf16.mxu0 0
    %7906 = vmatpush1.bf16.msra.mxu0 0
    %7907 = vmatprep.subr.bf16.mxu0 0
    %7908 = vmatpush1.bf16.msra.mxu0 0
    %7909 = vmatprep.subr.bf16.mxu0 0
    %7910 = vmatpush1.bf16.msra.mxu0 0
    %7911 = vmatprep.subr.bf16.mxu0 0
    %7912 = vmatpush1.bf16.msra.mxu0 0
    %7913 = vmatprep.subr.bf16.mxu0 0
    %7914 = vmatpush1.bf16.msra.mxu0 0
    %7915 = vmatprep.subr.bf16.mxu0 0
    %7916 = vmatpush1.bf16.msra.mxu0 0
    %7917 = vmatprep.subr.bf16.mxu0 0
    %7918 = vmatpush1.bf16.msra.mxu0 0
    %7919 = vmatprep.subr.bf16.mxu0 0
    %7920 = vmatpush1.bf16.msra.mxu0 0
    %7921 = vmatprep.subr.bf16.mxu0 0
    %7922 = vmatpush1.bf16.msra.mxu0 0
    %7923 = vmatprep.subr.bf16.mxu0 0
    %7924 = vmatpush1.bf16.msra.mxu0 0
    %7925 = vmatprep.subr.bf16.mxu0 0
    %7926 = vmatpush1.bf16.msra.mxu0 0
    %7927 = vmatprep.mubr.bf16.mxu0 0
    %7928 = vmatmul.mubr.bf16.gmra.mrb[0].mxu0 %v7514
    %v7929 = vpop.f32.mrb[0].mxu0
    %v7930 = vadd.f32 %v7641, %v7929
    %v7931 = vpop.f32.mrb[0].mxu0
    %v7932 = vpop.f32.mrb[0].mxu0
    %v7933 = vadd.f32 %v7644, %v7932
    %v7934 = vpop.f32.mrb[0].mxu0
    %7935 = vmatprep.mubr.bf16.mxu0 0
    %7936 = vmatmul.mubr.bf16.gmra.mrb[0].mxu0 %v7517
    %v7937 = vpop.f32.mrb[0].mxu0
    %v7938 = vadd.f32 %v7649, %v7937
    %v7939 = vpop.f32.mrb[0].mxu0
    %v7940 = vpop.f32.mrb[0].mxu0
    %v7941 = vadd.f32 %v7652, %v7940
    %v7942 = vpop.f32.mrb[0].mxu0
    %7943 = vmatprep.mubr.bf16.mxu0 0
    %7944 = vmatmul.mubr.bf16.gmra.mrb[0].mxu0 %v7520
    %v7945 = vpop.f32.mrb[0].mxu0
    %v7946 = vadd.f32 %v7657, %v7945
    %v7947 = vpop.f32.mrb[0].mxu0
    %v7948 = vpop.f32.mrb[0].mxu0
    %v7949 = vadd.f32 %v7660, %v7948
    %v7950 = vpop.f32.mrb[0].mxu0
    %7951 = vmatprep.mubr.bf16.mxu0 0
    %7952 = vmatmul.mubr.bf16.gmra.mrb[0].mxu0 %v7523
    %v7953 = vpop.f32.mrb[0].mxu0
    %v7954 = vadd.f32 %v7665, %v7953
    %v7955 = vpop.f32.mrb[0].mxu0
    %v7956 = vpop.f32.mrb[0].mxu0
    %v7957 = vadd.f32 %v7668, %v7956
    %v7958 = vpop.f32.mrb[0].mxu0
    %7959 = vmatprep.mubr.bf16.mxu0 0
    %7960 = vmatmul.mubr.bf16.gmra.mrb[0].mxu0 %v7526
    %v7961 = vpop.f32.mrb[0].mxu0
    %v7962 = vadd.f32 %v7673, %v7961
    %v7963 = vpop.f32.mrb[0].mxu0
    %v7964 = vpop.f32.mrb[0].mxu0
    %v7965 = vadd.f32 %v7676, %v7964
    %v7966 = vpop.f32.mrb[0].mxu0
    %7967 = vmatprep.mubr.bf16.mxu0 0
    %7968 = vmatmul.mubr.bf16.gmra.mrb[0].mxu0 %v7529
    %v7969 = vpop.f32.mrb[0].mxu0
    %v7970 = vadd.f32 %v7681, %v7969
    %v7971 = vpop.f32.mrb[0].mxu0
    %v7972 = vpop.f32.mrb[0].mxu0
    %v7973 = vadd.f32 %v7684, %v7972
    %v7974 = vpop.f32.mrb[0].mxu0
    %7975 = vmatprep.mubr.bf16.mxu0 0
    %7976 = vmatmul.mubr.bf16.gmra.mrb[0].mxu0 %v7532
    %v7977 = vpop.f32.mrb[0].mxu0
    %v7978 = vadd.f32 %v7689, %v7977
    %v7979 = vpop.f32.mrb[0].mxu0
    %v7980 = vpop.f32.mrb[0].mxu0
    %v7981 = vadd.f32 %v7692, %v7980
    %v7982 = vpop.f32.mrb[0].mxu0
    %7983 = vmatprep.mubr.bf16.mxu0 0
    %7984 = vmatmul.mubr.bf16.gmra.mrb[0].mxu0 %v7535
    %v7985 = vpop.f32.mrb[0].mxu0
    %v7986 = vadd.f32 %v7697, %v7985
    %v7987 = vpop.f32.mrb[0].mxu0
    %v7988 = vpop.f32.mrb[0].mxu0
    %v7989 = vadd.f32 %v7700, %v7988
    %v7990 = vpop.f32.mrb[0].mxu0
    %7991 = vmatprep.mubr.bf16.mxu0 0
    %7992 = vmatmul.mubr.bf16.gmra.mrb[0].mxu0 %v7538
    %v7993 = vpop.f32.mrb[0].mxu0
    %v7994 = vadd.f32 %v7705, %v7993
    %v7995 = vpop.f32.mrb[0].mxu0
    %v7996 = vpop.f32.mrb[0].mxu0
    %v7997 = vadd.f32 %v7708, %v7996
    %v7998 = vpop.f32.mrb[0].mxu0
    %7999 = vmatprep.mubr.bf16.mxu0 0
    %8000 = vmatmul.mubr.bf16.gmra.mrb[0].mxu0 %v7541
    %v8001 = vpop.f32.mrb[0].mxu0
    %v8002 = vadd.f32 %v7713, %v8001
    %v8003 = vpop.f32.mrb[0].mxu0
    %v8004 = vpop.f32.mrb[0].mxu0
    %v8005 = vadd.f32 %v7716, %v8004
    %v8006 = vpop.f32.mrb[0].mxu0
    %8007 = vmatprep.mubr.bf16.mxu0 0
    %8008 = vmatmul.mubr.bf16.gmra.mrb[0].mxu0 %v7544
    %v8009 = vpop.f32.mrb[0].mxu0
    %v8010 = vadd.f32 %v7721, %v8009
    %v8011 = vpop.f32.mrb[0].mxu0
    %v8012 = vpop.f32.mrb[0].mxu0
    %v8013 = vadd.f32 %v7724, %v8012
    %v8014 = vpop.f32.mrb[0].mxu0
    %8015 = vmatprep.mubr.bf16.mxu0 0
    %8016 = vmatmul.mubr.bf16.gmra.mrb[0].mxu0 %v7547
    %v8017 = vpop.f32.mrb[0].mxu0
    %v8018 = vadd.f32 %v7729, %v8017
    %v8019 = vpop.f32.mrb[0].mxu0
    %v8020 = vpop.f32.mrb[0].mxu0
    %v8021 = vadd.f32 %v7732, %v8020
    %v8022 = vpop.f32.mrb[0].mxu0
    %8023 = vmatprep.mubr.bf16.mxu0 0
    %8024 = vmatmul.mubr.bf16.gmra.mrb[0].mxu0 %v7550
    %v8025 = vpop.f32.mrb[0].mxu0
    %v8026 = vadd.f32 %v7737, %v8025
    %v8027 = vpop.f32.mrb[0].mxu0
    %v8028 = vpop.f32.mrb[0].mxu0
    %v8029 = vadd.f32 %v7740, %v8028
    %v8030 = vpop.f32.mrb[0].mxu0
    %8031 = vmatprep.mubr.bf16.mxu0 0
    %8032 = vmatmul.mubr.bf16.gmra.mrb[0].mxu0 %v7553
    %v8033 = vpop.f32.mrb[0].mxu0
    %v8034 = vadd.f32 %v7745, %v8033
    %v8035 = vpop.f32.mrb[0].mxu0
    %v8036 = vpop.f32.mrb[0].mxu0
    %v8037 = vadd.f32 %v7748, %v8036
    %v8038 = vpop.f32.mrb[0].mxu0
    %8039 = vmatprep.mubr.bf16.mxu0 0
    %8040 = vmatmul.mubr.bf16.gmra.mrb[0].mxu0 %v7556
    %v8041 = vpop.f32.mrb[0].mxu0
    %v8042 = vadd.f32 %v7753, %v8041
    %v8043 = vpop.f32.mrb[0].mxu0
    %v8044 = vpop.f32.mrb[0].mxu0
    %v8045 = vadd.f32 %v7756, %v8044
    %v8046 = vpop.f32.mrb[0].mxu0
    %8047 = vmatprep.mubr.bf16.mxu0 0
    %8048 = vmatmul.mubr.bf16.gmra.mrb[0].mxu0 %v7559
    %v8049 = vpop.f32.mrb[0].mxu0
    %v8050 = vadd.f32 %v7761, %v8049
    %v8051 = vpop.f32.mrb[0].mxu0
    %v8052 = vpop.f32.mrb[0].mxu0
    %v8053 = vadd.f32 %v7764, %v8052
    %v8054 = vpop.f32.mrb[0].mxu0
    %8055 = vmatprep.mubr.bf16.mxu0 0
    %8056 = vmatmul.mubr.bf16.gmra.mrb[0].mxu0 %v7562
    %v8057 = vpop.f32.mrb[0].mxu0
    %v8058 = vadd.f32 %v7769, %v8057
    %v8059 = vpop.f32.mrb[0].mxu0
    %v8060 = vpop.f32.mrb[0].mxu0
    %v8061 = vadd.f32 %v7772, %v8060
    %v8062 = vpop.f32.mrb[0].mxu0
    %8063 = vmatprep.mubr.bf16.mxu0 0
    %8064 = vmatmul.mubr.bf16.gmra.mrb[0].mxu0 %v7565
    %v8065 = vpop.f32.mrb[0].mxu0
    %v8066 = vadd.f32 %v7777, %v8065
    %v8067 = vpop.f32.mrb[0].mxu0
    %v8068 = vpop.f32.mrb[0].mxu0
    %v8069 = vadd.f32 %v7780, %v8068
    %v8070 = vpop.f32.mrb[0].mxu0
    %8071 = vmatprep.mubr.bf16.mxu0 0
    %8072 = vmatmul.mubr.bf16.gmra.mrb[0].mxu0 %v7568
    %v8073 = vpop.f32.mrb[0].mxu0
    %v8074 = vadd.f32 %v7785, %v8073
    %v8075 = vpop.f32.mrb[0].mxu0
    %v8076 = vpop.f32.mrb[0].mxu0
    %v8077 = vadd.f32 %v7788, %v8076
    %v8078 = vpop.f32.mrb[0].mxu0
    %8079 = vmatprep.mubr.bf16.mxu0 0
    %8080 = vmatmul.mubr.bf16.gmra.mrb[0].mxu0 %v7571
    %v8081 = vpop.f32.mrb[0].mxu0
    %v8082 = vadd.f32 %v7793, %v8081
    %v8083 = vpop.f32.mrb[0].mxu0
    %v8084 = vpop.f32.mrb[0].mxu0
    %v8085 = vadd.f32 %v7796, %v8084
    %v8086 = vpop.f32.mrb[0].mxu0
    %8087 = vmatprep.mubr.bf16.mxu0 0
    %8088 = vmatmul.mubr.bf16.gmra.mrb[0].mxu0 %v7574
    %v8089 = vpop.f32.mrb[0].mxu0
    %v8090 = vadd.f32 %v7801, %v8089
    %v8091 = vpop.f32.mrb[0].mxu0
    %v8092 = vpop.f32.mrb[0].mxu0
    %v8093 = vadd.f32 %v7804, %v8092
    %v8094 = vpop.f32.mrb[0].mxu0
    %8095 = vmatprep.mubr.bf16.mxu0 0
    %8096 = vmatmul.mubr.bf16.gmra.mrb[0].mxu0 %v7577
    %v8097 = vpop.f32.mrb[0].mxu0
    %v8098 = vadd.f32 %v7809, %v8097
    %v8099 = vpop.f32.mrb[0].mxu0
    %v8100 = vpop.f32.mrb[0].mxu0
    %v8101 = vadd.f32 %v7812, %v8100
    %v8102 = vpop.f32.mrb[0].mxu0
    %8103 = vmatprep.mubr.bf16.mxu0 0
    %8104 = vmatmul.mubr.bf16.gmra.mrb[0].mxu0 %v7580
    %v8105 = vpop.f32.mrb[0].mxu0
    %v8106 = vadd.f32 %v7817, %v8105
    %v8107 = vpop.f32.mrb[0].mxu0
    %v8108 = vpop.f32.mrb[0].mxu0
    %v8109 = vadd.f32 %v7820, %v8108
    %v8110 = vpop.f32.mrb[0].mxu0
    %8111 = vmatprep.mubr.bf16.mxu0 0
    %8112 = vmatmul.mubr.bf16.gmra.mrb[0].mxu0 %v7583
    %v8113 = vpop.f32.mrb[0].mxu0
    %v8114 = vadd.f32 %v7825, %v8113
    %v8115 = vpop.f32.mrb[0].mxu0
    %v8116 = vpop.f32.mrb[0].mxu0
    %v8117 = vadd.f32 %v7828, %v8116
    %v8118 = vpop.f32.mrb[0].mxu0
    %8119 = vmatprep.mubr.bf16.mxu0 0
    %8120 = vmatmul.mubr.bf16.gmra.mrb[0].mxu0 %v7586
    %v8121 = vpop.f32.mrb[0].mxu0
    %v8122 = vadd.f32 %v7833, %v8121
    %v8123 = vpop.f32.mrb[0].mxu0
    %v8124 = vpop.f32.mrb[0].mxu0
    %v8125 = vadd.f32 %v7836, %v8124
    %v8126 = vpop.f32.mrb[0].mxu0
    %8127 = vmatprep.mubr.bf16.mxu0 0
    %8128 = vmatmul.mubr.bf16.gmra.mrb[0].mxu0 %v7589
    %v8129 = vpop.f32.mrb[0].mxu0
    %v8130 = vadd.f32 %v7841, %v8129
    %v8131 = vpop.f32.mrb[0].mxu0
    %v8132 = vpop.f32.mrb[0].mxu0
    %v8133 = vadd.f32 %v7844, %v8132
    %v8134 = vpop.f32.mrb[0].mxu0
    %8135 = vmatprep.mubr.bf16.mxu0 0
    %8136 = vmatmul.mubr.bf16.gmra.mrb[0].mxu0 %v7592
    %v8137 = vpop.f32.mrb[0].mxu0
    %v8138 = vadd.f32 %v7849, %v8137
    %v8139 = vpop.f32.mrb[0].mxu0
    %v8140 = vpop.f32.mrb[0].mxu0
    %v8141 = vadd.f32 %v7852, %v8140
    %v8142 = vpop.f32.mrb[0].mxu0
    %8143 = vmatprep.mubr.bf16.mxu0 0
    %8144 = vmatmul.mubr.bf16.gmra.mrb[0].mxu0 %v7595
    %v8145 = vpop.f32.mrb[0].mxu0
    %v8146 = vadd.f32 %v7857, %v8145
    %v8147 = vpop.f32.mrb[0].mxu0
    %v8148 = vpop.f32.mrb[0].mxu0
    %v8149 = vadd.f32 %v7860, %v8148
    %v8150 = vpop.f32.mrb[0].mxu0
    %8151 = vmatprep.mubr.bf16.mxu0 0
    %8152 = vmatmul.mubr.bf16.gmra.mrb[0].mxu0 %v7598
    %v8153 = vpop.f32.mrb[0].mxu0
    %v8154 = vadd.f32 %v7865, %v8153
    %v8155 = vpop.f32.mrb[0].mxu0
    %v8156 = vpop.f32.mrb[0].mxu0
    %v8157 = vadd.f32 %v7868, %v8156
    %v8158 = vpop.f32.mrb[0].mxu0
    %8159 = vmatprep.mubr.bf16.mxu0 0
    %8160 = vmatmul.mubr.bf16.gmra.mrb[0].mxu0 %v7601
    %v8161 = vpop.f32.mrb[0].mxu0
    %v8162 = vadd.f32 %v7873, %v8161
    %v8163 = vpop.f32.mrb[0].mxu0
    %v8164 = vpop.f32.mrb[0].mxu0
    %v8165 = vadd.f32 %v7876, %v8164
    %v8166 = vpop.f32.mrb[0].mxu0
    %8167 = vmatprep.mubr.bf16.mxu0 0
    %8168 = vmatmul.mubr.bf16.gmra.mrb[0].mxu0 %v7604
    %v8169 = vpop.f32.mrb[0].mxu0
    %v8170 = vadd.f32 %v7881, %v8169
    %v8171 = vpop.f32.mrb[0].mxu0
    %v8172 = vpop.f32.mrb[0].mxu0
    %v8173 = vadd.f32 %v7884, %v8172
    %v8174 = vpop.f32.mrb[0].mxu0
    %8175 = vmatprep.mubr.bf16.mxu0 0
    %8176 = vmatmul.mubr.bf16.gmra.mrb[0].mxu0 %v7559
    %v8177 = vpop.f32.mrb[0].mxu0
    %v8178 = vadd.f32 %v7889, %v8177
    %v8179 = vpop.f32.mrb[0].mxu0
    %v8180 = vpop.f32.mrb[0].mxu0
    %v8181 = vadd.f32 %v7892, %v8180
    %v8182 = vpop.f32.mrb[0].mxu0
    %8183 = vdwg.mxu0
    %v8184 = vsel %vm4126, %v7930, 0.0
    %v8185 = vsel %vm4126, %v7933, 0.0
    %v8186 = vadd.f32 %v8184, %v8185
    %v8187 = vsel %vm4126, %v7938, 0.0
    %v8188 = vadd.f32 %v8186, %v8187
    %v8189 = vsel %vm4126, %v7941, 0.0
    %v8190 = vadd.f32 %v8188, %v8189
    %v8191 = vsel %vm4126, %v7946, 0.0
    %v8192 = vadd.f32 %v8190, %v8191
    %v8193 = vsel %vm4126, %v7949, 0.0
    %v8194 = vadd.f32 %v8192, %v8193
    %v8195 = vsel %vm4126, %v7954, 0.0
    %v8196 = vadd.f32 %v8194, %v8195
    %v8197 = vsel %vm4126, %v7957, 0.0
    %v8198 = vadd.f32 %v8196, %v8197
    %v8199 = vsel %vm4126, %v7962, 0.0
    %v8200 = vadd.f32 %v8198, %v8199
    %v8201 = vsel %vm4126, %v7965, 0.0
    %v8202 = vadd.f32 %v8200, %v8201
    %v8203 = vsel %vm4126, %v7970, 0.0
    %v8204 = vadd.f32 %v8202, %v8203
    %v8205 = vsel %vm4126, %v7973, 0.0
    %v8206 = vadd.f32 %v8204, %v8205
    %v8207 = vsel %vm4126, %v7978, 0.0
    %v8208 = vadd.f32 %v8206, %v8207
    %v8209 = vsel %vm4126, %v7981, 0.0
    %v8210 = vadd.f32 %v8208, %v8209
    %v8211 = vsel %vm4126, %v7986, 0.0
    %v8212 = vadd.f32 %v8210, %v8211
    %v8213 = vsel %vm4126, %v7989, 0.0
    %v8214 = vadd.f32 %v8212, %v8213
    %v8215 = vsel %vm4126, %v7994, 0.0
    %v8216 = vadd.f32 %v8214, %v8215
    %v8217 = vsel %vm4126, %v7997, 0.0
    %v8218 = vadd.f32 %v8216, %v8217
    %v8219 = vsel %vm4126, %v8002, 0.0
    %v8220 = vadd.f32 %v8218, %v8219
    %v8221 = vsel %vm4126, %v8005, 0.0
    %v8222 = vadd.f32 %v8220, %v8221
    %v8223 = vsel %vm4126, %v8010, 0.0
    %v8224 = vadd.f32 %v8222, %v8223
    %v8225 = vsel %vm4126, %v8013, 0.0
    %v8226 = vadd.f32 %v8224, %v8225
    %v8227 = vsel %vm4126, %v8018, 0.0
    %v8228 = vadd.f32 %v8226, %v8227
    %v8229 = vsel %vm4126, %v8021, 0.0
    %v8230 = vadd.f32 %v8228, %v8229
    %v8231 = vsel %vm4126, %v8026, 0.0
    %v8232 = vadd.f32 %v8230, %v8231
    %v8233 = vsel %vm4126, %v8029, 0.0
    %v8234 = vadd.f32 %v8232, %v8233
    %v8235 = vsel %vm4126, %v8034, 0.0
    %v8236 = vadd.f32 %v8234, %v8235
    %v8237 = vsel %vm4126, %v8037, 0.0
    %v8238 = vadd.f32 %v8236, %v8237
    %v8239 = vsel %vm4126, %v8042, 0.0
    %v8240 = vadd.f32 %v8238, %v8239
    %v8241 = vsel %vm4126, %v8045, 0.0
    %v8242 = vadd.f32 %v8240, %v8241
    %v8243 = vsel %vm4126, %v8050, 0.0
    %v8244 = vadd.f32 %v8242, %v8243
    %v8245 = vsel %vm4126, %v8053, 0.0
    %v8246 = vadd.f32 %v8244, %v8245
    %v8247 = vsel %vm4126, %v8058, 0.0
    %v8248 = vadd.f32 %v8246, %v8247
    %v8249 = vsel %vm4126, %v8061, 0.0
    %v8250 = vadd.f32 %v8248, %v8249
    %v8251 = vsel %vm4126, %v8066, 0.0
    %v8252 = vadd.f32 %v8250, %v8251
    %v8253 = vsel %vm4126, %v8069, 0.0
    %v8254 = vadd.f32 %v8252, %v8253
    %v8255 = vsel %vm4126, %v8074, 0.0
    %v8256 = vadd.f32 %v8254, %v8255
    %v8257 = vsel %vm4126, %v8077, 0.0
    %v8258 = vadd.f32 %v8256, %v8257
    %v8259 = vsel %vm4126, %v8082, 0.0
    %v8260 = vadd.f32 %v8258, %v8259
    %v8261 = vsel %vm4126, %v8085, 0.0
    %v8262 = vadd.f32 %v8260, %v8261
    %v8263 = vsel %vm4126, %v8090, 0.0
    %v8264 = vadd.f32 %v8262, %v8263
    %v8265 = vsel %vm4126, %v8093, 0.0
    %v8266 = vadd.f32 %v8264, %v8265
    %v8267 = vsel %vm4126, %v8098, 0.0
    %v8268 = vadd.f32 %v8266, %v8267
    %v8269 = vsel %vm4126, %v8101, 0.0
    %v8270 = vadd.f32 %v8268, %v8269
    %v8271 = vsel %vm4126, %v8106, 0.0
    %v8272 = vadd.f32 %v8270, %v8271
    %v8273 = vsel %vm4126, %v8109, 0.0
    %v8274 = vadd.f32 %v8272, %v8273
    %v8275 = vsel %vm4126, %v8114, 0.0
    %v8276 = vadd.f32 %v8274, %v8275
    %v8277 = vsel %vm4126, %v8117, 0.0
    %v8278 = vadd.f32 %v8276, %v8277
    %v8279 = vsel %vm4126, %v8122, 0.0
    %v8280 = vadd.f32 %v8278, %v8279
    %v8281 = vsel %vm4126, %v8125, 0.0
    %v8282 = vadd.f32 %v8280, %v8281
    %v8283 = vsel %vm4126, %v8130, 0.0
    %v8284 = vadd.f32 %v8282, %v8283
    %v8285 = vsel %vm4126, %v8133, 0.0
    %v8286 = vadd.f32 %v8284, %v8285
    %v8287 = vsel %vm4126, %v8138, 0.0
    %v8288 = vadd.f32 %v8286, %v8287
    %v8289 = vsel %vm4126, %v8141, 0.0
    %v8290 = vadd.f32 %v8288, %v8289
    %v8291 = vsel %vm4126, %v8146, 0.0
    %v8292 = vadd.f32 %v8290, %v8291
    %v8293 = vsel %vm4126, %v8149, 0.0
    %v8294 = vadd.f32 %v8292, %v8293
    %v8295 = vsel %vm4126, %v8154, 0.0
    %v8296 = vadd.f32 %v8294, %v8295
    %v8297 = vsel %vm4126, %v8157, 0.0
    %v8298 = vadd.f32 %v8296, %v8297
    %v8299 = vsel %vm4126, %v8162, 0.0
    %v8300 = vadd.f32 %v8298, %v8299
    %v8301 = vsel %vm4126, %v8165, 0.0
    %v8302 = vadd.f32 %v8300, %v8301
    %v8303 = vsel %vm4126, %v8170, 0.0
    %v8304 = vadd.f32 %v8302, %v8303
    %v8305 = vsel %vm4126, %v8173, 0.0
    %v8306 = vadd.f32 %v8304, %v8305
    %v8307 = vsel %vm4126, %v8178, 0.0
    %v8308 = vadd.f32 %v8306, %v8307
    %v8309 = vsel %vm4126, %v8181, 0.0
    %v8310 = vadd.f32 %v8308, %v8309
    %v8311 = vrot.slane %v8310, 4
    %v8312 = vadd.f32 %v8310, %v8311
    %v8313 = vrot.slane %v8312, 2
    %v8314 = vadd.f32 %v8312, %v8313
    %v8315 = vrot.slane %v8314, 1
    %v8316 = vadd.f32 %v8314, %v8315
    %v8317 = vmul.f32 %v7930, %v7930
    %v8318 = vmul.f32 %v7933, %v7933
    %v8319 = vmul.f32 %v7938, %v7938
    %v8320 = vmul.f32 %v7941, %v7941
    %v8321 = vmul.f32 %v7946, %v7946
    %v8322 = vmul.f32 %v7949, %v7949
    %v8323 = vmul.f32 %v7954, %v7954
    %v8324 = vmul.f32 %v7957, %v7957
    %v8325 = vmul.f32 %v7962, %v7962
    %v8326 = vmul.f32 %v7965, %v7965
    %v8327 = vmul.f32 %v7970, %v7970
    %v8328 = vmul.f32 %v7973, %v7973
    %v8329 = vmul.f32 %v7978, %v7978
    %v8330 = vmul.f32 %v7981, %v7981
    %v8331 = vmul.f32 %v7986, %v7986
    %v8332 = vmul.f32 %v7989, %v7989
    %v8333 = vmul.f32 %v7994, %v7994
    %v8334 = vmul.f32 %v7997, %v7997
    %v8335 = vmul.f32 %v8002, %v8002
    %v8336 = vmul.f32 %v8005, %v8005
    %v8337 = vmul.f32 %v8010, %v8010
    %v8338 = vmul.f32 %v8013, %v8013
    %v8339 = vmul.f32 %v8018, %v8018
    %v8340 = vmul.f32 %v8021, %v8021
    %v8341 = vmul.f32 %v8026, %v8026
    %v8342 = vmul.f32 %v8029, %v8029
    %v8343 = vmul.f32 %v8034, %v8034
    %v8344 = vmul.f32 %v8037, %v8037
    %v8345 = vmul.f32 %v8042, %v8042
    %v8346 = vmul.f32 %v8045, %v8045
    %v8347 = vmul.f32 %v8050, %v8050
    %v8348 = vmul.f32 %v8053, %v8053
    %v8349 = vmul.f32 %v8058, %v8058
    %v8350 = vmul.f32 %v8061, %v8061
    %v8351 = vmul.f32 %v8066, %v8066
    %v8352 = vmul.f32 %v8069, %v8069
    %v8353 = vmul.f32 %v8074, %v8074
    %v8354 = vmul.f32 %v8077, %v8077
    %v8355 = vmul.f32 %v8082, %v8082
    %v8356 = vmul.f32 %v8085, %v8085
    %v8357 = vmul.f32 %v8090, %v8090
    %v8358 = vmul.f32 %v8093, %v8093
    %v8359 = vmul.f32 %v8098, %v8098
    %v8360 = vmul.f32 %v8101, %v8101
    %v8361 = vmul.f32 %v8106, %v8106
    %v8362 = vmul.f32 %v8109, %v8109
    %v8363 = vmul.f32 %v8114, %v8114
    %v8364 = vmul.f32 %v8117, %v8117
    %v8365 = vmul.f32 %v8122, %v8122
    %v8366 = vmul.f32 %v8125, %v8125
    %v8367 = vmul.f32 %v8130, %v8130
    %v8368 = vmul.f32 %v8133, %v8133
    %v8369 = vmul.f32 %v8138, %v8138
    %v8370 = vmul.f32 %v8141, %v8141
    %v8371 = vmul.f32 %v8146, %v8146
    %v8372 = vmul.f32 %v8149, %v8149
    %v8373 = vmul.f32 %v8154, %v8154
    %v8374 = vmul.f32 %v8157, %v8157
    %v8375 = vmul.f32 %v8162, %v8162
    %v8376 = vmul.f32 %v8165, %v8165
    %v8377 = vmul.f32 %v8170, %v8170
    %v8378 = vmul.f32 %v8173, %v8173
    %v8379 = vmul.f32 %v8178, %v8178
    %v8380 = vmul.f32 %v8181, %v8181
    %v8381 = vsel %vm4126, %v8317, 0.0
    %v8382 = vsel %vm4126, %v8318, 0.0
    %v8383 = vadd.f32 %v8381, %v8382
    %v8384 = vsel %vm4126, %v8319, 0.0
    %v8385 = vadd.f32 %v8383, %v8384
    %v8386 = vsel %vm4126, %v8320, 0.0
    %v8387 = vadd.f32 %v8385, %v8386
    %v8388 = vsel %vm4126, %v8321, 0.0
    %v8389 = vadd.f32 %v8387, %v8388
    %v8390 = vsel %vm4126, %v8322, 0.0
    %v8391 = vadd.f32 %v8389, %v8390
    %v8392 = vsel %vm4126, %v8323, 0.0
    %v8393 = vadd.f32 %v8391, %v8392
    %v8394 = vsel %vm4126, %v8324, 0.0
    %v8395 = vadd.f32 %v8393, %v8394
    %v8396 = vsel %vm4126, %v8325, 0.0
    %v8397 = vadd.f32 %v8395, %v8396
    %v8398 = vsel %vm4126, %v8326, 0.0
    %v8399 = vadd.f32 %v8397, %v8398
    %v8400 = vsel %vm4126, %v8327, 0.0
    %v8401 = vadd.f32 %v8399, %v8400
    %v8402 = vsel %vm4126, %v8328, 0.0
    %v8403 = vadd.f32 %v8401, %v8402
    %v8404 = vsel %vm4126, %v8329, 0.0
    %v8405 = vadd.f32 %v8403, %v8404
    %v8406 = vsel %vm4126, %v8330, 0.0
    %v8407 = vadd.f32 %v8405, %v8406
    %v8408 = vsel %vm4126, %v8331, 0.0
    %v8409 = vadd.f32 %v8407, %v8408
    %v8410 = vsel %vm4126, %v8332, 0.0
    %v8411 = vadd.f32 %v8409, %v8410
    %v8412 = vsel %vm4126, %v8333, 0.0
    %v8413 = vadd.f32 %v8411, %v8412
    %v8414 = vsel %vm4126, %v8334, 0.0
    %v8415 = vadd.f32 %v8413, %v8414
    %v8416 = vsel %vm4126, %v8335, 0.0
    %v8417 = vadd.f32 %v8415, %v8416
    %v8418 = vsel %vm4126, %v8336, 0.0
    %v8419 = vadd.f32 %v8417, %v8418
    %v8420 = vsel %vm4126, %v8337, 0.0
    %v8421 = vadd.f32 %v8419, %v8420
    %v8422 = vsel %vm4126, %v8338, 0.0
    %v8423 = vadd.f32 %v8421, %v8422
    %v8424 = vsel %vm4126, %v8339, 0.0
    %v8425 = vadd.f32 %v8423, %v8424
    %v8426 = vsel %vm4126, %v8340, 0.0
    %v8427 = vadd.f32 %v8425, %v8426
    %v8428 = vsel %vm4126, %v8341, 0.0
    %v8429 = vadd.f32 %v8427, %v8428
    %v8430 = vsel %vm4126, %v8342, 0.0
    %v8431 = vadd.f32 %v8429, %v8430
    %v8432 = vsel %vm4126, %v8343, 0.0
    %v8433 = vadd.f32 %v8431, %v8432
    %v8434 = vsel %vm4126, %v8344, 0.0
    %v8435 = vadd.f32 %v8433, %v8434
    %v8436 = vsel %vm4126, %v8345, 0.0
    %v8437 = vadd.f32 %v8435, %v8436
    %v8438 = vsel %vm4126, %v8346, 0.0
    %v8439 = vadd.f32 %v8437, %v8438
    %v8440 = vsel %vm4126, %v8347, 0.0
    %v8441 = vadd.f32 %v8439, %v8440
    %v8442 = vsel %vm4126, %v8348, 0.0
    %v8443 = vadd.f32 %v8441, %v8442
    %v8444 = vsel %vm4126, %v8349, 0.0
    %v8445 = vadd.f32 %v8443, %v8444
    %v8446 = vsel %vm4126, %v8350, 0.0
    %v8447 = vadd.f32 %v8445, %v8446
    %v8448 = vsel %vm4126, %v8351, 0.0
    %v8449 = vadd.f32 %v8447, %v8448
    %v8450 = vsel %vm4126, %v8352, 0.0
    %v8451 = vadd.f32 %v8449, %v8450
    %v8452 = vsel %vm4126, %v8353, 0.0
    %v8453 = vadd.f32 %v8451, %v8452
    %v8454 = vsel %vm4126, %v8354, 0.0
    %v8455 = vadd.f32 %v8453, %v8454
    %v8456 = vsel %vm4126, %v8355, 0.0
    %v8457 = vadd.f32 %v8455, %v8456
    %v8458 = vsel %vm4126, %v8356, 0.0
    %v8459 = vadd.f32 %v8457, %v8458
    %v8460 = vsel %vm4126, %v8357, 0.0
    %v8461 = vadd.f32 %v8459, %v8460
    %v8462 = vsel %vm4126, %v8358, 0.0
    %v8463 = vadd.f32 %v8461, %v8462
    %v8464 = vsel %vm4126, %v8359, 0.0
    %v8465 = vadd.f32 %v8463, %v8464
    %v8466 = vsel %vm4126, %v8360, 0.0
    %v8467 = vadd.f32 %v8465, %v8466
    %v8468 = vsel %vm4126, %v8361, 0.0
    %v8469 = vadd.f32 %v8467, %v8468
    %v8470 = vsel %vm4126, %v8362, 0.0
    %v8471 = vadd.f32 %v8469, %v8470
    %v8472 = vsel %vm4126, %v8363, 0.0
    %v8473 = vadd.f32 %v8471, %v8472
    %v8474 = vsel %vm4126, %v8364, 0.0
    %v8475 = vadd.f32 %v8473, %v8474
    %v8476 = vsel %vm4126, %v8365, 0.0
    %v8477 = vadd.f32 %v8475, %v8476
    %v8478 = vsel %vm4126, %v8366, 0.0
    %v8479 = vadd.f32 %v8477, %v8478
    %v8480 = vsel %vm4126, %v8367, 0.0
    %v8481 = vadd.f32 %v8479, %v8480
    %v8482 = vsel %vm4126, %v8368, 0.0
    %v8483 = vadd.f32 %v8481, %v8482
    %v8484 = vsel %vm4126, %v8369, 0.0
    %v8485 = vadd.f32 %v8483, %v8484
    %v8486 = vsel %vm4126, %v8370, 0.0
    %v8487 = vadd.f32 %v8485, %v8486
    %v8488 = vsel %vm4126, %v8371, 0.0
    %v8489 = vadd.f32 %v8487, %v8488
    %v8490 = vsel %vm4126, %v8372, 0.0
    %v8491 = vadd.f32 %v8489, %v8490
    %v8492 = vsel %vm4126, %v8373, 0.0
    %v8493 = vadd.f32 %v8491, %v8492
    %v8494 = vsel %vm4126, %v8374, 0.0
    %v8495 = vadd.f32 %v8493, %v8494
    %v8496 = vsel %vm4126, %v8375, 0.0
    %v8497 = vadd.f32 %v8495, %v8496
    %v8498 = vsel %vm4126, %v8376, 0.0
    %v8499 = vadd.f32 %v8497, %v8498
    %v8500 = vsel %vm4126, %v8377, 0.0
    %v8501 = vadd.f32 %v8499, %v8500
    %v8502 = vsel %vm4126, %v8378, 0.0
    %v8503 = vadd.f32 %v8501, %v8502
    %v8504 = vsel %vm4126, %v8379, 0.0
    %v8505 = vadd.f32 %v8503, %v8504
    %v8506 = vsel %vm4126, %v8380, 0.0
    %v8507 = vadd.f32 %v8505, %v8506
    %v8508 = vrot.slane %v8507, 4
    %v8509 = vadd.f32 %v8507, %v8508
    %v8510 = vrot.slane %v8509, 2
    %v8511 = vadd.f32 %v8509, %v8510
    %v8512 = vrot.slane %v8511, 1
    %v8513 = vadd.f32 %v8511, %v8512
    %v8514 = vmul.f32 %v8316, 0.001953125
    %v8515 = vmul.f32 %v8513, 0.001953125
    %v8516 = vmul.f32 %v8514, %v8514
    %v8517 = vsub.f32 %v8515, %v8516
    %v8518 = vsub.f32 %v7930, %v8514
    %v8519 = vsub.f32 %v7933, %v8514
    %v8520 = vsub.f32 %v7938, %v8514
    %v8521 = vsub.f32 %v7941, %v8514
    %v8522 = vsub.f32 %v7946, %v8514
    %v8523 = vsub.f32 %v7949, %v8514
    %v8524 = vsub.f32 %v7954, %v8514
    %v8525 = vsub.f32 %v7957, %v8514
    %v8526 = vsub.f32 %v7962, %v8514
    %v8527 = vsub.f32 %v7965, %v8514
    %v8528 = vsub.f32 %v7970, %v8514
    %v8529 = vsub.f32 %v7973, %v8514
    %v8530 = vsub.f32 %v7978, %v8514
    %v8531 = vsub.f32 %v7981, %v8514
    %v8532 = vsub.f32 %v7986, %v8514
    %v8533 = vsub.f32 %v7989, %v8514
    %v8534 = vsub.f32 %v7994, %v8514
    %v8535 = vsub.f32 %v7997, %v8514
    %v8536 = vsub.f32 %v8002, %v8514
    %v8537 = vsub.f32 %v8005, %v8514
    %v8538 = vsub.f32 %v8010, %v8514
    %v8539 = vsub.f32 %v8013, %v8514
    %v8540 = vsub.f32 %v8018, %v8514
    %v8541 = vsub.f32 %v8021, %v8514
    %v8542 = vsub.f32 %v8026, %v8514
    %v8543 = vsub.f32 %v8029, %v8514
    %v8544 = vsub.f32 %v8034, %v8514
    %v8545 = vsub.f32 %v8037, %v8514
    %v8546 = vsub.f32 %v8042, %v8514
    %v8547 = vsub.f32 %v8045, %v8514
    %v8548 = vsub.f32 %v8050, %v8514
    %v8549 = vsub.f32 %v8053, %v8514
    %v8550 = vsub.f32 %v8058, %v8514
    %v8551 = vsub.f32 %v8061, %v8514
    %v8552 = vsub.f32 %v8066, %v8514
    %v8553 = vsub.f32 %v8069, %v8514
    %v8554 = vsub.f32 %v8074, %v8514
    %v8555 = vsub.f32 %v8077, %v8514
    %v8556 = vsub.f32 %v8082, %v8514
    %v8557 = vsub.f32 %v8085, %v8514
    %v8558 = vsub.f32 %v8090, %v8514
    %v8559 = vsub.f32 %v8093, %v8514
    %v8560 = vsub.f32 %v8098, %v8514
    %v8561 = vsub.f32 %v8101, %v8514
    %v8562 = vsub.f32 %v8106, %v8514
    %v8563 = vsub.f32 %v8109, %v8514
    %v8564 = vsub.f32 %v8114, %v8514
    %v8565 = vsub.f32 %v8117, %v8514
    %v8566 = vsub.f32 %v8122, %v8514
    %v8567 = vsub.f32 %v8125, %v8514
    %v8568 = vsub.f32 %v8130, %v8514
    %v8569 = vsub.f32 %v8133, %v8514
    %v8570 = vsub.f32 %v8138, %v8514
    %v8571 = vsub.f32 %v8141, %v8514
    %v8572 = vsub.f32 %v8146, %v8514
    %v8573 = vsub.f32 %v8149, %v8514
    %v8574 = vsub.f32 %v8154, %v8514
    %v8575 = vsub.f32 %v8157, %v8514
    %v8576 = vsub.f32 %v8162, %v8514
    %v8577 = vsub.f32 %v8165, %v8514
    %v8578 = vsub.f32 %v8170, %v8514
    %v8579 = vsub.f32 %v8173, %v8514
    %v8580 = vsub.f32 %v8178, %v8514
    %v8581 = vsub.f32 %v8181, %v8514
    %v8582 = vadd.f32 %v8517, 1e-05
    %v8583 = vrsqrt.pop %v8582
    %v8584 = vmul.f32 %v8518, %v8583
    %v8585 = vmul.f32 %v8519, %v8583
    %v8586 = vmul.f32 %v8520, %v8583
    %v8587 = vmul.f32 %v8521, %v8583
    %v8588 = vmul.f32 %v8522, %v8583
    %v8589 = vmul.f32 %v8523, %v8583
    %v8590 = vmul.f32 %v8524, %v8583
    %v8591 = vmul.f32 %v8525, %v8583
    %v8592 = vmul.f32 %v8526, %v8583
    %v8593 = vmul.f32 %v8527, %v8583
    %v8594 = vmul.f32 %v8528, %v8583
    %v8595 = vmul.f32 %v8529, %v8583
    %v8596 = vmul.f32 %v8530, %v8583
    %v8597 = vmul.f32 %v8531, %v8583
    %v8598 = vmul.f32 %v8532, %v8583
    %v8599 = vmul.f32 %v8533, %v8583
    %v8600 = vmul.f32 %v8534, %v8583
    %v8601 = vmul.f32 %v8535, %v8583
    %v8602 = vmul.f32 %v8536, %v8583
    %v8603 = vmul.f32 %v8537, %v8583
    %v8604 = vmul.f32 %v8538, %v8583
    %v8605 = vmul.f32 %v8539, %v8583
    %v8606 = vmul.f32 %v8540, %v8583
    %v8607 = vmul.f32 %v8541, %v8583
    %v8608 = vmul.f32 %v8542, %v8583
    %v8609 = vmul.f32 %v8543, %v8583
    %v8610 = vmul.f32 %v8544, %v8583
    %v8611 = vmul.f32 %v8545, %v8583
    %v8612 = vmul.f32 %v8546, %v8583
    %v8613 = vmul.f32 %v8547, %v8583
    %v8614 = vmul.f32 %v8548, %v8583
    %v8615 = vmul.f32 %v8549, %v8583
    %v8616 = vmul.f32 %v8550, %v8583
    %v8617 = vmul.f32 %v8551, %v8583
    %v8618 = vmul.f32 %v8552, %v8583
    %v8619 = vmul.f32 %v8553, %v8583
    %v8620 = vmul.f32 %v8554, %v8583
    %v8621 = vmul.f32 %v8555, %v8583
    %v8622 = vmul.f32 %v8556, %v8583
    %v8623 = vmul.f32 %v8557, %v8583
    %v8624 = vmul.f32 %v8558, %v8583
    %v8625 = vmul.f32 %v8559, %v8583
    %v8626 = vmul.f32 %v8560, %v8583
    %v8627 = vmul.f32 %v8561, %v8583
    %v8628 = vmul.f32 %v8562, %v8583
    %v8629 = vmul.f32 %v8563, %v8583
    %v8630 = vmul.f32 %v8564, %v8583
    %v8631 = vmul.f32 %v8565, %v8583
    %v8632 = vmul.f32 %v8566, %v8583
    %v8633 = vmul.f32 %v8567, %v8583
    %v8634 = vmul.f32 %v8568, %v8583
    %v8635 = vmul.f32 %v8569, %v8583
    %v8636 = vmul.f32 %v8570, %v8583
    %v8637 = vmul.f32 %v8571, %v8583
    %v8638 = vmul.f32 %v8572, %v8583
    %v8639 = vmul.f32 %v8573, %v8583
    %v8640 = vmul.f32 %v8574, %v8583
    %v8641 = vmul.f32 %v8575, %v8583
    %v8642 = vmul.f32 %v8576, %v8583
    %v8643 = vmul.f32 %v8577, %v8583
    %v8644 = vmul.f32 %v8578, %v8583
    %v8645 = vmul.f32 %v8579, %v8583
    %v8646 = vmul.f32 %v8580, %v8583
    %v8647 = vmul.f32 %v8581, %v8583
    %v8649 = vlaneseq
    %v8650 = vshrl.u32 %v8649, 7
    %v8651 = vsub.s32 0, %v8650
    %v8652 = vrot.slane %v4959, %v8651
    %v8654 = vmul.f32 %v8584, %v8652
    %v8655 = vmul.f32 %v8585, %v8652
    %v8656 = vmul.f32 %v8586, %v8652
    %v8657 = vmul.f32 %v8587, %v8652
    %v8658 = vmul.f32 %v8588, %v8652
    %v8659 = vmul.f32 %v8589, %v8652
    %v8660 = vmul.f32 %v8590, %v8652
    %v8661 = vmul.f32 %v8591, %v8652
    %v8662 = vmul.f32 %v8592, %v8652
    %v8663 = vmul.f32 %v8593, %v8652
    %v8664 = vmul.f32 %v8594, %v8652
    %v8665 = vmul.f32 %v8595, %v8652
    %v8666 = vmul.f32 %v8596, %v8652
    %v8667 = vmul.f32 %v8597, %v8652
    %v8668 = vmul.f32 %v8598, %v8652
    %v8669 = vmul.f32 %v8599, %v8652
    %v8670 = vmul.f32 %v8600, %v8652
    %v8671 = vmul.f32 %v8601, %v8652
    %v8672 = vmul.f32 %v8602, %v8652
    %v8673 = vmul.f32 %v8603, %v8652
    %v8674 = vmul.f32 %v8604, %v8652
    %v8675 = vmul.f32 %v8605, %v8652
    %v8676 = vmul.f32 %v8606, %v8652
    %v8677 = vmul.f32 %v8607, %v8652
    %v8678 = vmul.f32 %v8608, %v8652
    %v8679 = vmul.f32 %v8609, %v8652
    %v8680 = vmul.f32 %v8610, %v8652
    %v8681 = vmul.f32 %v8611, %v8652
    %v8682 = vmul.f32 %v8612, %v8652
    %v8683 = vmul.f32 %v8613, %v8652
    %v8684 = vmul.f32 %v8614, %v8652
    %v8685 = vmul.f32 %v8615, %v8652
    %v8686 = vmul.f32 %v8616, %v8652
    %v8687 = vmul.f32 %v8617, %v8652
    %v8688 = vmul.f32 %v8618, %v8652
    %v8689 = vmul.f32 %v8619, %v8652
    %v8690 = vmul.f32 %v8620, %v8652
    %v8691 = vmul.f32 %v8621, %v8652
    %v8692 = vmul.f32 %v8622, %v8652
    %v8693 = vmul.f32 %v8623, %v8652
    %v8694 = vmul.f32 %v8624, %v8652
    %v8695 = vmul.f32 %v8625, %v8652
    %v8696 = vmul.f32 %v8626, %v8652
    %v8697 = vmul.f32 %v8627, %v8652
    %v8698 = vmul.f32 %v8628, %v8652
    %v8699 = vmul.f32 %v8629, %v8652
    %v8700 = vmul.f32 %v8630, %v8652
    %v8701 = vmul.f32 %v8631, %v8652
    %v8702 = vmul.f32 %v8632, %v8652
    %v8703 = vmul.f32 %v8633, %v8652
    %v8704 = vmul.f32 %v8634, %v8652
    %v8705 = vmul.f32 %v8635, %v8652
    %v8706 = vmul.f32 %v8636, %v8652
    %v8707 = vmul.f32 %v8637, %v8652
    %v8708 = vmul.f32 %v8638, %v8652
    %v8709 = vmul.f32 %v8639, %v8652
    %v8710 = vmul.f32 %v8640, %v8652
    %v8711 = vmul.f32 %v8641, %v8652
    %v8712 = vmul.f32 %v8642, %v8652
    %v8713 = vmul.f32 %v8643, %v8652
    %v8714 = vmul.f32 %v8644, %v8652
    %v8715 = vmul.f32 %v8645, %v8652
    %v8716 = vmul.f32 %v8646, %v8652
    %v8717 = vmul.f32 %v8647, %v8652
    %v8719 = vlaneseq
    %v8720 = vshrl.u32 %v8719, 7
    %v8721 = vsub.s32 0, %v8720
    %v8722 = vrot.slane %v4960, %v8721
    %v8724 = vadd.f32 %v8654, %v8722
    %v8725 = vadd.f32 %v8655, %v8722
    %v8726 = vadd.f32 %v8656, %v8722
    %v8727 = vadd.f32 %v8657, %v8722
    %v8728 = vadd.f32 %v8658, %v8722
    %v8729 = vadd.f32 %v8659, %v8722
    %v8730 = vadd.f32 %v8660, %v8722
    %v8731 = vadd.f32 %v8661, %v8722
    %v8732 = vadd.f32 %v8662, %v8722
    %v8733 = vadd.f32 %v8663, %v8722
    %v8734 = vadd.f32 %v8664, %v8722
    %v8735 = vadd.f32 %v8665, %v8722
    %v8736 = vadd.f32 %v8666, %v8722
    %v8737 = vadd.f32 %v8667, %v8722
    %v8738 = vadd.f32 %v8668, %v8722
    %v8739 = vadd.f32 %v8669, %v8722
    %v8740 = vadd.f32 %v8670, %v8722
    %v8741 = vadd.f32 %v8671, %v8722
    %v8742 = vadd.f32 %v8672, %v8722
    %v8743 = vadd.f32 %v8673, %v8722
    %v8744 = vadd.f32 %v8674, %v8722
    %v8745 = vadd.f32 %v8675, %v8722
    %v8746 = vadd.f32 %v8676, %v8722
    %v8747 = vadd.f32 %v8677, %v8722
    %v8748 = vadd.f32 %v8678, %v8722
    %v8749 = vadd.f32 %v8679, %v8722
    %v8750 = vadd.f32 %v8680, %v8722
    %v8751 = vadd.f32 %v8681, %v8722
    %v8752 = vadd.f32 %v8682, %v8722
    %v8753 = vadd.f32 %v8683, %v8722
    %v8754 = vadd.f32 %v8684, %v8722
    %v8755 = vadd.f32 %v8685, %v8722
    %v8756 = vadd.f32 %v8686, %v8722
    %v8757 = vadd.f32 %v8687, %v8722
    %v8758 = vadd.f32 %v8688, %v8722
    %v8759 = vadd.f32 %v8689, %v8722
    %v8760 = vadd.f32 %v8690, %v8722
    %v8761 = vadd.f32 %v8691, %v8722
    %v8762 = vadd.f32 %v8692, %v8722
    %v8763 = vadd.f32 %v8693, %v8722
    %v8764 = vadd.f32 %v8694, %v8722
    %v8765 = vadd.f32 %v8695, %v8722
    %v8766 = vadd.f32 %v8696, %v8722
    %v8767 = vadd.f32 %v8697, %v8722
    %v8768 = vadd.f32 %v8698, %v8722
    %v8769 = vadd.f32 %v8699, %v8722
    %v8770 = vadd.f32 %v8700, %v8722
    %v8771 = vadd.f32 %v8701, %v8722
    %v8772 = vadd.f32 %v8702, %v8722
    %v8773 = vadd.f32 %v8703, %v8722
    %v8774 = vadd.f32 %v8704, %v8722
    %v8775 = vadd.f32 %v8705, %v8722
    %v8776 = vadd.f32 %v8706, %v8722
    %v8777 = vadd.f32 %v8707, %v8722
    %v8778 = vadd.f32 %v8708, %v8722
    %v8779 = vadd.f32 %v8709, %v8722
    %v8780 = vadd.f32 %v8710, %v8722
    %v8781 = vadd.f32 %v8711, %v8722
    %v8782 = vadd.f32 %v8712, %v8722
    %v8783 = vadd.f32 %v8713, %v8722
    %v8784 = vadd.f32 %v8714, %v8722
    %v8785 = vadd.f32 %v8715, %v8722
    %v8786 = vadd.f32 %v8716, %v8722
    %v8787 = vadd.f32 %v8717, %v8722
    %vm8788 = vcmp.ge.f32.partialorder %v8724, 0.0
    %vm8789 = vcmp.ge.f32.partialorder %v8725, 0.0
    %vm8790 = vcmp.ge.f32.partialorder %v8726, 0.0
    %vm8791 = vcmp.ge.f32.partialorder %v8727, 0.0
    %vm8792 = vcmp.ge.f32.partialorder %v8728, 0.0
    %vm8793 = vcmp.ge.f32.partialorder %v8729, 0.0
    %vm8794 = vcmp.ge.f32.partialorder %v8730, 0.0
    %vm8795 = vcmp.ge.f32.partialorder %v8731, 0.0
    %vm8796 = vcmp.ge.f32.partialorder %v8732, 0.0
    %vm8797 = vcmp.ge.f32.partialorder %v8733, 0.0
    %vm8798 = vcmp.ge.f32.partialorder %v8734, 0.0
    %vm8799 = vcmp.ge.f32.partialorder %v8735, 0.0
    %vm8800 = vcmp.ge.f32.partialorder %v8736, 0.0
    %vm8801 = vcmp.ge.f32.partialorder %v8737, 0.0
    %vm8802 = vcmp.ge.f32.partialorder %v8738, 0.0
    %vm8803 = vcmp.ge.f32.partialorder %v8739, 0.0
    %vm8804 = vcmp.ge.f32.partialorder %v8740, 0.0
    %vm8805 = vcmp.ge.f32.partialorder %v8741, 0.0
    %vm8806 = vcmp.ge.f32.partialorder %v8742, 0.0
    %vm8807 = vcmp.ge.f32.partialorder %v8743, 0.0
    %vm8808 = vcmp.ge.f32.partialorder %v8744, 0.0
    %vm8809 = vcmp.ge.f32.partialorder %v8745, 0.0
    %vm8810 = vcmp.ge.f32.partialorder %v8746, 0.0
    %vm8811 = vcmp.ge.f32.partialorder %v8747, 0.0
    %vm8812 = vcmp.ge.f32.partialorder %v8748, 0.0
    %vm8813 = vcmp.ge.f32.partialorder %v8749, 0.0
    %vm8814 = vcmp.ge.f32.partialorder %v8750, 0.0
    %vm8815 = vcmp.ge.f32.partialorder %v8751, 0.0
    %vm8816 = vcmp.ge.f32.partialorder %v8752, 0.0
    %vm8817 = vcmp.ge.f32.partialorder %v8753, 0.0
    %vm8818 = vcmp.ge.f32.partialorder %v8754, 0.0
    %vm8819 = vcmp.ge.f32.partialorder %v8755, 0.0
    %vm8820 = vcmp.ge.f32.partialorder %v8756, 0.0
    %vm8821 = vcmp.ge.f32.partialorder %v8757, 0.0
    %vm8822 = vcmp.ge.f32.partialorder %v8758, 0.0
    %vm8823 = vcmp.ge.f32.partialorder %v8759, 0.0
    %vm8824 = vcmp.ge.f32.partialorder %v8760, 0.0
    %vm8825 = vcmp.ge.f32.partialorder %v8761, 0.0
    %vm8826 = vcmp.ge.f32.partialorder %v8762, 0.0
    %vm8827 = vcmp.ge.f32.partialorder %v8763, 0.0
    %vm8828 = vcmp.ge.f32.partialorder %v8764, 0.0
    %vm8829 = vcmp.ge.f32.partialorder %v8765, 0.0
    %vm8830 = vcmp.ge.f32.partialorder %v8766, 0.0
    %vm8831 = vcmp.ge.f32.partialorder %v8767, 0.0
    %vm8832 = vcmp.ge.f32.partialorder %v8768, 0.0
    %vm8833 = vcmp.ge.f32.partialorder %v8769, 0.0
    %vm8834 = vcmp.ge.f32.partialorder %v8770, 0.0
    %vm8835 = vcmp.ge.f32.partialorder %v8771, 0.0
    %vm8836 = vcmp.ge.f32.partialorder %v8772, 0.0
    %vm8837 = vcmp.ge.f32.partialorder %v8773, 0.0
    %vm8838 = vcmp.ge.f32.partialorder %v8774, 0.0
    %vm8839 = vcmp.ge.f32.partialorder %v8775, 0.0
    %vm8840 = vcmp.ge.f32.partialorder %v8776, 0.0
    %vm8841 = vcmp.ge.f32.partialorder %v8777, 0.0
    %vm8842 = vcmp.ge.f32.partialorder %v8778, 0.0
    %vm8843 = vcmp.ge.f32.partialorder %v8779, 0.0
    %vm8844 = vcmp.ge.f32.partialorder %v8780, 0.0
    %vm8845 = vcmp.ge.f32.partialorder %v8781, 0.0
    %vm8846 = vcmp.ge.f32.partialorder %v8782, 0.0
    %vm8847 = vcmp.ge.f32.partialorder %v8783, 0.0
    %vm8848 = vcmp.ge.f32.partialorder %v8784, 0.0
    %vm8849 = vcmp.ge.f32.partialorder %v8785, 0.0
    %vm8850 = vcmp.ge.f32.partialorder %v8786, 0.0
    %vm8851 = vcmp.ge.f32.partialorder %v8787, 0.0
    %v8852 = vmul.f32 %v8724, 0.01
    %v8853 = vmul.f32 %v8725, 0.01
    %v8854 = vmul.f32 %v8726, 0.01
    %v8855 = vmul.f32 %v8727, 0.01
    %v8856 = vmul.f32 %v8728, 0.01
    %v8857 = vmul.f32 %v8729, 0.01
    %v8858 = vmul.f32 %v8730, 0.01
    %v8859 = vmul.f32 %v8731, 0.01
    %v8860 = vmul.f32 %v8732, 0.01
    %v8861 = vmul.f32 %v8733, 0.01
    %v8862 = vmul.f32 %v8734, 0.01
    %v8863 = vmul.f32 %v8735, 0.01
    %v8864 = vmul.f32 %v8736, 0.01
    %v8865 = vmul.f32 %v8737, 0.01
    %v8866 = vmul.f32 %v8738, 0.01
    %v8867 = vmul.f32 %v8739, 0.01
    %v8868 = vmul.f32 %v8740, 0.01
    %v8869 = vmul.f32 %v8741, 0.01
    %v8870 = vmul.f32 %v8742, 0.01
    %v8871 = vmul.f32 %v8743, 0.01
    %v8872 = vmul.f32 %v8744, 0.01
    %v8873 = vmul.f32 %v8745, 0.01
    %v8874 = vmul.f32 %v8746, 0.01
    %v8875 = vmul.f32 %v8747, 0.01
    %v8876 = vmul.f32 %v8748, 0.01
    %v8877 = vmul.f32 %v8749, 0.01
    %v8878 = vmul.f32 %v8750, 0.01
    %v8879 = vmul.f32 %v8751, 0.01
    %v8880 = vmul.f32 %v8752, 0.01
    %v8881 = vmul.f32 %v8753, 0.01
    %v8882 = vmul.f32 %v8754, 0.01
    %v8883 = vmul.f32 %v8755, 0.01
    %v8884 = vmul.f32 %v8756, 0.01
    %v8885 = vmul.f32 %v8757, 0.01
    %v8886 = vmul.f32 %v8758, 0.01
    %v8887 = vmul.f32 %v8759, 0.01
    %v8888 = vmul.f32 %v8760, 0.01
    %v8889 = vmul.f32 %v8761, 0.01
    %v8890 = vmul.f32 %v8762, 0.01
    %v8891 = vmul.f32 %v8763, 0.01
    %v8892 = vmul.f32 %v8764, 0.01
    %v8893 = vmul.f32 %v8765, 0.01
    %v8894 = vmul.f32 %v8766, 0.01
    %v8895 = vmul.f32 %v8767, 0.01
    %v8896 = vmul.f32 %v8768, 0.01
    %v8897 = vmul.f32 %v8769, 0.01
    %v8898 = vmul.f32 %v8770, 0.01
    %v8899 = vmul.f32 %v8771, 0.01
    %v8900 = vmul.f32 %v8772, 0.01
    %v8901 = vmul.f32 %v8773, 0.01
    %v8902 = vmul.f32 %v8774, 0.01
    %v8903 = vmul.f32 %v8775, 0.01
    %v8904 = vmul.f32 %v8776, 0.01
    %v8905 = vmul.f32 %v8777, 0.01
    %v8906 = vmul.f32 %v8778, 0.01
    %v8907 = vmul.f32 %v8779, 0.01
    %v8908 = vmul.f32 %v8780, 0.01
    %v8909 = vmul.f32 %v8781, 0.01
    %v8910 = vmul.f32 %v8782, 0.01
    %v8911 = vmul.f32 %v8783, 0.01
    %v8912 = vmul.f32 %v8784, 0.01
    %v8913 = vmul.f32 %v8785, 0.01
    %v8914 = vmul.f32 %v8786, 0.01
    %v8915 = vmul.f32 %v8787, 0.01
    %v8916 = vsel %vm8788, %v8724, %v8852
    %v8917 = vsel %vm8789, %v8725, %v8853
    %v8918 = vsel %vm8790, %v8726, %v8854
    %v8919 = vsel %vm8791, %v8727, %v8855
    %v8920 = vsel %vm8792, %v8728, %v8856
    %v8921 = vsel %vm8793, %v8729, %v8857
    %v8922 = vsel %vm8794, %v8730, %v8858
    %v8923 = vsel %vm8795, %v8731, %v8859
    %v8924 = vsel %vm8796, %v8732, %v8860
    %v8925 = vsel %vm8797, %v8733, %v8861
    %v8926 = vsel %vm8798, %v8734, %v8862
    %v8927 = vsel %vm8799, %v8735, %v8863
    %v8928 = vsel %vm8800, %v8736, %v8864
    %v8929 = vsel %vm8801, %v8737, %v8865
    %v8930 = vsel %vm8802, %v8738, %v8866
    %v8931 = vsel %vm8803, %v8739, %v8867
    %v8932 = vsel %vm8804, %v8740, %v8868
    %v8933 = vsel %vm8805, %v8741, %v8869
    %v8934 = vsel %vm8806, %v8742, %v8870
    %v8935 = vsel %vm8807, %v8743, %v8871
    %v8936 = vsel %vm8808, %v8744, %v8872
    %v8937 = vsel %vm8809, %v8745, %v8873
    %v8938 = vsel %vm8810, %v8746, %v8874
    %v8939 = vsel %vm8811, %v8747, %v8875
    %v8940 = vsel %vm8812, %v8748, %v8876
    %v8941 = vsel %vm8813, %v8749, %v8877
    %v8942 = vsel %vm8814, %v8750, %v8878
    %v8943 = vsel %vm8815, %v8751, %v8879
    %v8944 = vsel %vm8816, %v8752, %v8880
    %v8945 = vsel %vm8817, %v8753, %v8881
    %v8946 = vsel %vm8818, %v8754, %v8882
    %v8947 = vsel %vm8819, %v8755, %v8883
    %v8948 = vsel %vm8820, %v8756, %v8884
    %v8949 = vsel %vm8821, %v8757, %v8885
    %v8950 = vsel %vm8822, %v8758, %v8886
    %v8951 = vsel %vm8823, %v8759, %v8887
    %v8952 = vsel %vm8824, %v8760, %v8888
    %v8953 = vsel %vm8825, %v8761, %v8889
    %v8954 = vsel %vm8826, %v8762, %v8890
    %v8955 = vsel %vm8827, %v8763, %v8891
    %v8956 = vsel %vm8828, %v8764, %v8892
    %v8957 = vsel %vm8829, %v8765, %v8893
    %v8958 = vsel %vm8830, %v8766, %v8894
    %v8959 = vsel %vm8831, %v8767, %v8895
    %v8960 = vsel %vm8832, %v8768, %v8896
    %v8961 = vsel %vm8833, %v8769, %v8897
    %v8962 = vsel %vm8834, %v8770, %v8898
    %v8963 = vsel %vm8835, %v8771, %v8899
    %v8964 = vsel %vm8836, %v8772, %v8900
    %v8965 = vsel %vm8837, %v8773, %v8901
    %v8966 = vsel %vm8838, %v8774, %v8902
    %v8967 = vsel %vm8839, %v8775, %v8903
    %v8968 = vsel %vm8840, %v8776, %v8904
    %v8969 = vsel %vm8841, %v8777, %v8905
    %v8970 = vsel %vm8842, %v8778, %v8906
    %v8971 = vsel %vm8843, %v8779, %v8907
    %v8972 = vsel %vm8844, %v8780, %v8908
    %v8973 = vsel %vm8845, %v8781, %v8909
    %v8974 = vsel %vm8846, %v8782, %v8910
    %v8975 = vsel %vm8847, %v8783, %v8911
    %v8976 = vsel %vm8848, %v8784, %v8912
    %v8977 = vsel %vm8849, %v8785, %v8913
    %v8978 = vsel %vm8850, %v8786, %v8914
    %v8979 = vsel %vm8851, %v8787, %v8915
    %v8980 = vmax.f32 %v8916, %v8918
    %v8981 = vmax.f32 %v8917, %v8919
    %v8982 = vmax.f32 %v8920, %v8922
    %v8983 = vmax.f32 %v8921, %v8923
    %v8984 = vmax.f32 %v8924, %v8926
    %v8985 = vmax.f32 %v8925, %v8927
    %v8986 = vmax.f32 %v8928, %v8930
    %v8987 = vmax.f32 %v8929, %v8931
    %v8988 = vmax.f32 %v8932, %v8934
    %v8989 = vmax.f32 %v8933, %v8935
    %v8990 = vmax.f32 %v8936, %v8938
    %v8991 = vmax.f32 %v8937, %v8939
    %v8992 = vmax.f32 %v8940, %v8942
    %v8993 = vmax.f32 %v8941, %v8943
    %v8994 = vmax.f32 %v8944, %v8946
    %v8995 = vmax.f32 %v8945, %v8947
    %v8996 = vmax.f32 %v8948, %v8950
    %v8997 = vmax.f32 %v8949, %v8951
    %v8998 = vmax.f32 %v8952, %v8954
    %v8999 = vmax.f32 %v8953, %v8955
    %v9000 = vmax.f32 %v8956, %v8958
    %v9001 = vmax.f32 %v8957, %v8959
    %v9002 = vmax.f32 %v8960, %v8962
    %v9003 = vmax.f32 %v8961, %v8963
    %v9004 = vmax.f32 %v8964, %v8966
    %v9005 = vmax.f32 %v8965, %v8967
    %v9006 = vmax.f32 %v8968, %v8970
    %v9007 = vmax.f32 %v8969, %v8971
    %v9008 = vmax.f32 %v8972, %v8974
    %v9009 = vmax.f32 %v8973, %v8975
    %v9010 = vmax.f32 %v8976, %v8978
    %v9011 = vmax.f32 %v8977, %v8979
    %v9028 = vrot.slane %v8980, 1
    %v9029 = vrot.slane %v8982, 1
    %v9030 = vrot.slane %v8984, 1
    %v9031 = vrot.slane %v8986, 1
    %v9032 = vrot.slane %v8988, 1
    %v9033 = vrot.slane %v8990, 1
    %v9034 = vrot.slane %v8992, 1
    %v9035 = vrot.slane %v8994, 1
    %v9036 = vrot.slane %v8996, 1
    %v9037 = vrot.slane %v8998, 1
    %v9038 = vrot.slane %v9000, 1
    %v9039 = vrot.slane %v9002, 1
    %v9040 = vrot.slane %v9004, 1
    %v9041 = vrot.slane %v9006, 1
    %v9042 = vrot.slane %v9008, 1
    %v9043 = vrot.slane %v9010, 1
    %v9060 = vmax.f32 %v8980, %v9028
    %v9061 = vmax.f32 %v8982, %v9029
    %v9062 = vmax.f32 %v8984, %v9030
    %v9063 = vmax.f32 %v8986, %v9031
    %v9064 = vmax.f32 %v8988, %v9032
    %v9065 = vmax.f32 %v8990, %v9033
    %v9066 = vmax.f32 %v8992, %v9034
    %v9067 = vmax.f32 %v8994, %v9035
    %v9068 = vmax.f32 %v8996, %v9036
    %v9069 = vmax.f32 %v8998, %v9037
    %v9070 = vmax.f32 %v9000, %v9038
    %v9071 = vmax.f32 %v9002, %v9039
    %v9072 = vmax.f32 %v9004, %v9040
    %v9073 = vmax.f32 %v9006, %v9041
    %v9074 = vmax.f32 %v9008, %v9042
    %v9075 = vmax.f32 %v9010, %v9043
    %v9092 = vrot.slane %v8981, 1
    %v9093 = vrot.slane %v8983, 1
    %v9094 = vrot.slane %v8985, 1
    %v9095 = vrot.slane %v8987, 1
    %v9096 = vrot.slane %v8989, 1
    %v9097 = vrot.slane %v8991, 1
    %v9098 = vrot.slane %v8993, 1
    %v9099 = vrot.slane %v8995, 1
    %v9100 = vrot.slane %v8997, 1
    %v9101 = vrot.slane %v8999, 1
    %v9102 = vrot.slane %v9001, 1
    %v9103 = vrot.slane %v9003, 1
    %v9104 = vrot.slane %v9005, 1
    %v9105 = vrot.slane %v9007, 1
    %v9106 = vrot.slane %v9009, 1
    %v9107 = vrot.slane %v9011, 1
    %v9124 = vmax.f32 %v8981, %v9092
    %v9125 = vmax.f32 %v8983, %v9093
    %v9126 = vmax.f32 %v8985, %v9094
    %v9127 = vmax.f32 %v8987, %v9095
    %v9128 = vmax.f32 %v8989, %v9096
    %v9129 = vmax.f32 %v8991, %v9097
    %v9130 = vmax.f32 %v8993, %v9098
    %v9131 = vmax.f32 %v8995, %v9099
    %v9132 = vmax.f32 %v8997, %v9100
    %v9133 = vmax.f32 %v8999, %v9101
    %v9134 = vmax.f32 %v9001, %v9102
    %v9135 = vmax.f32 %v9003, %v9103
    %v9136 = vmax.f32 %v9005, %v9104
    %v9137 = vmax.f32 %v9007, %v9105
    %v9138 = vmax.f32 %v9009, %v9106
    %v9139 = vmax.f32 %v9011, %v9107
    %v9156 = vrot.slane %v9060, 1
    %v9157 = vrot.slane %v9061, 1
    %v9158 = vrot.slane %v9062, 1
    %v9159 = vrot.slane %v9063, 1
    %v9160 = vrot.slane %v9064, 1
    %v9161 = vrot.slane %v9065, 1
    %v9162 = vrot.slane %v9066, 1
    %v9163 = vrot.slane %v9067, 1
    %v9164 = vrot.slane %v9068, 1
    %v9165 = vrot.slane %v9069, 1
    %v9166 = vrot.slane %v9070, 1
    %v9167 = vrot.slane %v9071, 1
    %v9168 = vrot.slane %v9072, 1
    %v9169 = vrot.slane %v9073, 1
    %v9170 = vrot.slane %v9074, 1
    %v9171 = vrot.slane %v9075, 1
    %v9188 = vrot.slane %v9060, 2
    %v9189 = vrot.slane %v9061, 2
    %v9190 = vrot.slane %v9062, 2
    %v9191 = vrot.slane %v9063, 2
    %v9192 = vrot.slane %v9064, 2
    %v9193 = vrot.slane %v9065, 2
    %v9194 = vrot.slane %v9066, 2
    %v9195 = vrot.slane %v9067, 2
    %v9196 = vrot.slane %v9068, 2
    %v9197 = vrot.slane %v9069, 2
    %v9198 = vrot.slane %v9070, 2
    %v9199 = vrot.slane %v9071, 2
    %v9200 = vrot.slane %v9072, 2
    %v9201 = vrot.slane %v9073, 2
    %v9202 = vrot.slane %v9074, 2
    %v9203 = vrot.slane %v9075, 2
    %v9220 = vrot.slane %v9060, 3
    %v9221 = vrot.slane %v9061, 3
    %v9222 = vrot.slane %v9062, 3
    %v9223 = vrot.slane %v9063, 3
    %v9224 = vrot.slane %v9064, 3
    %v9225 = vrot.slane %v9065, 3
    %v9226 = vrot.slane %v9066, 3
    %v9227 = vrot.slane %v9067, 3
    %v9228 = vrot.slane %v9068, 3
    %v9229 = vrot.slane %v9069, 3
    %v9230 = vrot.slane %v9070, 3
    %v9231 = vrot.slane %v9071, 3
    %v9232 = vrot.slane %v9072, 3
    %v9233 = vrot.slane %v9073, 3
    %v9234 = vrot.slane %v9074, 3
    %v9235 = vrot.slane %v9075, 3
    %v9268 = vrot.slane %v9124, 4
    %v9269 = vrot.slane %v9125, 4
    %v9270 = vrot.slane %v9126, 4
    %v9271 = vrot.slane %v9127, 4
    %v9272 = vrot.slane %v9128, 4
    %v9273 = vrot.slane %v9129, 4
    %v9274 = vrot.slane %v9130, 4
    %v9275 = vrot.slane %v9131, 4
    %v9276 = vrot.slane %v9132, 4
    %v9277 = vrot.slane %v9133, 4
    %v9278 = vrot.slane %v9134, 4
    %v9279 = vrot.slane %v9135, 4
    %v9280 = vrot.slane %v9136, 4
    %v9281 = vrot.slane %v9137, 4
    %v9282 = vrot.slane %v9138, 4
    %v9283 = vrot.slane %v9139, 4
    %v9300 = vrot.slane %v9124, 5
    %v9301 = vrot.slane %v9125, 5
    %v9302 = vrot.slane %v9126, 5
    %v9303 = vrot.slane %v9127, 5
    %v9304 = vrot.slane %v9128, 5
    %v9305 = vrot.slane %v9129, 5
    %v9306 = vrot.slane %v9130, 5
    %v9307 = vrot.slane %v9131, 5
    %v9308 = vrot.slane %v9132, 5
    %v9309 = vrot.slane %v9133, 5
    %v9310 = vrot.slane %v9134, 5
    %v9311 = vrot.slane %v9135, 5
    %v9312 = vrot.slane %v9136, 5
    %v9313 = vrot.slane %v9137, 5
    %v9314 = vrot.slane %v9138, 5
    %v9315 = vrot.slane %v9139, 5
    %v9332 = vrot.slane %v9124, 6
    %v9333 = vrot.slane %v9125, 6
    %v9334 = vrot.slane %v9126, 6
    %v9335 = vrot.slane %v9127, 6
    %v9336 = vrot.slane %v9128, 6
    %v9337 = vrot.slane %v9129, 6
    %v9338 = vrot.slane %v9130, 6
    %v9339 = vrot.slane %v9131, 6
    %v9340 = vrot.slane %v9132, 6
    %v9341 = vrot.slane %v9133, 6
    %v9342 = vrot.slane %v9134, 6
    %v9343 = vrot.slane %v9135, 6
    %v9344 = vrot.slane %v9136, 6
    %v9345 = vrot.slane %v9137, 6
    %v9346 = vrot.slane %v9138, 6
    %v9347 = vrot.slane %v9139, 6
    %v9364 = vrot.slane %v9124, 7
    %v9365 = vrot.slane %v9125, 7
    %v9366 = vrot.slane %v9126, 7
    %v9367 = vrot.slane %v9127, 7
    %v9368 = vrot.slane %v9128, 7
    %v9369 = vrot.slane %v9129, 7
    %v9370 = vrot.slane %v9130, 7
    %v9371 = vrot.slane %v9131, 7
    %v9372 = vrot.slane %v9132, 7
    %v9373 = vrot.slane %v9133, 7
    %v9374 = vrot.slane %v9134, 7
    %v9375 = vrot.slane %v9135, 7
    %v9376 = vrot.slane %v9136, 7
    %v9377 = vrot.slane %v9137, 7
    %v9378 = vrot.slane %v9138, 7
    %v9379 = vrot.slane %v9139, 7
    %v9396 = vsel %vm190, %v9060, %v9156
    %v9397 = vsel %vm190, %v9061, %v9157
    %v9398 = vsel %vm190, %v9062, %v9158
    %v9399 = vsel %vm190, %v9063, %v9159
    %v9400 = vsel %vm190, %v9064, %v9160
    %v9401 = vsel %vm190, %v9065, %v9161
    %v9402 = vsel %vm190, %v9066, %v9162
    %v9403 = vsel %vm190, %v9067, %v9163
    %v9404 = vsel %vm190, %v9068, %v9164
    %v9405 = vsel %vm190, %v9069, %v9165
    %v9406 = vsel %vm190, %v9070, %v9166
    %v9407 = vsel %vm190, %v9071, %v9167
    %v9408 = vsel %vm190, %v9072, %v9168
    %v9409 = vsel %vm190, %v9073, %v9169
    %v9410 = vsel %vm190, %v9074, %v9170
    %v9411 = vsel %vm190, %v9075, %v9171
    %vm9412 = vcmask 1041408
    %v9413 = vsel %vm9412, %v9396, %v9188
    %v9414 = vsel %vm9412, %v9397, %v9189
    %v9415 = vsel %vm9412, %v9398, %v9190
    %v9416 = vsel %vm9412, %v9399, %v9191
    %v9417 = vsel %vm9412, %v9400, %v9192
    %v9418 = vsel %vm9412, %v9401, %v9193
    %v9419 = vsel %vm9412, %v9402, %v9194
    %v9420 = vsel %vm9412, %v9403, %v9195
    %v9421 = vsel %vm9412, %v9404, %v9196
    %v9422 = vsel %vm9412, %v9405, %v9197
    %v9423 = vsel %vm9412, %v9406, %v9198
    %v9424 = vsel %vm9412, %v9407, %v9199
    %v9425 = vsel %vm9412, %v9408, %v9200
    %v9426 = vsel %vm9412, %v9409, %v9201
    %v9427 = vsel %vm9412, %v9410, %v9202
    %v9428 = vsel %vm9412, %v9411, %v9203
    %vm9429 = vcmask 1042432
    %v9430 = vsel %vm9429, %v9413, %v9220
    %v9431 = vsel %vm9429, %v9414, %v9221
    %v9432 = vsel %vm9429, %v9415, %v9222
    %v9433 = vsel %vm9429, %v9416, %v9223
    %v9434 = vsel %vm9429, %v9417, %v9224
    %v9435 = vsel %vm9429, %v9418, %v9225
    %v9436 = vsel %vm9429, %v9419, %v9226
    %v9437 = vsel %vm9429, %v9420, %v9227
    %v9438 = vsel %vm9429, %v9421, %v9228
    %v9439 = vsel %vm9429, %v9422, %v9229
    %v9440 = vsel %vm9429, %v9423, %v9230
    %v9441 = vsel %vm9429, %v9424, %v9231
    %v9442 = vsel %vm9429, %v9425, %v9232
    %v9443 = vsel %vm9429, %v9426, %v9233
    %v9444 = vsel %vm9429, %v9427, %v9234
    %v9445 = vsel %vm9429, %v9428, %v9235
    %vm9446 = vcmask 1043456
    %v9447 = vsel %vm9446, %v9430, %v9268
    %v9448 = vsel %vm9446, %v9431, %v9269
    %v9449 = vsel %vm9446, %v9432, %v9270
    %v9450 = vsel %vm9446, %v9433, %v9271
    %v9451 = vsel %vm9446, %v9434, %v9272
    %v9452 = vsel %vm9446, %v9435, %v9273
    %v9453 = vsel %vm9446, %v9436, %v9274
    %v9454 = vsel %vm9446, %v9437, %v9275
    %v9455 = vsel %vm9446, %v9438, %v9276
    %v9456 = vsel %vm9446, %v9439, %v9277
    %v9457 = vsel %vm9446, %v9440, %v9278
    %v9458 = vsel %vm9446, %v9441, %v9279
    %v9459 = vsel %vm9446, %v9442, %v9280
    %v9460 = vsel %vm9446, %v9443, %v9281
    %v9461 = vsel %vm9446, %v9444, %v9282
    %v9462 = vsel %vm9446, %v9445, %v9283
    %vm9463 = vcmask 1044480
    %v9464 = vsel %vm9463, %v9447, %v9300
    %v9465 = vsel %vm9463, %v9448, %v9301
    %v9466 = vsel %vm9463, %v9449, %v9302
    %v9467 = vsel %vm9463, %v9450, %v9303
    %v9468 = vsel %vm9463, %v9451, %v9304
    %v9469 = vsel %vm9463, %v9452, %v9305
    %v9470 = vsel %vm9463, %v9453, %v9306
    %v9471 = vsel %vm9463, %v9454, %v9307
    %v9472 = vsel %vm9463, %v9455, %v9308
    %v9473 = vsel %vm9463, %v9456, %v9309
    %v9474 = vsel %vm9463, %v9457, %v9310
    %v9475 = vsel %vm9463, %v9458, %v9311
    %v9476 = vsel %vm9463, %v9459, %v9312
    %v9477 = vsel %vm9463, %v9460, %v9313
    %v9478 = vsel %vm9463, %v9461, %v9314
    %v9479 = vsel %vm9463, %v9462, %v9315
    %v9480 = vsel %vm1644, %v9464, %v9332
    %v9481 = vsel %vm1644, %v9465, %v9333
    %v9482 = vsel %vm1644, %v9466, %v9334
    %v9483 = vsel %vm1644, %v9467, %v9335
    %v9484 = vsel %vm1644, %v9468, %v9336
    %v9485 = vsel %vm1644, %v9469, %v9337
    %v9486 = vsel %vm1644, %v9470, %v9338
    %v9487 = vsel %vm1644, %v9471, %v9339
    %v9488 = vsel %vm1644, %v9472, %v9340
    %v9489 = vsel %vm1644, %v9473, %v9341
    %v9490 = vsel %vm1644, %v9474, %v9342
    %v9491 = vsel %vm1644, %v9475, %v9343
    %v9492 = vsel %vm1644, %v9476, %v9344
    %v9493 = vsel %vm1644, %v9477, %v9345
    %v9494 = vsel %vm1644, %v9478, %v9346
    %v9495 = vsel %vm1644, %v9479, %v9347
    %v9496 = vsel %vm1174, %v9480, %v9364
    %v9497 = vsel %vm1174, %v9481, %v9365
    %v9498 = vsel %vm1174, %v9482, %v9366
    %v9499 = vsel %vm1174, %v9483, %v9367
    %v9500 = vsel %vm1174, %v9484, %v9368
    %v9501 = vsel %vm1174, %v9485, %v9369
    %v9502 = vsel %vm1174, %v9486, %v9370
    %v9503 = vsel %vm1174, %v9487, %v9371
    %v9504 = vsel %vm1174, %v9488, %v9372
    %v9505 = vsel %vm1174, %v9489, %v9373
    %v9506 = vsel %vm1174, %v9490, %v9374
    %v9507 = vsel %vm1174, %v9491, %v9375
    %v9508 = vsel %vm1174, %v9492, %v9376
    %v9509 = vsel %vm1174, %v9493, %v9377
    %v9510 = vsel %vm1174, %v9494, %v9378
    %v9511 = vsel %vm1174, %v9495, %v9379
    %v9512 = vld [vmem:[%s7] sm:$0xf]
    %v9513 = vld [vmem:[%s7 + $0x4] sm:$0xf]
    %v9514 = vld [vmem:[%s7 + $0x8] sm:$0xf]
    %v9515 = vld [vmem:[%s7 + $0xc] sm:$0xf]
    %v9516 = vld [vmem:[%s7 + $0x10] sm:$0xf]
    %v9517 = vld [vmem:[%s7 + $0x14] sm:$0xf]
    %v9518 = vld [vmem:[%s7 + $0x18] sm:$0xf]
    %v9519 = vld [vmem:[%s7 + $0x1c] sm:$0xf]
    %v9520 = vld [vmem:[%s7 + $0x20] sm:$0xf]
    %v9521 = vld [vmem:[%s7 + $0x24] sm:$0xf]
    %v9522 = vld [vmem:[%s7 + $0x28] sm:$0xf]
    %v9523 = vld [vmem:[%s7 + $0x2c] sm:$0xf]
    %v9524 = vld [vmem:[%s7 + $0x30] sm:$0xf]
    %v9525 = vld [vmem:[%s7 + $0x34] sm:$0xf]
    %v9526 = vld [vmem:[%s7 + $0x38] sm:$0xf]
    %v9527 = vld [vmem:[%s7 + $0x3c] sm:$0xf]
    %v9528 = vld [vmem:[%s7 + $0x40] sm:$0xf]
    %v9529 = vld [vmem:[%s7 + $0x44] sm:$0xf]
    %v9530 = vld [vmem:[%s7 + $0x48] sm:$0xf]
    %v9531 = vld [vmem:[%s7 + $0x4c] sm:$0xf]
    %v9532 = vld [vmem:[%s7 + $0x50] sm:$0xf]
    %v9533 = vld [vmem:[%s7 + $0x54] sm:$0xf]
    %v9534 = vld [vmem:[%s7 + $0x58] sm:$0xf]
    %v9535 = vld [vmem:[%s7 + $0x5c] sm:$0xf]
    %v9536 = vld [vmem:[%s7 + $0x60] sm:$0xf]
    %v9537 = vld [vmem:[%s7 + $0x64] sm:$0xf]
    %v9538 = vld [vmem:[%s7 + $0x68] sm:$0xf]
    %v9539 = vld [vmem:[%s7 + $0x6c] sm:$0xf]
    %v9540 = vld [vmem:[%s7 + $0x70] sm:$0xf]
    %v9541 = vld [vmem:[%s7 + $0x74] sm:$0xf]
    %v9542 = vld [vmem:[%s7 + $0x78] sm:$0xf]
    %v9543 = vld [vmem:[%s7 + $0x7c] sm:$0xf]
    %v9544 = vld [vmem:[%s7 + $0x80] sm:$0xf]
    %v9545 = vld [vmem:[%s7 + $0x84] sm:$0xf]
    %v9546 = vld [vmem:[%s7 + $0x88] sm:$0xf]
    %v9547 = vld [vmem:[%s7 + $0x8c] sm:$0xf]
    %v9548 = vld [vmem:[%s8] sm:$0x1]
    %v9549 = vld [vmem:[%s9] sm:$0x1]
    %v9566 = vrot.slane %v9496, 7
    %v9567 = vrot.slane %v9497, 7
    %v9568 = vrot.slane %v9498, 7
    %v9569 = vrot.slane %v9499, 7
    %v9570 = vrot.slane %v9500, 7
    %v9571 = vrot.slane %v9501, 7
    %v9572 = vrot.slane %v9502, 7
    %v9573 = vrot.slane %v9503, 7
    %v9574 = vrot.slane %v9504, 7
    %v9575 = vrot.slane %v9505, 7
    %v9576 = vrot.slane %v9506, 7
    %v9577 = vrot.slane %v9507, 7
    %v9578 = vrot.slane %v9508, 7
    %v9579 = vrot.slane %v9509, 7
    %v9580 = vrot.slane %v9510, 7
    %v9581 = vrot.slane %v9511, 7
    %v9598 = vsel %vm190, 0.0, %v9566
    %v9599 = vsel %vm190, 0.0, %v9567
    %v9600 = vsel %vm190, 0.0, %v9568
    %v9601 = vsel %vm190, 0.0, %v9569
    %v9602 = vsel %vm190, 0.0, %v9570
    %v9603 = vsel %vm190, 0.0, %v9571
    %v9604 = vsel %vm190, 0.0, %v9572
    %v9605 = vsel %vm190, 0.0, %v9573
    %v9606 = vsel %vm190, 0.0, %v9574
    %v9607 = vsel %vm190, 0.0, %v9575
    %v9608 = vsel %vm190, 0.0, %v9576
    %v9609 = vsel %vm190, 0.0, %v9577
    %v9610 = vsel %vm190, 0.0, %v9578
    %v9611 = vsel %vm190, 0.0, %v9579
    %v9612 = vsel %vm190, 0.0, %v9580
    %v9613 = vsel %vm190, 0.0, %v9581
    %v9614 = vsel %vm190, %v9566, 0.0
    %v9615 = vsel %vm190, %v9567, 0.0
    %v9616 = vsel %vm190, %v9568, 0.0
    %v9617 = vsel %vm190, %v9569, 0.0
    %v9618 = vsel %vm190, %v9570, 0.0
    %v9619 = vsel %vm190, %v9571, 0.0
    %v9620 = vsel %vm190, %v9572, 0.0
    %v9621 = vsel %vm190, %v9573, 0.0
    %v9622 = vsel %vm190, %v9574, 0.0
    %v9623 = vsel %vm190, %v9575, 0.0
    %v9624 = vsel %vm190, %v9576, 0.0
    %v9625 = vsel %vm190, %v9577, 0.0
    %v9626 = vsel %vm190, %v9578, 0.0
    %v9627 = vsel %vm190, %v9579, 0.0
    %v9628 = vsel %vm190, %v9580, 0.0
    %v9629 = vsel %vm190, %v9581, 0.0
    %v9658 = vsel %vm1174, %v5340, %v5343
    %v9659 = vrot.slane %v9598, 1
    %v9660 = vrot.slane %v9614, 1
    %v9661 = vsel %vm1174, %v9659, %v9660
    %v9662 = vrot.slane %v9599, 1
    %v9663 = vrot.slane %v9615, 1
    %v9664 = vsel %vm1174, %v9662, %v9663
    %v9665 = vrot.slane %v9600, 1
    %v9666 = vrot.slane %v9616, 1
    %v9667 = vsel %vm1174, %v9665, %v9666
    %v9668 = vrot.slane %v9601, 1
    %v9669 = vrot.slane %v9617, 1
    %v9670 = vsel %vm1174, %v9668, %v9669
    %v9671 = vrot.slane %v9602, 1
    %v9672 = vrot.slane %v9618, 1
    %v9673 = vsel %vm1174, %v9671, %v9672
    %v9674 = vrot.slane %v9603, 1
    %v9675 = vrot.slane %v9619, 1
    %v9676 = vsel %vm1174, %v9674, %v9675
    %v9677 = vrot.slane %v9604, 1
    %v9678 = vrot.slane %v9620, 1
    %v9679 = vsel %vm1174, %v9677, %v9678
    %v9680 = vrot.slane %v9606, 1
    %v9681 = vrot.slane %v9622, 1
    %v9682 = vsel %vm1174, %v9680, %v9681
    %v9683 = vrot.slane %v9607, 1
    %v9684 = vrot.slane %v9623, 1
    %v9685 = vsel %vm1174, %v9683, %v9684
    %v9686 = vrot.slane %v9608, 1
    %v9687 = vrot.slane %v9624, 1
    %v9688 = vsel %vm1174, %v9686, %v9687
    %v9689 = vrot.slane %v9609, 1
    %v9690 = vrot.slane %v9625, 1
    %v9691 = vsel %vm1174, %v9689, %v9690
    %v9692 = vrot.slane %v9610, 1
    %v9693 = vrot.slane %v9626, 1
    %v9694 = vsel %vm1174, %v9692, %v9693
    %v9695 = vrot.slane %v9611, 1
    %v9696 = vrot.slane %v9627, 1
    %v9697 = vsel %vm1174, %v9695, %v9696
    %v9698 = vrot.slane %v9612, 1
    %v9699 = vrot.slane %v9628, 1
    %v9700 = vsel %vm1174, %v9698, %v9699
    %9701 = vrot.lane.b32.xlu0 %v9658, 32
    %v9702 = vpop.permute.xlu0 %9701
    %9703 = vrot.lane.b32.xlu0 %v9661, 32
    %v9704 = vpop.permute.xlu0 %9703
    %9705 = vrot.lane.b32.xlu0 %v9664, 32
    %v9706 = vpop.permute.xlu0 %9705
    %9707 = vrot.lane.b32.xlu0 %v9667, 32
    %v9708 = vpop.permute.xlu0 %9707
    %9709 = vrot.lane.b32.xlu0 %v9670, 32
    %v9710 = vpop.permute.xlu0 %9709
    %9711 = vrot.lane.b32.xlu0 %v9673, 32
    %v9712 = vpop.permute.xlu0 %9711
    %9713 = vrot.lane.b32.xlu0 %v9676, 32
    %v9714 = vpop.permute.xlu0 %9713
    %9715 = vrot.lane.b32.xlu0 %v9679, 32
    %v9716 = vpop.permute.xlu0 %9715
    %9717 = vrot.lane.b32.xlu0 %v9682, 32
    %v9718 = vpop.permute.xlu0 %9717
    %9719 = vrot.lane.b32.xlu0 %v9685, 32
    %v9720 = vpop.permute.xlu0 %9719
    %9721 = vrot.lane.b32.xlu0 %v9688, 32
    %v9722 = vpop.permute.xlu0 %9721
    %9723 = vrot.lane.b32.xlu0 %v9691, 32
    %v9724 = vpop.permute.xlu0 %9723
    %9725 = vrot.lane.b32.xlu0 %v9694, 32
    %v9726 = vpop.permute.xlu0 %9725
    %9727 = vrot.lane.b32.xlu0 %v9697, 32
    %v9728 = vpop.permute.xlu0 %9727
    %9729 = vrot.lane.b32.xlu0 %v9700, 32
    %v9730 = vpop.permute.xlu0 %9729
    %v9746 = vsel %vm1644, %v5681, %v5684
    %v9747 = vrot.slane %v9598, 2
    %v9748 = vrot.slane %v9614, 2
    %v9749 = vsel %vm1644, %v9747, %v9748
    %v9750 = vrot.slane %v9599, 2
    %v9751 = vrot.slane %v9615, 2
    %v9752 = vsel %vm1644, %v9750, %v9751
    %v9753 = vrot.slane %v9600, 2
    %v9754 = vrot.slane %v9616, 2
    %v9755 = vsel %vm1644, %v9753, %v9754
    %v9756 = vrot.slane %v9601, 2
    %v9757 = vrot.slane %v9617, 2
    %v9758 = vsel %vm1644, %v9756, %v9757
    %v9759 = vrot.slane %v9602, 2
    %v9760 = vrot.slane %v9618, 2
    %v9761 = vsel %vm1644, %v9759, %v9760
    %v9762 = vrot.slane %v9603, 2
    %v9763 = vrot.slane %v9619, 2
    %v9764 = vsel %vm1644, %v9762, %v9763
    %v9765 = vrot.slane %v9604, 2
    %v9766 = vrot.slane %v9620, 2
    %v9767 = vsel %vm1644, %v9765, %v9766
    %v9768 = vrot.slane %v9606, 2
    %v9769 = vrot.slane %v9622, 2
    %v9770 = vsel %vm1644, %v9768, %v9769
    %v9771 = vrot.slane %v9607, 2
    %v9772 = vrot.slane %v9623, 2
    %v9773 = vsel %vm1644, %v9771, %v9772
    %v9774 = vrot.slane %v9608, 2
    %v9775 = vrot.slane %v9624, 2
    %v9776 = vsel %vm1644, %v9774, %v9775
    %v9777 = vrot.slane %v9609, 2
    %v9778 = vrot.slane %v9625, 2
    %v9779 = vsel %vm1644, %v9777, %v9778
    %v9780 = vrot.slane %v9610, 2
    %v9781 = vrot.slane %v9626, 2
    %v9782 = vsel %vm1644, %v9780, %v9781
    %v9783 = vrot.slane %v9611, 2
    %v9784 = vrot.slane %v9627, 2
    %v9785 = vsel %vm1644, %v9783, %v9784
    %v9786 = vrot.slane %v9612, 2
    %v9787 = vrot.slane %v9628, 2
    %v9788 = vsel %vm1644, %v9786, %v9787
    %9789 = vrot.lane.b32.xlu0 %v9746, 64
    %v9790 = vpop.permute.xlu0 %9789
    %9791 = vrot.lane.b32.xlu0 %v9749, 64
    %v9792 = vpop.permute.xlu0 %9791
    %9793 = vrot.lane.b32.xlu0 %v9752, 64
    %v9794 = vpop.permute.xlu0 %9793
    %9795 = vrot.lane.b32.xlu0 %v9755, 64
    %v9796 = vpop.permute.xlu0 %9795
    %9797 = vrot.lane.b32.xlu0 %v9758, 64
    %v9798 = vpop.permute.xlu0 %9797
    %9799 = vrot.lane.b32.xlu0 %v9761, 64
    %v9800 = vpop.permute.xlu0 %9799
    %9801 = vrot.lane.b32.xlu0 %v9764, 64
    %v9802 = vpop.permute.xlu0 %9801
    %9803 = vrot.lane.b32.xlu0 %v9767, 64
    %v9804 = vpop.permute.xlu0 %9803
    %9805 = vrot.lane.b32.xlu0 %v9770, 64
    %v9806 = vpop.permute.xlu0 %9805
    %9807 = vrot.lane.b32.xlu0 %v9773, 64
    %v9808 = vpop.permute.xlu0 %9807
    %9809 = vrot.lane.b32.xlu0 %v9776, 64
    %v9810 = vpop.permute.xlu0 %9809
    %9811 = vrot.lane.b32.xlu0 %v9779, 64
    %v9812 = vpop.permute.xlu0 %9811
    %9813 = vrot.lane.b32.xlu0 %v9782, 64
    %v9814 = vpop.permute.xlu0 %9813
    %9815 = vrot.lane.b32.xlu0 %v9785, 64
    %v9816 = vpop.permute.xlu0 %9815
    %9817 = vrot.lane.b32.xlu0 %v9788, 64
    %v9818 = vpop.permute.xlu0 %9817
    %9836 = vrot.lane.b32.xlu0 %v9598, 96
    %v9837 = vpop.permute.xlu0 %9836
    %9838 = vrot.lane.b32.xlu0 %v9599, 96
    %v9839 = vpop.permute.xlu0 %9838
    %9840 = vrot.lane.b32.xlu0 %v9600, 96
    %v9841 = vpop.permute.xlu0 %9840
    %9842 = vrot.lane.b32.xlu0 %v9601, 96
    %v9843 = vpop.permute.xlu0 %9842
    %9844 = vrot.lane.b32.xlu0 %v9602, 96
    %v9845 = vpop.permute.xlu0 %9844
    %9846 = vrot.lane.b32.xlu0 %v9603, 96
    %v9847 = vpop.permute.xlu0 %9846
    %9848 = vrot.lane.b32.xlu0 %v9604, 96
    %v9849 = vpop.permute.xlu0 %9848
    %9850 = vrot.lane.b32.xlu0 %v9605, 96
    %v9851 = vpop.permute.xlu0 %9850
    %9852 = vrot.lane.b32.xlu0 %v9606, 96
    %v9853 = vpop.permute.xlu0 %9852
    %9854 = vrot.lane.b32.xlu0 %v9607, 96
    %v9855 = vpop.permute.xlu0 %9854
    %9856 = vrot.lane.b32.xlu0 %v9608, 96
    %v9857 = vpop.permute.xlu0 %9856
    %9858 = vrot.lane.b32.xlu0 %v9609, 96
    %v9859 = vpop.permute.xlu0 %9858
    %9860 = vrot.lane.b32.xlu0 %v9610, 96
    %v9861 = vpop.permute.xlu0 %9860
    %9862 = vrot.lane.b32.xlu0 %v9611, 96
    %v9863 = vpop.permute.xlu0 %9862
    %9864 = vrot.lane.b32.xlu0 %v9612, 96
    %v9865 = vpop.permute.xlu0 %9864
    %9866 = vrot.lane.b32.xlu0 %v9613, 96
    %v9867 = vpop.permute.xlu0 %9866
    %v9886 = vrot.slane %v9605, 1
    %v9887 = vrot.slane %v9621, 1
    %v9888 = vsel %vm1174, %v9886, %v9887
    %v9889 = vrot.slane %v9613, 1
    %v9890 = vrot.slane %v9629, 1
    %v9891 = vsel %vm1174, %v9889, %v9890
    %v9908 = vrot.slane %v9605, 2
    %v9909 = vrot.slane %v9621, 2
    %v9910 = vsel %vm1644, %v9908, %v9909
    %v9911 = vrot.slane %v9613, 2
    %v9912 = vrot.slane %v9629, 2
    %v9913 = vsel %vm1644, %v9911, %v9912
    %9914 = vrot.lane.b32.xlu0 %v9749, 32
    %v9915 = vpop.permute.xlu0 %9914
    %9916 = vrot.lane.b32.xlu0 %v9752, 32
    %v9917 = vpop.permute.xlu0 %9916
    %9918 = vrot.lane.b32.xlu0 %v9755, 32
    %v9919 = vpop.permute.xlu0 %9918
    %9920 = vrot.lane.b32.xlu0 %v9758, 32
    %v9921 = vpop.permute.xlu0 %9920
    %9922 = vrot.lane.b32.xlu0 %v9761, 32
    %v9923 = vpop.permute.xlu0 %9922
    %9924 = vrot.lane.b32.xlu0 %v9764, 32
    %v9925 = vpop.permute.xlu0 %9924
    %9926 = vrot.lane.b32.xlu0 %v9767, 32
    %v9927 = vpop.permute.xlu0 %9926
    %9928 = vrot.lane.b32.xlu0 %v9910, 32
    %v9929 = vpop.permute.xlu0 %9928
    %9930 = vrot.lane.b32.xlu0 %v9770, 32
    %v9931 = vpop.permute.xlu0 %9930
    %9932 = vrot.lane.b32.xlu0 %v9773, 32
    %v9933 = vpop.permute.xlu0 %9932
    %9934 = vrot.lane.b32.xlu0 %v9776, 32
    %v9935 = vpop.permute.xlu0 %9934
    %9936 = vrot.lane.b32.xlu0 %v9779, 32
    %v9937 = vpop.permute.xlu0 %9936
    %9938 = vrot.lane.b32.xlu0 %v9782, 32
    %v9939 = vpop.permute.xlu0 %9938
    %9940 = vrot.lane.b32.xlu0 %v9785, 32
    %v9941 = vpop.permute.xlu0 %9940
    %9942 = vrot.lane.b32.xlu0 %v9788, 32
    %v9943 = vpop.permute.xlu0 %9942
    %9944 = vrot.lane.b32.xlu0 %v9913, 32
    %v9945 = vpop.permute.xlu0 %9944
    %9962 = vrot.lane.b32.xlu0 %v9599, 64
    %v9963 = vpop.permute.xlu0 %9962
    %9964 = vrot.lane.b32.xlu0 %v9600, 64
    %v9965 = vpop.permute.xlu0 %9964
    %9966 = vrot.lane.b32.xlu0 %v9601, 64
    %v9967 = vpop.permute.xlu0 %9966
    %9968 = vrot.lane.b32.xlu0 %v9602, 64
    %v9969 = vpop.permute.xlu0 %9968
    %9970 = vrot.lane.b32.xlu0 %v9603, 64
    %v9971 = vpop.permute.xlu0 %9970
    %9972 = vrot.lane.b32.xlu0 %v9604, 64
    %v9973 = vpop.permute.xlu0 %9972
    %9974 = vrot.lane.b32.xlu0 %v9605, 64
    %v9975 = vpop.permute.xlu0 %9974
    %9976 = vrot.lane.b32.xlu0 %v9607, 64
    %v9977 = vpop.permute.xlu0 %9976
    %9978 = vrot.lane.b32.xlu0 %v9608, 64
    %v9979 = vpop.permute.xlu0 %9978
    %9980 = vrot.lane.b32.xlu0 %v9609, 64
    %v9981 = vpop.permute.xlu0 %9980
    %9982 = vrot.lane.b32.xlu0 %v9610, 64
    %v9983 = vpop.permute.xlu0 %9982
    %9984 = vrot.lane.b32.xlu0 %v9611, 64
    %v9985 = vpop.permute.xlu0 %9984
    %9986 = vrot.lane.b32.xlu0 %v9612, 64
    %v9987 = vpop.permute.xlu0 %9986
    %9988 = vrot.lane.b32.xlu0 %v9613, 64
    %v9989 = vpop.permute.xlu0 %9988
    %10004 = vrot.lane.b32.xlu0 %v9664, 96
    %v10005 = vpop.permute.xlu0 %10004
    %10006 = vrot.lane.b32.xlu0 %v9667, 96
    %v10007 = vpop.permute.xlu0 %10006
    %10008 = vrot.lane.b32.xlu0 %v9670, 96
    %v10009 = vpop.permute.xlu0 %10008
    %10010 = vrot.lane.b32.xlu0 %v9673, 96
    %v10011 = vpop.permute.xlu0 %10010
    %10012 = vrot.lane.b32.xlu0 %v9676, 96
    %v10013 = vpop.permute.xlu0 %10012
    %10014 = vrot.lane.b32.xlu0 %v9679, 96
    %v10015 = vpop.permute.xlu0 %10014
    %10016 = vrot.lane.b32.xlu0 %v9888, 96
    %v10017 = vpop.permute.xlu0 %10016
    %10018 = vrot.lane.b32.xlu0 %v9658, 96
    %v10019 = vpop.permute.xlu0 %10018
    %10020 = vrot.lane.b32.xlu0 %v9685, 96
    %v10021 = vpop.permute.xlu0 %10020
    %10022 = vrot.lane.b32.xlu0 %v9688, 96
    %v10023 = vpop.permute.xlu0 %10022
    %10024 = vrot.lane.b32.xlu0 %v9691, 96
    %v10025 = vpop.permute.xlu0 %10024
    %10026 = vrot.lane.b32.xlu0 %v9694, 96
    %v10027 = vpop.permute.xlu0 %10026
    %10028 = vrot.lane.b32.xlu0 %v9697, 96
    %v10029 = vpop.permute.xlu0 %10028
    %10030 = vrot.lane.b32.xlu0 %v9700, 96
    %v10031 = vpop.permute.xlu0 %10030
    %10032 = vrot.lane.b32.xlu0 %v9891, 96
    %v10033 = vpop.permute.xlu0 %10032
    %v10064 = vsel %vm4126, %v354, %v9702
    %v10065 = vsel %vm4126, %v9598, %v9704
    %v10066 = vsel %vm4126, %v9599, %v9706
    %v10067 = vsel %vm4126, %v9600, %v9708
    %v10068 = vsel %vm4126, %v9601, %v9710
    %v10069 = vsel %vm4126, %v9602, %v9712
    %v10070 = vsel %vm4126, %v9603, %v9714
    %v10071 = vsel %vm4126, %v9604, %v9716
    %v10072 = vsel %vm4126, %v9606, %v9718
    %v10073 = vsel %vm4126, %v9607, %v9720
    %v10074 = vsel %vm4126, %v9608, %v9722
    %v10075 = vsel %vm4126, %v9609, %v9724
    %v10076 = vsel %vm4126, %v9610, %v9726
    %v10077 = vsel %vm4126, %v9611, %v9728
    %v10078 = vsel %vm4126, %v9612, %v9730
    %v10079 = vsel %vm6990, %v10064, %v9790
    %v10080 = vsel %vm6990, %v10065, %v9792
    %v10081 = vsel %vm6990, %v10066, %v9794
    %v10082 = vsel %vm6990, %v10067, %v9796
    %v10083 = vsel %vm6990, %v10068, %v9798
    %v10084 = vsel %vm6990, %v10069, %v9800
    %v10085 = vsel %vm6990, %v10070, %v9802
    %v10086 = vsel %vm6990, %v10071, %v9804
    %v10087 = vsel %vm6990, %v10072, %v9806
    %v10088 = vsel %vm6990, %v10073, %v9808
    %v10089 = vsel %vm6990, %v10074, %v9810
    %v10090 = vsel %vm6990, %v10075, %v9812
    %v10091 = vsel %vm6990, %v10076, %v9814
    %v10092 = vsel %vm6990, %v10077, %v9816
    %v10093 = vsel %vm6990, %v10078, %v9818
    %v10094 = vsel %vm7053, %v10079, %v9837
    %v10095 = vsel %vm7053, %v10080, %v9839
    %v10096 = vsel %vm7053, %v10081, %v9841
    %v10097 = vsel %vm7053, %v10082, %v9843
    %v10098 = vsel %vm7053, %v10083, %v9845
    %v10099 = vsel %vm7053, %v10084, %v9847
    %v10100 = vsel %vm7053, %v10085, %v9849
    %v10101 = vsel %vm7053, %v10086, %v9851
    %v10102 = vsel %vm7053, %v10079, %v9853
    %v10103 = vsel %vm7053, %v10087, %v9855
    %v10104 = vsel %vm7053, %v10088, %v9857
    %v10105 = vsel %vm7053, %v10089, %v9859
    %v10106 = vsel %vm7053, %v10090, %v9861
    %v10107 = vsel %vm7053, %v10091, %v9863
    %v10108 = vsel %vm7053, %v10092, %v9865
    %v10109 = vsel %vm7053, %v10093, %v9867
    %v10110 = vsel %vm4126, %v9661, %v9915
    %v10111 = vsel %vm4126, %v9664, %v9917
    %v10112 = vsel %vm4126, %v9667, %v9919
    %v10113 = vsel %vm4126, %v9670, %v9921
    %v10114 = vsel %vm4126, %v9673, %v9923
    %v10115 = vsel %vm4126, %v9676, %v9925
    %v10116 = vsel %vm4126, %v9679, %v9927
    %v10117 = vsel %vm4126, %v9888, %v9929
    %v10118 = vsel %vm4126, %v9682, %v9931
    %v10119 = vsel %vm4126, %v9685, %v9933
    %v10120 = vsel %vm4126, %v9688, %v9935
    %v10121 = vsel %vm4126, %v9691, %v9937
    %v10122 = vsel %vm4126, %v9694, %v9939
    %v10123 = vsel %vm4126, %v9697, %v9941
    %v10124 = vsel %vm4126, %v9700, %v9943
    %v10125 = vsel %vm4126, %v9891, %v9945
    %v10126 = vsel %vm6990, %v10110, %v9963
    %v10127 = vsel %vm6990, %v10111, %v9965
    %v10128 = vsel %vm6990, %v10112, %v9967
    %v10129 = vsel %vm6990, %v10113, %v9969
    %v10130 = vsel %vm6990, %v10114, %v9971
    %v10131 = vsel %vm6990, %v10115, %v9973
    %v10132 = vsel %vm6990, %v10116, %v9975
    %v10133 = vsel %vm6990, %v10117, %v6555
    %v10134 = vsel %vm6990, %v10118, %v9977
    %v10135 = vsel %vm6990, %v10119, %v9979
    %v10136 = vsel %vm6990, %v10120, %v9981
    %v10137 = vsel %vm6990, %v10121, %v9983
    %v10138 = vsel %vm6990, %v10122, %v9985
    %v10139 = vsel %vm6990, %v10123, %v9987
    %v10140 = vsel %vm6990, %v10124, %v9989
    %v10141 = vsel %vm6990, %v10125, %v6555
    %v10142 = vsel %vm7053, %v10126, %v10005
    %v10143 = vsel %vm7053, %v10127, %v10007
    %v10144 = vsel %vm7053, %v10128, %v10009
    %v10145 = vsel %vm7053, %v10129, %v10011
    %v10146 = vsel %vm7053, %v10130, %v10013
    %v10147 = vsel %vm7053, %v10131, %v10015
    %v10148 = vsel %vm7053, %v10132, %v10017
    %v10149 = vsel %vm7053, %v10133, %v10019
    %v10150 = vsel %vm7053, %v10134, %v10021
    %v10151 = vsel %vm7053, %v10135, %v10023
    %v10152 = vsel %vm7053, %v10136, %v10025
    %v10153 = vsel %vm7053, %v10137, %v10027
    %v10154 = vsel %vm7053, %v10138, %v10029
    %v10155 = vsel %vm7053, %v10139, %v10031
    %v10156 = vsel %vm7053, %v10140, %v10033
    %v10157 = vsel %vm7053, %v10141, %v10019
    %v10158 = vpack.c.bf16 %v10095, %v10094
    %v10159 = vpack.c.bf16 %v10143, %v10142
    %v10160 = vpack.c.bf16 %v9755, %v9752
    %v10161 = vpack.c.bf16 %v10097, %v10096
    %v10162 = vpack.c.bf16 %v10145, %v10144
    %v10163 = vpack.c.bf16 %v9761, %v9758
    %v10164 = vpack.c.bf16 %v10099, %v10098
    %v10165 = vpack.c.bf16 %v10147, %v10146
    %v10166 = vpack.c.bf16 %v9767, %v9764
    %v10167 = vpack.c.bf16 %v10101, %v10100
    %v10168 = vpack.c.bf16 %v10149, %v10148
    %v10169 = vpack.c.bf16 %v9746, %v9910
    %v10170 = vpack.c.bf16 %v10103, %v10102
    %v10171 = vpack.c.bf16 %v10151, %v10150
    %v10172 = vpack.c.bf16 %v9776, %v9773
    %v10173 = vpack.c.bf16 %v10105, %v10104
    %v10174 = vpack.c.bf16 %v10153, %v10152
    %v10175 = vpack.c.bf16 %v9782, %v9779
    %v10176 = vpack.c.bf16 %v10107, %v10106
    %v10177 = vpack.c.bf16 %v10155, %v10154
    %v10178 = vpack.c.bf16 %v9788, %v9785
    %v10179 = vpack.c.bf16 %v10109, %v10108
    %v10180 = vpack.c.bf16 %v10157, %v10156
    %v10181 = vpack.c.bf16 %v9746, %v9913
    %v10218 = vunpack.c.l.b16 %v9512
    %v10219 = vunpack.c.l.b16 %v9513
    %v10220 = vunpack.c.l.b16 %v9514
    %v10221 = vunpack.c.l.b16 %v9515
    %v10222 = vunpack.c.l.b16 %v9516
    %v10223 = vunpack.c.l.b16 %v9517
    %v10224 = vunpack.c.l.b16 %v9518
    %v10225 = vunpack.c.l.b16 %v9519
    %v10226 = vunpack.c.l.b16 %v9520
    %v10227 = vunpack.c.l.b16 %v9521
    %v10228 = vunpack.c.l.b16 %v9522
    %v10229 = vunpack.c.l.b16 %v9523
    %v10230 = vunpack.c.l.b16 %v9524
    %v10231 = vunpack.c.l.b16 %v9525
    %v10232 = vunpack.c.l.b16 %v9526
    %v10233 = vunpack.c.l.b16 %v9527
    %v10234 = vunpack.c.l.b16 %v9528
    %v10235 = vunpack.c.l.b16 %v9529
    %v10236 = vunpack.c.l.b16 %v9530
    %v10237 = vunpack.c.l.b16 %v9531
    %v10238 = vunpack.c.l.b16 %v9532
    %v10239 = vunpack.c.l.b16 %v9533
    %v10240 = vunpack.c.l.b16 %v9534
    %v10241 = vunpack.c.l.b16 %v9535
    %v10242 = vunpack.c.l.b16 %v9536
    %v10243 = vunpack.c.l.b16 %v9537
    %v10244 = vunpack.c.l.b16 %v9538
    %v10245 = vunpack.c.l.b16 %v9539
    %v10246 = vunpack.c.l.b16 %v9540
    %v10247 = vunpack.c.l.b16 %v9541
    %v10248 = vunpack.c.l.b16 %v9542
    %v10249 = vunpack.c.l.b16 %v9543
    %v10250 = vunpack.c.l.b16 %v9544
    %v10251 = vunpack.c.l.b16 %v9545
    %v10252 = vunpack.c.l.b16 %v9546
    %v10253 = vunpack.c.l.b16 %v9547
    %v10254 = vpack.c.b16 %v10219, %v10218
    %v10255 = vpack.c.b16 %v10221, %v10220
    %v10256 = vpack.c.b16 %v10223, %v10222
    %v10257 = vpack.c.b16 %v10225, %v10224
    %v10258 = vpack.c.b16 %v10227, %v10226
    %v10259 = vpack.c.b16 %v10229, %v10228
    %v10260 = vpack.c.b16 %v10231, %v10230
    %v10261 = vpack.c.b16 %v10233, %v10232
    %v10262 = vpack.c.b16 %v10235, %v10234
    %v10263 = vpack.c.b16 %v10237, %v10236
    %v10264 = vpack.c.b16 %v10239, %v10238
    %v10265 = vpack.c.b16 %v10241, %v10240
    %v10266 = vpack.c.b16 %v10243, %v10242
    %v10267 = vpack.c.b16 %v10245, %v10244
    %v10268 = vpack.c.b16 %v10247, %v10246
    %v10269 = vpack.c.b16 %v10249, %v10248
    %v10270 = vpack.c.b16 %v10251, %v10250
    %v10271 = vpack.c.b16 %v10253, %v10252
    %v10291 = vsel %vm4126, %v10160, 0
    %v10294 = vsel %vm4126, %v10163, 0
    %v10297 = vsel %vm4126, %v10166, 0
    %v10300 = vsel %vm4126, %v10169, 0
    %v10303 = vsel %vm4126, %v10172, 0
    %v10306 = vsel %vm4126, %v10175, 0
    %v10309 = vsel %vm4126, %v10178, 0
    %v10312 = vsel %vm4126, %v10181, 0
    %10314 = vmatprep.subr.bf16.mxu0 0
    %10315 = vmatpush1.bf16.msra.mxu0 %v10254
    %10316 = vmatprep.subr.bf16.mxu0 0
    %10317 = vmatpush1.bf16.msra.mxu0 %v10255
    %10318 = vmatprep.subr.bf16.mxu0 0
    %10319 = vmatpush1.bf16.msra.mxu0 %v10256
    %10320 = vmatprep.subr.bf16.mxu0 0
    %10321 = vmatpush1.bf16.msra.mxu0 %v10257
    %10322 = vmatprep.subr.bf16.mxu0 0
    %10323 = vmatpush1.bf16.msra.mxu0 %v10258
    %10324 = vmatprep.subr.bf16.mxu0 0
    %10325 = vmatpush1.bf16.msra.mxu0 %v10259
    %10326 = vmatprep.subr.bf16.mxu0 0
    %10327 = vmatpush1.bf16.msra.mxu0 %v10260
    %10328 = vmatprep.subr.bf16.mxu0 0
    %10329 = vmatpush1.bf16.msra.mxu0 %v10261
    %10330 = vmatprep.subr.bf16.mxu0 0
    %10331 = vmatpush1.bf16.msra.mxu0 %v10262
    %10332 = vmatprep.subr.bf16.mxu0 0
    %10333 = vmatpush1.bf16.msra.mxu0 %v10263
    %10334 = vmatprep.subr.bf16.mxu0 0
    %10335 = vmatpush1.bf16.msra.mxu0 %v10264
    %10336 = vmatprep.subr.bf16.mxu0 0
    %10337 = vmatpush1.bf16.msra.mxu0 %v10265
    %10338 = vmatprep.subr.bf16.mxu0 0
    %10339 = vmatpush1.bf16.msra.mxu0 %v10266
    %10340 = vmatprep.subr.bf16.mxu0 0
    %10341 = vmatpush1.bf16.msra.mxu0 %v10267
    %10342 = vmatprep.subr.bf16.mxu0 0
    %10343 = vmatpush1.bf16.msra.mxu0 %v10268
    %10344 = vmatprep.subr.bf16.mxu0 0
    %10345 = vmatpush1.bf16.msra.mxu0 %v10269
    %10346 = vmatprep.mubr.bf16.mxu0 %v10159
    %10347 = vmatmul.mubr.bf16.gmra.mrb[0].mxu0 %v10158
    %v10348 = vpop.f32.mrb[0].mxu0
    %v10349 = vadd.f32 0.0, %v10348
    %v10350 = vpop.f32.mrb[0].mxu0
    %v10351 = vpop.f32.mrb[0].mxu0
    %v10352 = vadd.f32 0.0, %v10351
    %v10353 = vpop.f32.mrb[0].mxu0
    %10354 = vmatprep.mubr.bf16.mxu0 %v10162
    %10355 = vmatmul.mubr.bf16.gmra.mrb[0].mxu0 %v10161
    %v10356 = vpop.f32.mrb[0].mxu0
    %v10357 = vadd.f32 0.0, %v10356
    %v10358 = vpop.f32.mrb[0].mxu0
    %v10359 = vpop.f32.mrb[0].mxu0
    %v10360 = vadd.f32 0.0, %v10359
    %v10361 = vpop.f32.mrb[0].mxu0
    %10362 = vmatprep.mubr.bf16.mxu0 %v10165
    %10363 = vmatmul.mubr.bf16.gmra.mrb[0].mxu0 %v10164
    %v10364 = vpop.f32.mrb[0].mxu0
    %v10365 = vadd.f32 0.0, %v10364
    %v10366 = vpop.f32.mrb[0].mxu0
    %v10367 = vpop.f32.mrb[0].mxu0
    %v10368 = vadd.f32 0.0, %v10367
    %v10369 = vpop.f32.mrb[0].mxu0
    %10370 = vmatprep.mubr.bf16.mxu0 %v10168
    %10371 = vmatmul.mubr.bf16.gmra.mrb[0].mxu0 %v10167
    %v10372 = vpop.f32.mrb[0].mxu0
    %v10373 = vadd.f32 0.0, %v10372
    %v10374 = vpop.f32.mrb[0].mxu0
    %v10375 = vpop.f32.mrb[0].mxu0
    %v10376 = vadd.f32 0.0, %v10375
    %v10377 = vpop.f32.mrb[0].mxu0
    %10378 = vmatprep.mubr.bf16.mxu0 %v10171
    %10379 = vmatmul.mubr.bf16.gmra.mrb[0].mxu0 %v10170
    %v10380 = vpop.f32.mrb[0].mxu0
    %v10381 = vadd.f32 0.0, %v10380
    %v10382 = vpop.f32.mrb[0].mxu0
    %v10383 = vpop.f32.mrb[0].mxu0
    %v10384 = vadd.f32 0.0, %v10383
    %v10385 = vpop.f32.mrb[0].mxu0
    %10386 = vmatprep.mubr.bf16.mxu0 %v10174
    %10387 = vmatmul.mubr.bf16.gmra.mrb[0].mxu0 %v10173
    %v10388 = vpop.f32.mrb[0].mxu0
    %v10389 = vadd.f32 0.0, %v10388
    %v10390 = vpop.f32.mrb[0].mxu0
    %v10391 = vpop.f32.mrb[0].mxu0
    %v10392 = vadd.f32 0.0, %v10391
    %v10393 = vpop.f32.mrb[0].mxu0
    %10394 = vmatprep.mubr.bf16.mxu0 %v10177
    %10395 = vmatmul.mubr.bf16.gmra.mrb[0].mxu0 %v10176
    %v10396 = vpop.f32.mrb[0].mxu0
    %v10397 = vadd.f32 0.0, %v10396
    %v10398 = vpop.f32.mrb[0].mxu0
    %v10399 = vpop.f32.mrb[0].mxu0
    %v10400 = vadd.f32 0.0, %v10399
    %v10401 = vpop.f32.mrb[0].mxu0
    %10402 = vmatprep.mubr.bf16.mxu0 %v10180
    %10403 = vmatmul.mubr.bf16.gmra.mrb[0].mxu0 %v10179
    %v10404 = vpop.f32.mrb[0].mxu0
    %v10405 = vadd.f32 0.0, %v10404
    %v10406 = vpop.f32.mrb[0].mxu0
    %v10407 = vpop.f32.mrb[0].mxu0
    %v10408 = vadd.f32 0.0, %v10407
    %v10409 = vpop.f32.mrb[0].mxu0
    %10410 = vdwg.mxu0
    %10411 = vmatprep.subr.bf16.mxu0 0
    %10412 = vmatpush1.bf16.msra.mxu0 %v10270
    %10413 = vmatprep.subr.bf16.mxu0 0
    %10414 = vmatpush1.bf16.msra.mxu0 %v10271
    %10415 = vmatprep.subr.bf16.mxu0 0
    %10416 = vmatpush1.bf16.msra.mxu0 0
    %10417 = vmatprep.subr.bf16.mxu0 0
    %10418 = vmatpush1.bf16.msra.mxu0 0
    %10419 = vmatprep.subr.bf16.mxu0 0
    %10420 = vmatpush1.bf16.msra.mxu0 0
    %10421 = vmatprep.subr.bf16.mxu0 0
    %10422 = vmatpush1.bf16.msra.mxu0 0
    %10423 = vmatprep.subr.bf16.mxu0 0
    %10424 = vmatpush1.bf16.msra.mxu0 0
    %10425 = vmatprep.subr.bf16.mxu0 0
    %10426 = vmatpush1.bf16.msra.mxu0 0
    %10427 = vmatprep.subr.bf16.mxu0 0
    %10428 = vmatpush1.bf16.msra.mxu0 0
    %10429 = vmatprep.subr.bf16.mxu0 0
    %10430 = vmatpush1.bf16.msra.mxu0 0
    %10431 = vmatprep.subr.bf16.mxu0 0
    %10432 = vmatpush1.bf16.msra.mxu0 0
    %10433 = vmatprep.subr.bf16.mxu0 0
    %10434 = vmatpush1.bf16.msra.mxu0 0
    %10435 = vmatprep.subr.bf16.mxu0 0
    %10436 = vmatpush1.bf16.msra.mxu0 0
    %10437 = vmatprep.subr.bf16.mxu0 0
    %10438 = vmatpush1.bf16.msra.mxu0 0
    %10439 = vmatprep.subr.bf16.mxu0 0
    %10440 = vmatpush1.bf16.msra.mxu0 0
    %10441 = vmatprep.subr.bf16.mxu0 0
    %10442 = vmatpush1.bf16.msra.mxu0 0
    %10443 = vmatprep.mubr.bf16.mxu0 0
    %10444 = vmatmul.mubr.bf16.gmra.mrb[0].mxu0 %v10291
    %v10445 = vpop.f32.mrb[0].mxu0
    %v10446 = vadd.f32 %v10349, %v10445
    %v10447 = vpop.f32.mrb[0].mxu0
    %v10448 = vpop.f32.mrb[0].mxu0
    %v10449 = vadd.f32 %v10352, %v10448
    %v10450 = vpop.f32.mrb[0].mxu0
    %10451 = vmatprep.mubr.bf16.mxu0 0
    %10452 = vmatmul.mubr.bf16.gmra.mrb[0].mxu0 %v10294
    %v10453 = vpop.f32.mrb[0].mxu0
    %v10454 = vadd.f32 %v10357, %v10453
    %v10455 = vpop.f32.mrb[0].mxu0
    %v10456 = vpop.f32.mrb[0].mxu0
    %v10457 = vadd.f32 %v10360, %v10456
    %v10458 = vpop.f32.mrb[0].mxu0
    %10459 = vmatprep.mubr.bf16.mxu0 0
    %10460 = vmatmul.mubr.bf16.gmra.mrb[0].mxu0 %v10297
    %v10461 = vpop.f32.mrb[0].mxu0
    %v10462 = vadd.f32 %v10365, %v10461
    %v10463 = vpop.f32.mrb[0].mxu0
    %v10464 = vpop.f32.mrb[0].mxu0
    %v10465 = vadd.f32 %v10368, %v10464
    %v10466 = vpop.f32.mrb[0].mxu0
    %10467 = vmatprep.mubr.bf16.mxu0 0
    %10468 = vmatmul.mubr.bf16.gmra.mrb[0].mxu0 %v10300
    %v10469 = vpop.f32.mrb[0].mxu0
    %v10470 = vadd.f32 %v10373, %v10469
    %v10471 = vpop.f32.mrb[0].mxu0
    %v10472 = vpop.f32.mrb[0].mxu0
    %v10473 = vadd.f32 %v10376, %v10472
    %v10474 = vpop.f32.mrb[0].mxu0
    %10475 = vmatprep.mubr.bf16.mxu0 0
    %10476 = vmatmul.mubr.bf16.gmra.mrb[0].mxu0 %v10303
    %v10477 = vpop.f32.mrb[0].mxu0
    %v10478 = vadd.f32 %v10381, %v10477
    %v10479 = vpop.f32.mrb[0].mxu0
    %v10480 = vpop.f32.mrb[0].mxu0
    %v10481 = vadd.f32 %v10384, %v10480
    %v10482 = vpop.f32.mrb[0].mxu0
    %10483 = vmatprep.mubr.bf16.mxu0 0
    %10484 = vmatmul.mubr.bf16.gmra.mrb[0].mxu0 %v10306
    %v10485 = vpop.f32.mrb[0].mxu0
    %v10486 = vadd.f32 %v10389, %v10485
    %v10487 = vpop.f32.mrb[0].mxu0
    %v10488 = vpop.f32.mrb[0].mxu0
    %v10489 = vadd.f32 %v10392, %v10488
    %v10490 = vpop.f32.mrb[0].mxu0
    %10491 = vmatprep.mubr.bf16.mxu0 0
    %10492 = vmatmul.mubr.bf16.gmra.mrb[0].mxu0 %v10309
    %v10493 = vpop.f32.mrb[0].mxu0
    %v10494 = vadd.f32 %v10397, %v10493
    %v10495 = vpop.f32.mrb[0].mxu0
    %v10496 = vpop.f32.mrb[0].mxu0
    %v10497 = vadd.f32 %v10400, %v10496
    %v10498 = vpop.f32.mrb[0].mxu0
    %10499 = vmatprep.mubr.bf16.mxu0 0
    %10500 = vmatmul.mubr.bf16.gmra.mrb[0].mxu0 %v10312
    %v10501 = vpop.f32.mrb[0].mxu0
    %v10502 = vadd.f32 %v10405, %v10501
    %v10503 = vpop.f32.mrb[0].mxu0
    %v10504 = vpop.f32.mrb[0].mxu0
    %v10505 = vadd.f32 %v10408, %v10504
    %v10506 = vpop.f32.mrb[0].mxu0
    %10507 = vdwg.mxu0
    %v10508 = vsel %vm6990, %v10446, 0.0
    %v10509 = vsel %vm6990, %v10449, 0.0
    %v10510 = vadd.f32 %v10508, %v10509
    %v10511 = vsel %vm6990, %v10454, 0.0
    %v10512 = vadd.f32 %v10510, %v10511
    %v10513 = vsel %vm6990, %v10457, 0.0
    %v10514 = vadd.f32 %v10512, %v10513
    %v10515 = vsel %vm6990, %v10462, 0.0
    %v10516 = vadd.f32 %v10514, %v10515
    %v10517 = vsel %vm6990, %v10465, 0.0
    %v10518 = vadd.f32 %v10516, %v10517
    %v10519 = vsel %vm6990, %v10470, 0.0
    %v10520 = vadd.f32 %v10518, %v10519
    %v10521 = vsel %vm6990, %v10473, 0.0
    %v10522 = vadd.f32 %v10520, %v10521
    %v10523 = vsel %vm6990, %v10478, 0.0
    %v10524 = vadd.f32 %v10522, %v10523
    %v10525 = vsel %vm6990, %v10481, 0.0
    %v10526 = vadd.f32 %v10524, %v10525
    %v10527 = vsel %vm6990, %v10486, 0.0
    %v10528 = vadd.f32 %v10526, %v10527
    %v10529 = vsel %vm6990, %v10489, 0.0
    %v10530 = vadd.f32 %v10528, %v10529
    %v10531 = vsel %vm6990, %v10494, 0.0
    %v10532 = vadd.f32 %v10530, %v10531
    %v10533 = vsel %vm6990, %v10497, 0.0
    %v10534 = vadd.f32 %v10532, %v10533
    %v10535 = vsel %vm6990, %v10502, 0.0
    %v10536 = vadd.f32 %v10534, %v10535
    %v10537 = vsel %vm6990, %v10505, 0.0
    %v10538 = vadd.f32 %v10536, %v10537
    %v10539 = vrot.slane %v10538, 4
    %v10540 = vadd.f32 %v10538, %v10539
    %v10541 = vrot.slane %v10540, 2
    %v10542 = vadd.f32 %v10540, %v10541
    %v10543 = vrot.slane %v10542, 1
    %v10544 = vadd.f32 %v10542, %v10543
    %v10545 = vmul.f32 %v10446, %v10446
    %v10546 = vmul.f32 %v10449, %v10449
    %v10547 = vmul.f32 %v10454, %v10454
    %v10548 = vmul.f32 %v10457, %v10457
    %v10549 = vmul.f32 %v10462, %v10462
    %v10550 = vmul.f32 %v10465, %v10465
    %v10551 = vmul.f32 %v10470, %v10470
    %v10552 = vmul.f32 %v10473, %v10473
    %v10553 = vmul.f32 %v10478, %v10478
    %v10554 = vmul.f32 %v10481, %v10481
    %v10555 = vmul.f32 %v10486, %v10486
    %v10556 = vmul.f32 %v10489, %v10489
    %v10557 = vmul.f32 %v10494, %v10494
    %v10558 = vmul.f32 %v10497, %v10497
    %v10559 = vmul.f32 %v10502, %v10502
    %v10560 = vmul.f32 %v10505, %v10505
    %v10561 = vsel %vm6990, %v10545, 0.0
    %v10562 = vsel %vm6990, %v10546, 0.0
    %v10563 = vadd.f32 %v10561, %v10562
    %v10564 = vsel %vm6990, %v10547, 0.0
    %v10565 = vadd.f32 %v10563, %v10564
    %v10566 = vsel %vm6990, %v10548, 0.0
    %v10567 = vadd.f32 %v10565, %v10566
    %v10568 = vsel %vm6990, %v10549, 0.0
    %v10569 = vadd.f32 %v10567, %v10568
    %v10570 = vsel %vm6990, %v10550, 0.0
    %v10571 = vadd.f32 %v10569, %v10570
    %v10572 = vsel %vm6990, %v10551, 0.0
    %v10573 = vadd.f32 %v10571, %v10572
    %v10574 = vsel %vm6990, %v10552, 0.0
    %v10575 = vadd.f32 %v10573, %v10574
    %v10576 = vsel %vm6990, %v10553, 0.0
    %v10577 = vadd.f32 %v10575, %v10576
    %v10578 = vsel %vm6990, %v10554, 0.0
    %v10579 = vadd.f32 %v10577, %v10578
    %v10580 = vsel %vm6990, %v10555, 0.0
    %v10581 = vadd.f32 %v10579, %v10580
    %v10582 = vsel %vm6990, %v10556, 0.0
    %v10583 = vadd.f32 %v10581, %v10582
    %v10584 = vsel %vm6990, %v10557, 0.0
    %v10585 = vadd.f32 %v10583, %v10584
    %v10586 = vsel %vm6990, %v10558, 0.0
    %v10587 = vadd.f32 %v10585, %v10586
    %v10588 = vsel %vm6990, %v10559, 0.0
    %v10589 = vadd.f32 %v10587, %v10588
    %v10590 = vsel %vm6990, %v10560, 0.0
    %v10591 = vadd.f32 %v10589, %v10590
    %v10592 = vrot.slane %v10591, 4
    %v10593 = vadd.f32 %v10591, %v10592
    %v10594 = vrot.slane %v10593, 2
    %v10595 = vadd.f32 %v10593, %v10594
    %v10596 = vrot.slane %v10595, 1
    %v10597 = vadd.f32 %v10595, %v10596
    %v10598 = vmul.f32 %v10544, 0.0078125
    %v10599 = vmul.f32 %v10597, 0.0078125
    %v10600 = vmul.f32 %v10598, %v10598
    %v10601 = vsub.f32 %v10599, %v10600
    %v10602 = vsub.f32 %v10446, %v10598
    %v10603 = vsub.f32 %v10449, %v10598
    %v10604 = vsub.f32 %v10454, %v10598
    %v10605 = vsub.f32 %v10457, %v10598
    %v10606 = vsub.f32 %v10462, %v10598
    %v10607 = vsub.f32 %v10465, %v10598
    %v10608 = vsub.f32 %v10470, %v10598
    %v10609 = vsub.f32 %v10473, %v10598
    %v10610 = vsub.f32 %v10478, %v10598
    %v10611 = vsub.f32 %v10481, %v10598
    %v10612 = vsub.f32 %v10486, %v10598
    %v10613 = vsub.f32 %v10489, %v10598
    %v10614 = vsub.f32 %v10494, %v10598
    %v10615 = vsub.f32 %v10497, %v10598
    %v10616 = vsub.f32 %v10502, %v10598
    %v10617 = vsub.f32 %v10505, %v10598
    %v10618 = vadd.f32 %v10601, 1e-05
    %v10619 = vrsqrt.pop %v10618
    %v10620 = vmul.f32 %v10602, %v10619
    %v10621 = vmul.f32 %v10603, %v10619
    %v10622 = vmul.f32 %v10604, %v10619
    %v10623 = vmul.f32 %v10605, %v10619
    %v10624 = vmul.f32 %v10606, %v10619
    %v10625 = vmul.f32 %v10607, %v10619
    %v10626 = vmul.f32 %v10608, %v10619
    %v10627 = vmul.f32 %v10609, %v10619
    %v10628 = vmul.f32 %v10610, %v10619
    %v10629 = vmul.f32 %v10611, %v10619
    %v10630 = vmul.f32 %v10612, %v10619
    %v10631 = vmul.f32 %v10613, %v10619
    %v10632 = vmul.f32 %v10614, %v10619
    %v10633 = vmul.f32 %v10615, %v10619
    %v10634 = vmul.f32 %v10616, %v10619
    %v10635 = vmul.f32 %v10617, %v10619
    %v10637 = vlaneseq
    %v10638 = vshrl.u32 %v10637, 7
    %v10639 = vsub.s32 0, %v10638
    %v10640 = vrot.slane %v9548, %v10639
    %v10642 = vmul.f32 %v10620, %v10640
    %v10643 = vmul.f32 %v10621, %v10640
    %v10644 = vmul.f32 %v10622, %v10640
    %v10645 = vmul.f32 %v10623, %v10640
    %v10646 = vmul.f32 %v10624, %v10640
    %v10647 = vmul.f32 %v10625, %v10640
    %v10648 = vmul.f32 %v10626, %v10640
    %v10649 = vmul.f32 %v10627, %v10640
    %v10650 = vmul.f32 %v10628, %v10640
    %v10651 = vmul.f32 %v10629, %v10640
    %v10652 = vmul.f32 %v10630, %v10640
    %v10653 = vmul.f32 %v10631, %v10640
    %v10654 = vmul.f32 %v10632, %v10640
    %v10655 = vmul.f32 %v10633, %v10640
    %v10656 = vmul.f32 %v10634, %v10640
    %v10657 = vmul.f32 %v10635, %v10640
    %v10659 = vlaneseq
    %v10660 = vshrl.u32 %v10659, 7
    %v10661 = vsub.s32 0, %v10660
    %v10662 = vrot.slane %v9549, %v10661
    %v10664 = vadd.f32 %v10642, %v10662
    %v10665 = vadd.f32 %v10643, %v10662
    %v10666 = vadd.f32 %v10644, %v10662
    %v10667 = vadd.f32 %v10645, %v10662
    %v10668 = vadd.f32 %v10646, %v10662
    %v10669 = vadd.f32 %v10647, %v10662
    %v10670 = vadd.f32 %v10648, %v10662
    %v10671 = vadd.f32 %v10649, %v10662
    %v10672 = vadd.f32 %v10650, %v10662
    %v10673 = vadd.f32 %v10651, %v10662
    %v10674 = vadd.f32 %v10652, %v10662
    %v10675 = vadd.f32 %v10653, %v10662
    %v10676 = vadd.f32 %v10654, %v10662
    %v10677 = vadd.f32 %v10655, %v10662
    %v10678 = vadd.f32 %v10656, %v10662
    %v10679 = vadd.f32 %v10657, %v10662
    %vm10680 = vcmp.ge.f32.partialorder %v10664, 0.0
    %vm10681 = vcmp.ge.f32.partialorder %v10665, 0.0
    %vm10682 = vcmp.ge.f32.partialorder %v10666, 0.0
    %vm10683 = vcmp.ge.f32.partialorder %v10667, 0.0
    %vm10684 = vcmp.ge.f32.partialorder %v10668, 0.0
    %vm10685 = vcmp.ge.f32.partialorder %v10669, 0.0
    %vm10686 = vcmp.ge.f32.partialorder %v10670, 0.0
    %vm10687 = vcmp.ge.f32.partialorder %v10671, 0.0
    %vm10688 = vcmp.ge.f32.partialorder %v10672, 0.0
    %vm10689 = vcmp.ge.f32.partialorder %v10673, 0.0
    %vm10690 = vcmp.ge.f32.partialorder %v10674, 0.0
    %vm10691 = vcmp.ge.f32.partialorder %v10675, 0.0
    %vm10692 = vcmp.ge.f32.partialorder %v10676, 0.0
    %vm10693 = vcmp.ge.f32.partialorder %v10677, 0.0
    %vm10694 = vcmp.ge.f32.partialorder %v10678, 0.0
    %vm10695 = vcmp.ge.f32.partialorder %v10679, 0.0
    %v10696 = vmul.f32 %v10664, 0.01
    %v10697 = vmul.f32 %v10665, 0.01
    %v10698 = vmul.f32 %v10666, 0.01
    %v10699 = vmul.f32 %v10667, 0.01
    %v10700 = vmul.f32 %v10668, 0.01
    %v10701 = vmul.f32 %v10669, 0.01
    %v10702 = vmul.f32 %v10670, 0.01
    %v10703 = vmul.f32 %v10671, 0.01
    %v10704 = vmul.f32 %v10672, 0.01
    %v10705 = vmul.f32 %v10673, 0.01
    %v10706 = vmul.f32 %v10674, 0.01
    %v10707 = vmul.f32 %v10675, 0.01
    %v10708 = vmul.f32 %v10676, 0.01
    %v10709 = vmul.f32 %v10677, 0.01
    %v10710 = vmul.f32 %v10678, 0.01
    %v10711 = vmul.f32 %v10679, 0.01
    %v10712 = vsel %vm10680, %v10664, %v10696
    %v10713 = vsel %vm10681, %v10665, %v10697
    %v10714 = vsel %vm10682, %v10666, %v10698
    %v10715 = vsel %vm10683, %v10667, %v10699
    %v10716 = vsel %vm10684, %v10668, %v10700
    %v10717 = vsel %vm10685, %v10669, %v10701
    %v10718 = vsel %vm10686, %v10670, %v10702
    %v10719 = vsel %vm10687, %v10671, %v10703
    %v10720 = vsel %vm10688, %v10672, %v10704
    %v10721 = vsel %vm10689, %v10673, %v10705
    %v10722 = vsel %vm10690, %v10674, %v10706
    %v10723 = vsel %vm10691, %v10675, %v10707
    %v10724 = vsel %vm10692, %v10676, %v10708
    %v10725 = vsel %vm10693, %v10677, %v10709
    %v10726 = vsel %vm10694, %v10678, %v10710
    %v10727 = vsel %vm10695, %v10679, %v10711
    %v10728 = vld [vmem:[%s10] sm:$0xf]
    %v10729 = vld [vmem:[%s10 + $0x4] sm:$0xf]
    %v10730 = vld [vmem:[%s10 + $0x8] sm:$0xf]
    %v10731 = vld [vmem:[%s10 + $0xc] sm:$0xf]
    %v10732 = vld [vmem:[%s10 + $0x10] sm:$0xf]
    %v10733 = vld [vmem:[%s10 + $0x14] sm:$0xf]
    %v10734 = vld [vmem:[%s10 + $0x18] sm:$0xf]
    %v10735 = vld [vmem:[%s10 + $0x1c] sm:$0xf]
    %v10736 = vld [vmem:[%s10 + $0x20] sm:$0xf]
    %v10737 = vld [vmem:[%s10 + $0x24] sm:$0xf]
    %v10738 = vld [vmem:[%s10 + $0x28] sm:$0xf]
    %v10739 = vld [vmem:[%s10 + $0x2c] sm:$0xf]
    %v10740 = vld [vmem:[%s10 + $0x30] sm:$0xf]
    %v10741 = vld [vmem:[%s10 + $0x34] sm:$0xf]
    %v10742 = vld [vmem:[%s10 + $0x38] sm:$0xf]
    %v10743 = vld [vmem:[%s10 + $0x3c] sm:$0xf]
    %v10744 = vld [vmem:[%s10 + $0x40] sm:$0xf]
    %v10745 = vld [vmem:[%s10 + $0x44] sm:$0xf]
    %v10746 = vld [vmem:[%s10 + $0x48] sm:$0xf]
    %v10747 = vld [vmem:[%s10 + $0x4c] sm:$0xf]
    %v10748 = vld [vmem:[%s10 + $0x50] sm:$0xf]
    %v10749 = vld [vmem:[%s10 + $0x54] sm:$0xf]
    %v10750 = vld [vmem:[%s10 + $0x58] sm:$0xf]
    %v10751 = vld [vmem:[%s10 + $0x5c] sm:$0xf]
    %v10752 = vld [vmem:[%s10 + $0x60] sm:$0xf]
    %v10753 = vld [vmem:[%s10 + $0x64] sm:$0xf]
    %v10754 = vld [vmem:[%s10 + $0x68] sm:$0xf]
    %v10755 = vld [vmem:[%s10 + $0x6c] sm:$0xf]
    %v10756 = vld [vmem:[%s10 + $0x70] sm:$0xf]
    %v10757 = vld [vmem:[%s10 + $0x74] sm:$0xf]
    %v10758 = vld [vmem:[%s10 + $0x78] sm:$0xf]
    %v10759 = vld [vmem:[%s10 + $0x7c] sm:$0xf]
    %v10760 = vld [vmem:[%s10 + $0x80] sm:$0xf]
    %v10761 = vld [vmem:[%s10 + $0x84] sm:$0xf]
    %v10762 = vld [vmem:[%s10 + $0x88] sm:$0xf]
    %v10763 = vld [vmem:[%s10 + $0x8c] sm:$0xf]
    %v10764 = vld [vmem:[%s10 + $0x90] sm:$0xf]
    %v10765 = vld [vmem:[%s10 + $0x94] sm:$0xf]
    %v10766 = vld [vmem:[%s10 + $0x98] sm:$0xf]
    %v10767 = vld [vmem:[%s10 + $0x9c] sm:$0xf]
    %v10768 = vld [vmem:[%s10 + $0xa0] sm:$0xf]
    %v10769 = vld [vmem:[%s10 + $0xa4] sm:$0xf]
    %v10770 = vld [vmem:[%s10 + $0xa8] sm:$0xf]
    %v10771 = vld [vmem:[%s10 + $0xac] sm:$0xf]
    %v10772 = vld [vmem:[%s10 + $0xb0] sm:$0xf]
    %v10773 = vld [vmem:[%s10 + $0xb4] sm:$0xf]
    %v10774 = vld [vmem:[%s10 + $0xb8] sm:$0xf]
    %v10775 = vld [vmem:[%s10 + $0xbc] sm:$0xf]
    %v10776 = vld [vmem:[%s10 + $0xc0] sm:$0xf]
    %v10777 = vld [vmem:[%s10 + $0xc4] sm:$0xf]
    %v10778 = vld [vmem:[%s10 + $0xc8] sm:$0xf]
    %v10779 = vld [vmem:[%s10 + $0xcc] sm:$0xf]
    %v10780 = vld [vmem:[%s10 + $0xd0] sm:$0xf]
    %v10781 = vld [vmem:[%s10 + $0xd4] sm:$0xf]
    %v10782 = vld [vmem:[%s10 + $0xd8] sm:$0xf]
    %v10783 = vld [vmem:[%s10 + $0xdc] sm:$0xf]
    %v10784 = vld [vmem:[%s10 + $0xe0] sm:$0xf]
    %v10785 = vld [vmem:[%s10 + $0xe4] sm:$0xf]
    %v10786 = vld [vmem:[%s10 + $0xe8] sm:$0xf]
    %v10787 = vld [vmem:[%s10 + $0xec] sm:$0xf]
    %v10788 = vld [vmem:[%s10 + $0xf0] sm:$0xf]
    %v10789 = vld [vmem:[%s10 + $0xf4] sm:$0xf]
    %v10790 = vld [vmem:[%s10 + $0xf8] sm:$0xf]
    %v10791 = vld [vmem:[%s10 + $0xfc] sm:$0xf]
    %v10792 = vld [vmem:[%s10 + $0x100] sm:$0xf]
    %v10793 = vld [vmem:[%s10 + $0x104] sm:$0xf]
    %v10794 = vld [vmem:[%s10 + $0x108] sm:$0xf]
    %v10795 = vld [vmem:[%s10 + $0x10c] sm:$0xf]
    %v10796 = vld [vmem:[%s10 + $0x110] sm:$0xf]
    %v10797 = vld [vmem:[%s10 + $0x114] sm:$0xf]
    %v10798 = vld [vmem:[%s10 + $0x118] sm:$0xf]
    %v10799 = vld [vmem:[%s10 + $0x11c] sm:$0xf]
    %v10800 = vld [vmem:[%s11] sm:$0x1]
    %v10801 = vld [vmem:[%s12] sm:$0x1]
    %v10818 = vrot.slane %v10712, 7
    %v10819 = vrot.slane %v10713, 7
    %v10820 = vrot.slane %v10714, 7
    %v10821 = vrot.slane %v10715, 7
    %v10822 = vrot.slane %v10716, 7
    %v10823 = vrot.slane %v10717, 7
    %v10824 = vrot.slane %v10718, 7
    %v10825 = vrot.slane %v10719, 7
    %v10826 = vrot.slane %v10720, 7
    %v10827 = vrot.slane %v10721, 7
    %v10828 = vrot.slane %v10722, 7
    %v10829 = vrot.slane %v10723, 7
    %v10830 = vrot.slane %v10724, 7
    %v10831 = vrot.slane %v10725, 7
    %v10832 = vrot.slane %v10726, 7
    %v10833 = vrot.slane %v10727, 7
    %v10850 = vsel %vm190, 0.0, %v10818
    %v10851 = vsel %vm190, 0.0, %v10819
    %v10852 = vsel %vm190, 0.0, %v10820
    %v10853 = vsel %vm190, 0.0, %v10821
    %v10854 = vsel %vm190, 0.0, %v10822
    %v10855 = vsel %vm190, 0.0, %v10823
    %v10856 = vsel %vm190, 0.0, %v10824
    %v10857 = vsel %vm190, 0.0, %v10825
    %v10858 = vsel %vm190, 0.0, %v10826
    %v10859 = vsel %vm190, 0.0, %v10827
    %v10860 = vsel %vm190, 0.0, %v10828
    %v10861 = vsel %vm190, 0.0, %v10829
    %v10862 = vsel %vm190, 0.0, %v10830
    %v10863 = vsel %vm190, 0.0, %v10831
    %v10864 = vsel %vm190, 0.0, %v10832
    %v10865 = vsel %vm190, 0.0, %v10833
    %v10866 = vsel %vm190, %v10818, 0.0
    %v10867 = vsel %vm190, %v10819, 0.0
    %v10868 = vsel %vm190, %v10820, 0.0
    %v10869 = vsel %vm190, %v10821, 0.0
    %v10870 = vsel %vm190, %v10822, 0.0
    %v10871 = vsel %vm190, %v10823, 0.0
    %v10872 = vsel %vm190, %v10824, 0.0
    %v10873 = vsel %vm190, %v10825, 0.0
    %v10874 = vsel %vm190, %v10826, 0.0
    %v10875 = vsel %vm190, %v10827, 0.0
    %v10876 = vsel %vm190, %v10828, 0.0
    %v10877 = vsel %vm190, %v10829, 0.0
    %v10878 = vsel %vm190, %v10830, 0.0
    %v10879 = vsel %vm190, %v10831, 0.0
    %v10880 = vsel %vm190, %v10832, 0.0
    %v10881 = vsel %vm190, %v10833, 0.0
    %v10910 = vrot.slane %v10850, 1
    %v10911 = vrot.slane %v10866, 1
    %v10912 = vsel %vm1174, %v10910, %v10911
    %v10913 = vrot.slane %v10851, 1
    %v10914 = vrot.slane %v10867, 1
    %v10915 = vsel %vm1174, %v10913, %v10914
    %v10916 = vrot.slane %v10852, 1
    %v10917 = vrot.slane %v10868, 1
    %v10918 = vsel %vm1174, %v10916, %v10917
    %v10919 = vrot.slane %v10853, 1
    %v10920 = vrot.slane %v10869, 1
    %v10921 = vsel %vm1174, %v10919, %v10920
    %v10922 = vrot.slane %v10854, 1
    %v10923 = vrot.slane %v10870, 1
    %v10924 = vsel %vm1174, %v10922, %v10923
    %v10925 = vrot.slane %v10855, 1
    %v10926 = vrot.slane %v10871, 1
    %v10927 = vsel %vm1174, %v10925, %v10926
    %v10928 = vrot.slane %v10856, 1
    %v10929 = vrot.slane %v10872, 1
    %v10930 = vsel %vm1174, %v10928, %v10929
    %v10931 = vrot.slane %v10858, 1
    %v10932 = vrot.slane %v10874, 1
    %v10933 = vsel %vm1174, %v10931, %v10932
    %v10934 = vrot.slane %v10859, 1
    %v10935 = vrot.slane %v10875, 1
    %v10936 = vsel %vm1174, %v10934, %v10935
    %v10937 = vrot.slane %v10860, 1
    %v10938 = vrot.slane %v10876, 1
    %v10939 = vsel %vm1174, %v10937, %v10938
    %v10940 = vrot.slane %v10861, 1
    %v10941 = vrot.slane %v10877, 1
    %v10942 = vsel %vm1174, %v10940, %v10941
    %v10943 = vrot.slane %v10862, 1
    %v10944 = vrot.slane %v10878, 1
    %v10945 = vsel %vm1174, %v10943, %v10944
    %v10946 = vrot.slane %v10863, 1
    %v10947 = vrot.slane %v10879, 1
    %v10948 = vsel %vm1174, %v10946, %v10947
    %v10949 = vrot.slane %v10864, 1
    %v10950 = vrot.slane %v10880, 1
    %v10951 = vsel %vm1174, %v10949, %v10950
    %10952 = vrot.lane.b32.xlu0 %v9658, 64
    %v10953 = vpop.permute.xlu0 %10952
    %10954 = vrot.lane.b32.xlu0 %v10912, 64
    %v10955 = vpop.permute.xlu0 %10954
    %10956 = vrot.lane.b32.xlu0 %v10915, 64
    %v10957 = vpop.permute.xlu0 %10956
    %10958 = vrot.lane.b32.xlu0 %v10918, 64
    %v10959 = vpop.permute.xlu0 %10958
    %10960 = vrot.lane.b32.xlu0 %v10921, 64
    %v10961 = vpop.permute.xlu0 %10960
    %10962 = vrot.lane.b32.xlu0 %v10924, 64
    %v10963 = vpop.permute.xlu0 %10962
    %10964 = vrot.lane.b32.xlu0 %v10927, 64
    %v10965 = vpop.permute.xlu0 %10964
    %10966 = vrot.lane.b32.xlu0 %v10930, 64
    %v10967 = vpop.permute.xlu0 %10966
    %10968 = vrot.lane.b32.xlu0 %v10933, 64
    %v10969 = vpop.permute.xlu0 %10968
    %10970 = vrot.lane.b32.xlu0 %v10936, 64
    %v10971 = vpop.permute.xlu0 %10970
    %10972 = vrot.lane.b32.xlu0 %v10939, 64
    %v10973 = vpop.permute.xlu0 %10972
    %10974 = vrot.lane.b32.xlu0 %v10942, 64
    %v10975 = vpop.permute.xlu0 %10974
    %10976 = vrot.lane.b32.xlu0 %v10945, 64
    %v10977 = vpop.permute.xlu0 %10976
    %10978 = vrot.lane.b32.xlu0 %v10948, 64
    %v10979 = vpop.permute.xlu0 %10978
    %10980 = vrot.lane.b32.xlu0 %v10951, 64
    %v10981 = vpop.permute.xlu0 %10980
    %v10997 = vrot.slane %v10850, 2
    %v10998 = vrot.slane %v10866, 2
    %v10999 = vsel %vm1644, %v10997, %v10998
    %v11000 = vrot.slane %v10851, 2
    %v11001 = vrot.slane %v10867, 2
    %v11002 = vsel %vm1644, %v11000, %v11001
    %v11003 = vrot.slane %v10852, 2
    %v11004 = vrot.slane %v10868, 2
    %v11005 = vsel %vm1644, %v11003, %v11004
    %v11006 = vrot.slane %v10853, 2
    %v11007 = vrot.slane %v10869, 2
    %v11008 = vsel %vm1644, %v11006, %v11007
    %v11009 = vrot.slane %v10854, 2
    %v11010 = vrot.slane %v10870, 2
    %v11011 = vsel %vm1644, %v11009, %v11010
    %v11012 = vrot.slane %v10855, 2
    %v11013 = vrot.slane %v10871, 2
    %v11014 = vsel %vm1644, %v11012, %v11013
    %v11015 = vrot.slane %v10856, 2
    %v11016 = vrot.slane %v10872, 2
    %v11017 = vsel %vm1644, %v11015, %v11016
    %v11018 = vrot.slane %v10858, 2
    %v11019 = vrot.slane %v10874, 2
    %v11020 = vsel %vm1644, %v11018, %v11019
    %v11021 = vrot.slane %v10859, 2
    %v11022 = vrot.slane %v10875, 2
    %v11023 = vsel %vm1644, %v11021, %v11022
    %v11024 = vrot.slane %v10860, 2
    %v11025 = vrot.slane %v10876, 2
    %v11026 = vsel %vm1644, %v11024, %v11025
    %v11027 = vrot.slane %v10861, 2
    %v11028 = vrot.slane %v10877, 2
    %v11029 = vsel %vm1644, %v11027, %v11028
    %v11030 = vrot.slane %v10862, 2
    %v11031 = vrot.slane %v10878, 2
    %v11032 = vsel %vm1644, %v11030, %v11031
    %v11033 = vrot.slane %v10863, 2
    %v11034 = vrot.slane %v10879, 2
    %v11035 = vsel %vm1644, %v11033, %v11034
    %v11036 = vrot.slane %v10864, 2
    %v11037 = vrot.slane %v10880, 2
    %v11038 = vsel %vm1644, %v11036, %v11037
    %11055 = vrot.lane.b32.xlu0 %v10850, 64
    %v11056 = vpop.permute.xlu0 %11055
    %11057 = vrot.lane.b32.xlu0 %v10851, 64
    %v11058 = vpop.permute.xlu0 %11057
    %11059 = vrot.lane.b32.xlu0 %v10852, 64
    %v11060 = vpop.permute.xlu0 %11059
    %11061 = vrot.lane.b32.xlu0 %v10853, 64
    %v11062 = vpop.permute.xlu0 %11061
    %11063 = vrot.lane.b32.xlu0 %v10854, 64
    %v11064 = vpop.permute.xlu0 %11063
    %11065 = vrot.lane.b32.xlu0 %v10855, 64
    %v11066 = vpop.permute.xlu0 %11065
    %11067 = vrot.lane.b32.xlu0 %v10856, 64
    %v11068 = vpop.permute.xlu0 %11067
    %11069 = vrot.lane.b32.xlu0 %v10857, 64
    %v11070 = vpop.permute.xlu0 %11069
    %11071 = vrot.lane.b32.xlu0 %v10858, 64
    %v11072 = vpop.permute.xlu0 %11071
    %11073 = vrot.lane.b32.xlu0 %v10859, 64
    %v11074 = vpop.permute.xlu0 %11073
    %11075 = vrot.lane.b32.xlu0 %v10860, 64
    %v11076 = vpop.permute.xlu0 %11075
    %11077 = vrot.lane.b32.xlu0 %v10861, 64
    %v11078 = vpop.permute.xlu0 %11077
    %11079 = vrot.lane.b32.xlu0 %v10862, 64
    %v11080 = vpop.permute.xlu0 %11079
    %11081 = vrot.lane.b32.xlu0 %v10863, 64
    %v11082 = vpop.permute.xlu0 %11081
    %11083 = vrot.lane.b32.xlu0 %v10864, 64
    %v11084 = vpop.permute.xlu0 %11083
    %11085 = vrot.lane.b32.xlu0 %v10865, 64
    %v11086 = vpop.permute.xlu0 %11085
    %v11105 = vrot.slane %v10857, 1
    %v11106 = vrot.slane %v10873, 1
    %v11107 = vsel %vm1174, %v11105, %v11106
    %v11108 = vrot.slane %v10865, 1
    %v11109 = vrot.slane %v10881, 1
    %v11110 = vsel %vm1174, %v11108, %v11109
    %v11127 = vrot.slane %v10857, 2
    %v11128 = vrot.slane %v10873, 2
    %v11129 = vsel %vm1644, %v11127, %v11128
    %v11130 = vrot.slane %v10865, 2
    %v11131 = vrot.slane %v10881, 2
    %v11132 = vsel %vm1644, %v11130, %v11131
    %11133 = vrot.lane.b32.xlu0 %v10999, 64
    %v11134 = vpop.permute.xlu0 %11133
    %11135 = vrot.lane.b32.xlu0 %v11002, 64
    %v11136 = vpop.permute.xlu0 %11135
    %11137 = vrot.lane.b32.xlu0 %v11005, 64
    %v11138 = vpop.permute.xlu0 %11137
    %11139 = vrot.lane.b32.xlu0 %v11008, 64
    %v11140 = vpop.permute.xlu0 %11139
    %11141 = vrot.lane.b32.xlu0 %v11011, 64
    %v11142 = vpop.permute.xlu0 %11141
    %11143 = vrot.lane.b32.xlu0 %v11014, 64
    %v11144 = vpop.permute.xlu0 %11143
    %11145 = vrot.lane.b32.xlu0 %v11017, 64
    %v11146 = vpop.permute.xlu0 %11145
    %11147 = vrot.lane.b32.xlu0 %v11129, 64
    %v11148 = vpop.permute.xlu0 %11147
    %11149 = vrot.lane.b32.xlu0 %v11020, 64
    %v11150 = vpop.permute.xlu0 %11149
    %11151 = vrot.lane.b32.xlu0 %v11023, 64
    %v11152 = vpop.permute.xlu0 %11151
    %11153 = vrot.lane.b32.xlu0 %v11026, 64
    %v11154 = vpop.permute.xlu0 %11153
    %11155 = vrot.lane.b32.xlu0 %v11029, 64
    %v11156 = vpop.permute.xlu0 %11155
    %11157 = vrot.lane.b32.xlu0 %v11032, 64
    %v11158 = vpop.permute.xlu0 %11157
    %11159 = vrot.lane.b32.xlu0 %v11035, 64
    %v11160 = vpop.permute.xlu0 %11159
    %11161 = vrot.lane.b32.xlu0 %v11038, 64
    %v11162 = vpop.permute.xlu0 %11161
    %11163 = vrot.lane.b32.xlu0 %v11132, 64
    %v11164 = vpop.permute.xlu0 %11163
    %11181 = vrot.lane.b32.xlu0 %v11107, 64
    %v11182 = vpop.permute.xlu0 %11181
    %11183 = vrot.lane.b32.xlu0 %v11110, 64
    %v11184 = vpop.permute.xlu0 %11183
    %v11189 = vsel %vm6990, %v354, %v10953
    %v11190 = vsel %vm6990, %v10850, %v10955
    %v11191 = vsel %vm6990, %v10851, %v10957
    %v11192 = vsel %vm6990, %v10852, %v10959
    %v11193 = vsel %vm6990, %v10853, %v10961
    %v11194 = vsel %vm6990, %v10854, %v10963
    %v11195 = vsel %vm6990, %v10855, %v10965
    %v11196 = vsel %vm6990, %v10856, %v10967
    %v11197 = vsel %vm6990, %v10858, %v10969
    %v11198 = vsel %vm6990, %v10859, %v10971
    %v11199 = vsel %vm6990, %v10860, %v10973
    %v11200 = vsel %vm6990, %v10861, %v10975
    %v11201 = vsel %vm6990, %v10862, %v10977
    %v11202 = vsel %vm6990, %v10863, %v10979
    %v11203 = vsel %vm6990, %v10864, %v10981
    %v11204 = vsel %vm6990, %v9746, %v11056
    %v11205 = vsel %vm6990, %v10999, %v11058
    %v11206 = vsel %vm6990, %v11002, %v11060
    %v11207 = vsel %vm6990, %v11005, %v11062
    %v11208 = vsel %vm6990, %v11008, %v11064
    %v11209 = vsel %vm6990, %v11011, %v11066
    %v11210 = vsel %vm6990, %v11014, %v11068
    %v11211 = vsel %vm6990, %v11017, %v11070
    %v11212 = vsel %vm6990, %v9746, %v11072
    %v11213 = vsel %vm6990, %v11020, %v11074
    %v11214 = vsel %vm6990, %v11023, %v11076
    %v11215 = vsel %vm6990, %v11026, %v11078
    %v11216 = vsel %vm6990, %v11029, %v11080
    %v11217 = vsel %vm6990, %v11032, %v11082
    %v11218 = vsel %vm6990, %v11035, %v11084
    %v11219 = vsel %vm6990, %v11038, %v11086
    %v11220 = vsel %vm6990, %v10912, %v11134
    %v11221 = vsel %vm6990, %v10915, %v11136
    %v11222 = vsel %vm6990, %v10918, %v11138
    %v11223 = vsel %vm6990, %v10921, %v11140
    %v11224 = vsel %vm6990, %v10924, %v11142
    %v11225 = vsel %vm6990, %v10927, %v11144
    %v11226 = vsel %vm6990, %v10930, %v11146
    %v11227 = vsel %vm6990, %v11107, %v11148
    %v11228 = vsel %vm6990, %v10933, %v11150
    %v11229 = vsel %vm6990, %v10936, %v11152
    %v11230 = vsel %vm6990, %v10939, %v11154
    %v11231 = vsel %vm6990, %v10942, %v11156
    %v11232 = vsel %vm6990, %v10945, %v11158
    %v11233 = vsel %vm6990, %v10948, %v11160
    %v11234 = vsel %vm6990, %v10951, %v11162
    %v11235 = vsel %vm6990, %v11110, %v11164
    %v11236 = vsel %vm6990, %v10857, %v11182
    %v11237 = vsel %vm6990, %v10865, %v11184
    %v11238 = vpack.c.bf16 %v11190, %v11189
    %v11239 = vpack.c.bf16 %v11205, %v11204
    %v11240 = vpack.c.bf16 %v11221, %v11220
    %v11241 = vpack.c.bf16 %v11192, %v11191
    %v11242 = vpack.c.bf16 %v11005, %v11002
    %v11243 = vpack.c.bf16 %v11207, %v11206
    %v11244 = vpack.c.bf16 %v11223, %v11222
    %v11245 = vpack.c.bf16 %v11194, %v11193
    %v11246 = vpack.c.bf16 %v11011, %v11008
    %v11247 = vpack.c.bf16 %v11209, %v11208
    %v11248 = vpack.c.bf16 %v11225, %v11224
    %v11249 = vpack.c.bf16 %v11196, %v11195
    %v11250 = vpack.c.bf16 %v11017, %v11014
    %v11251 = vpack.c.bf16 %v11211, %v11210
    %v11252 = vpack.c.bf16 %v11227, %v11226
    %v11253 = vpack.c.bf16 %v11189, %v11236
    %v11254 = vpack.c.bf16 %v9746, %v11129
    %v11255 = vpack.c.bf16 %v11197, %v11189
    %v11256 = vpack.c.bf16 %v11213, %v11212
    %v11257 = vpack.c.bf16 %v11229, %v11228
    %v11258 = vpack.c.bf16 %v11199, %v11198
    %v11259 = vpack.c.bf16 %v11026, %v11023
    %v11260 = vpack.c.bf16 %v11215, %v11214
    %v11261 = vpack.c.bf16 %v11231, %v11230
    %v11262 = vpack.c.bf16 %v11201, %v11200
    %v11263 = vpack.c.bf16 %v11032, %v11029
    %v11264 = vpack.c.bf16 %v11217, %v11216
    %v11265 = vpack.c.bf16 %v11233, %v11232
    %v11266 = vpack.c.bf16 %v11203, %v11202
    %v11267 = vpack.c.bf16 %v11038, %v11035
    %v11268 = vpack.c.bf16 %v11219, %v11218
    %v11269 = vpack.c.bf16 %v11235, %v11234
    %v11270 = vpack.c.bf16 %v11189, %v11237
    %v11271 = vpack.c.bf16 %v9746, %v11132
    %v11344 = vunpack.c.l.b16 %v10728
    %v11345 = vunpack.c.l.b16 %v10729
    %v11346 = vunpack.c.l.b16 %v10730
    %v11347 = vunpack.c.l.b16 %v10731
    %v11348 = vunpack.c.l.b16 %v10732
    %v11349 = vunpack.c.l.b16 %v10733
    %v11350 = vunpack.c.l.b16 %v10734
    %v11351 = vunpack.c.l.b16 %v10735
    %v11352 = vunpack.c.l.b16 %v10736
    %v11353 = vunpack.c.l.b16 %v10737
    %v11354 = vunpack.c.l.b16 %v10738
    %v11355 = vunpack.c.l.b16 %v10739
    %v11356 = vunpack.c.l.b16 %v10740
    %v11357 = vunpack.c.l.b16 %v10741
    %v11358 = vunpack.c.l.b16 %v10742
    %v11359 = vunpack.c.l.b16 %v10743
    %v11360 = vunpack.c.l.b16 %v10744
    %v11361 = vunpack.c.l.b16 %v10745
    %v11362 = vunpack.c.l.b16 %v10746
    %v11363 = vunpack.c.l.b16 %v10747
    %v11364 = vunpack.c.l.b16 %v10748
    %v11365 = vunpack.c.l.b16 %v10749
    %v11366 = vunpack.c.l.b16 %v10750
    %v11367 = vunpack.c.l.b16 %v10751
    %v11368 = vunpack.c.l.b16 %v10752
    %v11369 = vunpack.c.l.b16 %v10753
    %v11370 = vunpack.c.l.b16 %v10754
    %v11371 = vunpack.c.l.b16 %v10755
    %v11372 = vunpack.c.l.b16 %v10756
    %v11373 = vunpack.c.l.b16 %v10757
    %v11374 = vunpack.c.l.b16 %v10758
    %v11375 = vunpack.c.l.b16 %v10759
    %v11376 = vunpack.c.l.b16 %v10760
    %v11377 = vunpack.c.l.b16 %v10761
    %v11378 = vunpack.c.l.b16 %v10762
    %v11379 = vunpack.c.l.b16 %v10763
    %v11380 = vunpack.c.l.b16 %v10764
    %v11381 = vunpack.c.l.b16 %v10765
    %v11382 = vunpack.c.l.b16 %v10766
    %v11383 = vunpack.c.l.b16 %v10767
    %v11384 = vunpack.c.l.b16 %v10768
    %v11385 = vunpack.c.l.b16 %v10769
    %v11386 = vunpack.c.l.b16 %v10770
    %v11387 = vunpack.c.l.b16 %v10771
    %v11388 = vunpack.c.l.b16 %v10772
    %v11389 = vunpack.c.l.b16 %v10773
    %v11390 = vunpack.c.l.b16 %v10774
    %v11391 = vunpack.c.l.b16 %v10775
    %v11392 = vunpack.c.l.b16 %v10776
    %v11393 = vunpack.c.l.b16 %v10777
    %v11394 = vunpack.c.l.b16 %v10778
    %v11395 = vunpack.c.l.b16 %v10779
    %v11396 = vunpack.c.l.b16 %v10780
    %v11397 = vunpack.c.l.b16 %v10781
    %v11398 = vunpack.c.l.b16 %v10782
    %v11399 = vunpack.c.l.b16 %v10783
    %v11400 = vunpack.c.l.b16 %v10784
    %v11401 = vunpack.c.l.b16 %v10785
    %v11402 = vunpack.c.l.b16 %v10786
    %v11403 = vunpack.c.l.b16 %v10787
    %v11404 = vunpack.c.l.b16 %v10788
    %v11405 = vunpack.c.l.b16 %v10789
    %v11406 = vunpack.c.l.b16 %v10790
    %v11407 = vunpack.c.l.b16 %v10791
    %v11408 = vunpack.c.l.b16 %v10792
    %v11409 = vunpack.c.l.b16 %v10793
    %v11410 = vunpack.c.l.b16 %v10794
    %v11411 = vunpack.c.l.b16 %v10795
    %v11412 = vunpack.c.l.b16 %v10796
    %v11413 = vunpack.c.l.b16 %v10797
    %v11414 = vunpack.c.l.b16 %v10798
    %v11415 = vunpack.c.l.b16 %v10799
    %v11416 = vpack.c.b16 %v11345, %v11344
    %v11417 = vpack.c.b16 %v11347, %v11346
    %v11418 = vpack.c.b16 %v11349, %v11348
    %v11419 = vpack.c.b16 %v11351, %v11350
    %v11420 = vpack.c.b16 %v11353, %v11352
    %v11421 = vpack.c.b16 %v11355, %v11354
    %v11422 = vpack.c.b16 %v11357, %v11356
    %v11423 = vpack.c.b16 %v11359, %v11358
    %v11424 = vpack.c.b16 %v11361, %v11360
    %v11425 = vpack.c.b16 %v11363, %v11362
    %v11426 = vpack.c.b16 %v11365, %v11364
    %v11427 = vpack.c.b16 %v11367, %v11366
    %v11428 = vpack.c.b16 %v11369, %v11368
    %v11429 = vpack.c.b16 %v11371, %v11370
    %v11430 = vpack.c.b16 %v11373, %v11372
    %v11431 = vpack.c.b16 %v11375, %v11374
    %v11432 = vpack.c.b16 %v11377, %v11376
    %v11433 = vpack.c.b16 %v11379, %v11378
    %v11434 = vpack.c.b16 %v11381, %v11380
    %v11435 = vpack.c.b16 %v11383, %v11382
    %v11436 = vpack.c.b16 %v11385, %v11384
    %v11437 = vpack.c.b16 %v11387, %v11386
    %v11438 = vpack.c.b16 %v11389, %v11388
    %v11439 = vpack.c.b16 %v11391, %v11390
    %v11440 = vpack.c.b16 %v11393, %v11392
    %v11441 = vpack.c.b16 %v11395, %v11394
    %v11442 = vpack.c.b16 %v11397, %v11396
    %v11443 = vpack.c.b16 %v11399, %v11398
    %v11444 = vpack.c.b16 %v11401, %v11400
    %v11445 = vpack.c.b16 %v11403, %v11402
    %v11446 = vpack.c.b16 %v11405, %v11404
    %v11447 = vpack.c.b16 %v11407, %v11406
    %v11448 = vpack.c.b16 %v11409, %v11408
    %v11449 = vpack.c.b16 %v11411, %v11410
    %v11450 = vpack.c.b16 %v11413, %v11412
    %v11451 = vpack.c.b16 %v11415, %v11414
    %v11489 = vsel %vm6990, %v11242, 0
    %v11492 = vsel %vm6990, %v11246, 0
    %v11495 = vsel %vm6990, %v11250, 0
    %v11498 = vsel %vm6990, %v11254, 0
    %v11501 = vsel %vm6990, %v11259, 0
    %v11504 = vsel %vm6990, %v11263, 0
    %v11507 = vsel %vm6990, %v11267, 0
    %v11510 = vsel %vm6990, %v11271, 0
    %11512 = vmatprep.subr.bf16.mxu0 0
    %11513 = vmatpush1.bf16.msra.mxu0 %v11416
    %11514 = vmatprep.subr.bf16.mxu0 0
    %11515 = vmatpush1.bf16.msra.mxu0 %v11417
    %11516 = vmatprep.subr.bf16.mxu0 0
    %11517 = vmatpush1.bf16.msra.mxu0 %v11418
    %11518 = vmatprep.subr.bf16.mxu0 0
    %11519 = vmatpush1.bf16.msra.mxu0 %v11419
    %11520 = vmatprep.subr.bf16.mxu0 0
    %11521 = vmatpush1.bf16.msra.mxu0 %v11420
    %11522 = vmatprep.subr.bf16.mxu0 0
    %11523 = vmatpush1.bf16.msra.mxu0 %v11421
    %11524 = vmatprep.subr.bf16.mxu0 0
    %11525 = vmatpush1.bf16.msra.mxu0 %v11422
    %11526 = vmatprep.subr.bf16.mxu0 0
    %11527 = vmatpush1.bf16.msra.mxu0 %v11423
    %11528 = vmatprep.subr.bf16.mxu0 0
    %11529 = vmatpush1.bf16.msra.mxu0 %v11424
    %11530 = vmatprep.subr.bf16.mxu0 0
    %11531 = vmatpush1.bf16.msra.mxu0 %v11425
    %11532 = vmatprep.subr.bf16.mxu0 0
    %11533 = vmatpush1.bf16.msra.mxu0 %v11426
    %11534 = vmatprep.subr.bf16.mxu0 0
    %11535 = vmatpush1.bf16.msra.mxu0 %v11427
    %11536 = vmatprep.subr.bf16.mxu0 0
    %11537 = vmatpush1.bf16.msra.mxu0 %v11428
    %11538 = vmatprep.subr.bf16.mxu0 0
    %11539 = vmatpush1.bf16.msra.mxu0 %v11429
    %11540 = vmatprep.subr.bf16.mxu0 0
    %11541 = vmatpush1.bf16.msra.mxu0 %v11430
    %11542 = vmatprep.subr.bf16.mxu0 0
    %11543 = vmatpush1.bf16.msra.mxu0 %v11431
    %11544 = vmatprep.mubr.bf16.mxu0 %v11239
    %11545 = vmatmul.mubr.bf16.gmra.mrb[0].mxu0 %v11238
    %v11546 = vpop.f32.mrb[0].mxu0
    %v11547 = vadd.f32 0.0, %v11546
    %v11548 = vpop.f32.mrb[0].mxu0
    %v11549 = vpop.f32.mrb[0].mxu0
    %v11550 = vadd.f32 0.0, %v11549
    %v11551 = vpop.f32.mrb[0].mxu0
    %11552 = vmatprep.mubr.bf16.mxu0 %v11243
    %11553 = vmatmul.mubr.bf16.gmra.mrb[0].mxu0 %v11241
    %v11554 = vpop.f32.mrb[0].mxu0
    %v11555 = vadd.f32 0.0, %v11554
    %v11556 = vpop.f32.mrb[0].mxu0
    %v11557 = vpop.f32.mrb[0].mxu0
    %v11558 = vadd.f32 0.0, %v11557
    %v11559 = vpop.f32.mrb[0].mxu0
    %11560 = vmatprep.mubr.bf16.mxu0 %v11247
    %11561 = vmatmul.mubr.bf16.gmra.mrb[0].mxu0 %v11245
    %v11562 = vpop.f32.mrb[0].mxu0
    %v11563 = vadd.f32 0.0, %v11562
    %v11564 = vpop.f32.mrb[0].mxu0
    %v11565 = vpop.f32.mrb[0].mxu0
    %v11566 = vadd.f32 0.0, %v11565
    %v11567 = vpop.f32.mrb[0].mxu0
    %11568 = vmatprep.mubr.bf16.mxu0 %v11251
    %11569 = vmatmul.mubr.bf16.gmra.mrb[0].mxu0 %v11249
    %v11570 = vpop.f32.mrb[0].mxu0
    %v11571 = vadd.f32 0.0, %v11570
    %v11572 = vpop.f32.mrb[0].mxu0
    %v11573 = vpop.f32.mrb[0].mxu0
    %v11574 = vadd.f32 0.0, %v11573
    %v11575 = vpop.f32.mrb[0].mxu0
    %11576 = vmatprep.mubr.bf16.mxu0 %v11256
    %11577 = vmatmul.mubr.bf16.gmra.mrb[0].mxu0 %v11255
    %v11578 = vpop.f32.mrb[0].mxu0
    %v11579 = vadd.f32 0.0, %v11578
    %v11580 = vpop.f32.mrb[0].mxu0
    %v11581 = vpop.f32.mrb[0].mxu0
    %v11582 = vadd.f32 0.0, %v11581
    %v11583 = vpop.f32.mrb[0].mxu0
    %11584 = vmatprep.mubr.bf16.mxu0 %v11260
    %11585 = vmatmul.mubr.bf16.gmra.mrb[0].mxu0 %v11258
    %v11586 = vpop.f32.mrb[0].mxu0
    %v11587 = vadd.f32 0.0, %v11586
    %v11588 = vpop.f32.mrb[0].mxu0
    %v11589 = vpop.f32.mrb[0].mxu0
    %v11590 = vadd.f32 0.0, %v11589
    %v11591 = vpop.f32.mrb[0].mxu0
    %11592 = vmatprep.mubr.bf16.mxu0 %v11264
    %11593 = vmatmul.mubr.bf16.gmra.mrb[0].mxu0 %v11262
    %v11594 = vpop.f32.mrb[0].mxu0
    %v11595 = vadd.f32 0.0, %v11594
    %v11596 = vpop.f32.mrb[0].mxu0
    %v11597 = vpop.f32.mrb[0].mxu0
    %v11598 = vadd.f32 0.0, %v11597
    %v11599 = vpop.f32.mrb[0].mxu0
    %11600 = vmatprep.mubr.bf16.mxu0 %v11268
    %11601 = vmatmul.mubr.bf16.gmra.mrb[0].mxu0 %v11266
    %v11602 = vpop.f32.mrb[0].mxu0
    %v11603 = vadd.f32 0.0, %v11602
    %v11604 = vpop.f32.mrb[0].mxu0
    %v11605 = vpop.f32.mrb[0].mxu0
    %v11606 = vadd.f32 0.0, %v11605
    %v11607 = vpop.f32.mrb[0].mxu0
    %11608 = vdwg.mxu0
    %11609 = vmatprep.subr.bf16.mxu0 0
    %11610 = vmatpush1.bf16.msra.mxu0 %v11432
    %11611 = vmatprep.subr.bf16.mxu0 0
    %11612 = vmatpush1.bf16.msra.mxu0 %v11433
    %11613 = vmatprep.subr.bf16.mxu0 0
    %11614 = vmatpush1.bf16.msra.mxu0 %v11434
    %11615 = vmatprep.subr.bf16.mxu0 0
    %11616 = vmatpush1.bf16.msra.mxu0 %v11435
    %11617 = vmatprep.subr.bf16.mxu0 0
    %11618 = vmatpush1.bf16.msra.mxu0 %v11436
    %11619 = vmatprep.subr.bf16.mxu0 0
    %11620 = vmatpush1.bf16.msra.mxu0 %v11437
    %11621 = vmatprep.subr.bf16.mxu0 0
    %11622 = vmatpush1.bf16.msra.mxu0 %v11438
    %11623 = vmatprep.subr.bf16.mxu0 0
    %11624 = vmatpush1.bf16.msra.mxu0 %v11439
    %11625 = vmatprep.subr.bf16.mxu0 0
    %11626 = vmatpush1.bf16.msra.mxu0 %v11440
    %11627 = vmatprep.subr.bf16.mxu0 0
    %11628 = vmatpush1.bf16.msra.mxu0 %v11441
    %11629 = vmatprep.subr.bf16.mxu0 0
    %11630 = vmatpush1.bf16.msra.mxu0 %v11442
    %11631 = vmatprep.subr.bf16.mxu0 0
    %11632 = vmatpush1.bf16.msra.mxu0 %v11443
    %11633 = vmatprep.subr.bf16.mxu0 0
    %11634 = vmatpush1.bf16.msra.mxu0 %v11444
    %11635 = vmatprep.subr.bf16.mxu0 0
    %11636 = vmatpush1.bf16.msra.mxu0 %v11445
    %11637 = vmatprep.subr.bf16.mxu0 0
    %11638 = vmatpush1.bf16.msra.mxu0 %v11446
    %11639 = vmatprep.subr.bf16.mxu0 0
    %11640 = vmatpush1.bf16.msra.mxu0 %v11447
    %11641 = vmatprep.mubr.bf16.mxu0 %v11241
    %11642 = vmatmul.mubr.bf16.gmra.mrb[0].mxu0 %v11240
    %v11643 = vpop.f32.mrb[0].mxu0
    %v11644 = vadd.f32 %v11547, %v11643
    %v11645 = vpop.f32.mrb[0].mxu0
    %v11646 = vpop.f32.mrb[0].mxu0
    %v11647 = vadd.f32 %v11550, %v11646
    %v11648 = vpop.f32.mrb[0].mxu0
    %11649 = vmatprep.mubr.bf16.mxu0 %v11245
    %11650 = vmatmul.mubr.bf16.gmra.mrb[0].mxu0 %v11244
    %v11651 = vpop.f32.mrb[0].mxu0
    %v11652 = vadd.f32 %v11555, %v11651
    %v11653 = vpop.f32.mrb[0].mxu0
    %v11654 = vpop.f32.mrb[0].mxu0
    %v11655 = vadd.f32 %v11558, %v11654
    %v11656 = vpop.f32.mrb[0].mxu0
    %11657 = vmatprep.mubr.bf16.mxu0 %v11249
    %11658 = vmatmul.mubr.bf16.gmra.mrb[0].mxu0 %v11248
    %v11659 = vpop.f32.mrb[0].mxu0
    %v11660 = vadd.f32 %v11563, %v11659
    %v11661 = vpop.f32.mrb[0].mxu0
    %v11662 = vpop.f32.mrb[0].mxu0
    %v11663 = vadd.f32 %v11566, %v11662
    %v11664 = vpop.f32.mrb[0].mxu0
    %11665 = vmatprep.mubr.bf16.mxu0 %v11253
    %11666 = vmatmul.mubr.bf16.gmra.mrb[0].mxu0 %v11252
    %v11667 = vpop.f32.mrb[0].mxu0
    %v11668 = vadd.f32 %v11571, %v11667
    %v11669 = vpop.f32.mrb[0].mxu0
    %v11670 = vpop.f32.mrb[0].mxu0
    %v11671 = vadd.f32 %v11574, %v11670
    %v11672 = vpop.f32.mrb[0].mxu0
    %11673 = vmatprep.mubr.bf16.mxu0 %v11258
    %11674 = vmatmul.mubr.bf16.gmra.mrb[0].mxu0 %v11257
    %v11675 = vpop.f32.mrb[0].mxu0
    %v11676 = vadd.f32 %v11579, %v11675
    %v11677 = vpop.f32.mrb[0].mxu0
    %v11678 = vpop.f32.mrb[0].mxu0
    %v11679 = vadd.f32 %v11582, %v11678
    %v11680 = vpop.f32.mrb[0].mxu0
    %11681 = vmatprep.mubr.bf16.mxu0 %v11262
    %11682 = vmatmul.mubr.bf16.gmra.mrb[0].mxu0 %v11261
    %v11683 = vpop.f32.mrb[0].mxu0
    %v11684 = vadd.f32 %v11587, %v11683
    %v11685 = vpop.f32.mrb[0].mxu0
    %v11686 = vpop.f32.mrb[0].mxu0
    %v11687 = vadd.f32 %v11590, %v11686
    %v11688 = vpop.f32.mrb[0].mxu0
    %11689 = vmatprep.mubr.bf16.mxu0 %v11266
    %11690 = vmatmul.mubr.bf16.gmra.mrb[0].mxu0 %v11265
    %v11691 = vpop.f32.mrb[0].mxu0
    %v11692 = vadd.f32 %v11595, %v11691
    %v11693 = vpop.f32.mrb[0].mxu0
    %v11694 = vpop.f32.mrb[0].mxu0
    %v11695 = vadd.f32 %v11598, %v11694
    %v11696 = vpop.f32.mrb[0].mxu0
    %11697 = vmatprep.mubr.bf16.mxu0 %v11270
    %11698 = vmatmul.mubr.bf16.gmra.mrb[0].mxu0 %v11269
    %v11699 = vpop.f32.mrb[0].mxu0
    %v11700 = vadd.f32 %v11603, %v11699
    %v11701 = vpop.f32.mrb[0].mxu0
    %v11702 = vpop.f32.mrb[0].mxu0
    %v11703 = vadd.f32 %v11606, %v11702
    %v11704 = vpop.f32.mrb[0].mxu0
    %11705 = vdwg.mxu0
    %11706 = vmatprep.subr.bf16.mxu0 0
    %11707 = vmatpush1.bf16.msra.mxu0 %v11448
    %11708 = vmatprep.subr.bf16.mxu0 0
    %11709 = vmatpush1.bf16.msra.mxu0 %v11449
    %11710 = vmatprep.subr.bf16.mxu0 0
    %11711 = vmatpush1.bf16.msra.mxu0 %v11450
    %11712 = vmatprep.subr.bf16.mxu0 0
    %11713 = vmatpush1.bf16.msra.mxu0 %v11451
    %11714 = vmatprep.subr.bf16.mxu0 0
    %11715 = vmatpush1.bf16.msra.mxu0 0
    %11716 = vmatprep.subr.bf16.mxu0 0
    %11717 = vmatpush1.bf16.msra.mxu0 0
    %11718 = vmatprep.subr.bf16.mxu0 0
    %11719 = vmatpush1.bf16.msra.mxu0 0
    %11720 = vmatprep.subr.bf16.mxu0 0
    %11721 = vmatpush1.bf16.msra.mxu0 0
    %11722 = vmatprep.subr.bf16.mxu0 0
    %11723 = vmatpush1.bf16.msra.mxu0 0
    %11724 = vmatprep.subr.bf16.mxu0 0
    %11725 = vmatpush1.bf16.msra.mxu0 0
    %11726 = vmatprep.subr.bf16.mxu0 0
    %11727 = vmatpush1.bf16.msra.mxu0 0
    %11728 = vmatprep.subr.bf16.mxu0 0
    %11729 = vmatpush1.bf16.msra.mxu0 0
    %11730 = vmatprep.subr.bf16.mxu0 0
    %11731 = vmatpush1.bf16.msra.mxu0 0
    %11732 = vmatprep.subr.bf16.mxu0 0
    %11733 = vmatpush1.bf16.msra.mxu0 0
    %11734 = vmatprep.subr.bf16.mxu0 0
    %11735 = vmatpush1.bf16.msra.mxu0 0
    %11736 = vmatprep.subr.bf16.mxu0 0
    %11737 = vmatpush1.bf16.msra.mxu0 0
    %11738 = vmatprep.mubr.bf16.mxu0 0
    %11739 = vmatmul.mubr.bf16.gmra.mrb[0].mxu0 %v11489
    %v11740 = vpop.f32.mrb[0].mxu0
    %v11741 = vadd.f32 %v11644, %v11740
    %v11742 = vpop.f32.mrb[0].mxu0
    %v11743 = vpop.f32.mrb[0].mxu0
    %v11744 = vadd.f32 %v11647, %v11743
    %v11745 = vpop.f32.mrb[0].mxu0
    %11746 = vmatprep.mubr.bf16.mxu0 0
    %11747 = vmatmul.mubr.bf16.gmra.mrb[0].mxu0 %v11492
    %v11748 = vpop.f32.mrb[0].mxu0
    %v11749 = vadd.f32 %v11652, %v11748
    %v11750 = vpop.f32.mrb[0].mxu0
    %v11751 = vpop.f32.mrb[0].mxu0
    %v11752 = vadd.f32 %v11655, %v11751
    %v11753 = vpop.f32.mrb[0].mxu0
    %11754 = vmatprep.mubr.bf16.mxu0 0
    %11755 = vmatmul.mubr.bf16.gmra.mrb[0].mxu0 %v11495
    %v11756 = vpop.f32.mrb[0].mxu0
    %v11757 = vadd.f32 %v11660, %v11756
    %v11758 = vpop.f32.mrb[0].mxu0
    %v11759 = vpop.f32.mrb[0].mxu0
    %v11760 = vadd.f32 %v11663, %v11759
    %v11761 = vpop.f32.mrb[0].mxu0
    %11762 = vmatprep.mubr.bf16.mxu0 0
    %11763 = vmatmul.mubr.bf16.gmra.mrb[0].mxu0 %v11498
    %v11764 = vpop.f32.mrb[0].mxu0
    %v11765 = vadd.f32 %v11668, %v11764
    %v11766 = vpop.f32.mrb[0].mxu0
    %v11767 = vpop.f32.mrb[0].mxu0
    %v11768 = vadd.f32 %v11671, %v11767
    %v11769 = vpop.f32.mrb[0].mxu0
    %11770 = vmatprep.mubr.bf16.mxu0 0
    %11771 = vmatmul.mubr.bf16.gmra.mrb[0].mxu0 %v11501
    %v11772 = vpop.f32.mrb[0].mxu0
    %v11773 = vadd.f32 %v11676, %v11772
    %v11774 = vpop.f32.mrb[0].mxu0
    %v11775 = vpop.f32.mrb[0].mxu0
    %v11776 = vadd.f32 %v11679, %v11775
    %v11777 = vpop.f32.mrb[0].mxu0
    %11778 = vmatprep.mubr.bf16.mxu0 0
    %11779 = vmatmul.mubr.bf16.gmra.mrb[0].mxu0 %v11504
    %v11780 = vpop.f32.mrb[0].mxu0
    %v11781 = vadd.f32 %v11684, %v11780
    %v11782 = vpop.f32.mrb[0].mxu0
    %v11783 = vpop.f32.mrb[0].mxu0
    %v11784 = vadd.f32 %v11687, %v11783
    %v11785 = vpop.f32.mrb[0].mxu0
    %11786 = vmatprep.mubr.bf16.mxu0 0
    %11787 = vmatmul.mubr.bf16.gmra.mrb[0].mxu0 %v11507
    %v11788 = vpop.f32.mrb[0].mxu0
    %v11789 = vadd.f32 %v11692, %v11788
    %v11790 = vpop.f32.mrb[0].mxu0
    %v11791 = vpop.f32.mrb[0].mxu0
    %v11792 = vadd.f32 %v11695, %v11791
    %v11793 = vpop.f32.mrb[0].mxu0
    %11794 = vmatprep.mubr.bf16.mxu0 0
    %11795 = vmatmul.mubr.bf16.gmra.mrb[0].mxu0 %v11510
    %v11796 = vpop.f32.mrb[0].mxu0
    %v11797 = vadd.f32 %v11700, %v11796
    %v11798 = vpop.f32.mrb[0].mxu0
    %v11799 = vpop.f32.mrb[0].mxu0
    %v11800 = vadd.f32 %v11703, %v11799
    %v11801 = vpop.f32.mrb[0].mxu0
    %11802 = vdwg.mxu0
    %v11803 = vsel %vm6990, %v11741, 0.0
    %v11804 = vsel %vm6990, %v11744, 0.0
    %v11805 = vadd.f32 %v11803, %v11804
    %v11806 = vsel %vm6990, %v11749, 0.0
    %v11807 = vadd.f32 %v11805, %v11806
    %v11808 = vsel %vm6990, %v11752, 0.0
    %v11809 = vadd.f32 %v11807, %v11808
    %v11810 = vsel %vm6990, %v11757, 0.0
    %v11811 = vadd.f32 %v11809, %v11810
    %v11812 = vsel %vm6990, %v11760, 0.0
    %v11813 = vadd.f32 %v11811, %v11812
    %v11814 = vsel %vm6990, %v11765, 0.0
    %v11815 = vadd.f32 %v11813, %v11814
    %v11816 = vsel %vm6990, %v11768, 0.0
    %v11817 = vadd.f32 %v11815, %v11816
    %v11818 = vsel %vm6990, %v11773, 0.0
    %v11819 = vadd.f32 %v11817, %v11818
    %v11820 = vsel %vm6990, %v11776, 0.0
    %v11821 = vadd.f32 %v11819, %v11820
    %v11822 = vsel %vm6990, %v11781, 0.0
    %v11823 = vadd.f32 %v11821, %v11822
    %v11824 = vsel %vm6990, %v11784, 0.0
    %v11825 = vadd.f32 %v11823, %v11824
    %v11826 = vsel %vm6990, %v11789, 0.0
    %v11827 = vadd.f32 %v11825, %v11826
    %v11828 = vsel %vm6990, %v11792, 0.0
    %v11829 = vadd.f32 %v11827, %v11828
    %v11830 = vsel %vm6990, %v11797, 0.0
    %v11831 = vadd.f32 %v11829, %v11830
    %v11832 = vsel %vm6990, %v11800, 0.0
    %v11833 = vadd.f32 %v11831, %v11832
    %v11834 = vrot.slane %v11833, 4
    %v11835 = vadd.f32 %v11833, %v11834
    %v11836 = vrot.slane %v11835, 2
    %v11837 = vadd.f32 %v11835, %v11836
    %v11838 = vrot.slane %v11837, 1
    %v11839 = vadd.f32 %v11837, %v11838
    %v11840 = vmul.f32 %v11741, %v11741
    %v11841 = vmul.f32 %v11744, %v11744
    %v11842 = vmul.f32 %v11749, %v11749
    %v11843 = vmul.f32 %v11752, %v11752
    %v11844 = vmul.f32 %v11757, %v11757
    %v11845 = vmul.f32 %v11760, %v11760
    %v11846 = vmul.f32 %v11765, %v11765
    %v11847 = vmul.f32 %v11768, %v11768
    %v11848 = vmul.f32 %v11773, %v11773
    %v11849 = vmul.f32 %v11776, %v11776
    %v11850 = vmul.f32 %v11781, %v11781
    %v11851 = vmul.f32 %v11784, %v11784
    %v11852 = vmul.f32 %v11789, %v11789
    %v11853 = vmul.f32 %v11792, %v11792
    %v11854 = vmul.f32 %v11797, %v11797
    %v11855 = vmul.f32 %v11800, %v11800
    %v11856 = vsel %vm6990, %v11840, 0.0
    %v11857 = vsel %vm6990, %v11841, 0.0
    %v11858 = vadd.f32 %v11856, %v11857
    %v11859 = vsel %vm6990, %v11842, 0.0
    %v11860 = vadd.f32 %v11858, %v11859
    %v11861 = vsel %vm6990, %v11843, 0.0
    %v11862 = vadd.f32 %v11860, %v11861
    %v11863 = vsel %vm6990, %v11844, 0.0
    %v11864 = vadd.f32 %v11862, %v11863
    %v11865 = vsel %vm6990, %v11845, 0.0
    %v11866 = vadd.f32 %v11864, %v11865
    %v11867 = vsel %vm6990, %v11846, 0.0
    %v11868 = vadd.f32 %v11866, %v11867
    %v11869 = vsel %vm6990, %v11847, 0.0
    %v11870 = vadd.f32 %v11868, %v11869
    %v11871 = vsel %vm6990, %v11848, 0.0
    %v11872 = vadd.f32 %v11870, %v11871
    %v11873 = vsel %vm6990, %v11849, 0.0
    %v11874 = vadd.f32 %v11872, %v11873
    %v11875 = vsel %vm6990, %v11850, 0.0
    %v11876 = vadd.f32 %v11874, %v11875
    %v11877 = vsel %vm6990, %v11851, 0.0
    %v11878 = vadd.f32 %v11876, %v11877
    %v11879 = vsel %vm6990, %v11852, 0.0
    %v11880 = vadd.f32 %v11878, %v11879
    %v11881 = vsel %vm6990, %v11853, 0.0
    %v11882 = vadd.f32 %v11880, %v11881
    %v11883 = vsel %vm6990, %v11854, 0.0
    %v11884 = vadd.f32 %v11882, %v11883
    %v11885 = vsel %vm6990, %v11855, 0.0
    %v11886 = vadd.f32 %v11884, %v11885
    %v11887 = vrot.slane %v11886, 4
    %v11888 = vadd.f32 %v11886, %v11887
    %v11889 = vrot.slane %v11888, 2
    %v11890 = vadd.f32 %v11888, %v11889
    %v11891 = vrot.slane %v11890, 1
    %v11892 = vadd.f32 %v11890, %v11891
    %v11893 = vmul.f32 %v11839, 0.0078125
    %v11894 = vmul.f32 %v11892, 0.0078125
    %v11895 = vmul.f32 %v11893, %v11893
    %v11896 = vsub.f32 %v11894, %v11895
    %v11897 = vsub.f32 %v11741, %v11893
    %v11898 = vsub.f32 %v11744, %v11893
    %v11899 = vsub.f32 %v11749, %v11893
    %v11900 = vsub.f32 %v11752, %v11893
    %v11901 = vsub.f32 %v11757, %v11893
    %v11902 = vsub.f32 %v11760, %v11893
    %v11903 = vsub.f32 %v11765, %v11893
    %v11904 = vsub.f32 %v11768, %v11893
    %v11905 = vsub.f32 %v11773, %v11893
    %v11906 = vsub.f32 %v11776, %v11893
    %v11907 = vsub.f32 %v11781, %v11893
    %v11908 = vsub.f32 %v11784, %v11893
    %v11909 = vsub.f32 %v11789, %v11893
    %v11910 = vsub.f32 %v11792, %v11893
    %v11911 = vsub.f32 %v11797, %v11893
    %v11912 = vsub.f32 %v11800, %v11893
    %v11913 = vadd.f32 %v11896, 1e-05
    %v11914 = vrsqrt.pop %v11913
    %v11915 = vmul.f32 %v11897, %v11914
    %v11916 = vmul.f32 %v11898, %v11914
    %v11917 = vmul.f32 %v11899, %v11914
    %v11918 = vmul.f32 %v11900, %v11914
    %v11919 = vmul.f32 %v11901, %v11914
    %v11920 = vmul.f32 %v11902, %v11914
    %v11921 = vmul.f32 %v11903, %v11914
    %v11922 = vmul.f32 %v11904, %v11914
    %v11923 = vmul.f32 %v11905, %v11914
    %v11924 = vmul.f32 %v11906, %v11914
    %v11925 = vmul.f32 %v11907, %v11914
    %v11926 = vmul.f32 %v11908, %v11914
    %v11927 = vmul.f32 %v11909, %v11914
    %v11928 = vmul.f32 %v11910, %v11914
    %v11929 = vmul.f32 %v11911, %v11914
    %v11930 = vmul.f32 %v11912, %v11914
    %v11932 = vlaneseq
    %v11933 = vshrl.u32 %v11932, 7
    %v11934 = vsub.s32 0, %v11933
    %v11935 = vrot.slane %v10800, %v11934
    %v11937 = vmul.f32 %v11915, %v11935
    %v11938 = vmul.f32 %v11916, %v11935
    %v11939 = vmul.f32 %v11917, %v11935
    %v11940 = vmul.f32 %v11918, %v11935
    %v11941 = vmul.f32 %v11919, %v11935
    %v11942 = vmul.f32 %v11920, %v11935
    %v11943 = vmul.f32 %v11921, %v11935
    %v11944 = vmul.f32 %v11922, %v11935
    %v11945 = vmul.f32 %v11923, %v11935
    %v11946 = vmul.f32 %v11924, %v11935
    %v11947 = vmul.f32 %v11925, %v11935
    %v11948 = vmul.f32 %v11926, %v11935
    %v11949 = vmul.f32 %v11927, %v11935
    %v11950 = vmul.f32 %v11928, %v11935
    %v11951 = vmul.f32 %v11929, %v11935
    %v11952 = vmul.f32 %v11930, %v11935
    %v11954 = vlaneseq
    %v11955 = vshrl.u32 %v11954, 7
    %v11956 = vsub.s32 0, %v11955
    %v11957 = vrot.slane %v10801, %v11956
    %v11959 = vadd.f32 %v11937, %v11957
    %v11960 = vadd.f32 %v11938, %v11957
    %v11961 = vadd.f32 %v11939, %v11957
    %v11962 = vadd.f32 %v11940, %v11957
    %v11963 = vadd.f32 %v11941, %v11957
    %v11964 = vadd.f32 %v11942, %v11957
    %v11965 = vadd.f32 %v11943, %v11957
    %v11966 = vadd.f32 %v11944, %v11957
    %v11967 = vadd.f32 %v11945, %v11957
    %v11968 = vadd.f32 %v11946, %v11957
    %v11969 = vadd.f32 %v11947, %v11957
    %v11970 = vadd.f32 %v11948, %v11957
    %v11971 = vadd.f32 %v11949, %v11957
    %v11972 = vadd.f32 %v11950, %v11957
    %v11973 = vadd.f32 %v11951, %v11957
    %v11974 = vadd.f32 %v11952, %v11957
    %vm11975 = vcmp.ge.f32.partialorder %v11959, 0.0
    %vm11976 = vcmp.ge.f32.partialorder %v11960, 0.0
    %vm11977 = vcmp.ge.f32.partialorder %v11961, 0.0
    %vm11978 = vcmp.ge.f32.partialorder %v11962, 0.0
    %vm11979 = vcmp.ge.f32.partialorder %v11963, 0.0
    %vm11980 = vcmp.ge.f32.partialorder %v11964, 0.0
    %vm11981 = vcmp.ge.f32.partialorder %v11965, 0.0
    %vm11982 = vcmp.ge.f32.partialorder %v11966, 0.0
    %vm11983 = vcmp.ge.f32.partialorder %v11967, 0.0
    %vm11984 = vcmp.ge.f32.partialorder %v11968, 0.0
    %vm11985 = vcmp.ge.f32.partialorder %v11969, 0.0
    %vm11986 = vcmp.ge.f32.partialorder %v11970, 0.0
    %vm11987 = vcmp.ge.f32.partialorder %v11971, 0.0
    %vm11988 = vcmp.ge.f32.partialorder %v11972, 0.0
    %vm11989 = vcmp.ge.f32.partialorder %v11973, 0.0
    %vm11990 = vcmp.ge.f32.partialorder %v11974, 0.0
    %v11991 = vmul.f32 %v11959, 0.01
    %v11992 = vmul.f32 %v11960, 0.01
    %v11993 = vmul.f32 %v11961, 0.01
    %v11994 = vmul.f32 %v11962, 0.01
    %v11995 = vmul.f32 %v11963, 0.01
    %v11996 = vmul.f32 %v11964, 0.01
    %v11997 = vmul.f32 %v11965, 0.01
    %v11998 = vmul.f32 %v11966, 0.01
    %v11999 = vmul.f32 %v11967, 0.01
    %v12000 = vmul.f32 %v11968, 0.01
    %v12001 = vmul.f32 %v11969, 0.01
    %v12002 = vmul.f32 %v11970, 0.01
    %v12003 = vmul.f32 %v11971, 0.01
    %v12004 = vmul.f32 %v11972, 0.01
    %v12005 = vmul.f32 %v11973, 0.01
    %v12006 = vmul.f32 %v11974, 0.01
    %v12007 = vsel %vm11975, %v11959, %v11991
    %v12008 = vsel %vm11976, %v11960, %v11992
    %v12009 = vsel %vm11977, %v11961, %v11993
    %v12010 = vsel %vm11978, %v11962, %v11994
    %v12011 = vsel %vm11979, %v11963, %v11995
    %v12012 = vsel %vm11980, %v11964, %v11996
    %v12013 = vsel %vm11981, %v11965, %v11997
    %v12014 = vsel %vm11982, %v11966, %v11998
    %v12015 = vsel %vm11983, %v11967, %v11999
    %v12016 = vsel %vm11984, %v11968, %v12000
    %v12017 = vsel %vm11985, %v11969, %v12001
    %v12018 = vsel %vm11986, %v11970, %v12002
    %v12019 = vsel %vm11987, %v11971, %v12003
    %v12020 = vsel %vm11988, %v11972, %v12004
    %v12021 = vsel %vm11989, %v11973, %v12005
    %v12022 = vsel %vm11990, %v11974, %v12006
    %v12023 = vmax.f32 %v12007, %v12008
    %v12024 = vmax.f32 %v12009, %v12010
    %v12025 = vmax.f32 %v12011, %v12012
    %v12026 = vmax.f32 %v12013, %v12014
    %v12027 = vmax.f32 %v12015, %v12016
    %v12028 = vmax.f32 %v12017, %v12018
    %v12029 = vmax.f32 %v12019, %v12020
    %v12030 = vmax.f32 %v12021, %v12022
    %v12039 = vrot.slane %v12023, 1
    %v12040 = vrot.slane %v12024, 1
    %v12041 = vrot.slane %v12025, 1
    %v12042 = vrot.slane %v12026, 1
    %v12043 = vrot.slane %v12027, 1
    %v12044 = vrot.slane %v12028, 1
    %v12045 = vrot.slane %v12029, 1
    %v12046 = vrot.slane %v12030, 1
    %v12055 = vmax.f32 %v12023, %v12039
    %v12056 = vmax.f32 %v12024, %v12040
    %v12057 = vmax.f32 %v12025, %v12041
    %v12058 = vmax.f32 %v12026, %v12042
    %v12059 = vmax.f32 %v12027, %v12043
    %v12060 = vmax.f32 %v12028, %v12044
    %v12061 = vmax.f32 %v12029, %v12045
    %v12062 = vmax.f32 %v12030, %v12046
    %v12071 = vrot.slane %v12055, 1
    %v12072 = vrot.slane %v12056, 1
    %v12073 = vrot.slane %v12057, 1
    %v12074 = vrot.slane %v12058, 1
    %v12075 = vrot.slane %v12059, 1
    %v12076 = vrot.slane %v12060, 1
    %v12077 = vrot.slane %v12061, 1
    %v12078 = vrot.slane %v12062, 1
    %v12087 = vrot.slane %v12055, 2
    %v12088 = vrot.slane %v12056, 2
    %v12089 = vrot.slane %v12057, 2
    %v12090 = vrot.slane %v12058, 2
    %v12091 = vrot.slane %v12059, 2
    %v12092 = vrot.slane %v12060, 2
    %v12093 = vrot.slane %v12061, 2
    %v12094 = vrot.slane %v12062, 2
    %v12103 = vrot.slane %v12055, 3
    %v12104 = vrot.slane %v12056, 3
    %v12105 = vrot.slane %v12057, 3
    %v12106 = vrot.slane %v12058, 3
    %v12107 = vrot.slane %v12059, 3
    %v12108 = vrot.slane %v12060, 3
    %v12109 = vrot.slane %v12061, 3
    %v12110 = vrot.slane %v12062, 3
    %v12119 = vsel %vm190, %v12055, %v12071
    %v12120 = vsel %vm190, %v12056, %v12072
    %v12121 = vsel %vm190, %v12057, %v12073
    %v12122 = vsel %vm190, %v12058, %v12074
    %v12123 = vsel %vm190, %v12059, %v12075
    %v12124 = vsel %vm190, %v12060, %v12076
    %v12125 = vsel %vm190, %v12061, %v12077
    %v12126 = vsel %vm190, %v12062, %v12078
    %v12127 = vsel %vm9412, %v12119, %v12087
    %v12128 = vsel %vm9412, %v12120, %v12088
    %v12129 = vsel %vm9412, %v12121, %v12089
    %v12130 = vsel %vm9412, %v12122, %v12090
    %v12131 = vsel %vm9412, %v12123, %v12091
    %v12132 = vsel %vm9412, %v12124, %v12092
    %v12133 = vsel %vm9412, %v12125, %v12093
    %v12134 = vsel %vm9412, %v12126, %v12094
    %v12135 = vsel %vm9429, %v12127, %v12103
    %v12136 = vsel %vm9429, %v12128, %v12104
    %v12137 = vsel %vm9429, %v12129, %v12105
    %v12138 = vsel %vm9429, %v12130, %v12106
    %v12139 = vsel %vm9429, %v12131, %v12107
    %v12140 = vsel %vm9429, %v12132, %v12108
    %v12141 = vsel %vm9429, %v12133, %v12109
    %v12142 = vsel %vm9429, %v12134, %v12110
    %v12145 = vrot.slane %v12139, 7
    %vm12146 = vcmask 1041409
    %v12147 = vsel %vm12146, %v12145, %v12135
    %v12149 = vrot.slane %v12135, 1
    %v12150 = vsel %vm12146, %v12139, %v12149
    %12151 = vrot.lane.b32.xlu0 %v12150, 64
    %v12152 = vpop.permute.xlu0 %12151
    %v12154 = vrot.slane %v12135, 2
    %v12155 = vrot.slane %v12139, 1
    %v12156 = vsel %vm12146, %v12155, %v12154
    %v12158 = vrot.slane %v12135, 3
    %v12159 = vrot.slane %v12139, 2
    %v12160 = vsel %vm12146, %v12159, %v12158
    %12161 = vrot.lane.b32.xlu0 %v12160, 64
    %v12162 = vpop.permute.xlu0 %12161
    %v12166 = vrot.slane %v12140, 7
    %v12167 = vsel %vm12146, %v12166, %v12136
    %v12169 = vrot.slane %v12136, 1
    %v12170 = vsel %vm12146, %v12140, %v12169
    %12171 = vrot.lane.b32.xlu0 %v12170, 64
    %v12172 = vpop.permute.xlu0 %12171
    %v12174 = vrot.slane %v12136, 2
    %v12175 = vrot.slane %v12140, 1
    %v12176 = vsel %vm12146, %v12175, %v12174
    %v12178 = vrot.slane %v12136, 3
    %v12179 = vrot.slane %v12140, 2
    %v12180 = vsel %vm12146, %v12179, %v12178
    %12181 = vrot.lane.b32.xlu0 %v12180, 64
    %v12182 = vpop.permute.xlu0 %12181
    %v12186 = vrot.slane %v12141, 7
    %v12187 = vsel %vm12146, %v12186, %v12137
    %v12189 = vrot.slane %v12137, 1
    %v12190 = vsel %vm12146, %v12141, %v12189
    %12191 = vrot.lane.b32.xlu0 %v12190, 64
    %v12192 = vpop.permute.xlu0 %12191
    %v12194 = vrot.slane %v12137, 2
    %v12195 = vrot.slane %v12141, 1
    %v12196 = vsel %vm12146, %v12195, %v12194
    %v12198 = vrot.slane %v12137, 3
    %v12199 = vrot.slane %v12141, 2
    %v12200 = vsel %vm12146, %v12199, %v12198
    %12201 = vrot.lane.b32.xlu0 %v12200, 64
    %v12202 = vpop.permute.xlu0 %12201
    %v12206 = vrot.slane %v12142, 7
    %v12207 = vsel %vm12146, %v12206, %v12138
    %v12209 = vrot.slane %v12138, 1
    %v12210 = vsel %vm12146, %v12142, %v12209
    %12211 = vrot.lane.b32.xlu0 %v12210, 64
    %v12212 = vpop.permute.xlu0 %12211
    %v12214 = vrot.slane %v12138, 2
    %v12215 = vrot.slane %v12142, 1
    %v12216 = vsel %vm12146, %v12215, %v12214
    %v12218 = vrot.slane %v12138, 3
    %v12219 = vrot.slane %v12142, 2
    %v12220 = vsel %vm12146, %v12219, %v12218
    %12221 = vrot.lane.b32.xlu0 %v12220, 64
    %v12222 = vpop.permute.xlu0 %12221
    %v12224 = vsel %vm6990, %v12147, %v12152
    %v12225 = vsel %vm6990, %v12156, %v12162
    %v12226 = vsel %vm6990, %v12167, %v12172
    %v12227 = vsel %vm6990, %v12176, %v12182
    %v12228 = vsel %vm6990, %v12187, %v12192
    %v12229 = vsel %vm6990, %v12196, %v12202
    %v12230 = vsel %vm6990, %v12207, %v12212
    %v12231 = vsel %vm6990, %v12216, %v12222
    %v12232 = vpack.c.bf16 %v12224, %v12224
    %v12233 = vpack.c.bf16 %v12225, %v12225
    %v12234 = vpack.c.bf16 %v12226, %v12226
    %v12235 = vpack.c.bf16 %v12227, %v12227
    %v12236 = vpack.c.bf16 %v12228, %v12228
    %v12237 = vpack.c.bf16 %v12229, %v12229
    %v12238 = vpack.c.bf16 %v12230, %v12230
    %v12239 = vpack.c.bf16 %v12231, %v12231
    %v12240 = vld [vmem:[%s13] sm:$0xff]
    %v12241 = vld [vmem:[%s13 + $0x8] sm:$0xff]
    %v12242 = vld [vmem:[%s13 + $0x10] sm:$0xff]
    %v12243 = vld [vmem:[%s13 + $0x18] sm:$0xff]
    %v12244 = vld [vmem:[%s13 + $0x20] sm:$0xff]
    %v12245 = vld [vmem:[%s13 + $0x28] sm:$0xff]
    %v12246 = vld [vmem:[%s13 + $0x30] sm:$0xff]
    %v12247 = vld [vmem:[%s13 + $0x38] sm:$0xff]
    %v12248 = vld [vmem:[%s13 + $0x40] sm:$0xff]
    %v12249 = vld [vmem:[%s13 + $0x48] sm:$0xff]
    %v12250 = vld [vmem:[%s13 + $0x50] sm:$0xff]
    %v12251 = vld [vmem:[%s13 + $0x58] sm:$0xff]
    %v12252 = vld [vmem:[%s13 + $0x60] sm:$0xff]
    %v12253 = vld [vmem:[%s13 + $0x68] sm:$0xff]
    %v12254 = vld [vmem:[%s13 + $0x70] sm:$0xff]
    %v12255 = vld [vmem:[%s13 + $0x78] sm:$0xff]
    %v12256 = vld [vmem:[%s13 + $0x80] sm:$0xff]
    %v12257 = vld [vmem:[%s13 + $0x88] sm:$0xff]
    %v12258 = vld [vmem:[%s13 + $0x90] sm:$0xff]
    %v12259 = vld [vmem:[%s13 + $0x98] sm:$0xff]
    %v12260 = vld [vmem:[%s13 + $0xa0] sm:$0xff]
    %v12261 = vld [vmem:[%s13 + $0xa8] sm:$0xff]
    %v12262 = vld [vmem:[%s13 + $0xb0] sm:$0xff]
    %v12263 = vld [vmem:[%s13 + $0xb8] sm:$0xff]
    %v12264 = vld [vmem:[%s13 + $0xc0] sm:$0xff]
    %v12265 = vld [vmem:[%s13 + $0xc8] sm:$0xff]
    %v12266 = vld [vmem:[%s13 + $0xd0] sm:$0xff]
    %v12267 = vld [vmem:[%s13 + $0xd8] sm:$0xff]
    %v12268 = vld [vmem:[%s13 + $0xe0] sm:$0xff]
    %v12269 = vld [vmem:[%s13 + $0xe8] sm:$0xff]
    %v12270 = vld [vmem:[%s13 + $0xf0] sm:$0xff]
    %v12271 = vld [vmem:[%s13 + $0xf8] sm:$0xff]
    %v12272 = vld [vmem:[%s13 + $0x100] sm:$0xff]
    %v12273 = vld [vmem:[%s13 + $0x108] sm:$0xff]
    %v12274 = vld [vmem:[%s13 + $0x110] sm:$0xff]
    %v12275 = vld [vmem:[%s13 + $0x118] sm:$0xff]
    %v12276 = vld [vmem:[%s13 + $0x120] sm:$0xff]
    %v12277 = vld [vmem:[%s13 + $0x128] sm:$0xff]
    %v12278 = vld [vmem:[%s13 + $0x130] sm:$0xff]
    %v12279 = vld [vmem:[%s13 + $0x138] sm:$0xff]
    %v12280 = vld [vmem:[%s13 + $0x140] sm:$0xff]
    %v12281 = vld [vmem:[%s13 + $0x148] sm:$0xff]
    %v12282 = vld [vmem:[%s13 + $0x150] sm:$0xff]
    %v12283 = vld [vmem:[%s13 + $0x158] sm:$0xff]
    %v12284 = vld [vmem:[%s13 + $0x160] sm:$0xff]
    %v12285 = vld [vmem:[%s13 + $0x168] sm:$0xff]
    %v12286 = vld [vmem:[%s13 + $0x170] sm:$0xff]
    %v12287 = vld [vmem:[%s13 + $0x178] sm:$0xff]
    %v12288 = vld [vmem:[%s13 + $0x180] sm:$0xff]
    %v12289 = vld [vmem:[%s13 + $0x188] sm:$0xff]
    %v12290 = vld [vmem:[%s13 + $0x190] sm:$0xff]
    %v12291 = vld [vmem:[%s13 + $0x198] sm:$0xff]
    %v12292 = vld [vmem:[%s13 + $0x1a0] sm:$0xff]
    %v12293 = vld [vmem:[%s13 + $0x1a8] sm:$0xff]
    %v12294 = vld [vmem:[%s13 + $0x1b0] sm:$0xff]
    %v12295 = vld [vmem:[%s13 + $0x1b8] sm:$0xff]
    %v12296 = vld [vmem:[%s13 + $0x1c0] sm:$0xff]
    %v12297 = vld [vmem:[%s13 + $0x1c8] sm:$0xff]
    %v12298 = vld [vmem:[%s13 + $0x1d0] sm:$0xff]
    %v12299 = vld [vmem:[%s13 + $0x1d8] sm:$0xff]
    %v12300 = vld [vmem:[%s13 + $0x1e0] sm:$0xff]
    %v12301 = vld [vmem:[%s13 + $0x1e8] sm:$0xff]
    %v12302 = vld [vmem:[%s13 + $0x1f0] sm:$0xff]
    %v12303 = vld [vmem:[%s13 + $0x1f8] sm:$0xff]
    %v12304 = vld [vmem:[%s13 + $0x200] sm:$0xff]
    %v12305 = vld [vmem:[%s13 + $0x208] sm:$0xff]
    %v12306 = vld [vmem:[%s13 + $0x210] sm:$0xff]
    %v12307 = vld [vmem:[%s13 + $0x218] sm:$0xff]
    %v12308 = vld [vmem:[%s13 + $0x220] sm:$0xff]
    %v12309 = vld [vmem:[%s13 + $0x228] sm:$0xff]
    %v12310 = vld [vmem:[%s13 + $0x230] sm:$0xff]
    %v12311 = vld [vmem:[%s13 + $0x238] sm:$0xff]
    %v12312 = vld [vmem:[%s13 + $0x240] sm:$0xff]
    %v12313 = vld [vmem:[%s13 + $0x248] sm:$0xff]
    %v12314 = vld [vmem:[%s13 + $0x250] sm:$0xff]
    %v12315 = vld [vmem:[%s13 + $0x258] sm:$0xff]
    %v12316 = vld [vmem:[%s13 + $0x260] sm:$0xff]
    %v12317 = vld [vmem:[%s13 + $0x268] sm:$0xff]
    %v12318 = vld [vmem:[%s13 + $0x270] sm:$0xff]
    %v12319 = vld [vmem:[%s13 + $0x278] sm:$0xff]
    %v12320 = vld [vmem:[%s13 + $0x280] sm:$0xff]
    %v12321 = vld [vmem:[%s13 + $0x288] sm:$0xff]
    %v12322 = vld [vmem:[%s13 + $0x290] sm:$0xff]
    %v12323 = vld [vmem:[%s13 + $0x298] sm:$0xff]
    %v12324 = vld [vmem:[%s13 + $0x2a0] sm:$0xff]
    %v12325 = vld [vmem:[%s13 + $0x2a8] sm:$0xff]
    %v12326 = vld [vmem:[%s13 + $0x2b0] sm:$0xff]
    %v12327 = vld [vmem:[%s13 + $0x2b8] sm:$0xff]
    %v12328 = vld [vmem:[%s13 + $0x2c0] sm:$0xff]
    %v12329 = vld [vmem:[%s13 + $0x2c8] sm:$0xff]
    %v12330 = vld [vmem:[%s13 + $0x2d0] sm:$0xff]
    %v12331 = vld [vmem:[%s13 + $0x2d8] sm:$0xff]
    %v12332 = vld [vmem:[%s13 + $0x2e0] sm:$0xff]
    %v12333 = vld [vmem:[%s13 + $0x2e8] sm:$0xff]
    %v12334 = vld [vmem:[%s13 + $0x2f0] sm:$0xff]
    %v12335 = vld [vmem:[%s13 + $0x2f8] sm:$0xff]
    %v12336 = vld [vmem:[%s13 + $0x300] sm:$0xff]
    %v12337 = vld [vmem:[%s13 + $0x308] sm:$0xff]
    %v12338 = vld [vmem:[%s13 + $0x310] sm:$0xff]
    %v12339 = vld [vmem:[%s13 + $0x318] sm:$0xff]
    %v12340 = vld [vmem:[%s13 + $0x320] sm:$0xff]
    %v12341 = vld [vmem:[%s13 + $0x328] sm:$0xff]
    %v12342 = vld [vmem:[%s13 + $0x330] sm:$0xff]
    %v12343 = vld [vmem:[%s13 + $0x338] sm:$0xff]
    %v12344 = vld [vmem:[%s13 + $0x340] sm:$0xff]
    %v12345 = vld [vmem:[%s13 + $0x348] sm:$0xff]
    %v12346 = vld [vmem:[%s13 + $0x350] sm:$0xff]
    %v12347 = vld [vmem:[%s13 + $0x358] sm:$0xff]
    %v12348 = vld [vmem:[%s13 + $0x360] sm:$0xff]
    %v12349 = vld [vmem:[%s13 + $0x368] sm:$0xff]
    %v12350 = vld [vmem:[%s13 + $0x370] sm:$0xff]
    %v12351 = vld [vmem:[%s13 + $0x378] sm:$0xff]
    %v12352 = vld [vmem:[%s13 + $0x380] sm:$0xff]
    %v12353 = vld [vmem:[%s13 + $0x388] sm:$0xff]
    %v12354 = vld [vmem:[%s13 + $0x390] sm:$0xff]
    %v12355 = vld [vmem:[%s13 + $0x398] sm:$0xff]
    %v12356 = vld [vmem:[%s13 + $0x3a0] sm:$0xff]
    %v12357 = vld [vmem:[%s13 + $0x3a8] sm:$0xff]
    %v12358 = vld [vmem:[%s13 + $0x3b0] sm:$0xff]
    %v12359 = vld [vmem:[%s13 + $0x3b8] sm:$0xff]
    %v12360 = vld [vmem:[%s13 + $0x3c0] sm:$0xff]
    %v12361 = vld [vmem:[%s13 + $0x3c8] sm:$0xff]
    %v12362 = vld [vmem:[%s13 + $0x3d0] sm:$0xff]
    %v12363 = vld [vmem:[%s13 + $0x3d8] sm:$0xff]
    %v12364 = vld [vmem:[%s13 + $0x3e0] sm:$0xff]
    %v12365 = vld [vmem:[%s13 + $0x3e8] sm:$0xff]
    %v12366 = vld [vmem:[%s13 + $0x3f0] sm:$0xff]
    %v12367 = vld [vmem:[%s13 + $0x3f8] sm:$0xff]
    %v12496 = vunpack.c.l.b16 %v12240
    %v12497 = vunpack.c.h.b16 %v12240
    %v12498 = vunpack.c.l.b16 %v12241
    %v12499 = vunpack.c.h.b16 %v12241
    %v12500 = vunpack.c.l.b16 %v12242
    %v12501 = vunpack.c.h.b16 %v12242
    %v12502 = vunpack.c.l.b16 %v12243
    %v12503 = vunpack.c.h.b16 %v12243
    %v12504 = vunpack.c.l.b16 %v12244
    %v12505 = vunpack.c.h.b16 %v12244
    %v12506 = vunpack.c.l.b16 %v12245
    %v12507 = vunpack.c.h.b16 %v12245
    %v12508 = vunpack.c.l.b16 %v12246
    %v12509 = vunpack.c.h.b16 %v12246
    %v12510 = vunpack.c.l.b16 %v12247
    %v12511 = vunpack.c.h.b16 %v12247
    %v12512 = vunpack.c.l.b16 %v12248
    %v12513 = vunpack.c.h.b16 %v12248
    %v12514 = vunpack.c.l.b16 %v12249
    %v12515 = vunpack.c.h.b16 %v12249
    %v12516 = vunpack.c.l.b16 %v12250
    %v12517 = vunpack.c.h.b16 %v12250
    %v12518 = vunpack.c.l.b16 %v12251
    %v12519 = vunpack.c.h.b16 %v12251
    %v12520 = vunpack.c.l.b16 %v12252
    %v12521 = vunpack.c.h.b16 %v12252
    %v12522 = vunpack.c.l.b16 %v12253
    %v12523 = vunpack.c.h.b16 %v12253
    %v12524 = vunpack.c.l.b16 %v12254
    %v12525 = vunpack.c.h.b16 %v12254
    %v12526 = vunpack.c.l.b16 %v12255
    %v12527 = vunpack.c.h.b16 %v12255
    %v12528 = vunpack.c.l.b16 %v12256
    %v12529 = vunpack.c.h.b16 %v12256
    %v12530 = vunpack.c.l.b16 %v12257
    %v12531 = vunpack.c.h.b16 %v12257
    %v12532 = vunpack.c.l.b16 %v12258
    %v12533 = vunpack.c.h.b16 %v12258
    %v12534 = vunpack.c.l.b16 %v12259
    %v12535 = vunpack.c.h.b16 %v12259
    %v12536 = vunpack.c.l.b16 %v12260
    %v12537 = vunpack.c.h.b16 %v12260
    %v12538 = vunpack.c.l.b16 %v12261
    %v12539 = vunpack.c.h.b16 %v12261
    %v12540 = vunpack.c.l.b16 %v12262
    %v12541 = vunpack.c.h.b16 %v12262
    %v12542 = vunpack.c.l.b16 %v12263
    %v12543 = vunpack.c.h.b16 %v12263
    %v12544 = vunpack.c.l.b16 %v12264
    %v12545 = vunpack.c.h.b16 %v12264
    %v12546 = vunpack.c.l.b16 %v12265
    %v12547 = vunpack.c.h.b16 %v12265
    %v12548 = vunpack.c.l.b16 %v12266
    %v12549 = vunpack.c.h.b16 %v12266
    %v12550 = vunpack.c.l.b16 %v12267
    %v12551 = vunpack.c.h.b16 %v12267
    %v12552 = vunpack.c.l.b16 %v12268
    %v12553 = vunpack.c.h.b16 %v12268
    %v12554 = vunpack.c.l.b16 %v12269
    %v12555 = vunpack.c.h.b16 %v12269
    %v12556 = vunpack.c.l.b16 %v12270
    %v12557 = vunpack.c.h.b16 %v12270
    %v12558 = vunpack.c.l.b16 %v12271
    %v12559 = vunpack.c.h.b16 %v12271
    %v12560 = vunpack.c.l.b16 %v12272
    %v12561 = vunpack.c.h.b16 %v12272
    %v12562 = vunpack.c.l.b16 %v12273
    %v12563 = vunpack.c.h.b16 %v12273
    %v12564 = vunpack.c.l.b16 %v12274
    %v12565 = vunpack.c.h.b16 %v12274
    %v12566 = vunpack.c.l.b16 %v12275
    %v12567 = vunpack.c.h.b16 %v12275
    %v12568 = vunpack.c.l.b16 %v12276
    %v12569 = vunpack.c.h.b16 %v12276
    %v12570 = vunpack.c.l.b16 %v12277
    %v12571 = vunpack.c.h.b16 %v12277
    %v12572 = vunpack.c.l.b16 %v12278
    %v12573 = vunpack.c.h.b16 %v12278
    %v12574 = vunpack.c.l.b16 %v12279
    %v12575 = vunpack.c.h.b16 %v12279
    %v12576 = vunpack.c.l.b16 %v12280
    %v12577 = vunpack.c.h.b16 %v12280
    %v12578 = vunpack.c.l.b16 %v12281
    %v12579 = vunpack.c.h.b16 %v12281
    %v12580 = vunpack.c.l.b16 %v12282
    %v12581 = vunpack.c.h.b16 %v12282
    %v12582 = vunpack.c.l.b16 %v12283
    %v12583 = vunpack.c.h.b16 %v12283
    %v12584 = vunpack.c.l.b16 %v12284
    %v12585 = vunpack.c.h.b16 %v12284
    %v12586 = vunpack.c.l.b16 %v12285
    %v12587 = vunpack.c.h.b16 %v12285
    %v12588 = vunpack.c.l.b16 %v12286
    %v12589 = vunpack.c.h.b16 %v12286
    %v12590 = vunpack.c.l.b16 %v12287
    %v12591 = vunpack.c.h.b16 %v12287
    %v12592 = vunpack.c.l.b16 %v12288
    %v12593 = vunpack.c.h.b16 %v12288
    %v12594 = vunpack.c.l.b16 %v12289
    %v12595 = vunpack.c.h.b16 %v12289
    %v12596 = vunpack.c.l.b16 %v12290
    %v12597 = vunpack.c.h.b16 %v12290
    %v12598 = vunpack.c.l.b16 %v12291
    %v12599 = vunpack.c.h.b16 %v12291
    %v12600 = vunpack.c.l.b16 %v12292
    %v12601 = vunpack.c.h.b16 %v12292
    %v12602 = vunpack.c.l.b16 %v12293
    %v12603 = vunpack.c.h.b16 %v12293
    %v12604 = vunpack.c.l.b16 %v12294
    %v12605 = vunpack.c.h.b16 %v12294
    %v12606 = vunpack.c.l.b16 %v12295
    %v12607 = vunpack.c.h.b16 %v12295
    %v12608 = vunpack.c.l.b16 %v12296
    %v12609 = vunpack.c.h.b16 %v12296
    %v12610 = vunpack.c.l.b16 %v12297
    %v12611 = vunpack.c.h.b16 %v12297
    %v12612 = vunpack.c.l.b16 %v12298
    %v12613 = vunpack.c.h.b16 %v12298
    %v12614 = vunpack.c.l.b16 %v12299
    %v12615 = vunpack.c.h.b16 %v12299
    %v12616 = vunpack.c.l.b16 %v12300
    %v12617 = vunpack.c.h.b16 %v12300
    %v12618 = vunpack.c.l.b16 %v12301
    %v12619 = vunpack.c.h.b16 %v12301
    %v12620 = vunpack.c.l.b16 %v12302
    %v12621 = vunpack.c.h.b16 %v12302
    %v12622 = vunpack.c.l.b16 %v12303
    %v12623 = vunpack.c.h.b16 %v12303
    %v12624 = vunpack.c.l.b16 %v12304
    %v12625 = vunpack.c.h.b16 %v12304
    %v12626 = vunpack.c.l.b16 %v12305
    %v12627 = vunpack.c.h.b16 %v12305
    %v12628 = vunpack.c.l.b16 %v12306
    %v12629 = vunpack.c.h.b16 %v12306
    %v12630 = vunpack.c.l.b16 %v12307
    %v12631 = vunpack.c.h.b16 %v12307
    %v12632 = vunpack.c.l.b16 %v12308
    %v12633 = vunpack.c.h.b16 %v12308
    %v12634 = vunpack.c.l.b16 %v12309
    %v12635 = vunpack.c.h.b16 %v12309
    %v12636 = vunpack.c.l.b16 %v12310
    %v12637 = vunpack.c.h.b16 %v12310
    %v12638 = vunpack.c.l.b16 %v12311
    %v12639 = vunpack.c.h.b16 %v12311
    %v12640 = vunpack.c.l.b16 %v12312
    %v12641 = vunpack.c.h.b16 %v12312
    %v12642 = vunpack.c.l.b16 %v12313
    %v12643 = vunpack.c.h.b16 %v12313
    %v12644 = vunpack.c.l.b16 %v12314
    %v12645 = vunpack.c.h.b16 %v12314
    %v12646 = vunpack.c.l.b16 %v12315
    %v12647 = vunpack.c.h.b16 %v12315
    %v12648 = vunpack.c.l.b16 %v12316
    %v12649 = vunpack.c.h.b16 %v12316
    %v12650 = vunpack.c.l.b16 %v12317
    %v12651 = vunpack.c.h.b16 %v12317
    %v12652 = vunpack.c.l.b16 %v12318
    %v12653 = vunpack.c.h.b16 %v12318
    %v12654 = vunpack.c.l.b16 %v12319
    %v12655 = vunpack.c.h.b16 %v12319
    %v12656 = vunpack.c.l.b16 %v12320
    %v12657 = vunpack.c.h.b16 %v12320
    %v12658 = vunpack.c.l.b16 %v12321
    %v12659 = vunpack.c.h.b16 %v12321
    %v12660 = vunpack.c.l.b16 %v12322
    %v12661 = vunpack.c.h.b16 %v12322
    %v12662 = vunpack.c.l.b16 %v12323
    %v12663 = vunpack.c.h.b16 %v12323
    %v12664 = vunpack.c.l.b16 %v12324
    %v12665 = vunpack.c.h.b16 %v12324
    %v12666 = vunpack.c.l.b16 %v12325
    %v12667 = vunpack.c.h.b16 %v12325
    %v12668 = vunpack.c.l.b16 %v12326
    %v12669 = vunpack.c.h.b16 %v12326
    %v12670 = vunpack.c.l.b16 %v12327
    %v12671 = vunpack.c.h.b16 %v12327
    %v12672 = vunpack.c.l.b16 %v12328
    %v12673 = vunpack.c.h.b16 %v12328
    %v12674 = vunpack.c.l.b16 %v12329
    %v12675 = vunpack.c.h.b16 %v12329
    %v12676 = vunpack.c.l.b16 %v12330
    %v12677 = vunpack.c.h.b16 %v12330
    %v12678 = vunpack.c.l.b16 %v12331
    %v12679 = vunpack.c.h.b16 %v12331
    %v12680 = vunpack.c.l.b16 %v12332
    %v12681 = vunpack.c.h.b16 %v12332
    %v12682 = vunpack.c.l.b16 %v12333
    %v12683 = vunpack.c.h.b16 %v12333
    %v12684 = vunpack.c.l.b16 %v12334
    %v12685 = vunpack.c.h.b16 %v12334
    %v12686 = vunpack.c.l.b16 %v12335
    %v12687 = vunpack.c.h.b16 %v12335
    %v12688 = vunpack.c.l.b16 %v12336
    %v12689 = vunpack.c.h.b16 %v12336
    %v12690 = vunpack.c.l.b16 %v12337
    %v12691 = vunpack.c.h.b16 %v12337
    %v12692 = vunpack.c.l.b16 %v12338
    %v12693 = vunpack.c.h.b16 %v12338
    %v12694 = vunpack.c.l.b16 %v12339
    %v12695 = vunpack.c.h.b16 %v12339
    %v12696 = vunpack.c.l.b16 %v12340
    %v12697 = vunpack.c.h.b16 %v12340
    %v12698 = vunpack.c.l.b16 %v12341
    %v12699 = vunpack.c.h.b16 %v12341
    %v12700 = vunpack.c.l.b16 %v12342
    %v12701 = vunpack.c.h.b16 %v12342
    %v12702 = vunpack.c.l.b16 %v12343
    %v12703 = vunpack.c.h.b16 %v12343
    %v12704 = vunpack.c.l.b16 %v12344
    %v12705 = vunpack.c.h.b16 %v12344
    %v12706 = vunpack.c.l.b16 %v12345
    %v12707 = vunpack.c.h.b16 %v12345
    %v12708 = vunpack.c.l.b16 %v12346
    %v12709 = vunpack.c.h.b16 %v12346
    %v12710 = vunpack.c.l.b16 %v12347
    %v12711 = vunpack.c.h.b16 %v12347
    %v12712 = vunpack.c.l.b16 %v12348
    %v12713 = vunpack.c.h.b16 %v12348
    %v12714 = vunpack.c.l.b16 %v12349
    %v12715 = vunpack.c.h.b16 %v12349
    %v12716 = vunpack.c.l.b16 %v12350
    %v12717 = vunpack.c.h.b16 %v12350
    %v12718 = vunpack.c.l.b16 %v12351
    %v12719 = vunpack.c.h.b16 %v12351
    %v12720 = vunpack.c.l.b16 %v12352
    %v12721 = vunpack.c.h.b16 %v12352
    %v12722 = vunpack.c.l.b16 %v12353
    %v12723 = vunpack.c.h.b16 %v12353
    %v12724 = vunpack.c.l.b16 %v12354
    %v12725 = vunpack.c.h.b16 %v12354
    %v12726 = vunpack.c.l.b16 %v12355
    %v12727 = vunpack.c.h.b16 %v12355
    %v12728 = vunpack.c.l.b16 %v12356
    %v12729 = vunpack.c.h.b16 %v12356
    %v12730 = vunpack.c.l.b16 %v12357
    %v12731 = vunpack.c.h.b16 %v12357
    %v12732 = vunpack.c.l.b16 %v12358
    %v12733 = vunpack.c.h.b16 %v12358
    %v12734 = vunpack.c.l.b16 %v12359
    %v12735 = vunpack.c.h.b16 %v12359
    %v12736 = vunpack.c.l.b16 %v12360
    %v12737 = vunpack.c.h.b16 %v12360
    %v12738 = vunpack.c.l.b16 %v12361
    %v12739 = vunpack.c.h.b16 %v12361
    %v12740 = vunpack.c.l.b16 %v12362
    %v12741 = vunpack.c.h.b16 %v12362
    %v12742 = vunpack.c.l.b16 %v12363
    %v12743 = vunpack.c.h.b16 %v12363
    %v12744 = vunpack.c.l.b16 %v12364
    %v12745 = vunpack.c.h.b16 %v12364
    %v12746 = vunpack.c.l.b16 %v12365
    %v12747 = vunpack.c.h.b16 %v12365
    %v12748 = vunpack.c.l.b16 %v12366
    %v12749 = vunpack.c.h.b16 %v12366
    %v12750 = vunpack.c.l.b16 %v12367
    %v12751 = vunpack.c.h.b16 %v12367
    %v12752 = vpack.c.b16 %v12498, %v12496
    %v12753 = vpack.c.b16 %v12499, %v12497
    %v12754 = vpack.c.b16 %v12502, %v12500
    %v12755 = vpack.c.b16 %v12503, %v12501
    %v12756 = vpack.c.b16 %v12506, %v12504
    %v12757 = vpack.c.b16 %v12507, %v12505
    %v12758 = vpack.c.b16 %v12510, %v12508
    %v12759 = vpack.c.b16 %v12511, %v12509
    %v12760 = vpack.c.b16 %v12514, %v12512
    %v12761 = vpack.c.b16 %v12515, %v12513
    %v12762 = vpack.c.b16 %v12518, %v12516
    %v12763 = vpack.c.b16 %v12519, %v12517
    %v12764 = vpack.c.b16 %v12522, %v12520
    %v12765 = vpack.c.b16 %v12523, %v12521
    %v12766 = vpack.c.b16 %v12526, %v12524
    %v12767 = vpack.c.b16 %v12527, %v12525
    %v12768 = vpack.c.b16 %v12530, %v12528
    %v12769 = vpack.c.b16 %v12531, %v12529
    %v12770 = vpack.c.b16 %v12534, %v12532
    %v12771 = vpack.c.b16 %v12535, %v12533
    %v12772 = vpack.c.b16 %v12538, %v12536
    %v12773 = vpack.c.b16 %v12539, %v12537
    %v12774 = vpack.c.b16 %v12542, %v12540
    %v12775 = vpack.c.b16 %v12543, %v12541
    %v12776 = vpack.c.b16 %v12546, %v12544
    %v12777 = vpack.c.b16 %v12547, %v12545
    %v12778 = vpack.c.b16 %v12550, %v12548
    %v12779 = vpack.c.b16 %v12551, %v12549
    %v12780 = vpack.c.b16 %v12554, %v12552
    %v12781 = vpack.c.b16 %v12555, %v12553
    %v12782 = vpack.c.b16 %v12558, %v12556
    %v12783 = vpack.c.b16 %v12559, %v12557
    %v12784 = vpack.c.b16 %v12562, %v12560
    %v12785 = vpack.c.b16 %v12563, %v12561
    %v12786 = vpack.c.b16 %v12566, %v12564
    %v12787 = vpack.c.b16 %v12567, %v12565
    %v12788 = vpack.c.b16 %v12570, %v12568
    %v12789 = vpack.c.b16 %v12571, %v12569
    %v12790 = vpack.c.b16 %v12574, %v12572
    %v12791 = vpack.c.b16 %v12575, %v12573
    %v12792 = vpack.c.b16 %v12578, %v12576
    %v12793 = vpack.c.b16 %v12579, %v12577
    %v12794 = vpack.c.b16 %v12582, %v12580
    %v12795 = vpack.c.b16 %v12583, %v12581
    %v12796 = vpack.c.b16 %v12586, %v12584
    %v12797 = vpack.c.b16 %v12587, %v12585
    %v12798 = vpack.c.b16 %v12590, %v12588
    %v12799 = vpack.c.b16 %v12591, %v12589
    %v12800 = vpack.c.b16 %v12594, %v12592
    %v12801 = vpack.c.b16 %v12595, %v12593
    %v12802 = vpack.c.b16 %v12598, %v12596
    %v12803 = vpack.c.b16 %v12599, %v12597
    %v12804 = vpack.c.b16 %v12602, %v12600
    %v12805 = vpack.c.b16 %v12603, %v12601
    %v12806 = vpack.c.b16 %v12606, %v12604
    %v12807 = vpack.c.b16 %v12607, %v12605
    %v12808 = vpack.c.b16 %v12610, %v12608
    %v12809 = vpack.c.b16 %v12611, %v12609
    %v12810 = vpack.c.b16 %v12614, %v12612
    %v12811 = vpack.c.b16 %v12615, %v12613
    %v12812 = vpack.c.b16 %v12618, %v12616
    %v12813 = vpack.c.b16 %v12619, %v12617
    %v12814 = vpack.c.b16 %v12622, %v12620
    %v12815 = vpack.c.b16 %v12623, %v12621
    %v12816 = vpack.c.b16 %v12626, %v12624
    %v12817 = vpack.c.b16 %v12627, %v12625
    %v12818 = vpack.c.b16 %v12630, %v12628
    %v12819 = vpack.c.b16 %v12631, %v12629
    %v12820 = vpack.c.b16 %v12634, %v12632
    %v12821 = vpack.c.b16 %v12635, %v12633
    %v12822 = vpack.c.b16 %v12638, %v12636
    %v12823 = vpack.c.b16 %v12639, %v12637
    %v12824 = vpack.c.b16 %v12642, %v12640
    %v12825 = vpack.c.b16 %v12643, %v12641
    %v12826 = vpack.c.b16 %v12646, %v12644
    %v12827 = vpack.c.b16 %v12647, %v12645
    %v12828 = vpack.c.b16 %v12650, %v12648
    %v12829 = vpack.c.b16 %v12651, %v12649
    %v12830 = vpack.c.b16 %v12654, %v12652
    %v12831 = vpack.c.b16 %v12655, %v12653
    %v12832 = vpack.c.b16 %v12658, %v12656
    %v12833 = vpack.c.b16 %v12659, %v12657
    %v12834 = vpack.c.b16 %v12662, %v12660
    %v12835 = vpack.c.b16 %v12663, %v12661
    %v12836 = vpack.c.b16 %v12666, %v12664
    %v12837 = vpack.c.b16 %v12667, %v12665
    %v12838 = vpack.c.b16 %v12670, %v12668
    %v12839 = vpack.c.b16 %v12671, %v12669
    %v12840 = vpack.c.b16 %v12674, %v12672
    %v12841 = vpack.c.b16 %v12675, %v12673
    %v12842 = vpack.c.b16 %v12678, %v12676
    %v12843 = vpack.c.b16 %v12679, %v12677
    %v12844 = vpack.c.b16 %v12682, %v12680
    %v12845 = vpack.c.b16 %v12683, %v12681
    %v12846 = vpack.c.b16 %v12686, %v12684
    %v12847 = vpack.c.b16 %v12687, %v12685
    %v12848 = vpack.c.b16 %v12690, %v12688
    %v12849 = vpack.c.b16 %v12691, %v12689
    %v12850 = vpack.c.b16 %v12694, %v12692
    %v12851 = vpack.c.b16 %v12695, %v12693
    %v12852 = vpack.c.b16 %v12698, %v12696
    %v12853 = vpack.c.b16 %v12699, %v12697
    %v12854 = vpack.c.b16 %v12702, %v12700
    %v12855 = vpack.c.b16 %v12703, %v12701
    %v12856 = vpack.c.b16 %v12706, %v12704
    %v12857 = vpack.c.b16 %v12707, %v12705
    %v12858 = vpack.c.b16 %v12710, %v12708
    %v12859 = vpack.c.b16 %v12711, %v12709
    %v12860 = vpack.c.b16 %v12714, %v12712
    %v12861 = vpack.c.b16 %v12715, %v12713
    %v12862 = vpack.c.b16 %v12718, %v12716
    %v12863 = vpack.c.b16 %v12719, %v12717
    %v12864 = vpack.c.b16 %v12722, %v12720
    %v12865 = vpack.c.b16 %v12723, %v12721
    %v12866 = vpack.c.b16 %v12726, %v12724
    %v12867 = vpack.c.b16 %v12727, %v12725
    %v12868 = vpack.c.b16 %v12730, %v12728
    %v12869 = vpack.c.b16 %v12731, %v12729
    %v12870 = vpack.c.b16 %v12734, %v12732
    %v12871 = vpack.c.b16 %v12735, %v12733
    %v12872 = vpack.c.b16 %v12738, %v12736
    %v12873 = vpack.c.b16 %v12739, %v12737
    %v12874 = vpack.c.b16 %v12742, %v12740
    %v12875 = vpack.c.b16 %v12743, %v12741
    %v12876 = vpack.c.b16 %v12746, %v12744
    %v12877 = vpack.c.b16 %v12747, %v12745
    %v12878 = vpack.c.b16 %v12750, %v12748
    %v12879 = vpack.c.b16 %v12751, %v12749
    %13008 = vmatprep.subr.bf16.mxu0 %v12753
    %13009 = vmatpush1.bf16.msra.mxu0 %v12752
    %13010 = vmatprep.subr.bf16.mxu0 %v12755
    %13011 = vmatpush1.bf16.msra.mxu0 %v12754
    %13012 = vmatprep.subr.bf16.mxu0 %v12757
    %13013 = vmatpush1.bf16.msra.mxu0 %v12756
    %13014 = vmatprep.subr.bf16.mxu0 %v12759
    %13015 = vmatpush1.bf16.msra.mxu0 %v12758
    %13016 = vmatprep.subr.bf16.mxu0 %v12761
    %13017 = vmatpush1.bf16.msra.mxu0 %v12760
    %13018 = vmatprep.subr.bf16.mxu0 %v12763
    %13019 = vmatpush1.bf16.msra.mxu0 %v12762
    %13020 = vmatprep.subr.bf16.mxu0 %v12765
    %13021 = vmatpush1.bf16.msra.mxu0 %v12764
    %13022 = vmatprep.subr.bf16.mxu0 %v12767
    %13023 = vmatpush1.bf16.msra.mxu0 %v12766
    %13024 = vmatprep.subr.bf16.mxu0 %v12769
    %13025 = vmatpush1.bf16.msra.mxu0 %v12768
    %13026 = vmatprep.subr.bf16.mxu0 %v12771
    %13027 = vmatpush1.bf16.msra.mxu0 %v12770
    %13028 = vmatprep.subr.bf16.mxu0 %v12773
    %13029 = vmatpush1.bf16.msra.mxu0 %v12772
    %13030 = vmatprep.subr.bf16.mxu0 %v12775
    %13031 = vmatpush1.bf16.msra.mxu0 %v12774
    %13032 = vmatprep.subr.bf16.mxu0 %v12777
    %13033 = vmatpush1.bf16.msra.mxu0 %v12776
    %13034 = vmatprep.subr.bf16.mxu0 %v12779
    %13035 = vmatpush1.bf16.msra.mxu0 %v12778
    %13036 = vmatprep.subr.bf16.mxu0 %v12781
    %13037 = vmatpush1.bf16.msra.mxu0 %v12780
    %13038 = vmatprep.subr.bf16.mxu0 %v12783
    %13039 = vmatpush1.bf16.msra.mxu0 %v12782
    %13040 = vmatprep.mubr.bf16.mxu0 %v12233
    %13041 = vmatmul.mubr.bf16.gmra.mrb[0].mxu0 %v12232
    %v13042 = vpop.f32.mrb[0].mxu0
    %v13043 = vadd.f32 0.0, %v13042
    %v13044 = vpop.f32.mrb[0].mxu0
    %v13045 = vadd.f32 0.0, %v13044
    %v13046 = vpop.f32.mrb[0].mxu0
    %v13047 = vpop.f32.mrb[0].mxu0
    %13048 = vdwg.mxu0
    %13049 = vmatprep.subr.bf16.mxu0 %v12785
    %13050 = vmatpush1.bf16.msra.mxu0 %v12784
    %13051 = vmatprep.subr.bf16.mxu0 %v12787
    %13052 = vmatpush1.bf16.msra.mxu0 %v12786
    %13053 = vmatprep.subr.bf16.mxu0 %v12789
    %13054 = vmatpush1.bf16.msra.mxu0 %v12788
    %13055 = vmatprep.subr.bf16.mxu0 %v12791
    %13056 = vmatpush1.bf16.msra.mxu0 %v12790
    %13057 = vmatprep.subr.bf16.mxu0 %v12793
    %13058 = vmatpush1.bf16.msra.mxu0 %v12792
    %13059 = vmatprep.subr.bf16.mxu0 %v12795
    %13060 = vmatpush1.bf16.msra.mxu0 %v12794
    %13061 = vmatprep.subr.bf16.mxu0 %v12797
    %13062 = vmatpush1.bf16.msra.mxu0 %v12796
    %13063 = vmatprep.subr.bf16.mxu0 %v12799
    %13064 = vmatpush1.bf16.msra.mxu0 %v12798
    %13065 = vmatprep.subr.bf16.mxu0 %v12801
    %13066 = vmatpush1.bf16.msra.mxu0 %v12800
    %13067 = vmatprep.subr.bf16.mxu0 %v12803
    %13068 = vmatpush1.bf16.msra.mxu0 %v12802
    %13069 = vmatprep.subr.bf16.mxu0 %v12805
    %13070 = vmatpush1.bf16.msra.mxu0 %v12804
    %13071 = vmatprep.subr.bf16.mxu0 %v12807
    %13072 = vmatpush1.bf16.msra.mxu0 %v12806
    %13073 = vmatprep.subr.bf16.mxu0 %v12809
    %13074 = vmatpush1.bf16.msra.mxu0 %v12808
    %13075 = vmatprep.subr.bf16.mxu0 %v12811
    %13076 = vmatpush1.bf16.msra.mxu0 %v12810
    %13077 = vmatprep.subr.bf16.mxu0 %v12813
    %13078 = vmatpush1.bf16.msra.mxu0 %v12812
    %13079 = vmatprep.subr.bf16.mxu0 %v12815
    %13080 = vmatpush1.bf16.msra.mxu0 %v12814
    %13081 = vmatprep.mubr.bf16.mxu0 %v12235
    %13082 = vmatmul.mubr.bf16.gmra.mrb[0].mxu0 %v12234
    %v13083 = vpop.f32.mrb[0].mxu0
    %v13084 = vadd.f32 %v13043, %v13083
    %v13085 = vpop.f32.mrb[0].mxu0
    %v13086 = vadd.f32 %v13045, %v13085
    %v13087 = vpop.f32.mrb[0].mxu0
    %v13088 = vpop.f32.mrb[0].mxu0
    %13089 = vdwg.mxu0
    %13090 = vmatprep.subr.bf16.mxu0 %v12817
    %13091 = vmatpush1.bf16.msra.mxu0 %v12816
    %13092 = vmatprep.subr.bf16.mxu0 %v12819
    %13093 = vmatpush1.bf16.msra.mxu0 %v12818
    %13094 = vmatprep.subr.bf16.mxu0 %v12821
    %13095 = vmatpush1.bf16.msra.mxu0 %v12820
    %13096 = vmatprep.subr.bf16.mxu0 %v12823
    %13097 = vmatpush1.bf16.msra.mxu0 %v12822
    %13098 = vmatprep.subr.bf16.mxu0 %v12825
    %13099 = vmatpush1.bf16.msra.mxu0 %v12824
    %13100 = vmatprep.subr.bf16.mxu0 %v12827
    %13101 = vmatpush1.bf16.msra.mxu0 %v12826
    %13102 = vmatprep.subr.bf16.mxu0 %v12829
    %13103 = vmatpush1.bf16.msra.mxu0 %v12828
    %13104 = vmatprep.subr.bf16.mxu0 %v12831
    %13105 = vmatpush1.bf16.msra.mxu0 %v12830
    %13106 = vmatprep.subr.bf16.mxu0 %v12833
    %13107 = vmatpush1.bf16.msra.mxu0 %v12832
    %13108 = vmatprep.subr.bf16.mxu0 %v12835
    %13109 = vmatpush1.bf16.msra.mxu0 %v12834
    %13110 = vmatprep.subr.bf16.mxu0 %v12837
    %13111 = vmatpush1.bf16.msra.mxu0 %v12836
    %13112 = vmatprep.subr.bf16.mxu0 %v12839
    %13113 = vmatpush1.bf16.msra.mxu0 %v12838
    %13114 = vmatprep.subr.bf16.mxu0 %v12841
    %13115 = vmatpush1.bf16.msra.mxu0 %v12840
    %13116 = vmatprep.subr.bf16.mxu0 %v12843
    %13117 = vmatpush1.bf16.msra.mxu0 %v12842
    %13118 = vmatprep.subr.bf16.mxu0 %v12845
    %13119 = vmatpush1.bf16.msra.mxu0 %v12844
    %13120 = vmatprep.subr.bf16.mxu0 %v12847
    %13121 = vmatpush1.bf16.msra.mxu0 %v12846
    %13122 = vmatprep.mubr.bf16.mxu0 %v12237
    %13123 = vmatmul.mubr.bf16.gmra.mrb[0].mxu0 %v12236
    %v13124 = vpop.f32.mrb[0].mxu0
    %v13125 = vadd.f32 %v13084, %v13124
    %v13126 = vpop.f32.mrb[0].mxu0
    %v13127 = vadd.f32 %v13086, %v13126
    %v13128 = vpop.f32.mrb[0].mxu0
    %v13129 = vpop.f32.mrb[0].mxu0
    %13130 = vdwg.mxu0
    %13131 = vmatprep.subr.bf16.mxu0 %v12849
    %13132 = vmatpush1.bf16.msra.mxu0 %v12848
    %13133 = vmatprep.subr.bf16.mxu0 %v12851
    %13134 = vmatpush1.bf16.msra.mxu0 %v12850
    %13135 = vmatprep.subr.bf16.mxu0 %v12853
    %13136 = vmatpush1.bf16.msra.mxu0 %v12852
    %13137 = vmatprep.subr.bf16.mxu0 %v12855
    %13138 = vmatpush1.bf16.msra.mxu0 %v12854
    %13139 = vmatprep.subr.bf16.mxu0 %v12857
    %13140 = vmatpush1.bf16.msra.mxu0 %v12856
    %13141 = vmatprep.subr.bf16.mxu0 %v12859
    %13142 = vmatpush1.bf16.msra.mxu0 %v12858
    %13143 = vmatprep.subr.bf16.mxu0 %v12861
    %13144 = vmatpush1.bf16.msra.mxu0 %v12860
    %13145 = vmatprep.subr.bf16.mxu0 %v12863
    %13146 = vmatpush1.bf16.msra.mxu0 %v12862
    %13147 = vmatprep.subr.bf16.mxu0 %v12865
    %13148 = vmatpush1.bf16.msra.mxu0 %v12864
    %13149 = vmatprep.subr.bf16.mxu0 %v12867
    %13150 = vmatpush1.bf16.msra.mxu0 %v12866
    %13151 = vmatprep.subr.bf16.mxu0 %v12869
    %13152 = vmatpush1.bf16.msra.mxu0 %v12868
    %13153 = vmatprep.subr.bf16.mxu0 %v12871
    %13154 = vmatpush1.bf16.msra.mxu0 %v12870
    %13155 = vmatprep.subr.bf16.mxu0 %v12873
    %13156 = vmatpush1.bf16.msra.mxu0 %v12872
    %13157 = vmatprep.subr.bf16.mxu0 %v12875
    %13158 = vmatpush1.bf16.msra.mxu0 %v12874
    %13159 = vmatprep.subr.bf16.mxu0 %v12877
    %13160 = vmatpush1.bf16.msra.mxu0 %v12876
    %13161 = vmatprep.subr.bf16.mxu0 %v12879
    %13162 = vmatpush1.bf16.msra.mxu0 %v12878
    %13163 = vmatprep.mubr.bf16.mxu0 %v12239
    %13164 = vmatmul.mubr.bf16.gmra.mrb[0].mxu0 %v12238
    %v13165 = vpop.f32.mrb[0].mxu0
    %v13166 = vadd.f32 %v13125, %v13165
    %v13167 = vpop.f32.mrb[0].mxu0
    %v13168 = vadd.f32 %v13127, %v13167
    %v13169 = vpop.f32.mrb[0].mxu0
    %v13170 = vpop.f32.mrb[0].mxu0
    %13171 = vdwg.mxu0
    %v13172 = vld [vmem:[%s14] sm:$0x3]
    %v13173 = vld [vmem:[%s15] sm:$0x3]
    %v13174 = vsel %vm9412, %v13166, 0.0
    %v13175 = vrot.slane %v13174, 4
    %v13176 = vadd.f32 %v13174, %v13175
    %v13177 = vrot.slane %v13176, 2
    %v13178 = vadd.f32 %v13176, %v13177
    %v13179 = vrot.slane %v13178, 1
    %v13180 = vadd.f32 %v13178, %v13179
    %v13181 = vsel %vm9412, %v13168, 0.0
    %v13182 = vrot.slane %v13181, 4
    %v13183 = vadd.f32 %v13181, %v13182
    %v13184 = vrot.slane %v13183, 2
    %v13185 = vadd.f32 %v13183, %v13184
    %v13186 = vrot.slane %v13185, 1
    %v13187 = vadd.f32 %v13185, %v13186
    %v13188 = vmul.f32 %v13166, %v13166
    %v13189 = vmul.f32 %v13168, %v13168
    %v13190 = vsel %vm9412, %v13188, 0.0
    %v13191 = vrot.slane %v13190, 4
    %v13192 = vadd.f32 %v13190, %v13191
    %v13193 = vrot.slane %v13192, 2
    %v13194 = vadd.f32 %v13192, %v13193
    %v13195 = vrot.slane %v13194, 1
    %v13196 = vadd.f32 %v13194, %v13195
    %v13197 = vsel %vm9412, %v13189, 0.0
    %v13198 = vrot.slane %v13197, 4
    %v13199 = vadd.f32 %v13197, %v13198
    %v13200 = vrot.slane %v13199, 2
    %v13201 = vadd.f32 %v13199, %v13200
    %v13202 = vrot.slane %v13201, 1
    %v13203 = vadd.f32 %v13201, %v13202
    %v13204 = vmul.f32 %v13180, 0.5
    %v13205 = vmul.f32 %v13187, 0.5
    %v13206 = vmul.f32 %v13196, 0.5
    %v13207 = vmul.f32 %v13203, 0.5
    %v13208 = vmul.f32 %v13204, %v13204
    %v13209 = vmul.f32 %v13205, %v13205
    %v13210 = vsub.f32 %v13206, %v13208
    %v13211 = vsub.f32 %v13207, %v13209
    %v13212 = vsub.f32 %v13166, %v13204
    %v13213 = vsub.f32 %v13168, %v13205
    %v13214 = vadd.f32 %v13210, 1e-05
    %v13215 = vadd.f32 %v13211, 1e-05
    %v13216 = vrsqrt.pop %v13214
    %v13217 = vrsqrt.pop %v13215
    %v13218 = vmul.f32 %v13212, %v13216
    %v13219 = vmul.f32 %v13213, %v13217
    %v13221 = vlaneseq
    %v13222 = vshrl.u32 %v13221, 7
    %v13223 = vsub.s32 0, %v13222
    %v13224 = vrot.slane %v13172, %v13223
    %v13225 = vlaneseq
    %v13226 = vshrl.u32 %v13225, 7
    %v13227 = vsub.s32 1, %v13226
    %v13228 = vrot.slane %v13172, %v13227
    %v13231 = vmul.f32 %v13218, %v13224
    %v13232 = vmul.f32 %v13219, %v13228
    %v13234 = vlaneseq
    %v13235 = vshrl.u32 %v13234, 7
    %v13236 = vsub.s32 0, %v13235
    %v13237 = vrot.slane %v13173, %v13236
    %v13238 = vlaneseq
    %v13239 = vshrl.u32 %v13238, 7
    %v13240 = vsub.s32 1, %v13239
    %v13241 = vrot.slane %v13173, %v13240
    %v13244 = vadd.f32 %v13231, %v13237
    %v13245 = vadd.f32 %v13232, %v13241
    %vm13246 = vcmp.ge.f32.partialorder %v13244, 0.0
    %vm13247 = vcmp.ge.f32.partialorder %v13245, 0.0
    %v13248 = vmul.f32 %v13244, 0.01
    %v13249 = vmul.f32 %v13245, 0.01
    %v13250 = vsel %vm13246, %v13244, %v13248
    %v13251 = vsel %vm13247, %v13245, %v13249
    %v13252 = vpack.c.bf16 %v13250, %v13250
    %v13253 = vpack.c.bf16 %v13251, %v13251
    %v13254 = vld [vmem:[%s16] sm:$0xf]
    %v13255 = vld [vmem:[%s16 + $0x4] sm:$0xf]
    %v13256 = vld [vmem:[%s16 + $0x8] sm:$0xf]
    %v13257 = vld [vmem:[%s16 + $0xc] sm:$0xf]
    %v13258 = vld [vmem:[%s16 + $0x10] sm:$0xf]
    %v13259 = vld [vmem:[%s16 + $0x14] sm:$0xf]
    %v13260 = vld [vmem:[%s16 + $0x18] sm:$0xf]
    %v13261 = vld [vmem:[%s16 + $0x1c] sm:$0xf]
    %v13262 = vld [vmem:[%s16 + $0x20] sm:$0xf]
    %v13263 = vld [vmem:[%s16 + $0x24] sm:$0xf]
    %v13264 = vld [vmem:[%s16 + $0x28] sm:$0xf]
    %v13265 = vld [vmem:[%s16 + $0x2c] sm:$0xf]
    %v13266 = vld [vmem:[%s16 + $0x30] sm:$0xf]
    %v13267 = vld [vmem:[%s16 + $0x34] sm:$0xf]
    %v13268 = vld [vmem:[%s16 + $0x38] sm:$0xf]
    %v13269 = vld [vmem:[%s16 + $0x3c] sm:$0xf]
    %v13270 = vld [vmem:[%s16 + $0x40] sm:$0xf]
    %v13271 = vld [vmem:[%s16 + $0x44] sm:$0xf]
    %v13272 = vld [vmem:[%s16 + $0x48] sm:$0xf]
    %v13273 = vld [vmem:[%s16 + $0x4c] sm:$0xf]
    %v13274 = vld [vmem:[%s16 + $0x50] sm:$0xf]
    %v13275 = vld [vmem:[%s16 + $0x54] sm:$0xf]
    %v13276 = vld [vmem:[%s16 + $0x58] sm:$0xf]
    %v13277 = vld [vmem:[%s16 + $0x5c] sm:$0xf]
    %v13278 = vld [vmem:[%s16 + $0x60] sm:$0xf]
    %v13279 = vld [vmem:[%s16 + $0x64] sm:$0xf]
    %v13280 = vld [vmem:[%s16 + $0x68] sm:$0xf]
    %v13281 = vld [vmem:[%s16 + $0x6c] sm:$0xf]
    %v13282 = vld [vmem:[%s16 + $0x70] sm:$0xf]
    %v13283 = vld [vmem:[%s16 + $0x74] sm:$0xf]
    %v13284 = vld [vmem:[%s16 + $0x78] sm:$0xf]
    %v13285 = vld [vmem:[%s16 + $0x7c] sm:$0xf]
    %v13286 = vld [vmem:[%s17] sm:$0x1]
    %v13288 = vlaneseq
    %v13289 = vshrl.u32 %v13288, 7
    %v13290 = vsub.s32 0, %v13289
    %v13291 = vrot.slane %v13286, %v13290
    %v13325 = vunpack.c.l.b16 %v13254
    %v13326 = vunpack.c.l.b16 %v13255
    %v13327 = vunpack.c.l.b16 %v13256
    %v13328 = vunpack.c.l.b16 %v13257
    %v13329 = vunpack.c.l.b16 %v13258
    %v13330 = vunpack.c.l.b16 %v13259
    %v13331 = vunpack.c.l.b16 %v13260
    %v13332 = vunpack.c.l.b16 %v13261
    %v13333 = vunpack.c.l.b16 %v13262
    %v13334 = vunpack.c.l.b16 %v13263
    %v13335 = vunpack.c.l.b16 %v13264
    %v13336 = vunpack.c.l.b16 %v13265
    %v13337 = vunpack.c.l.b16 %v13266
    %v13338 = vunpack.c.l.b16 %v13267
    %v13339 = vunpack.c.l.b16 %v13268
    %v13340 = vunpack.c.l.b16 %v13269
    %v13341 = vunpack.c.l.b16 %v13270
    %v13342 = vunpack.c.l.b16 %v13271
    %v13343 = vunpack.c.l.b16 %v13272
    %v13344 = vunpack.c.l.b16 %v13273
    %v13345 = vunpack.c.l.b16 %v13274
    %v13346 = vunpack.c.l.b16 %v13275
    %v13347 = vunpack.c.l.b16 %v13276
    %v13348 = vunpack.c.l.b16 %v13277
    %v13349 = vunpack.c.l.b16 %v13278
    %v13350 = vunpack.c.l.b16 %v13279
    %v13351 = vunpack.c.l.b16 %v13280
    %v13352 = vunpack.c.l.b16 %v13281
    %v13353 = vunpack.c.l.b16 %v13282
    %v13354 = vunpack.c.l.b16 %v13283
    %v13355 = vunpack.c.l.b16 %v13284
    %v13356 = vunpack.c.l.b16 %v13285
    %v13357 = vpack.c.b16 %v13326, %v13325
    %v13358 = vpack.c.b16 %v13328, %v13327
    %v13359 = vpack.c.b16 %v13330, %v13329
    %v13360 = vpack.c.b16 %v13332, %v13331
    %v13361 = vpack.c.b16 %v13334, %v13333
    %v13362 = vpack.c.b16 %v13336, %v13335
    %v13363 = vpack.c.b16 %v13338, %v13337
    %v13364 = vpack.c.b16 %v13340, %v13339
    %v13365 = vpack.c.b16 %v13342, %v13341
    %v13366 = vpack.c.b16 %v13344, %v13343
    %v13367 = vpack.c.b16 %v13346, %v13345
    %v13368 = vpack.c.b16 %v13348, %v13347
    %v13369 = vpack.c.b16 %v13350, %v13349
    %v13370 = vpack.c.b16 %v13352, %v13351
    %v13371 = vpack.c.b16 %v13354, %v13353
    %v13372 = vpack.c.b16 %v13356, %v13355
    %13389 = vmatprep.subr.bf16.mxu0 0
    %13390 = vmatpush1.bf16.msra.mxu0 %v13357
    %13391 = vmatprep.subr.bf16.mxu0 0
    %13392 = vmatpush1.bf16.msra.mxu0 %v13358
    %13393 = vmatprep.subr.bf16.mxu0 0
    %13394 = vmatpush1.bf16.msra.mxu0 %v13359
    %13395 = vmatprep.subr.bf16.mxu0 0
    %13396 = vmatpush1.bf16.msra.mxu0 %v13360
    %13397 = vmatprep.subr.bf16.mxu0 0
    %13398 = vmatpush1.bf16.msra.mxu0 %v13361
    %13399 = vmatprep.subr.bf16.mxu0 0
    %13400 = vmatpush1.bf16.msra.mxu0 %v13362
    %13401 = vmatprep.subr.bf16.mxu0 0
    %13402 = vmatpush1.bf16.msra.mxu0 %v13363
    %13403 = vmatprep.subr.bf16.mxu0 0
    %13404 = vmatpush1.bf16.msra.mxu0 %v13364
    %13405 = vmatprep.subr.bf16.mxu0 0
    %13406 = vmatpush1.bf16.msra.mxu0 %v13365
    %13407 = vmatprep.subr.bf16.mxu0 0
    %13408 = vmatpush1.bf16.msra.mxu0 %v13366
    %13409 = vmatprep.subr.bf16.mxu0 0
    %13410 = vmatpush1.bf16.msra.mxu0 %v13367
    %13411 = vmatprep.subr.bf16.mxu0 0
    %13412 = vmatpush1.bf16.msra.mxu0 %v13368
    %13413 = vmatprep.subr.bf16.mxu0 0
    %13414 = vmatpush1.bf16.msra.mxu0 %v13369
    %13415 = vmatprep.subr.bf16.mxu0 0
    %13416 = vmatpush1.bf16.msra.mxu0 %v13370
    %13417 = vmatprep.subr.bf16.mxu0 0
    %13418 = vmatpush1.bf16.msra.mxu0 %v13371
    %13419 = vmatprep.subr.bf16.mxu0 0
    %13420 = vmatpush1.bf16.msra.mxu0 %v13372
    %13421 = vmatprep.mubr.bf16.mxu0 %v13253
    %13422 = vmatmul.mubr.bf16.gmra.mrb[0].mxu0 %v13252
    %v13423 = vpop.f32.mrb[0].mxu0
    %v13424 = vadd.f32 %v13291, %v13423
    %v13425 = vpop.f32.mrb[0].mxu0
    %v13426 = vpop.f32.mrb[0].mxu0
    %v13427 = vpop.f32.mrb[0].mxu0
    %13428 = vdwg.mxu0
    %v13429 = vsub.f32 0.0, %v13424
    %v13430 = vmul.f32 %v13429, 1.442695
    %v13431 = vpow.pop %v13430
    %v13432 = vadd.f32 %v13431, 1.0
    %v13433 = vrcp.pop %v13432
    %v13434 = vmul.f32 1.0, %v13433
    %vm13435 = vcmask 58368
    %13436 = vst.msk [vmem:[#allocation2] sm:$0x3] %vm13435, %v13434
    // Predicated region
    $region74: #{hpc_cnn_forward.1} parent=1 // pred_check
      _
    $region75: #{hpc_cnn_forward.1} parent=1 // pred_check_branch
      %13438 = sbr.rel (0) target = $region77
    $region76: #{hpc_cnn_forward.1} parent=1 // pred_region
      %s13440 = ssub.s32 32, 32
      %13441 = vsyncadd [#allocation3], %s13440
      %s13443 = sshll.u32 [#allocation2], 4
      %s13444 = int_to_ptr.vmem [resolvable:$true] %s13443
      %13446 = dma.vmem_to_hbm [thread:$0]  %s13444, 32, %s18, [#allocation3]
    $region77: #{hpc_cnn_forward.1} parent=1 // pred_fallthru
      _
    // Predicated region
    $region78: #{hpc_cnn_forward.1} parent=1 // pred_check
      _
    $region79: #{hpc_cnn_forward.1} parent=1 // pred_check_branch
      %13448 = sbr.rel (0) target = $region81
    $region80: #{hpc_cnn_forward.1} parent=1 // pred_region
      %13449 = dma.done [#allocation3], 32
    $region81: #{hpc_cnn_forward.1} parent=1 // pred_fallthru
      _
    %13450 = vsyncpa [#allocation3], 1

</llo_original>
